<compile_context>
chip_gen: v6e
topology: v6e:2x2x1
jax: 0.10.0
libtpu: 0.0.40
codegen_flags: <defaults>
</compile_context>

<pallas_src>
import jax
import jax.numpy as jnp
from jax import lax
from jax.experimental import pallas as pl
from jax.experimental.pallas import tpu as pltpu

VMEM_SPEC = pl.BlockSpec(memory_space=pltpu.MemorySpace.VMEM)
VMEM_LIMIT = 32 * 1024 * 1024


# --------------------------------------------------------------------------
# Shared bidirectional LSTM recurrence over pre-projected gates.
#   gx_scr : [L, N, 8H]  x-projection (+bias); lanes 0:4H fwd, 4H:8H reverse
#   whh_ref: [2H, 8H]    block-diagonal recurrent weights (fwd | rev)
#   out_ref: [L, N, 2H]  lanes 0:H forward, H:2H reverse (original time order)
#   h_scr / c_scr: [N, 2H]  hidden / cell state (fwd lanes | rev lanes)
# Gate order follows PyTorch: i, f, g, o.
# --------------------------------------------------------------------------
def _lstm_recurrence(gx_scr, whh_ref, out_ref, h_scr, c_scr, H):
    L = gx_scr.shape[0]
    H4 = 4 * H

    h_scr[...] = jnp.zeros(h_scr.shape, h_scr.dtype)
    c_scr[...] = jnp.zeros(c_scr.shape, c_scr.dtype)

    def gates_to_hc(gates, c):
        i = jax.nn.sigmoid(gates[:, 0 * H:1 * H])
        f = jax.nn.sigmoid(gates[:, 1 * H:2 * H])
        g = jnp.tanh(gates[:, 2 * H:3 * H])
        o = jax.nn.sigmoid(gates[:, 3 * H:4 * H])
        c_new = f * c + i * g
        h_new = o * jnp.tanh(c_new)
        return h_new, c_new

    # Fully unrolled time loop (L is a compile-time constant): all indices are
    # static, and the independent fwd/rev gate math can overlap the single
    # per-step recurrence matmul.
    for t in range(L):
        rt = L - 1 - t
        rec = jnp.dot(h_scr[...], whh_ref[...],
                      preferred_element_type=jnp.float32)        # [N, 8H]
        gates_f = gx_scr[t][:, 0:H4] + rec[:, 0:H4]
        gates_r = gx_scr[rt][:, H4:2 * H4] + rec[:, H4:2 * H4]
        h_f, c_f = gates_to_hc(gates_f, c_scr[:, 0:H])
        h_r, c_r = gates_to_hc(gates_r, c_scr[:, H:2 * H])
        h_scr[:, 0:H] = h_f
        h_scr[:, H:2 * H] = h_r
        c_scr[:, 0:H] = c_f
        c_scr[:, H:2 * H] = c_r
        out_ref[t, :, 0:H] = h_f
        out_ref[rt, :, H:2 * H] = h_r


# --------------------------------------------------------------------------
# BiLSTM layer 1 (shared weights for both sequences, stacked along rows).
# --------------------------------------------------------------------------
def _bilstm1_kernel(x_ref, wih_ref, whh_ref, b_ref, out_ref,
                    gx_scr, h_scr, c_scr):
    L, N, Din = x_ref.shape
    G = wih_ref.shape[1]                    # 8 * hidden (fwd 4H | rev 4H)
    H = G // 8
    # Hoisted input projection: one big MXU matmul for all steps/rows/dirs.
    x2d = x_ref[...].reshape(L * N, Din)
    gx = jnp.dot(x2d, wih_ref[...], preferred_element_type=jnp.float32) + b_ref[...]
    gx_scr[...] = gx.reshape(L, N, G)
    _lstm_recurrence(gx_scr, whh_ref, out_ref, h_scr, c_scr, H)


def bilstm1_call(x_lnd, lstm_params):
    wih_cat, whh_bd, bias = lstm_params
    L, N, _ = x_lnd.shape
    G = wih_cat.shape[1]
    H = G // 8
    return pl.pallas_call(
        _bilstm1_kernel,
        out_shape=jax.ShapeDtypeStruct((L, N, 2 * H), jnp.float32),
        in_specs=[VMEM_SPEC] * 4,
        out_specs=VMEM_SPEC,
        scratch_shapes=[pltpu.VMEM((L, N, G), jnp.float32),
                        pltpu.VMEM((N, 2 * H), jnp.float32),
                        pltpu.VMEM((N, 2 * H), jnp.float32)],
        compiler_params=pltpu.CompilerParams(vmem_limit_bytes=VMEM_LIMIT),
    )(x_lnd, wih_cat, whh_bd, bias)


# --------------------------------------------------------------------------
# BiLSTM layer 2 with the submul/concat folded into the input projection:
#   ma @ W_ih = b1 @ (Wa+Wc) + ai @ (Wb-Wc) + (b1*ai) @ Wd
# (Wa..Wd are the four 2H-row blocks of W_ih^T; Wac/Wbc precomputed on host.)
# --------------------------------------------------------------------------
def _bilstm2_kernel(a_ref, ab_ref, wac_ref, wbc_ref, wd_ref, whh_ref, b_ref,
                    out_ref, gx_scr, h_scr, c_scr):
    L, N, D2 = a_ref.shape
    G = wac_ref.shape[1]
    H = G // 8
    a2d = a_ref[...].reshape(L * N, D2)
    ab2d = ab_ref[...].reshape(L * N, D2)
    gx = (jnp.dot(a2d, wac_ref[...], preferred_element_type=jnp.float32)
          + jnp.dot(ab2d, wbc_ref[...], preferred_element_type=jnp.float32)
          + jnp.dot(a2d * ab2d, wd_ref[...], preferred_element_type=jnp.float32)
          + b_ref[...])
    gx_scr[...] = gx.reshape(L, N, G)
    _lstm_recurrence(gx_scr, whh_ref, out_ref, h_scr, c_scr, H)


def bilstm2_call(h1_lnd, ab_lnd, lstm_params):
    wac, wbc, wd, whh_bd, bias = lstm_params
    L, N, _ = h1_lnd.shape
    G = wac.shape[1]
    H = G // 8
    return pl.pallas_call(
        _bilstm2_kernel,
        out_shape=jax.ShapeDtypeStruct((L, N, 2 * H), jnp.float32),
        in_specs=[VMEM_SPEC] * 7,
        out_specs=VMEM_SPEC,
        scratch_shapes=[pltpu.VMEM((L, N, G), jnp.float32),
                        pltpu.VMEM((N, 2 * H), jnp.float32),
                        pltpu.VMEM((N, 2 * H), jnp.float32)],
        compiler_params=pltpu.CompilerParams(vmem_limit_bytes=VMEM_LIMIT),
    )(h1_lnd, ab_lnd, wac, wbc, wd, whh_bd, bias)


# --------------------------------------------------------------------------
# ESIM soft-alignment attention: gridded over batch; one score matmul per
# pair, the other score matrix is its transpose.  Masking semantics mirror
# the PyTorch reference exactly (mask broadcast over the last axis, i.e. the
# rows of each score matrix are masked).
# --------------------------------------------------------------------------
def _attention_kernel(s1_ref, s2_ref, m1_ref, m2_ref, ai_ref, bj_ref):
    s1 = s1_ref[0]                                     # [L, D]
    s2 = s2_ref[0]
    m1 = m1_ref[0]                                     # [L, 1]
    m2 = m2_ref[0]

    # ekj[b] = s1 @ s2^T ; eik[b] = s2 @ s1^T = (s1 @ s2^T)^T
    e12 = lax.dot_general(s1, s2, (((1,), (1,)), ((), ())),
                          preferred_element_type=jnp.float32)     # [L, L]
    e21 = e12.T                                                    # XLU, ~free

    ekj = jnp.where(m2 == 1.0, -1e9, e12)
    eik = jnp.where(m1 == 1.0, -1e9, e21)

    def _softmax(x):
        mx = jnp.max(x, axis=-1, keepdims=True)
        e = jnp.exp(x - mx)
        return e * pl.reciprocal(jnp.sum(e, axis=-1, keepdims=True), approx=True)

    ai_ref[0] = jnp.dot(_softmax(ekj), s2, preferred_element_type=jnp.float32)
    bj_ref[0] = jnp.dot(_softmax(eik), s1, preferred_element_type=jnp.float32)


def attention_call(h1_bld, m1, m2, B):
    # h1_bld: [2B, L, D] (rows 0:B = seq1 states, B:2B = seq2 states)
    _, L, D = h1_bld.shape
    return pl.pallas_call(
        _attention_kernel,
        grid=(B,),
        in_specs=[pl.BlockSpec((1, L, D), lambda b: (b, 0, 0)),
                  pl.BlockSpec((1, L, D), lambda b: (b + B, 0, 0)),
                  pl.BlockSpec((1, L, 1), lambda b: (b, 0, 0)),
                  pl.BlockSpec((1, L, 1), lambda b: (b, 0, 0))],
        out_specs=[pl.BlockSpec((1, L, D), lambda b: (b, 0, 0)),
                   pl.BlockSpec((1, L, D), lambda b: (b, 0, 0))],
        out_shape=(jax.ShapeDtypeStruct((B, L, D), jnp.float32),
                   jax.ShapeDtypeStruct((B, L, D), jnp.float32)),
        compiler_params=pltpu.CompilerParams(
            dimension_semantics=("parallel",),
            vmem_limit_bytes=VMEM_LIMIT),
    )(h1_bld, h1_bld, m1, m2)


# --------------------------------------------------------------------------
# Pooling (avg + max over time) + FC head (Linear -> Linear -> Softmax).
# The 8H-wide pooled concat is folded into four partial matmuls against
# row-slices of W_fc1^T, so no in-kernel concat is needed.
# --------------------------------------------------------------------------
def _pool_fc_kernel(h2_ref, w1a_ref, w1b_ref, w1c_ref, w1d_ref,
                    b1_ref, w2_ref, b2_ref, out_ref):
    h2 = h2_ref[...]                                   # [L, 2B, 2H] time-major
    L = h2.shape[0]
    B = out_ref.shape[0]

    s = jnp.sum(h2, axis=0) * (1.0 / L)                # [2B, 2H] (unmasked avg)
    mx = jnp.max(h2, axis=0)                           # [2B, 2H]
    avg1, avg2 = s[0:B], s[B:2 * B]
    max1, max2 = mx[0:B], mx[B:2 * B]

    hid = (jnp.dot(avg1, w1a_ref[...], preferred_element_type=jnp.float32)
           + jnp.dot(max1, w1b_ref[...], preferred_element_type=jnp.float32)
           + jnp.dot(avg2, w1c_ref[...], preferred_element_type=jnp.float32)
           + jnp.dot(max2, w1d_ref[...], preferred_element_type=jnp.float32)
           + b1_ref[...])                              # [B, 2]
    # nn.Dropout(0.5) -> identity at inference.
    logits = jnp.dot(hid, w2_ref[...], preferred_element_type=jnp.float32) + b2_ref[...]
    m = jnp.max(logits, axis=-1, keepdims=True)
    e = jnp.exp(logits - m)
    out_ref[...] = e * pl.reciprocal(jnp.sum(e, axis=-1, keepdims=True))


def pool_fc_call(h2_lnd, fc_params):
    w1a, w1b, w1c, w1d, b1, w2, b2 = fc_params
    B = h2_lnd.shape[1] // 2
    out_dim = w2.shape[1]
    return pl.pallas_call(
        _pool_fc_kernel,
        out_shape=jax.ShapeDtypeStruct((B, out_dim), jnp.float32),
        in_specs=[VMEM_SPEC] * 8,
        out_specs=VMEM_SPEC,
        compiler_params=pltpu.CompilerParams(vmem_limit_bytes=VMEM_LIMIT),
    )(h2_lnd, w1a, w1b, w1c, w1d, b1, w2, b2)


# --------------------------------------------------------------------------
# Full ESIM forward
# --------------------------------------------------------------------------
def esim_forward(params, seq1, seq2, mask1, mask2):
    emb = params['embedding']
    B, L = seq1.shape

    e1 = emb[seq1]                                      # [B, L, H] (XLA gather)
    e2 = emb[seq2]
    x_all = jnp.concatenate([e1, e2], axis=0)           # [2B, L, H]
    x_lnd = jnp.transpose(x_all, (1, 0, 2))             # time-major [L, 2B, H]

    h1 = bilstm1_call(x_lnd, params['lstm1'])           # [L, 2B, 2H]

    h1_bld = jnp.transpose(h1, (1, 0, 2))               # [2B, L, 2H]
    m1 = mask1.astype(jnp.float32)[..., None]           # [B, L, 1]
    m2 = mask2.astype(jnp.float32)[..., None]
    ai, bj = attention_call(h1_bld, m1, m2, B)          # each [B, L, 2H]

    # aligned reps stacked to match the h1 row layout (seq1 rows | seq2 rows)
    ab = jnp.transpose(jnp.concatenate([ai, bj], axis=0), (1, 0, 2))  # [L, 2B, 2H]

    h2 = bilstm2_call(h1, ab, params['lstm2'])          # [L, 2B, 2H]

    return pool_fc_call(h2, params['fc'])               # [B, output_size]


if __name__ == "__main__":
    B, L = 2, 8
    H = 32            # hidden_size
    V = 50            # input_size (vocab)
    OUT = 3           # output_size

    keys = iter(jax.random.split(jax.random.PRNGKey(0), 32))

    def u(shape, k):
        return jax.random.uniform(next(keys), shape, jnp.float32, -k, k)

    embedding = jax.random.normal(next(keys), (V, H), jnp.float32)

    def raw_lstm_dir(din):
        kk = 1.0 / (H ** 0.5)
        w_ih = u((4 * H, din), kk)                      # torch layout [4H, Din]
        w_hh = u((4 * H, H), kk)
        b_ih = u((4 * H,), kk)
        b_hh = u((4 * H,), kk)
        return w_ih, w_hh, b_ih, b_hh

    def pack_whh(whf, whr):
        whh_bd = jnp.zeros((2 * H, 8 * H), jnp.float32)
        whh_bd = whh_bd.at[0:H, 0:4 * H].set(whf.T)
        whh_bd = whh_bd.at[H:2 * H, 4 * H:8 * H].set(whr.T)
        return whh_bd

    def pack_lstm1(din):
        wif, whf, bif, bhf = raw_lstm_dir(din)
        wir, whr, bir, bhr = raw_lstm_dir(din)
        wih_cat = jnp.concatenate([wif.T, wir.T], axis=1)          # [Din, 8H]
        bias = jnp.concatenate([bif + bhf, bir + bhr]).reshape(1, 8 * H)
        return (wih_cat, pack_whh(whf, whr), bias)

    def pack_lstm2():
        din = 8 * H
        wif, whf, bif, bhf = raw_lstm_dir(din)
        wir, whr, bir, bhr = raw_lstm_dir(din)

        def fold(w_ih):
            wt = w_ih.T                                            # [8H, 4H]
            wa, wb = wt[0:2 * H], wt[2 * H:4 * H]
            wc, wd = wt[4 * H:6 * H], wt[6 * H:8 * H]
            return wa + wc, wb - wc, wd                            # each [2H, 4H]

        wac_f, wbc_f, wd_f = fold(wif)
        wac_r, wbc_r, wd_r = fold(wir)
        wac = jnp.concatenate([wac_f, wac_r], axis=1)              # [2H, 8H]
        wbc = jnp.concatenate([wbc_f, wbc_r], axis=1)
        wdd = jnp.concatenate([wd_f, wd_r], axis=1)
        bias = jnp.concatenate([bif + bhf, bir + bhr]).reshape(1, 8 * H)
        return (wac, wbc, wdd, pack_whh(whf, whr), bias)

    lstm1 = pack_lstm1(H)
    lstm2 = pack_lstm2()

    k1 = 1.0 / (8 * H) ** 0.5
    w_fc1 = u((2, 8 * H), k1)                           # torch Linear(8H, 2)
    b_fc1 = u((2,), k1)
    k2 = 1.0 / (2 ** 0.5)
    w_fc2 = u((OUT, 2), k2)                             # torch Linear(2, OUT)
    b_fc2 = u((OUT,), k2)

    w1t = w_fc1.T                                       # [8H, 2]
    fc = (w1t[0 * 2 * H:1 * 2 * H],                     # rows matching avg(bi2_1)
          w1t[1 * 2 * H:2 * 2 * H],                     # max(bi2_1)
          w1t[2 * 2 * H:3 * 2 * H],                     # avg(bi2_2)
          w1t[3 * 2 * H:4 * 2 * H],                     # max(bi2_2)
          b_fc1.reshape(1, 2),
          w_fc2.T,                                      # [2, OUT]
          b_fc2.reshape(1, OUT))

    params = dict(hidden=H, embedding=embedding, lstm1=lstm1, lstm2=lstm2, fc=fc)

    seq1 = jax.random.randint(next(keys), (B, L), 0, V)
    seq2 = jax.random.randint(next(keys), (B, L), 0, V)
    mask1 = jnp.zeros((B, L), jnp.int32).at[:, L - 2:].set(1)   # 1 == padded position
    mask2 = jnp.zeros((B, L), jnp.int32).at[:, L - 1:].set(1)

    fwd = jax.jit(lambda s1, s2, m1, m2: esim_forward(params, s1, s2, m1, m2))
    out = fwd(seq1, seq2, mask1, mask2)
    out = jax.block_until_ready(out)

    assert out.shape == (B, OUT)
    assert bool(jnp.all(jnp.isfinite(out)))
    assert bool(jnp.allclose(jnp.sum(out, axis=-1), 1.0, atol=1e-4))
    print("KERNEL_OK")
</pallas_src>

<mosaic_0001>
module attributes {stable_mosaic.version = 11 : i64} {
  func.func @_attention_kernel(%arg0: i32, %arg1: memref<1x8x64xf32, #tpu.memory_space<vmem>>, %arg2: memref<1x8x64xf32, #tpu.memory_space<vmem>>, %arg3: memref<1x8x1xf32, #tpu.memory_space<vmem>>, %arg4: memref<1x8x1xf32, #tpu.memory_space<vmem>>, %arg5: memref<1x8x64xf32, #tpu.memory_space<vmem>>, %arg6: memref<1x8x64xf32, #tpu.memory_space<vmem>>) attributes {dimension_semantics = [#tpu.dimension_semantics<parallel>], iteration_bounds = array<i64: 2>, scalar_prefetch = 0 : i64, scratch_operands = 0 : i64, tpu.core_type = #tpu.core_type<tc>, window_params = [{transform_indices = @transform_0, window_bounds = array<i64: 1, 8, 64>}, {transform_indices = @transform_1, window_bounds = array<i64: 1, 8, 64>}, {transform_indices = @transform_2, window_bounds = array<i64: 1, 8, 1>}, {transform_indices = @transform_3, window_bounds = array<i64: 1, 8, 1>}, {transform_indices = @transform_4, window_bounds = array<i64: 1, 8, 64>}, {transform_indices = @transform_5, window_bounds = array<i64: 1, 8, 64>}]} {
    %c0 = arith.constant 0 : index
    %c0_0 = arith.constant 0 : index
    %c0_1 = arith.constant 0 : index
    %0 = vector.load %arg1[%c0, %c0_0, %c0_1] : memref<1x8x64xf32, #tpu.memory_space<vmem>>, vector<1x8x64xf32>
    %1 = vector.shape_cast %0 : vector<1x8x64xf32> to vector<8x64xf32>
    %c0_2 = arith.constant 0 : index
    %c0_3 = arith.constant 0 : index
    %c0_4 = arith.constant 0 : index
    %2 = vector.load %arg2[%c0_2, %c0_3, %c0_4] : memref<1x8x64xf32, #tpu.memory_space<vmem>>, vector<1x8x64xf32>
    %3 = vector.shape_cast %2 : vector<1x8x64xf32> to vector<8x64xf32>
    %c0_5 = arith.constant 0 : index
    %c0_6 = arith.constant 0 : index
    %c0_7 = arith.constant 0 : index
    %4 = vector.load %arg3[%c0_5, %c0_6, %c0_7] : memref<1x8x1xf32, #tpu.memory_space<vmem>>, vector<1x8x1xf32>
    %5 = vector.shape_cast %4 : vector<1x8x1xf32> to vector<8x1xf32>
    %c0_8 = arith.constant 0 : index
    %c0_9 = arith.constant 0 : index
    %c0_10 = arith.constant 0 : index
    %6 = vector.load %arg4[%c0_8, %c0_9, %c0_10] : memref<1x8x1xf32, #tpu.memory_space<vmem>>, vector<1x8x1xf32>
    %7 = vector.shape_cast %6 : vector<1x8x1xf32> to vector<8x1xf32>
    %cst = arith.constant dense<0.000000e+00> : vector<8x8xf32>
    %8 = tpu.matmul %1, %3, %cst {dimension_numbers = #tpu.dot_dimension_numbers<[1], [1], [0], [0], [0, 0, 1, 0], [], []>} : vector<8x64xf32>, vector<8x64xf32>, vector<8x8xf32> -> vector<8x8xf32>
    %9 = tpu.transpose %8, [1, 0] : vector<8x8xf32> -> vector<8x8xf32>
    %cst_11 = arith.constant 1.000000e+00 : f32
    %10 = vector.broadcast %cst_11 : f32 to vector<8x1xf32>
    %11 = arith.cmpf oeq, %7, %10 : vector<8x1xf32>
    %cst_12 = arith.constant -1.000000e+09 : f32
    %12 = vector.shape_cast %11 : vector<8x1xi1> to vector<8x1xi1>
    %13 = vector.broadcast %12 : vector<8x1xi1> to vector<8x8xi1>
    %14 = vector.broadcast %cst_12 : f32 to vector<8x8xf32>
    %15 = arith.select %13, %14, %8 : vector<8x8xi1>, vector<8x8xf32>
    %cst_13 = arith.constant 1.000000e+00 : f32
    %16 = vector.broadcast %cst_13 : f32 to vector<8x1xf32>
    %17 = arith.cmpf oeq, %5, %16 : vector<8x1xf32>
    %cst_14 = arith.constant -1.000000e+09 : f32
    %18 = vector.shape_cast %17 : vector<8x1xi1> to vector<8x1xi1>
    %19 = vector.broadcast %18 : vector<8x1xi1> to vector<8x8xi1>
    %20 = vector.broadcast %cst_14 : f32 to vector<8x8xf32>
    %21 = arith.select %19, %20, %9 : vector<8x8xi1>, vector<8x8xf32>
    %cst_15 = arith.constant dense<0xFF800000> : vector<8xf32>
    %22 = vector.multi_reduction <maximumf>, %15, %cst_15 [1] : vector<8x8xf32> to vector<8xf32>
    %23 = vector.shape_cast %22 : vector<8xf32> to vector<8x1xf32>
    %24 = vector.broadcast %23 : vector<8x1xf32> to vector<8x8xf32>
    %25 = arith.subf %15, %24 : vector<8x8xf32>
    %26 = math.exp %25 : vector<8x8xf32>
    %cst_16 = arith.constant dense<0.000000e+00> : vector<8xf32>
    %27 = vector.multi_reduction <add>, %26, %cst_16 [1] : vector<8x8xf32> to vector<8xf32>
    %28 = vector.shape_cast %27 : vector<8xf32> to vector<8x1xf32>
    %29 = tpu.reciprocal %28 {approx = true} : vector<8x1xf32> -> vector<8x1xf32>
    %30 = vector.broadcast %29 : vector<8x1xf32> to vector<8x8xf32>
    %31 = arith.mulf %26, %30 : vector<8x8xf32>
    %cst_17 = arith.constant dense<0.000000e+00> : vector<8x64xf32>
    %32 = tpu.matmul %31, %3, %cst_17 {dimension_numbers = #tpu.dot_dimension_numbers<[1], [0], [0], [1], [0, 0, 1, 1], [], []>} : vector<8x8xf32>, vector<8x64xf32>, vector<8x64xf32> -> vector<8x64xf32>
    %c0_18 = arith.constant 0 : index
    %c0_19 = arith.constant 0 : index
    %c0_20 = arith.constant 0 : index
    %33 = vector.load %arg5[%c0_18, %c0_19, %c0_20] : memref<1x8x64xf32, #tpu.memory_space<vmem>>, vector<1x8x64xf32>
    %34 = vector.shape_cast %33 : vector<1x8x64xf32> to vector<8x64xf32>
    %35 = vector.shape_cast %32 : vector<8x64xf32> to vector<1x8x64xf32>
    tpu.vector_store %arg5[%c0_18, %c0_19, %c0_20], %35 {strides = array<i32>} : memref<1x8x64xf32, #tpu.memory_space<vmem>>, vector<1x8x64xf32>,
    %cst_21 = arith.constant dense<0xFF800000> : vector<8xf32>
    %36 = vector.multi_reduction <maximumf>, %21, %cst_21 [1] : vector<8x8xf32> to vector<8xf32>
    %37 = vector.shape_cast %36 : vector<8xf32> to vector<8x1xf32>
    %38 = vector.broadcast %37 : vector<8x1xf32> to vector<8x8xf32>
    %39 = arith.subf %21, %38 : vector<8x8xf32>
    %40 = math.exp %39 : vector<8x8xf32>
    %cst_22 = arith.constant dense<0.000000e+00> : vector<8xf32>
    %41 = vector.multi_reduction <add>, %40, %cst_22 [1] : vector<8x8xf32> to vector<8xf32>
    %42 = vector.shape_cast %41 : vector<8xf32> to vector<8x1xf32>
    %43 = tpu.reciprocal %42 {approx = true} : vector<8x1xf32> -> vector<8x1xf32>
    %44 = vector.broadcast %43 : vector<8x1xf32> to vector<8x8xf32>
    %45 = arith.mulf %40, %44 : vector<8x8xf32>
    %cst_23 = arith.constant dense<0.000000e+00> : vector<8x64xf32>
    %46 = tpu.matmul %45, %1, %cst_23 {dimension_numbers = #tpu.dot_dimension_numbers<[1], [0], [0], [1], [0, 0, 1, 1], [], []>} : vector<8x8xf32>, vector<8x64xf32>, vector<8x64xf32> -> vector<8x64xf32>
    %c0_24 = arith.constant 0 : index
    %c0_25 = arith.constant 0 : index
    %c0_26 = arith.constant 0 : index
    %47 = vector.load %arg6[%c0_24, %c0_25, %c0_26] : memref<1x8x64xf32, #tpu.memory_space<vmem>>, vector<1x8x64xf32>
    %48 = vector.shape_cast %47 : vector<1x8x64xf32> to vector<8x64xf32>
    %49 = vector.shape_cast %46 : vector<8x64xf32> to vector<1x8x64xf32>
    tpu.vector_store %arg6[%c0_24, %c0_25, %c0_26], %49 {strides = array<i32>} : memref<1x8x64xf32, #tpu.memory_space<vmem>>, vector<1x8x64xf32>,
    return
  }
  func.func @transform_0(%arg0: i32) -> (i32, i32, i32) {
    %c0_i32 = arith.constant 0 : i32
    %c0_i32_0 = arith.constant 0 : i32
    %c0_i32_1 = arith.constant 0 : i32
    return %arg0, %c0_i32, %c0_i32_0 : i32, i32, i32
  }
  func.func @transform_1(%arg0: i32) -> (i32, i32, i32) {
    %c2_i32 = arith.constant 2 : i32
    %0 = arith.addi %arg0, %c2_i32 : i32
    %c0_i32 = arith.constant 0 : i32
    %c0_i32_0 = arith.constant 0 : i32
    %c0_i32_1 = arith.constant 0 : i32
    return %0, %c0_i32, %c0_i32_0 : i32, i32, i32
  }
  func.func @transform_2(%arg0: i32) -> (i32, i32, i32) {
    %c0_i32 = arith.constant 0 : i32
    %c0_i32_0 = arith.constant 0 : i32
    %c0_i32_1 = arith.constant 0 : i32
    return %arg0, %c0_i32, %c0_i32_0 : i32, i32, i32
  }
  func.func @transform_3(%arg0: i32) -> (i32, i32, i32) {
    %c0_i32 = arith.constant 0 : i32
    %c0_i32_0 = arith.constant 0 : i32
    %c0_i32_1 = arith.constant 0 : i32
    return %arg0, %c0_i32, %c0_i32_0 : i32, i32, i32
  }
  func.func @transform_4(%arg0: i32) -> (i32, i32, i32) {
    %c0_i32 = arith.constant 0 : i32
    %c0_i32_0 = arith.constant 0 : i32
    %c0_i32_1 = arith.constant 0 : i32
    return %arg0, %c0_i32, %c0_i32_0 : i32, i32, i32
  }
  func.func @transform_5(%arg0: i32) -> (i32, i32, i32) {
    %c0_i32 = arith.constant 0 : i32
    %c0_i32_0 = arith.constant 0 : i32
    %c0_i32_1 = arith.constant 0 : i32
    return %arg0, %c0_i32, %c0_i32_0 : i32, i32, i32
  }
}

module attributes {stable_mosaic.version = 11 : i64} {
  func.func @_bilstm1_kernel(%arg0: memref<8x4x32xf32, #tpu.memory_space<vmem>>, %arg1: memref<32x256xf32, #tpu.memory_space<vmem>>, %arg2: memref<64x256xf32, #tpu.memory_space<vmem>>, %arg3: memref<1x256xf32, #tpu.memory_space<vmem>>, %arg4: memref<8x4x64xf32, #tpu.memory_space<vmem>>, %arg5: memref<8x4x256xf32, #tpu.memory_space<vmem>>, %arg6: memref<4x64xf32, #tpu.memory_space<vmem>>, %arg7: memref<4x64xf32, #tpu.memory_space<vmem>>) attributes {dimension_semantics = [], scalar_prefetch = 0 : i64, scratch_operands = 3 : i64, tpu.core_type = #tpu.core_type<tc>} {
    %c0 = arith.constant 0 : index
    %c0_0 = arith.constant 0 : index
    %c0_1 = arith.constant 0 : index
    %0 = vector.load %arg0[%c0, %c0_0, %c0_1] : memref<8x4x32xf32, #tpu.memory_space<vmem>>, vector<8x4x32xf32>
    %1 = vector.shape_cast %0 : vector<8x4x32xf32> to vector<32x32xf32>
    %c0_2 = arith.constant 0 : index
    %c0_3 = arith.constant 0 : index
    %2 = vector.load %arg1[%c0_2, %c0_3] : memref<32x256xf32, #tpu.memory_space<vmem>>, vector<32x256xf32>
    %cst = arith.constant dense<0.000000e+00> : vector<32x256xf32>
    %3 = tpu.matmul %1, %2, %cst {dimension_numbers = #tpu.dot_dimension_numbers<[1], [0], [0], [1], [0, 0, 1, 1], [], []>} : vector<32x32xf32>, vector<32x256xf32>, vector<32x256xf32> -> vector<32x256xf32>
    %c0_4 = arith.constant 0 : index
    %c0_5 = arith.constant 0 : index
    %4 = vector.load %arg3[%c0_4, %c0_5] : memref<1x256xf32, #tpu.memory_space<vmem>>, vector<1x256xf32>
    %5 = vector.broadcast %4 : vector<1x256xf32> to vector<32x256xf32>
    %6 = arith.addf %3, %5 : vector<32x256xf32>
    %7 = vector.shape_cast %6 : vector<32x256xf32> to vector<8x4x256xf32>
    %c0_6 = arith.constant 0 : index
    %c0_7 = arith.constant 0 : index
    %c0_8 = arith.constant 0 : index
    %8 = vector.load %arg5[%c0_6, %c0_7, %c0_8] : memref<8x4x256xf32, #tpu.memory_space<vmem>>, vector<8x4x256xf32>
    tpu.vector_store %arg5[%c0_6, %c0_7, %c0_8], %7 {strides = array<i32>} : memref<8x4x256xf32, #tpu.memory_space<vmem>>, vector<8x4x256xf32>,
    %cst_9 = arith.constant 0.000000e+00 : f32
    %9 = vector.broadcast %cst_9 : f32 to vector<4x64xf32>
    %c0_10 = arith.constant 0 : index
    %c0_11 = arith.constant 0 : index
    %10 = vector.load %arg6[%c0_10, %c0_11] : memref<4x64xf32, #tpu.memory_space<vmem>>, vector<4x64xf32>
    tpu.vector_store %arg6[%c0_10, %c0_11], %9 {strides = array<i32>} : memref<4x64xf32, #tpu.memory_space<vmem>>, vector<4x64xf32>,
    %cst_12 = arith.constant 0.000000e+00 : f32
    %11 = vector.broadcast %cst_12 : f32 to vector<4x64xf32>
    %c0_13 = arith.constant 0 : index
    %c0_14 = arith.constant 0 : index
    %12 = vector.load %arg7[%c0_13, %c0_14] : memref<4x64xf32, #tpu.memory_space<vmem>>, vector<4x64xf32>
    tpu.vector_store %arg7[%c0_13, %c0_14], %11 {strides = array<i32>} : memref<4x64xf32, #tpu.memory_space<vmem>>, vector<4x64xf32>,
    %c0_15 = arith.constant 0 : index
    %c0_16 = arith.constant 0 : index
    %13 = vector.load %arg6[%c0_15, %c0_16] : memref<4x64xf32, #tpu.memory_space<vmem>>, vector<4x64xf32>
    %c0_17 = arith.constant 0 : index
    %c0_18 = arith.constant 0 : index
    %14 = vector.load %arg2[%c0_17, %c0_18] : memref<64x256xf32, #tpu.memory_space<vmem>>, vector<64x256xf32>
    %cst_19 = arith.constant dense<0.000000e+00> : vector<4x256xf32>
    %15 = tpu.matmul %13, %14, %cst_19 {dimension_numbers = #tpu.dot_dimension_numbers<[1], [0], [0], [1], [0, 0, 1, 1], [], []>} : vector<4x64xf32>, vector<64x256xf32>, vector<4x256xf32> -> vector<4x256xf32>
    %c0_20 = arith.constant 0 : index
    %c0_21 = arith.constant 0 : index
    %c0_22 = arith.constant 0 : index
    %16 = vector.load %arg5[%c0_20, %c0_21, %c0_22] : memref<8x4x256xf32, #tpu.memory_space<vmem>>, vector<1x4x256xf32>
    %17 = vector.shape_cast %16 : vector<1x4x256xf32> to vector<4x256xf32>
    %18 = vector.extract_strided_slice %17 {offsets = [0, 0], sizes = [4, 128], strides = [1, 1]} : vector<4x256xf32> to vector<4x128xf32>
    %19 = vector.extract_strided_slice %15 {offsets = [0, 0], sizes = [4, 128], strides = [1, 1]} : vector<4x256xf32> to vector<4x128xf32>
    %20 = arith.addf %18, %19 : vector<4x128xf32>
    %c7 = arith.constant 7 : index
    %c0_23 = arith.constant 0 : index
    %c0_24 = arith.constant 0 : index
    %21 = vector.load %arg5[%c7, %c0_23, %c0_24] : memref<8x4x256xf32, #tpu.memory_space<vmem>>, vector<1x4x256xf32>
    %22 = vector.shape_cast %21 : vector<1x4x256xf32> to vector<4x256xf32>
    %23 = vector.extract_strided_slice %22 {offsets = [0, 128], sizes = [4, 128], strides = [1, 1]} : vector<4x256xf32> to vector<4x128xf32>
    %24 = vector.extract_strided_slice %15 {offsets = [0, 128], sizes = [4, 128], strides = [1, 1]} : vector<4x256xf32> to vector<4x128xf32>
    %25 = arith.addf %23, %24 : vector<4x128xf32>
    %c0_25 = arith.constant 0 : index
    %c0_26 = arith.constant 0 : index
    %26 = vector.load %arg7[%c0_25, %c0_26] : memref<4x64xf32, #tpu.memory_space<vmem>>, vector<4x32xf32>
    %27 = vector.extract_strided_slice %20 {offsets = [0, 0], sizes = [4, 32], strides = [1, 1]} : vector<4x128xf32> to vector<4x32xf32>
    %28 = arith.negf %27 : vector<4x32xf32>
    %29 = math.exp %28 : vector<4x32xf32>
    %cst_27 = arith.constant 1.000000e+00 : f32
    %30 = vector.broadcast %cst_27 : f32 to vector<4x32xf32>
    %31 = arith.addf %30, %29 : vector<4x32xf32>
    %32 = arith.divf %30, %31 : vector<4x32xf32>
    %33 = vector.extract_strided_slice %20 {offsets = [0, 32], sizes = [4, 32], strides = [1, 1]} : vector<4x128xf32> to vector<4x32xf32>
    %34 = arith.negf %33 : vector<4x32xf32>
    %35 = math.exp %34 : vector<4x32xf32>
    %cst_28 = arith.constant 1.000000e+00 : f32
    %36 = vector.broadcast %cst_28 : f32 to vector<4x32xf32>
    %37 = arith.addf %36, %35 : vector<4x32xf32>
    %38 = arith.divf %36, %37 : vector<4x32xf32>
    %39 = vector.extract_strided_slice %20 {offsets = [0, 64], sizes = [4, 32], strides = [1, 1]} : vector<4x128xf32> to vector<4x32xf32>
    %40 = math.tanh %39 : vector<4x32xf32>
    %41 = vector.extract_strided_slice %20 {offsets = [0, 96], sizes = [4, 32], strides = [1, 1]} : vector<4x128xf32> to vector<4x32xf32>
    %42 = arith.negf %41 : vector<4x32xf32>
    %43 = math.exp %42 : vector<4x32xf32>
    %cst_29 = arith.constant 1.000000e+00 : f32
    %44 = vector.broadcast %cst_29 : f32 to vector<4x32xf32>
    %45 = arith.addf %44, %43 : vector<4x32xf32>
    %46 = arith.divf %44, %45 : vector<4x32xf32>
    %47 = arith.mulf %38, %26 : vector<4x32xf32>
    %48 = arith.mulf %32, %40 : vector<4x32xf32>
    %49 = arith.addf %47, %48 : vector<4x32xf32>
    %50 = math.tanh %49 : vector<4x32xf32>
    %51 = arith.mulf %46, %50 : vector<4x32xf32>
    %c0_30 = arith.constant 0 : index
    %c32 = arith.constant 32 : index
    %52 = vector.load %arg7[%c0_30, %c32] : memref<4x64xf32, #tpu.memory_space<vmem>>, vector<4x32xf32>
    %53 = vector.extract_strided_slice %25 {offsets = [0, 0], sizes = [4, 32], strides = [1, 1]} : vector<4x128xf32> to vector<4x32xf32>
    %54 = arith.negf %53 : vector<4x32xf32>
    %55 = math.exp %54 : vector<4x32xf32>
    %cst_31 = arith.constant 1.000000e+00 : f32
    %56 = vector.broadcast %cst_31 : f32 to vector<4x32xf32>
    %57 = arith.addf %56, %55 : vector<4x32xf32>
    %58 = arith.divf %56, %57 : vector<4x32xf32>
    %59 = vector.extract_strided_slice %25 {offsets = [0, 32], sizes = [4, 32], strides = [1, 1]} : vector<4x128xf32> to vector<4x32xf32>
    %60 = arith.negf %59 : vector<4x32xf32>
    %61 = math.exp %60 : vector<4x32xf32>
    %cst_32 = arith.constant 1.000000e+00 : f32
    %62 = vector.broadcast %cst_32 : f32 to vector<4x32xf32>
    %63 = arith.addf %62, %61 : vector<4x32xf32>
    %64 = arith.divf %62, %63 : vector<4x32xf32>
    %65 = vector.extract_strided_slice %25 {offsets = [0, 64], sizes = [4, 32], strides = [1, 1]} : vector<4x128xf32> to vector<4x32xf32>
    %66 = math.tanh %65 : vector<4x32xf32>
    %67 = vector.extract_strided_slice %25 {offsets = [0, 96], sizes = [4, 32], strides = [1, 1]} : vector<4x128xf32> to vector<4x32xf32>
    %68 = arith.negf %67 : vector<4x32xf32>
    %69 = math.exp %68 : vector<4x32xf32>
    %cst_33 = arith.constant 1.000000e+00 : f32
    %70 = vector.broadcast %cst_33 : f32 to vector<4x32xf32>
    %71 = arith.addf %70, %69 : vector<4x32xf32>
    %72 = arith.divf %70, %71 : vector<4x32xf32>
    %73 = arith.mulf %64, %52 : vector<4x32xf32>
    %74 = arith.mulf %58, %66 : vector<4x32xf32>
    %75 = arith.addf %73, %74 : vector<4x32xf32>
    %76 = math.tanh %75 : vector<4x32xf32>
    %77 = arith.mulf %72, %76 : vector<4x32xf32>
    %c0_34 = arith.constant 0 : index
    %c0_35 = arith.constant 0 : index
    %78 = vector.load %arg6[%c0_34, %c0_35] : memref<4x64xf32, #tpu.memory_space<vmem>>, vector<4x32xf32>
    tpu.vector_store %arg6[%c0_34, %c0_35], %51 {strides = array<i32>} : memref<4x64xf32, #tpu.memory_space<vmem>>, vector<4x32xf32>,
    %c0_36 = arith.constant 0 : index
    %c32_37 = arith.constant 32 : index
    %79 = vector.load %arg6[%c0_36, %c32_37] : memref<4x64xf32, #tpu.memory_space<vmem>>, vector<4x32xf32>
    tpu.vector_store %arg6[%c0_36, %c32_37], %77 {strides = array<i32>} : memref<4x64xf32, #tpu.memory_space<vmem>>, vector<4x32xf32>,
    %c0_38 = arith.constant 0 : index
    %c0_39 = arith.constant 0 : index
    %80 = vector.load %arg7[%c0_38, %c0_39] : memref<4x64xf32, #tpu.memory_space<vmem>>, vector<4x32xf32>
    tpu.vector_store %arg7[%c0_38, %c0_39], %49 {strides = array<i32>} : memref<4x64xf32, #tpu.memory_space<vmem>>, vector<4x32xf32>,
    %c0_40 = arith.constant 0 : index
    %c32_41 = arith.constant 32 : index
    %81 = vector.load %arg7[%c0_40, %c32_41] : memref<4x64xf32, #tpu.memory_space<vmem>>, vector<4x32xf32>
    tpu.vector_store %arg7[%c0_40, %c32_41], %75 {strides = array<i32>} : memref<4x64xf32, #tpu.memory_space<vmem>>, vector<4x32xf32>,
    %c0_42 = arith.constant 0 : index
    %c0_43 = arith.constant 0 : index
    %c0_44 = arith.constant 0 : index
    %82 = vector.load %arg4[%c0_42, %c0_43, %c0_44] : memref<8x4x64xf32, #tpu.memory_space<vmem>>, vector<1x4x32xf32>
    %83 = vector.shape_cast %82 : vector<1x4x32xf32> to vector<4x32xf32>
    %84 = vector.shape_cast %51 : vector<4x32xf32> to vector<1x4x32xf32>
    tpu.vector_store %arg4[%c0_42, %c0_43, %c0_44], %84 {strides = array<i32>} : memref<8x4x64xf32, #tpu.memory_space<vmem>>, vector<1x4x32xf32>,
    %c7_45 = arith.constant 7 : index
    %c0_46 = arith.constant 0 : index
    %c32_47 = arith.constant 32 : index
    %85 = vector.load %arg4[%c7_45, %c0_46, %c32_47] : memref<8x4x64xf32, #tpu.memory_space<vmem>>, vector<1x4x32xf32>
    %86 = vector.shape_cast %85 : vector<1x4x32xf32> to vector<4x32xf32>
    %87 = vector.shape_cast %77 : vector<4x32xf32> to vector<1x4x32xf32>
    tpu.vector_store %arg4[%c7_45, %c0_46, %c32_47], %87 {strides = array<i32>} : memref<8x4x64xf32, #tpu.memory_space<vmem>>, vector<1x4x32xf32>,
    %c0_48 = arith.constant 0 : index
    %c0_49 = arith.constant 0 : index
    %88 = vector.load %arg6[%c0_48, %c0_49] : memref<4x64xf32, #tpu.memory_space<vmem>>, vector<4x64xf32>
    %c0_50 = arith.constant 0 : index
    %c0_51 = arith.constant 0 : index
    %89 = vector.load %arg2[%c0_50, %c0_51] : memref<64x256xf32, #tpu.memory_space<vmem>>, vector<64x256xf32>
    %cst_52 = arith.constant dense<0.000000e+00> : vector<4x256xf32>
    %90 = tpu.matmul %88, %89, %cst_52 {dimension_numbers = #tpu.dot_dimension_numbers<[1], [0], [0], [1], [0, 0, 1, 1], [], []>} : vector<4x64xf32>, vector<64x256xf32>, vector<4x256xf32> -> vector<4x256xf32>
    %c1 = arith.constant 1 : index
    %c0_53 = arith.constant 0 : index
    %c0_54 = arith.constant 0 : index
    %91 = vector.load %arg5[%c1, %c0_53, %c0_54] : memref<8x4x256xf32, #tpu.memory_space<vmem>>, vector<1x4x256xf32>
    %92 = vector.shape_cast %91 : vector<1x4x256xf32> to vector<4x256xf32>
    %93 = vector.extract_strided_slice %92 {offsets = [0, 0], sizes = [4, 128], strides = [1, 1]} : vector<4x256xf32> to vector<4x128xf32>
    %94 = vector.extract_strided_slice %90 {offsets = [0, 0], sizes = [4, 128], strides = [1, 1]} : vector<4x256xf32> to vector<4x128xf32>
    %95 = arith.addf %93, %94 : vector<4x128xf32>
    %c6 = arith.constant 6 : index
    %c0_55 = arith.constant 0 : index
    %c0_56 = arith.constant 0 : index
    %96 = vector.load %arg5[%c6, %c0_55, %c0_56] : memref<8x4x256xf32, #tpu.memory_space<vmem>>, vector<1x4x256xf32>
    %97 = vector.shape_cast %96 : vector<1x4x256xf32> to vector<4x256xf32>
    %98 = vector.extract_strided_slice %97 {offsets = [0, 128], sizes = [4, 128], strides = [1, 1]} : vector<4x256xf32> to vector<4x128xf32>
    %99 = vector.extract_strided_slice %90 {offsets = [0, 128], sizes = [4, 128], strides = [1, 1]} : vector<4x256xf32> to vector<4x128xf32>
    %100 = arith.addf %98, %99 : vector<4x128xf32>
    %c0_57 = arith.constant 0 : index
    %c0_58 = arith.constant 0 : index
    %101 = vector.load %arg7[%c0_57, %c0_58] : memref<4x64xf32, #tpu.memory_space<vmem>>, vector<4x32xf32>
    %102 = vector.extract_strided_slice %95 {offsets = [0, 0], sizes = [4, 32], strides = [1, 1]} : vector<4x128xf32> to vector<4x32xf32>
    %103 = arith.negf %102 : vector<4x32xf32>
    %104 = math.exp %103 : vector<4x32xf32>
    %cst_59 = arith.constant 1.000000e+00 : f32
    %105 = vector.broadcast %cst_59 : f32 to vector<4x32xf32>
    %106 = arith.addf %105, %104 : vector<4x32xf32>
    %107 = arith.divf %105, %106 : vector<4x32xf32>
    %108 = vector.extract_strided_slice %95 {offsets = [0, 32], sizes = [4, 32], strides = [1, 1]} : vector<4x128xf32> to vector<4x32xf32>
    %109 = arith.negf %108 : vector<4x32xf32>
    %110 = math.exp %109 : vector<4x32xf32>
    %cst_60 = arith.constant 1.000000e+00 : f32
    %111 = vector.broadcast %cst_60 : f32 to vector<4x32xf32>
    %112 = arith.addf %111, %110 : vector<4x32xf32>
    %113 = arith.divf %111, %112 : vector<4x32xf32>
    %114 = vector.extract_strided_slice %95 {offsets = [0, 64], sizes = [4, 32], strides = [1, 1]} : vector<4x128xf32> to vector<4x32xf32>
    %115 = math.tanh %114 : vector<4x32xf32>
    %116 = vector.extract_strided_slice %95 {offsets = [0, 96], sizes = [4, 32], strides = [1, 1]} : vector<4x128xf32> to vector<4x32xf32>
    %117 = arith.negf %116 : vector<4x32xf32>
    %118 = math.exp %117 : vector<4x32xf32>
    %cst_61 = arith.constant 1.000000e+00 : f32
    %119 = vector.broadcast %cst_61 : f32 to vector<4x32xf32>
    %120 = arith.addf %119, %118 : vector<4x32xf32>
    %121 = arith.divf %119, %120 : vector<4x32xf32>
    %122 = arith.mulf %113, %101 : vector<4x32xf32>
    %123 = arith.mulf %107, %115 : vector<4x32xf32>
    %124 = arith.addf %122, %123 : vector<4x32xf32>
    %125 = math.tanh %124 : vector<4x32xf32>
    %126 = arith.mulf %121, %125 : vector<4x32xf32>
    %c0_62 = arith.constant 0 : index
    %c32_63 = arith.constant 32 : index
    %127 = vector.load %arg7[%c0_62, %c32_63] : memref<4x64xf32, #tpu.memory_space<vmem>>, vector<4x32xf32>
    %128 = vector.extract_strided_slice %100 {offsets = [0, 0], sizes = [4, 32], strides = [1, 1]} : vector<4x128xf32> to vector<4x32xf32>
    %129 = arith.negf %128 : vector<4x32xf32>
    %130 = math.exp %129 : vector<4x32xf32>
    %cst_64 = arith.constant 1.000000e+00 : f32
    %131 = vector.broadcast %cst_64 : f32 to vector<4x32xf32>
    %132 = arith.addf %131, %130 : vector<4x32xf32>
    %133 = arith.divf %131, %132 : vector<4x32xf32>
    %134 = vector.extract_strided_slice %100 {offsets = [0, 32], sizes = [4, 32], strides = [1, 1]} : vector<4x128xf32> to vector<4x32xf32>
    %135 = arith.negf %134 : vector<4x32xf32>
    %136 = math.exp %135 : vector<4x32xf32>
    %cst_65 = arith.constant 1.000000e+00 : f32
    %137 = vector.broadcast %cst_65 : f32 to vector<4x32xf32>
    %138 = arith.addf %137, %136 : vector<4x32xf32>
    %139 = arith.divf %137, %138 : vector<4x32xf32>
    %140 = vector.extract_strided_slice %100 {offsets = [0, 64], sizes = [4, 32], strides = [1, 1]} : vector<4x128xf32> to vector<4x32xf32>
    %141 = math.tanh %140 : vector<4x32xf32>
    %142 = vector.extract_strided_slice %100 {offsets = [0, 96], sizes = [4, 32], strides = [1, 1]} : vector<4x128xf32> to vector<4x32xf32>
    %143 = arith.negf %142 : vector<4x32xf32>
    %144 = math.exp %143 : vector<4x32xf32>
    %cst_66 = arith.constant 1.000000e+00 : f32
    %145 = vector.broadcast %cst_66 : f32 to vector<4x32xf32>
    %146 = arith.addf %145, %144 : vector<4x32xf32>
    %147 = arith.divf %145, %146 : vector<4x32xf32>
    %148 = arith.mulf %139, %127 : vector<4x32xf32>
    %149 = arith.mulf %133, %141 : vector<4x32xf32>
    %150 = arith.addf %148, %149 : vector<4x32xf32>
    %151 = math.tanh %150 : vector<4x32xf32>
    %152 = arith.mulf %147, %151 : vector<4x32xf32>
    %c0_67 = arith.constant 0 : index
    %c0_68 = arith.constant 0 : index
    %153 = vector.load %arg6[%c0_67, %c0_68] : memref<4x64xf32, #tpu.memory_space<vmem>>, vector<4x32xf32>
    tpu.vector_store %arg6[%c0_67, %c0_68], %126 {strides = array<i32>} : memref<4x64xf32, #tpu.memory_space<vmem>>, vector<4x32xf32>,
    %c0_69 = arith.constant 0 : index
    %c32_70 = arith.constant 32 : index
    %154 = vector.load %arg6[%c0_69, %c32_70] : memref<4x64xf32, #tpu.memory_space<vmem>>, vector<4x32xf32>
    tpu.vector_store %arg6[%c0_69, %c32_70], %152 {strides = array<i32>} : memref<4x64xf32, #tpu.memory_space<vmem>>, vector<4x32xf32>,
    %c0_71 = arith.constant 0 : index
    %c0_72 = arith.constant 0 : index
    %155 = vector.load %arg7[%c0_71, %c0_72] : memref<4x64xf32, #tpu.memory_space<vmem>>, vector<4x32xf32>
    tpu.vector_store %arg7[%c0_71, %c0_72], %124 {strides = array<i32>} : memref<4x64xf32, #tpu.memory_space<vmem>>, vector<4x32xf32>,
    %c0_73 = arith.constant 0 : index
    %c32_74 = arith.constant 32 : index
    %156 = vector.load %arg7[%c0_73, %c32_74] : memref<4x64xf32, #tpu.memory_space<vmem>>, vector<4x32xf32>
    tpu.vector_store %arg7[%c0_73, %c32_74], %150 {strides = array<i32>} : memref<4x64xf32, #tpu.memory_space<vmem>>, vector<4x32xf32>,
    %c1_75 = arith.constant 1 : index
    %c0_76 = arith.constant 0 : index
    %c0_77 = arith.constant 0 : index
    %157 = vector.load %arg4[%c1_75, %c0_76, %c0_77] : memref<8x4x64xf32, #tpu.memory_space<vmem>>, vector<1x4x32xf32>
    %158 = vector.shape_cast %157 : vector<1x4x32xf32> to vector<4x32xf32>
    %159 = vector.shape_cast %126 : vector<4x32xf32> to vector<1x4x32xf32>
    tpu.vector_store %arg4[%c1_75, %c0_76, %c0_77], %159 {strides = array<i32>} : memref<8x4x64xf32, #tpu.memory_space<vmem>>, vector<1x4x32xf32>,
    %c6_78 = arith.constant 6 : index
    %c0_79 = arith.constant 0 : index
    %c32_80 = arith.constant 32 : index
    %160 = vector.load %arg4[%c6_78, %c0_79, %c32_80] : memref<8x4x64xf32, #tpu.memory_space<vmem>>, vector<1x4x32xf32>
    %161 = vector.shape_cast %160 : vector<1x4x32xf32> to vector<4x32xf32>
    %162 = vector.shape_cast %152 : vector<4x32xf32> to vector<1x4x32xf32>
    tpu.vector_store %arg4[%c6_78, %c0_79, %c32_80], %162 {strides = array<i32>} : memref<8x4x64xf32, #tpu.memory_space<vmem>>, vector<1x4x32xf32>,
    %c0_81 = arith.constant 0 : index
    %c0_82 = arith.constant 0 : index
    %163 = vector.load %arg6[%c0_81, %c0_82] : memref<4x64xf32, #tpu.memory_space<vmem>>, vector<4x64xf32>
    %c0_83 = arith.constant 0 : index
    %c0_84 = arith.constant 0 : index
    %164 = vector.load %arg2[%c0_83, %c0_84] : memref<64x256xf32, #tpu.memory_space<vmem>>, vector<64x256xf32>
    %cst_85 = arith.constant dense<0.000000e+00> : vector<4x256xf32>
    %165 = tpu.matmul %163, %164, %cst_85 {dimension_numbers = #tpu.dot_dimension_numbers<[1], [0], [0], [1], [0, 0, 1, 1], [], []>} : vector<4x64xf32>, vector<64x256xf32>, vector<4x256xf32> -> vector<4x256xf32>
    %c2 = arith.constant 2 : index
    %c0_86 = arith.constant 0 : index
    %c0_87 = arith.constant 0 : index
    %166 = vector.load %arg5[%c2, %c0_86, %c0_87] : memref<8x4x256xf32, #tpu.memory_space<vmem>>, vector<1x4x256xf32>
    %167 = vector.shape_cast %166 : vector<1x4x256xf32> to vector<4x256xf32>
    %168 = vector.extract_strided_slice %167 {offsets = [0, 0], sizes = [4, 128], strides = [1, 1]} : vector<4x256xf32> to vector<4x128xf32>
    %169 = vector.extract_strided_slice %165 {offsets = [0, 0], sizes = [4, 128], strides = [1, 1]} : vector<4x256xf32> to vector<4x128xf32>
    %170 = arith.addf %168, %169 : vector<4x128xf32>
    %c5 = arith.constant 5 : index
    %c0_88 = arith.constant 0 : index
    %c0_89 = arith.constant 0 : index
    %171 = vector.load %arg5[%c5, %c0_88, %c0_89] : memref<8x4x256xf32, #tpu.memory_space<vmem>>, vector<1x4x256xf32>
    %172 = vector.shape_cast %171 : vector<1x4x256xf32> to vector<4x256xf32>
    %173 = vector.extract_strided_slice %172 {offsets = [0, 128], sizes = [4, 128], strides = [1, 1]} : vector<4x256xf32> to vector<4x128xf32>
    %174 = vector.extract_strided_slice %165 {offsets = [0, 128], sizes = [4, 128], strides = [1, 1]} : vector<4x256xf32> to vector<4x128xf32>
    %175 = arith.addf %173, %174 : vector<4x128xf32>
    %c0_90 = arith.constant 0 : index
    %c0_91 = arith.constant 0 : index
    %176 = vector.load %arg7[%c0_90, %c0_91] : memref<4x64xf32, #tpu.memory_space<vmem>>, vector<4x32xf32>
    %177 = vector.extract_strided_slice %170 {offsets = [0, 0], sizes = [4, 32], strides = [1, 1]} : vector<4x128xf32> to vector<4x32xf32>
    %178 = arith.negf %177 : vector<4x32xf32>
    %179 = math.exp %178 : vector<4x32xf32>
    %cst_92 = arith.constant 1.000000e+00 : f32
    %180 = vector.broadcast %cst_92 : f32 to vector<4x32xf32>
    %181 = arith.addf %180, %179 : vector<4x32xf32>
    %182 = arith.divf %180, %181 : vector<4x32xf32>
    %183 = vector.extract_strided_slice %170 {offsets = [0, 32], sizes = [4, 32], strides = [1, 1]} : vector<4x128xf32> to vector<4x32xf32>
    %184 = arith.negf %183 : vector<4x32xf32>
    %185 = math.exp %184 : vector<4x32xf32>
    %cst_93 = arith.constant 1.000000e+00 : f32
    %186 = vector.broadcast %cst_93 : f32 to vector<4x32xf32>
    %187 = arith.addf %186, %185 : vector<4x32xf32>
    %188 = arith.divf %186, %187 : vector<4x32xf32>
    %189 = vector.extract_strided_slice %170 {offsets = [0, 64], sizes = [4, 32], strides = [1, 1]} : vector<4x128xf32> to vector<4x32xf32>
    %190 = math.tanh %189 : vector<4x32xf32>
    %191 = vector.extract_strided_slice %170 {offsets = [0, 96], sizes = [4, 32], strides = [1, 1]} : vector<4x128xf32> to vector<4x32xf32>
    %192 = arith.negf %191 : vector<4x32xf32>
    %193 = math.exp %192 : vector<4x32xf32>
    %cst_94 = arith.constant 1.000000e+00 : f32
    %194 = vector.broadcast %cst_94 : f32 to vector<4x32xf32>
    %195 = arith.addf %194, %193 : vector<4x32xf32>
    %196 = arith.divf %194, %195 : vector<4x32xf32>
    %197 = arith.mulf %188, %176 : vector<4x32xf32>
    %198 = arith.mulf %182, %190 : vector<4x32xf32>
    %199 = arith.addf %197, %198 : vector<4x32xf32>
    %200 = math.tanh %199 : vector<4x32xf32>
    %201 = arith.mulf %196, %200 : vector<4x32xf32>
    %c0_95 = arith.constant 0 : index
    %c32_96 = arith.constant 32 : index
    %202 = vector.load %arg7[%c0_95, %c32_96] : memref<4x64xf32, #tpu.memory_space<vmem>>, vector<4x32xf32>
    %203 = vector.extract_strided_slice %175 {offsets = [0, 0], sizes = [4, 32], strides = [1, 1]} : vector<4x128xf32> to vector<4x32xf32>
    %204 = arith.negf %203 : vector<4x32xf32>
    %205 = math.exp %204 : vector<4x32xf32>
    %cst_97 = arith.constant 1.000000e+00 : f32
    %206 = vector.broadcast %cst_97 : f32 to vector<4x32xf32>
    %207 = arith.addf %206, %205 : vector<4x32xf32>
    %208 = arith.divf %206, %207 : vector<4x32xf32>
    %209 = vector.extract_strided_slice %175 {offsets = [0, 32], sizes = [4, 32], strides = [1, 1]} : vector<4x128xf32> to vector<4x32xf32>
    %210 = arith.negf %209 : vector<4x32xf32>
    %211 = math.exp %210 : vector<4x32xf32>
    %cst_98 = arith.constant 1.000000e+00 : f32
    %212 = vector.broadcast %cst_98 : f32 to vector<4x32xf32>
    %213 = arith.addf %212, %211 : vector<4x32xf32>
    %214 = arith.divf %212, %213 : vector<4x32xf32>
    %215 = vector.extract_strided_slice %175 {offsets = [0, 64], sizes = [4, 32], strides = [1, 1]} : vector<4x128xf32> to vector<4x32xf32>
    %216 = math.tanh %215 : vector<4x32xf32>
    %217 = vector.extract_strided_slice %175 {offsets = [0, 96], sizes = [4, 32], strides = [1, 1]} : vector<4x128xf32> to vector<4x32xf32>
    %218 = arith.negf %217 : vector<4x32xf32>
    %219 = math.exp %218 : vector<4x32xf32>
    %cst_99 = arith.constant 1.000000e+00 : f32
    %220 = vector.broadcast %cst_99 : f32 to vector<4x32xf32>
    %221 = arith.addf %220, %219 : vector<4x32xf32>
    %222 = arith.divf %220, %221 : vector<4x32xf32>
    %223 = arith.mulf %214, %202 : vector<4x32xf32>
    %224 = arith.mulf %208, %216 : vector<4x32xf32>
    %225 = arith.addf %223, %224 : vector<4x32xf32>
    %226 = math.tanh %225 : vector<4x32xf32>
    %227 = arith.mulf %222, %226 : vector<4x32xf32>
    %c0_100 = arith.constant 0 : index
    %c0_101 = arith.constant 0 : index
    %228 = vector.load %arg6[%c0_100, %c0_101] : memref<4x64xf32, #tpu.memory_space<vmem>>, vector<4x32xf32>
    tpu.vector_store %arg6[%c0_100, %c0_101], %201 {strides = array<i32>} : memref<4x64xf32, #tpu.memory_space<vmem>>, vector<4x32xf32>,
    %c0_102 = arith.constant 0 : index
    %c32_103 = arith.constant 32 : index
    %229 = vector.load %arg6[%c0_102, %c32_103] : memref<4x64xf32, #tpu.memory_space<vmem>>, vector<4x32xf32>
    tpu.vector_store %arg6[%c0_102, %c32_103], %227 {strides = array<i32>} : memref<4x64xf32, #tpu.memory_space<vmem>>, vector<4x32xf32>,
    %c0_104 = arith.constant 0 : index
    %c0_105 = arith.constant 0 : index
    %230 = vector.load %arg7[%c0_104, %c0_105] : memref<4x64xf32, #tpu.memory_space<vmem>>, vector<4x32xf32>
    tpu.vector_store %arg7[%c0_104, %c0_105], %199 {strides = array<i32>} : memref<4x64xf32, #tpu.memory_space<vmem>>, vector<4x32xf32>,
    %c0_106 = arith.constant 0 : index
    %c32_107 = arith.constant 32 : index
    %231 = vector.load %arg7[%c0_106, %c32_107] : memref<4x64xf32, #tpu.memory_space<vmem>>, vector<4x32xf32>
    tpu.vector_store %arg7[%c0_106, %c32_107], %225 {strides = array<i32>} : memref<4x64xf32, #tpu.memory_space<vmem>>, vector<4x32xf32>,
    %c2_108 = arith.constant 2 : index
    %c0_109 = arith.constant 0 : index
    %c0_110 = arith.constant 0 : index
    %232 = vector.load %arg4[%c2_108, %c0_109, %c0_110] : memref<8x4x64xf32, #tpu.memory_space<vmem>>, vector<1x4x32xf32>
    %233 = vector.shape_cast %232 : vector<1x4x32xf32> to vector<4x32xf32>
    %234 = vector.shape_cast %201 : vector<4x32xf32> to vector<1x4x32xf32>
    tpu.vector_store %arg4[%c2_108, %c0_109, %c0_110], %234 {strides = array<i32>} : memref<8x4x64xf32, #tpu.memory_space<vmem>>, vector<1x4x32xf32>,
    %c5_111 = arith.constant 5 : index
    %c0_112 = arith.constant 0 : index
    %c32_113 = arith.constant 32 : index
    %235 = vector.load %arg4[%c5_111, %c0_112, %c32_113] : memref<8x4x64xf32, #tpu.memory_space<vmem>>, vector<1x4x32xf32>
    %236 = vector.shape_cast %235 : vector<1x4x32xf32> to vector<4x32xf32>
    %237 = vector.shape_cast %227 : vector<4x32xf32> to vector<1x4x32xf32>
    tpu.vector_store %arg4[%c5_111, %c0_112, %c32_113], %237 {strides = array<i32>} : memref<8x4x64xf32, #tpu.memory_space<vmem>>, vector<1x4x32xf32>,
    %c0_114 = arith.constant 0 : index
    %c0_115 = arith.constant 0 : index
    %238 = vector.load %arg6[%c0_114, %c0_115] : memref<4x64xf32, #tpu.memory_space<vmem>>, vector<4x64xf32>
    %c0_116 = arith.constant 0 : index
    %c0_117 = arith.constant 0 : index
    %239 = vector.load %arg2[%c0_116, %c0_117] : memref<64x256xf32, #tpu.memory_space<vmem>>, vector<64x256xf32>
    %cst_118 = arith.constant dense<0.000000e+00> : vector<4x256xf32>
    %240 = tpu.matmul %238, %239, %cst_118 {dimension_numbers = #tpu.dot_dimension_numbers<[1], [0], [0], [1], [0, 0, 1, 1], [], []>} : vector<4x64xf32>, vector<64x256xf32>, vector<4x256xf32> -> vector<4x256xf32>
    %c3 = arith.constant 3 : index
    %c0_119 = arith.constant 0 : index
    %c0_120 = arith.constant 0 : index
    %241 = vector.load %arg5[%c3, %c0_119, %c0_120] : memref<8x4x256xf32, #tpu.memory_space<vmem>>, vector<1x4x256xf32>
    %242 = vector.shape_cast %241 : vector<1x4x256xf32> to vector<4x256xf32>
    %243 = vector.extract_strided_slice %242 {offsets = [0, 0], sizes = [4, 128], strides = [1, 1]} : vector<4x256xf32> to vector<4x128xf32>
    %244 = vector.extract_strided_slice %240 {offsets = [0, 0], sizes = [4, 128], strides = [1, 1]} : vector<4x256xf32> to vector<4x128xf32>
    %245 = arith.addf %243, %244 : vector<4x128xf32>
    %c4 = arith.constant 4 : index
    %c0_121 = arith.constant 0 : index
    %c0_122 = arith.constant 0 : index
    %246 = vector.load %arg5[%c4, %c0_121, %c0_122] : memref<8x4x256xf32, #tpu.memory_space<vmem>>, vector<1x4x256xf32>
    %247 = vector.shape_cast %246 : vector<1x4x256xf32> to vector<4x256xf32>
    %248 = vector.extract_strided_slice %247 {offsets = [0, 128], sizes = [4, 128], strides = [1, 1]} : vector<4x256xf32> to vector<4x128xf32>
    %249 = vector.extract_strided_slice %240 {offsets = [0, 128], sizes = [4, 128], strides = [1, 1]} : vector<4x256xf32> to vector<4x128xf32>
    %250 = arith.addf %248, %249 : vector<4x128xf32>
    %c0_123 = arith.constant 0 : index
    %c0_124 = arith.constant 0 : index
    %251 = vector.load %arg7[%c0_123, %c0_124] : memref<4x64xf32, #tpu.memory_space<vmem>>, vector<4x32xf32>
    %252 = vector.extract_strided_slice %245 {offsets = [0, 0], sizes = [4, 32], strides = [1, 1]} : vector<4x128xf32> to vector<4x32xf32>
    %253 = arith.negf %252 : vector<4x32xf32>
    %254 = math.exp %253 : vector<4x32xf32>
    %cst_125 = arith.constant 1.000000e+00 : f32
    %255 = vector.broadcast %cst_125 : f32 to vector<4x32xf32>
    %256 = arith.addf %255, %254 : vector<4x32xf32>
    %257 = arith.divf %255, %256 : vector<4x32xf32>
    %258 = vector.extract_strided_slice %245 {offsets = [0, 32], sizes = [4, 32], strides = [1, 1]} : vector<4x128xf32> to vector<4x32xf32>
    %259 = arith.negf %258 : vector<4x32xf32>
    %260 = math.exp %259 : vector<4x32xf32>
    %cst_126 = arith.constant 1.000000e+00 : f32
    %261 = vector.broadcast %cst_126 : f32 to vector<4x32xf32>
    %262 = arith.addf %261, %260 : vector<4x32xf32>
    %263 = arith.divf %261, %262 : vector<4x32xf32>
    %264 = vector.extract_strided_slice %245 {offsets = [0, 64], sizes = [4, 32], strides = [1, 1]} : vector<4x128xf32> to vector<4x32xf32>
    %265 = math.tanh %264 : vector<4x32xf32>
    %266 = vector.extract_strided_slice %245 {offsets = [0, 96], sizes = [4, 32], strides = [1, 1]} : vector<4x128xf32> to vector<4x32xf32>
    %267 = arith.negf %266 : vector<4x32xf32>
    %268 = math.exp %267 : vector<4x32xf32>
    %cst_127 = arith.constant 1.000000e+00 : f32
    %269 = vector.broadcast %cst_127 : f32 to vector<4x32xf32>
    %270 = arith.addf %269, %268 : vector<4x32xf32>
    %271 = arith.divf %269, %270 : vector<4x32xf32>
    %272 = arith.mulf %263, %251 : vector<4x32xf32>
    %273 = arith.mulf %257, %265 : vector<4x32xf32>
    %274 = arith.addf %272, %273 : vector<4x32xf32>
    %275 = math.tanh %274 : vector<4x32xf32>
    %276 = arith.mulf %271, %275 : vector<4x32xf32>
    %c0_128 = arith.constant 0 : index
    %c32_129 = arith.constant 32 : index
    %277 = vector.load %arg7[%c0_128, %c32_129] : memref<4x64xf32, #tpu.memory_space<vmem>>, vector<4x32xf32>
    %278 = vector.extract_strided_slice %250 {offsets = [0, 0], sizes = [4, 32], strides = [1, 1]} : vector<4x128xf32> to vector<4x32xf32>
    %279 = arith.negf %278 : vector<4x32xf32>
    %280 = math.exp %279 : vector<4x32xf32>
    %cst_130 = arith.constant 1.000000e+00 : f32
    %281 = vector.broadcast %cst_130 : f32 to vector<4x32xf32>
    %282 = arith.addf %281, %280 : vector<4x32xf32>
    %283 = arith.divf %281, %282 : vector<4x32xf32>
    %284 = vector.extract_strided_slice %250 {offsets = [0, 32], sizes = [4, 32], strides = [1, 1]} : vector<4x128xf32> to vector<4x32xf32>
    %285 = arith.negf %284 : vector<4x32xf32>
    %286 = math.exp %285 : vector<4x32xf32>
    %cst_131 = arith.constant 1.000000e+00 : f32
    %287 = vector.broadcast %cst_131 : f32 to vector<4x32xf32>
    %288 = arith.addf %287, %286 : vector<4x32xf32>
    %289 = arith.divf %287, %288 : vector<4x32xf32>
    %290 = vector.extract_strided_slice %250 {offsets = [0, 64], sizes = [4, 32], strides = [1, 1]} : vector<4x128xf32> to vector<4x32xf32>
    %291 = math.tanh %290 : vector<4x32xf32>
    %292 = vector.extract_strided_slice %250 {offsets = [0, 96], sizes = [4, 32], strides = [1, 1]} : vector<4x128xf32> to vector<4x32xf32>
    %293 = arith.negf %292 : vector<4x32xf32>
    %294 = math.exp %293 : vector<4x32xf32>
    %cst_132 = arith.constant 1.000000e+00 : f32
    %295 = vector.broadcast %cst_132 : f32 to vector<4x32xf32>
    %296 = arith.addf %295, %294 : vector<4x32xf32>
    %297 = arith.divf %295, %296 : vector<4x32xf32>
    %298 = arith.mulf %289, %277 : vector<4x32xf32>
    %299 = arith.mulf %283, %291 : vector<4x32xf32>
    %300 = arith.addf %298, %299 : vector<4x32xf32>
    %301 = math.tanh %300 : vector<4x32xf32>
    %302 = arith.mulf %297, %301 : vector<4x32xf32>
    %c0_133 = arith.constant 0 : index
    %c0_134 = arith.constant 0 : index
    %303 = vector.load %arg6[%c0_133, %c0_134] : memref<4x64xf32, #tpu.memory_space<vmem>>, vector<4x32xf32>
    tpu.vector_store %arg6[%c0_133, %c0_134], %276 {strides = array<i32>} : memref<4x64xf32, #tpu.memory_space<vmem>>, vector<4x32xf32>,
    %c0_135 = arith.constant 0 : index
    %c32_136 = arith.constant 32 : index
    %304 = vector.load %arg6[%c0_135, %c32_136] : memref<4x64xf32, #tpu.memory_space<vmem>>, vector<4x32xf32>
    tpu.vector_store %arg6[%c0_135, %c32_136], %302 {strides = array<i32>} : memref<4x64xf32, #tpu.memory_space<vmem>>, vector<4x32xf32>,
    %c0_137 = arith.constant 0 : index
    %c0_138 = arith.constant 0 : index
    %305 = vector.load %arg7[%c0_137, %c0_138] : memref<4x64xf32, #tpu.memory_space<vmem>>, vector<4x32xf32>
    tpu.vector_store %arg7[%c0_137, %c0_138], %274 {strides = array<i32>} : memref<4x64xf32, #tpu.memory_space<vmem>>, vector<4x32xf32>,
    %c0_139 = arith.constant 0 : index
    %c32_140 = arith.constant 32 : index
    %306 = vector.load %arg7[%c0_139, %c32_140] : memref<4x64xf32, #tpu.memory_space<vmem>>, vector<4x32xf32>
    tpu.vector_store %arg7[%c0_139, %c32_140], %300 {strides = array<i32>} : memref<4x64xf32, #tpu.memory_space<vmem>>, vector<4x32xf32>,
    %c3_141 = arith.constant 3 : index
    %c0_142 = arith.constant 0 : index
    %c0_143 = arith.constant 0 : index
    %307 = vector.load %arg4[%c3_141, %c0_142, %c0_143] : memref<8x4x64xf32, #tpu.memory_space<vmem>>, vector<1x4x32xf32>
    %308 = vector.shape_cast %307 : vector<1x4x32xf32> to vector<4x32xf32>
    %309 = vector.shape_cast %276 : vector<4x32xf32> to vector<1x4x32xf32>
    tpu.vector_store %arg4[%c3_141, %c0_142, %c0_143], %309 {strides = array<i32>} : memref<8x4x64xf32, #tpu.memory_space<vmem>>, vector<1x4x32xf32>,
    %c4_144 = arith.constant 4 : index
    %c0_145 = arith.constant 0 : index
    %c32_146 = arith.constant 32 : index
    %310 = vector.load %arg4[%c4_144, %c0_145, %c32_146] : memref<8x4x64xf32, #tpu.memory_space<vmem>>, vector<1x4x32xf32>
    %311 = vector.shape_cast %310 : vector<1x4x32xf32> to vector<4x32xf32>
    %312 = vector.shape_cast %302 : vector<4x32xf32> to vector<1x4x32xf32>
    tpu.vector_store %arg4[%c4_144, %c0_145, %c32_146], %312 {strides = array<i32>} : memref<8x4x64xf32, #tpu.memory_space<vmem>>, vector<1x4x32xf32>,
    %c0_147 = arith.constant 0 : index
    %c0_148 = arith.constant 0 : index
    %313 = vector.load %arg6[%c0_147, %c0_148] : memref<4x64xf32, #tpu.memory_space<vmem>>, vector<4x64xf32>
    %c0_149 = arith.constant 0 : index
    %c0_150 = arith.constant 0 : index
    %314 = vector.load %arg2[%c0_149, %c0_150] : memref<64x256xf32, #tpu.memory_space<vmem>>, vector<64x256xf32>
    %cst_151 = arith.constant dense<0.000000e+00> : vector<4x256xf32>
    %315 = tpu.matmul %313, %314, %cst_151 {dimension_numbers = #tpu.dot_dimension_numbers<[1], [0], [0], [1], [0, 0, 1, 1], [], []>} : vector<4x64xf32>, vector<64x256xf32>, vector<4x256xf32> -> vector<4x256xf32>
    %c4_152 = arith.constant 4 : index
    %c0_153 = arith.constant 0 : index
    %c0_154 = arith.constant 0 : index
    %316 = vector.load %arg5[%c4_152, %c0_153, %c0_154] : memref<8x4x256xf32, #tpu.memory_space<vmem>>, vector<1x4x256xf32>
    %317 = vector.shape_cast %316 : vector<1x4x256xf32> to vector<4x256xf32>
    %318 = vector.extract_strided_slice %317 {offsets = [0, 0], sizes = [4, 128], strides = [1, 1]} : vector<4x256xf32> to vector<4x128xf32>
    %319 = vector.extract_strided_slice %315 {offsets = [0, 0], sizes = [4, 128], strides = [1, 1]} : vector<4x256xf32> to vector<4x128xf32>
    %320 = arith.addf %318, %319 : vector<4x128xf32>
    %c3_155 = arith.constant 3 : index
    %c0_156 = arith.constant 0 : index
    %c0_157 = arith.constant 0 : index
    %321 = vector.load %arg5[%c3_155, %c0_156, %c0_157] : memref<8x4x256xf32, #tpu.memory_space<vmem>>, vector<1x4x256xf32>
    %322 = vector.shape_cast %321 : vector<1x4x256xf32> to vector<4x256xf32>
    %323 = vector.extract_strided_slice %322 {offsets = [0, 128], sizes = [4, 128], strides = [1, 1]} : vector<4x256xf32> to vector<4x128xf32>
    %324 = vector.extract_strided_slice %315 {offsets = [0, 128], sizes = [4, 128], strides = [1, 1]} : vector<4x256xf32> to vector<4x128xf32>
    %325 = arith.addf %323, %324 : vector<4x128xf32>
    %c0_158 = arith.constant 0 : index
    %c0_159 = arith.constant 0 : index
    %326 = vector.load %arg7[%c0_158, %c0_159] : memref<4x64xf32, #tpu.memory_space<vmem>>, vector<4x32xf32>
    %327 = vector.extract_strided_slice %320 {offsets = [0, 0], sizes = [4, 32], strides = [1, 1]} : vector<4x128xf32> to vector<4x32xf32>
    %328 = arith.negf %327 : vector<4x32xf32>
    %329 = math.exp %328 : vector<4x32xf32>
    %cst_160 = arith.constant 1.000000e+00 : f32
    %330 = vector.broadcast %cst_160 : f32 to vector<4x32xf32>
    %331 = arith.addf %330, %329 : vector<4x32xf32>
    %332 = arith.divf %330, %331 : vector<4x32xf32>
    %333 = vector.extract_strided_slice %320 {offsets = [0, 32], sizes = [4, 32], strides = [1, 1]} : vector<4x128xf32> to vector<4x32xf32>
    %334 = arith.negf %333 : vector<4x32xf32>
    %335 = math.exp %334 : vector<4x32xf32>
    %cst_161 = arith.constant 1.000000e+00 : f32
    %336 = vector.broadcast %cst_161 : f32 to vector<4x32xf32>
    %337 = arith.addf %336, %335 : vector<4x32xf32>
    %338 = arith.divf %336, %337 : vector<4x32xf32>
    %339 = vector.extract_strided_slice %320 {offsets = [0, 64], sizes = [4, 32], strides = [1, 1]} : vector<4x128xf32> to vector<4x32xf32>
    %340 = math.tanh %339 : vector<4x32xf32>
    %341 = vector.extract_strided_slice %320 {offsets = [0, 96], sizes = [4, 32], strides = [1, 1]} : vector<4x128xf32> to vector<4x32xf32>
    %342 = arith.negf %341 : vector<4x32xf32>
    %343 = math.exp %342 : vector<4x32xf32>
    %cst_162 = arith.constant 1.000000e+00 : f32
    %344 = vector.broadcast %cst_162 : f32 to vector<4x32xf32>
    %345 = arith.addf %344, %343 : vector<4x32xf32>
    %346 = arith.divf %344, %345 : vector<4x32xf32>
    %347 = arith.mulf %338, %326 : vector<4x32xf32>
    %348 = arith.mulf %332, %340 : vector<4x32xf32>
    %349 = arith.addf %347, %348 : vector<4x32xf32>
    %350 = math.tanh %349 : vector<4x32xf32>
    %351 = arith.mulf %346, %350 : vector<4x32xf32>
    %c0_163 = arith.constant 0 : index
    %c32_164 = arith.constant 32 : index
    %352 = vector.load %arg7[%c0_163, %c32_164] : memref<4x64xf32, #tpu.memory_space<vmem>>, vector<4x32xf32>
    %353 = vector.extract_strided_slice %325 {offsets = [0, 0], sizes = [4, 32], strides = [1, 1]} : vector<4x128xf32> to vector<4x32xf32>
    %354 = arith.negf %353 : vector<4x32xf32>
    %355 = math.exp %354 : vector<4x32xf32>
    %cst_165 = arith.constant 1.000000e+00 : f32
    %356 = vector.broadcast %cst_165 : f32 to vector<4x32xf32>
    %357 = arith.addf %356, %355 : vector<4x32xf32>
    %358 = arith.divf %356, %357 : vector<4x32xf32>
    %359 = vector.extract_strided_slice %325 {offsets = [0, 32], sizes = [4, 32], strides = [1, 1]} : vector<4x128xf32> to vector<4x32xf32>
    %360 = arith.negf %359 : vector<4x32xf32>
    %361 = math.exp %360 : vector<4x32xf32>
    %cst_166 = arith.constant 1.000000e+00 : f32
    %362 = vector.broadcast %cst_166 : f32 to vector<4x32xf32>
    %363 = arith.addf %362, %361 : vector<4x32xf32>
    %364 = arith.divf %362, %363 : vector<4x32xf32>
    %365 = vector.extract_strided_slice %325 {offsets = [0, 64], sizes = [4, 32], strides = [1, 1]} : vector<4x128xf32> to vector<4x32xf32>
    %366 = math.tanh %365 : vector<4x32xf32>
    %367 = vector.extract_strided_slice %325 {offsets = [0, 96], sizes = [4, 32], strides = [1, 1]} : vector<4x128xf32> to vector<4x32xf32>
    %368 = arith.negf %367 : vector<4x32xf32>
    %369 = math.exp %368 : vector<4x32xf32>
    %cst_167 = arith.constant 1.000000e+00 : f32
    %370 = vector.broadcast %cst_167 : f32 to vector<4x32xf32>
    %371 = arith.addf %370, %369 : vector<4x32xf32>
    %372 = arith.divf %370, %371 : vector<4x32xf32>
    %373 = arith.mulf %364, %352 : vector<4x32xf32>
    %374 = arith.mulf %358, %366 : vector<4x32xf32>
    %375 = arith.addf %373, %374 : vector<4x32xf32>
    %376 = math.tanh %375 : vector<4x32xf32>
    %377 = arith.mulf %372, %376 : vector<4x32xf32>
    %c0_168 = arith.constant 0 : index
    %c0_169 = arith.constant 0 : index
    %378 = vector.load %arg6[%c0_168, %c0_169] : memref<4x64xf32, #tpu.memory_space<vmem>>, vector<4x32xf32>
    tpu.vector_store %arg6[%c0_168, %c0_169], %351 {strides = array<i32>} : memref<4x64xf32, #tpu.memory_space<vmem>>, vector<4x32xf32>,
    %c0_170 = arith.constant 0 : index
    %c32_171 = arith.constant 32 : index
    %379 = vector.load %arg6[%c0_170, %c32_171] : memref<4x64xf32, #tpu.memory_space<vmem>>, vector<4x32xf32>
    tpu.vector_store %arg6[%c0_170, %c32_171], %377 {strides = array<i32>} : memref<4x64xf32, #tpu.memory_space<vmem>>, vector<4x32xf32>,
    %c0_172 = arith.constant 0 : index
    %c0_173 = arith.constant 0 : index
    %380 = vector.load %arg7[%c0_172, %c0_173] : memref<4x64xf32, #tpu.memory_space<vmem>>, vector<4x32xf32>
    tpu.vector_store %arg7[%c0_172, %c0_173], %349 {strides = array<i32>} : memref<4x64xf32, #tpu.memory_space<vmem>>, vector<4x32xf32>,
    %c0_174 = arith.constant 0 : index
    %c32_175 = arith.constant 32 : index
    %381 = vector.load %arg7[%c0_174, %c32_175] : memref<4x64xf32, #tpu.memory_space<vmem>>, vector<4x32xf32>
    tpu.vector_store %arg7[%c0_174, %c32_175], %375 {strides = array<i32>} : memref<4x64xf32, #tpu.memory_space<vmem>>, vector<4x32xf32>,
    %c4_176 = arith.constant 4 : index
    %c0_177 = arith.constant 0 : index
    %c0_178 = arith.constant 0 : index
    %382 = vector.load %arg4[%c4_176, %c0_177, %c0_178] : memref<8x4x64xf32, #tpu.memory_space<vmem>>, vector<1x4x32xf32>
    %383 = vector.shape_cast %382 : vector<1x4x32xf32> to vector<4x32xf32>
    %384 = vector.shape_cast %351 : vector<4x32xf32> to vector<1x4x32xf32>
    tpu.vector_store %arg4[%c4_176, %c0_177, %c0_178], %384 {strides = array<i32>} : memref<8x4x64xf32, #tpu.memory_space<vmem>>, vector<1x4x32xf32>,
    %c3_179 = arith.constant 3 : index
    %c0_180 = arith.constant 0 : index
    %c32_181 = arith.constant 32 : index
    %385 = vector.load %arg4[%c3_179, %c0_180, %c32_181] : memref<8x4x64xf32, #tpu.memory_space<vmem>>, vector<1x4x32xf32>
    %386 = vector.shape_cast %385 : vector<1x4x32xf32> to vector<4x32xf32>
    %387 = vector.shape_cast %377 : vector<4x32xf32> to vector<1x4x32xf32>
    tpu.vector_store %arg4[%c3_179, %c0_180, %c32_181], %387 {strides = array<i32>} : memref<8x4x64xf32, #tpu.memory_space<vmem>>, vector<1x4x32xf32>,
    %c0_182 = arith.constant 0 : index
    %c0_183 = arith.constant 0 : index
    %388 = vector.load %arg6[%c0_182, %c0_183] : memref<4x64xf32, #tpu.memory_space<vmem>>, vector<4x64xf32>
    %c0_184 = arith.constant 0 : index
    %c0_185 = arith.constant 0 : index
    %389 = vector.load %arg2[%c0_184, %c0_185] : memref<64x256xf32, #tpu.memory_space<vmem>>, vector<64x256xf32>
    %cst_186 = arith.constant dense<0.000000e+00> : vector<4x256xf32>
    %390 = tpu.matmul %388, %389, %cst_186 {dimension_numbers = #tpu.dot_dimension_numbers<[1], [0], [0], [1], [0, 0, 1, 1], [], []>} : vector<4x64xf32>, vector<64x256xf32>, vector<4x256xf32> -> vector<4x256xf32>
    %c5_187 = arith.constant 5 : index
    %c0_188 = arith.constant 0 : index
    %c0_189 = arith.constant 0 : index
    %391 = vector.load %arg5[%c5_187, %c0_188, %c0_189] : memref<8x4x256xf32, #tpu.memory_space<vmem>>, vector<1x4x256xf32>
    %392 = vector.shape_cast %391 : vector<1x4x256xf32> to vector<4x256xf32>
    %393 = vector.extract_strided_slice %392 {offsets = [0, 0], sizes = [4, 128], strides = [1, 1]} : vector<4x256xf32> to vector<4x128xf32>
    %394 = vector.extract_strided_slice %390 {offsets = [0, 0], sizes = [4, 128], strides = [1, 1]} : vector<4x256xf32> to vector<4x128xf32>
    %395 = arith.addf %393, %394 : vector<4x128xf32>
    %c2_190 = arith.constant 2 : index
    %c0_191 = arith.constant 0 : index
    %c0_192 = arith.constant 0 : index
    %396 = vector.load %arg5[%c2_190, %c0_191, %c0_192] : memref<8x4x256xf32, #tpu.memory_space<vmem>>, vector<1x4x256xf32>
    %397 = vector.shape_cast %396 : vector<1x4x256xf32> to vector<4x256xf32>
    %398 = vector.extract_strided_slice %397 {offsets = [0, 128], sizes = [4, 128], strides = [1, 1]} : vector<4x256xf32> to vector<4x128xf32>
    %399 = vector.extract_strided_slice %390 {offsets = [0, 128], sizes = [4, 128], strides = [1, 1]} : vector<4x256xf32> to vector<4x128xf32>
    %400 = arith.addf %398, %399 : vector<4x128xf32>
    %c0_193 = arith.constant 0 : index
    %c0_194 = arith.constant 0 : index
    %401 = vector.load %arg7[%c0_193, %c0_194] : memref<4x64xf32, #tpu.memory_space<vmem>>, vector<4x32xf32>
    %402 = vector.extract_strided_slice %395 {offsets = [0, 0], sizes = [4, 32], strides = [1, 1]} : vector<4x128xf32> to vector<4x32xf32>
    %403 = arith.negf %402 : vector<4x32xf32>
    %404 = math.exp %403 : vector<4x32xf32>
    %cst_195 = arith.constant 1.000000e+00 : f32
    %405 = vector.broadcast %cst_195 : f32 to vector<4x32xf32>
    %406 = arith.addf %405, %404 : vector<4x32xf32>
    %407 = arith.divf %405, %406 : vector<4x32xf32>
    %408 = vector.extract_strided_slice %395 {offsets = [0, 32], sizes = [4, 32], strides = [1, 1]} : vector<4x128xf32> to vector<4x32xf32>
    %409 = arith.negf %408 : vector<4x32xf32>
    %410 = math.exp %409 : vector<4x32xf32>
    %cst_196 = arith.constant 1.000000e+00 : f32
    %411 = vector.broadcast %cst_196 : f32 to vector<4x32xf32>
    %412 = arith.addf %411, %410 : vector<4x32xf32>
    %413 = arith.divf %411, %412 : vector<4x32xf32>
    %414 = vector.extract_strided_slice %395 {offsets = [0, 64], sizes = [4, 32], strides = [1, 1]} : vector<4x128xf32> to vector<4x32xf32>
    %415 = math.tanh %414 : vector<4x32xf32>
    %416 = vector.extract_strided_slice %395 {offsets = [0, 96], sizes = [4, 32], strides = [1, 1]} : vector<4x128xf32> to vector<4x32xf32>
    %417 = arith.negf %416 : vector<4x32xf32>
    %418 = math.exp %417 : vector<4x32xf32>
    %cst_197 = arith.constant 1.000000e+00 : f32
    %419 = vector.broadcast %cst_197 : f32 to vector<4x32xf32>
    %420 = arith.addf %419, %418 : vector<4x32xf32>
    %421 = arith.divf %419, %420 : vector<4x32xf32>
    %422 = arith.mulf %413, %401 : vector<4x32xf32>
    %423 = arith.mulf %407, %415 : vector<4x32xf32>
    %424 = arith.addf %422, %423 : vector<4x32xf32>
    %425 = math.tanh %424 : vector<4x32xf32>
    %426 = arith.mulf %421, %425 : vector<4x32xf32>
    %c0_198 = arith.constant 0 : index
    %c32_199 = arith.constant 32 : index
    %427 = vector.load %arg7[%c0_198, %c32_199] : memref<4x64xf32, #tpu.memory_space<vmem>>, vector<4x32xf32>
    %428 = vector.extract_strided_slice %400 {offsets = [0, 0], sizes = [4, 32], strides = [1, 1]} : vector<4x128xf32> to vector<4x32xf32>
    %429 = arith.negf %428 : vector<4x32xf32>
    %430 = math.exp %429 : vector<4x32xf32>
    %cst_200 = arith.constant 1.000000e+00 : f32
    %431 = vector.broadcast %cst_200 : f32 to vector<4x32xf32>
    %432 = arith.addf %431, %430 : vector<4x32xf32>
    %433 = arith.divf %431, %432 : vector<4x32xf32>
    %434 = vector.extract_strided_slice %400 {offsets = [0, 32], sizes = [4, 32], strides = [1, 1]} : vector<4x128xf32> to vector<4x32xf32>
    %435 = arith.negf %434 : vector<4x32xf32>
    %436 = math.exp %435 : vector<4x32xf32>
    %cst_201 = arith.constant 1.000000e+00 : f32
    %437 = vector.broadcast %cst_201 : f32 to vector<4x32xf32>
    %438 = arith.addf %437, %436 : vector<4x32xf32>
    %439 = arith.divf %437, %438 : vector<4x32xf32>
    %440 = vector.extract_strided_slice %400 {offsets = [0, 64], sizes = [4, 32], strides = [1, 1]} : vector<4x128xf32> to vector<4x32xf32>
    %441 = math.tanh %440 : vector<4x32xf32>
    %442 = vector.extract_strided_slice %400 {offsets = [0, 96], sizes = [4, 32], strides = [1, 1]} : vector<4x128xf32> to vector<4x32xf32>
    %443 = arith.negf %442 : vector<4x32xf32>
    %444 = math.exp %443 : vector<4x32xf32>
    %cst_202 = arith.constant 1.000000e+00 : f32
    %445 = vector.broadcast %cst_202 : f32 to vector<4x32xf32>
    %446 = arith.addf %445, %444 : vector<4x32xf32>
    %447 = arith.divf %445, %446 : vector<4x32xf32>
    %448 = arith.mulf %439, %427 : vector<4x32xf32>
    %449 = arith.mulf %433, %441 : vector<4x32xf32>
    %450 = arith.addf %448, %449 : vector<4x32xf32>
    %451 = math.tanh %450 : vector<4x32xf32>
    %452 = arith.mulf %447, %451 : vector<4x32xf32>
    %c0_203 = arith.constant 0 : index
    %c0_204 = arith.constant 0 : index
    %453 = vector.load %arg6[%c0_203, %c0_204] : memref<4x64xf32, #tpu.memory_space<vmem>>, vector<4x32xf32>
    tpu.vector_store %arg6[%c0_203, %c0_204], %426 {strides = array<i32>} : memref<4x64xf32, #tpu.memory_space<vmem>>, vector<4x32xf32>,
    %c0_205 = arith.constant 0 : index
    %c32_206 = arith.constant 32 : index
    %454 = vector.load %arg6[%c0_205, %c32_206] : memref<4x64xf32, #tpu.memory_space<vmem>>, vector<4x32xf32>
    tpu.vector_store %arg6[%c0_205, %c32_206], %452 {strides = array<i32>} : memref<4x64xf32, #tpu.memory_space<vmem>>, vector<4x32xf32>,
    %c0_207 = arith.constant 0 : index
    %c0_208 = arith.constant 0 : index
    %455 = vector.load %arg7[%c0_207, %c0_208] : memref<4x64xf32, #tpu.memory_space<vmem>>, vector<4x32xf32>
    tpu.vector_store %arg7[%c0_207, %c0_208], %424 {strides = array<i32>} : memref<4x64xf32, #tpu.memory_space<vmem>>, vector<4x32xf32>,
    %c0_209 = arith.constant 0 : index
    %c32_210 = arith.constant 32 : index
    %456 = vector.load %arg7[%c0_209, %c32_210] : memref<4x64xf32, #tpu.memory_space<vmem>>, vector<4x32xf32>
    tpu.vector_store %arg7[%c0_209, %c32_210], %450 {strides = array<i32>} : memref<4x64xf32, #tpu.memory_space<vmem>>, vector<4x32xf32>,
    %c5_211 = arith.constant 5 : index
    %c0_212 = arith.constant 0 : index
    %c0_213 = arith.constant 0 : index
    %457 = vector.load %arg4[%c5_211, %c0_212, %c0_213] : memref<8x4x64xf32, #tpu.memory_space<vmem>>, vector<1x4x32xf32>
    %458 = vector.shape_cast %457 : vector<1x4x32xf32> to vector<4x32xf32>
    %459 = vector.shape_cast %426 : vector<4x32xf32> to vector<1x4x32xf32>
    tpu.vector_store %arg4[%c5_211, %c0_212, %c0_213], %459 {strides = array<i32>} : memref<8x4x64xf32, #tpu.memory_space<vmem>>, vector<1x4x32xf32>,
    %c2_214 = arith.constant 2 : index
    %c0_215 = arith.constant 0 : index
    %c32_216 = arith.constant 32 : index
    %460 = vector.load %arg4[%c2_214, %c0_215, %c32_216] : memref<8x4x64xf32, #tpu.memory_space<vmem>>, vector<1x4x32xf32>
    %461 = vector.shape_cast %460 : vector<1x4x32xf32> to vector<4x32xf32>
    %462 = vector.shape_cast %452 : vector<4x32xf32> to vector<1x4x32xf32>
    tpu.vector_store %arg4[%c2_214, %c0_215, %c32_216], %462 {strides = array<i32>} : memref<8x4x64xf32, #tpu.memory_space<vmem>>, vector<1x4x32xf32>,
    %c0_217 = arith.constant 0 : index
    %c0_218 = arith.constant 0 : index
    %463 = vector.load %arg6[%c0_217, %c0_218] : memref<4x64xf32, #tpu.memory_space<vmem>>, vector<4x64xf32>
    %c0_219 = arith.constant 0 : index
    %c0_220 = arith.constant 0 : index
    %464 = vector.load %arg2[%c0_219, %c0_220] : memref<64x256xf32, #tpu.memory_space<vmem>>, vector<64x256xf32>
    %cst_221 = arith.constant dense<0.000000e+00> : vector<4x256xf32>
    %465 = tpu.matmul %463, %464, %cst_221 {dimension_numbers = #tpu.dot_dimension_numbers<[1], [0], [0], [1], [0, 0, 1, 1], [], []>} : vector<4x64xf32>, vector<64x256xf32>, vector<4x256xf32> -> vector<4x256xf32>
    %c6_222 = arith.constant 6 : index
    %c0_223 = arith.constant 0 : index
    %c0_224 = arith.constant 0 : index
    %466 = vector.load %arg5[%c6_222, %c0_223, %c0_224] : memref<8x4x256xf32, #tpu.memory_space<vmem>>, vector<1x4x256xf32>
    %467 = vector.shape_cast %466 : vector<1x4x256xf32> to vector<4x256xf32>
    %468 = vector.extract_strided_slice %467 {offsets = [0, 0], sizes = [4, 128], strides = [1, 1]} : vector<4x256xf32> to vector<4x128xf32>
    %469 = vector.extract_strided_slice %465 {offsets = [0, 0], sizes = [4, 128], strides = [1, 1]} : vector<4x256xf32> to vector<4x128xf32>
    %470 = arith.addf %468, %469 : vector<4x128xf32>
    %c1_225 = arith.constant 1 : index
    %c0_226 = arith.constant 0 : index
    %c0_227 = arith.constant 0 : index
    %471 = vector.load %arg5[%c1_225, %c0_226, %c0_227] : memref<8x4x256xf32, #tpu.memory_space<vmem>>, vector<1x4x256xf32>
    %472 = vector.shape_cast %471 : vector<1x4x256xf32> to vector<4x256xf32>
    %473 = vector.extract_strided_slice %472 {offsets = [0, 128], sizes = [4, 128], strides = [1, 1]} : vector<4x256xf32> to vector<4x128xf32>
    %474 = vector.extract_strided_slice %465 {offsets = [0, 128], sizes = [4, 128], strides = [1, 1]} : vector<4x256xf32> to vector<4x128xf32>
    %475 = arith.addf %473, %474 : vector<4x128xf32>
    %c0_228 = arith.constant 0 : index
    %c0_229 = arith.constant 0 : index
    %476 = vector.load %arg7[%c0_228, %c0_229] : memref<4x64xf32, #tpu.memory_space<vmem>>, vector<4x32xf32>
    %477 = vector.extract_strided_slice %470 {offsets = [0, 0], sizes = [4, 32], strides = [1, 1]} : vector<4x128xf32> to vector<4x32xf32>
    %478 = arith.negf %477 : vector<4x32xf32>
    %479 = math.exp %478 : vector<4x32xf32>
    %cst_230 = arith.constant 1.000000e+00 : f32
    %480 = vector.broadcast %cst_230 : f32 to vector<4x32xf32>
    %481 = arith.addf %480, %479 : vector<4x32xf32>
    %482 = arith.divf %480, %481 : vector<4x32xf32>
    %483 = vector.extract_strided_slice %470 {offsets = [0, 32], sizes = [4, 32], strides = [1, 1]} : vector<4x128xf32> to vector<4x32xf32>
    %484 = arith.negf %483 : vector<4x32xf32>
    %485 = math.exp %484 : vector<4x32xf32>
    %cst_231 = arith.constant 1.000000e+00 : f32
    %486 = vector.broadcast %cst_231 : f32 to vector<4x32xf32>
    %487 = arith.addf %486, %485 : vector<4x32xf32>
    %488 = arith.divf %486, %487 : vector<4x32xf32>
    %489 = vector.extract_strided_slice %470 {offsets = [0, 64], sizes = [4, 32], strides = [1, 1]} : vector<4x128xf32> to vector<4x32xf32>
    %490 = math.tanh %489 : vector<4x32xf32>
    %491 = vector.extract_strided_slice %470 {offsets = [0, 96], sizes = [4, 32], strides = [1, 1]} : vector<4x128xf32> to vector<4x32xf32>
    %492 = arith.negf %491 : vector<4x32xf32>
    %493 = math.exp %492 : vector<4x32xf32>
    %cst_232 = arith.constant 1.000000e+00 : f32
    %494 = vector.broadcast %cst_232 : f32 to vector<4x32xf32>
    %495 = arith.addf %494, %493 : vector<4x32xf32>
    %496 = arith.divf %494, %495 : vector<4x32xf32>
    %497 = arith.mulf %488, %476 : vector<4x32xf32>
    %498 = arith.mulf %482, %490 : vector<4x32xf32>
    %499 = arith.addf %497, %498 : vector<4x32xf32>
    %500 = math.tanh %499 : vector<4x32xf32>
    %501 = arith.mulf %496, %500 : vector<4x32xf32>
    %c0_233 = arith.constant 0 : index
    %c32_234 = arith.constant 32 : index
    %502 = vector.load %arg7[%c0_233, %c32_234] : memref<4x64xf32, #tpu.memory_space<vmem>>, vector<4x32xf32>
    %503 = vector.extract_strided_slice %475 {offsets = [0, 0], sizes = [4, 32], strides = [1, 1]} : vector<4x128xf32> to vector<4x32xf32>
    %504 = arith.negf %503 : vector<4x32xf32>
    %505 = math.exp %504 : vector<4x32xf32>
    %cst_235 = arith.constant 1.000000e+00 : f32
    %506 = vector.broadcast %cst_235 : f32 to vector<4x32xf32>
    %507 = arith.addf %506, %505 : vector<4x32xf32>
    %508 = arith.divf %506, %507 : vector<4x32xf32>
    %509 = vector.extract_strided_slice %475 {offsets = [0, 32], sizes = [4, 32], strides = [1, 1]} : vector<4x128xf32> to vector<4x32xf32>
    %510 = arith.negf %509 : vector<4x32xf32>
    %511 = math.exp %510 : vector<4x32xf32>
    %cst_236 = arith.constant 1.000000e+00 : f32
    %512 = vector.broadcast %cst_236 : f32 to vector<4x32xf32>
    %513 = arith.addf %512, %511 : vector<4x32xf32>
    %514 = arith.divf %512, %513 : vector<4x32xf32>
    %515 = vector.extract_strided_slice %475 {offsets = [0, 64], sizes = [4, 32], strides = [1, 1]} : vector<4x128xf32> to vector<4x32xf32>
    %516 = math.tanh %515 : vector<4x32xf32>
    %517 = vector.extract_strided_slice %475 {offsets = [0, 96], sizes = [4, 32], strides = [1, 1]} : vector<4x128xf32> to vector<4x32xf32>
    %518 = arith.negf %517 : vector<4x32xf32>
    %519 = math.exp %518 : vector<4x32xf32>
    %cst_237 = arith.constant 1.000000e+00 : f32
    %520 = vector.broadcast %cst_237 : f32 to vector<4x32xf32>
    %521 = arith.addf %520, %519 : vector<4x32xf32>
    %522 = arith.divf %520, %521 : vector<4x32xf32>
    %523 = arith.mulf %514, %502 : vector<4x32xf32>
    %524 = arith.mulf %508, %516 : vector<4x32xf32>
    %525 = arith.addf %523, %524 : vector<4x32xf32>
    %526 = math.tanh %525 : vector<4x32xf32>
    %527 = arith.mulf %522, %526 : vector<4x32xf32>
    %c0_238 = arith.constant 0 : index
    %c0_239 = arith.constant 0 : index
    %528 = vector.load %arg6[%c0_238, %c0_239] : memref<4x64xf32, #tpu.memory_space<vmem>>, vector<4x32xf32>
    tpu.vector_store %arg6[%c0_238, %c0_239], %501 {strides = array<i32>} : memref<4x64xf32, #tpu.memory_space<vmem>>, vector<4x32xf32>,
    %c0_240 = arith.constant 0 : index
    %c32_241 = arith.constant 32 : index
    %529 = vector.load %arg6[%c0_240, %c32_241] : memref<4x64xf32, #tpu.memory_space<vmem>>, vector<4x32xf32>
    tpu.vector_store %arg6[%c0_240, %c32_241], %527 {strides = array<i32>} : memref<4x64xf32, #tpu.memory_space<vmem>>, vector<4x32xf32>,
    %c0_242 = arith.constant 0 : index
    %c0_243 = arith.constant 0 : index
    %530 = vector.load %arg7[%c0_242, %c0_243] : memref<4x64xf32, #tpu.memory_space<vmem>>, vector<4x32xf32>
    tpu.vector_store %arg7[%c0_242, %c0_243], %499 {strides = array<i32>} : memref<4x64xf32, #tpu.memory_space<vmem>>, vector<4x32xf32>,
    %c0_244 = arith.constant 0 : index
    %c32_245 = arith.constant 32 : index
    %531 = vector.load %arg7[%c0_244, %c32_245] : memref<4x64xf32, #tpu.memory_space<vmem>>, vector<4x32xf32>
    tpu.vector_store %arg7[%c0_244, %c32_245], %525 {strides = array<i32>} : memref<4x64xf32, #tpu.memory_space<vmem>>, vector<4x32xf32>,
    %c6_246 = arith.constant 6 : index
    %c0_247 = arith.constant 0 : index
    %c0_248 = arith.constant 0 : index
    %532 = vector.load %arg4[%c6_246, %c0_247, %c0_248] : memref<8x4x64xf32, #tpu.memory_space<vmem>>, vector<1x4x32xf32>
    %533 = vector.shape_cast %532 : vector<1x4x32xf32> to vector<4x32xf32>
    %534 = vector.shape_cast %501 : vector<4x32xf32> to vector<1x4x32xf32>
    tpu.vector_store %arg4[%c6_246, %c0_247, %c0_248], %534 {strides = array<i32>} : memref<8x4x64xf32, #tpu.memory_space<vmem>>, vector<1x4x32xf32>,
    %c1_249 = arith.constant 1 : index
    %c0_250 = arith.constant 0 : index
    %c32_251 = arith.constant 32 : index
    %535 = vector.load %arg4[%c1_249, %c0_250, %c32_251] : memref<8x4x64xf32, #tpu.memory_space<vmem>>, vector<1x4x32xf32>
    %536 = vector.shape_cast %535 : vector<1x4x32xf32> to vector<4x32xf32>
    %537 = vector.shape_cast %527 : vector<4x32xf32> to vector<1x4x32xf32>
    tpu.vector_store %arg4[%c1_249, %c0_250, %c32_251], %537 {strides = array<i32>} : memref<8x4x64xf32, #tpu.memory_space<vmem>>, vector<1x4x32xf32>,
    %c0_252 = arith.constant 0 : index
    %c0_253 = arith.constant 0 : index
    %538 = vector.load %arg6[%c0_252, %c0_253] : memref<4x64xf32, #tpu.memory_space<vmem>>, vector<4x64xf32>
    %c0_254 = arith.constant 0 : index
    %c0_255 = arith.constant 0 : index
    %539 = vector.load %arg2[%c0_254, %c0_255] : memref<64x256xf32, #tpu.memory_space<vmem>>, vector<64x256xf32>
    %cst_256 = arith.constant dense<0.000000e+00> : vector<4x256xf32>
    %540 = tpu.matmul %538, %539, %cst_256 {dimension_numbers = #tpu.dot_dimension_numbers<[1], [0], [0], [1], [0, 0, 1, 1], [], []>} : vector<4x64xf32>, vector<64x256xf32>, vector<4x256xf32> -> vector<4x256xf32>
    %c7_257 = arith.constant 7 : index
    %c0_258 = arith.constant 0 : index
    %c0_259 = arith.constant 0 : index
    %541 = vector.load %arg5[%c7_257, %c0_258, %c0_259] : memref<8x4x256xf32, #tpu.memory_space<vmem>>, vector<1x4x256xf32>
    %542 = vector.shape_cast %541 : vector<1x4x256xf32> to vector<4x256xf32>
    %543 = vector.extract_strided_slice %542 {offsets = [0, 0], sizes = [4, 128], strides = [1, 1]} : vector<4x256xf32> to vector<4x128xf32>
    %544 = vector.extract_strided_slice %540 {offsets = [0, 0], sizes = [4, 128], strides = [1, 1]} : vector<4x256xf32> to vector<4x128xf32>
    %545 = arith.addf %543, %544 : vector<4x128xf32>
    %c0_260 = arith.constant 0 : index
    %c0_261 = arith.constant 0 : index
    %c0_262 = arith.constant 0 : index
    %546 = vector.load %arg5[%c0_260, %c0_261, %c0_262] : memref<8x4x256xf32, #tpu.memory_space<vmem>>, vector<1x4x256xf32>
    %547 = vector.shape_cast %546 : vector<1x4x256xf32> to vector<4x256xf32>
    %548 = vector.extract_strided_slice %547 {offsets = [0, 128], sizes = [4, 128], strides = [1, 1]} : vector<4x256xf32> to vector<4x128xf32>
    %549 = vector.extract_strided_slice %540 {offsets = [0, 128], sizes = [4, 128], strides = [1, 1]} : vector<4x256xf32> to vector<4x128xf32>
    %550 = arith.addf %548, %549 : vector<4x128xf32>
    %c0_263 = arith.constant 0 : index
    %c0_264 = arith.constant 0 : index
    %551 = vector.load %arg7[%c0_263, %c0_264] : memref<4x64xf32, #tpu.memory_space<vmem>>, vector<4x32xf32>
    %552 = vector.extract_strided_slice %545 {offsets = [0, 0], sizes = [4, 32], strides = [1, 1]} : vector<4x128xf32> to vector<4x32xf32>
    %553 = arith.negf %552 : vector<4x32xf32>
    %554 = math.exp %553 : vector<4x32xf32>
    %cst_265 = arith.constant 1.000000e+00 : f32
    %555 = vector.broadcast %cst_265 : f32 to vector<4x32xf32>
    %556 = arith.addf %555, %554 : vector<4x32xf32>
    %557 = arith.divf %555, %556 : vector<4x32xf32>
    %558 = vector.extract_strided_slice %545 {offsets = [0, 32], sizes = [4, 32], strides = [1, 1]} : vector<4x128xf32> to vector<4x32xf32>
    %559 = arith.negf %558 : vector<4x32xf32>
    %560 = math.exp %559 : vector<4x32xf32>
    %cst_266 = arith.constant 1.000000e+00 : f32
    %561 = vector.broadcast %cst_266 : f32 to vector<4x32xf32>
    %562 = arith.addf %561, %560 : vector<4x32xf32>
    %563 = arith.divf %561, %562 : vector<4x32xf32>
    %564 = vector.extract_strided_slice %545 {offsets = [0, 64], sizes = [4, 32], strides = [1, 1]} : vector<4x128xf32> to vector<4x32xf32>
    %565 = math.tanh %564 : vector<4x32xf32>
    %566 = vector.extract_strided_slice %545 {offsets = [0, 96], sizes = [4, 32], strides = [1, 1]} : vector<4x128xf32> to vector<4x32xf32>
    %567 = arith.negf %566 : vector<4x32xf32>
    %568 = math.exp %567 : vector<4x32xf32>
    %cst_267 = arith.constant 1.000000e+00 : f32
    %569 = vector.broadcast %cst_267 : f32 to vector<4x32xf32>
    %570 = arith.addf %569, %568 : vector<4x32xf32>
    %571 = arith.divf %569, %570 : vector<4x32xf32>
    %572 = arith.mulf %563, %551 : vector<4x32xf32>
    %573 = arith.mulf %557, %565 : vector<4x32xf32>
    %574 = arith.addf %572, %573 : vector<4x32xf32>
    %575 = math.tanh %574 : vector<4x32xf32>
    %576 = arith.mulf %571, %575 : vector<4x32xf32>
    %c0_268 = arith.constant 0 : index
    %c32_269 = arith.constant 32 : index
    %577 = vector.load %arg7[%c0_268, %c32_269] : memref<4x64xf32, #tpu.memory_space<vmem>>, vector<4x32xf32>
    %578 = vector.extract_strided_slice %550 {offsets = [0, 0], sizes = [4, 32], strides = [1, 1]} : vector<4x128xf32> to vector<4x32xf32>
    %579 = arith.negf %578 : vector<4x32xf32>
    %580 = math.exp %579 : vector<4x32xf32>
    %cst_270 = arith.constant 1.000000e+00 : f32
    %581 = vector.broadcast %cst_270 : f32 to vector<4x32xf32>
    %582 = arith.addf %581, %580 : vector<4x32xf32>
    %583 = arith.divf %581, %582 : vector<4x32xf32>
    %584 = vector.extract_strided_slice %550 {offsets = [0, 32], sizes = [4, 32], strides = [1, 1]} : vector<4x128xf32> to vector<4x32xf32>
    %585 = arith.negf %584 : vector<4x32xf32>
    %586 = math.exp %585 : vector<4x32xf32>
    %cst_271 = arith.constant 1.000000e+00 : f32
    %587 = vector.broadcast %cst_271 : f32 to vector<4x32xf32>
    %588 = arith.addf %587, %586 : vector<4x32xf32>
    %589 = arith.divf %587, %588 : vector<4x32xf32>
    %590 = vector.extract_strided_slice %550 {offsets = [0, 64], sizes = [4, 32], strides = [1, 1]} : vector<4x128xf32> to vector<4x32xf32>
    %591 = math.tanh %590 : vector<4x32xf32>
    %592 = vector.extract_strided_slice %550 {offsets = [0, 96], sizes = [4, 32], strides = [1, 1]} : vector<4x128xf32> to vector<4x32xf32>
    %593 = arith.negf %592 : vector<4x32xf32>
    %594 = math.exp %593 : vector<4x32xf32>
    %cst_272 = arith.constant 1.000000e+00 : f32
    %595 = vector.broadcast %cst_272 : f32 to vector<4x32xf32>
    %596 = arith.addf %595, %594 : vector<4x32xf32>
    %597 = arith.divf %595, %596 : vector<4x32xf32>
    %598 = arith.mulf %589, %577 : vector<4x32xf32>
    %599 = arith.mulf %583, %591 : vector<4x32xf32>
    %600 = arith.addf %598, %599 : vector<4x32xf32>
    %601 = math.tanh %600 : vector<4x32xf32>
    %602 = arith.mulf %597, %601 : vector<4x32xf32>
    %c0_273 = arith.constant 0 : index
    %c0_274 = arith.constant 0 : index
    %603 = vector.load %arg6[%c0_273, %c0_274] : memref<4x64xf32, #tpu.memory_space<vmem>>, vector<4x32xf32>
    tpu.vector_store %arg6[%c0_273, %c0_274], %576 {strides = array<i32>} : memref<4x64xf32, #tpu.memory_space<vmem>>, vector<4x32xf32>,
    %c0_275 = arith.constant 0 : index
    %c32_276 = arith.constant 32 : index
    %604 = vector.load %arg6[%c0_275, %c32_276] : memref<4x64xf32, #tpu.memory_space<vmem>>, vector<4x32xf32>
    tpu.vector_store %arg6[%c0_275, %c32_276], %602 {strides = array<i32>} : memref<4x64xf32, #tpu.memory_space<vmem>>, vector<4x32xf32>,
    %c0_277 = arith.constant 0 : index
    %c0_278 = arith.constant 0 : index
    %605 = vector.load %arg7[%c0_277, %c0_278] : memref<4x64xf32, #tpu.memory_space<vmem>>, vector<4x32xf32>
    tpu.vector_store %arg7[%c0_277, %c0_278], %574 {strides = array<i32>} : memref<4x64xf32, #tpu.memory_space<vmem>>, vector<4x32xf32>,
    %c0_279 = arith.constant 0 : index
    %c32_280 = arith.constant 32 : index
    %606 = vector.load %arg7[%c0_279, %c32_280] : memref<4x64xf32, #tpu.memory_space<vmem>>, vector<4x32xf32>
    tpu.vector_store %arg7[%c0_279, %c32_280], %600 {strides = array<i32>} : memref<4x64xf32, #tpu.memory_space<vmem>>, vector<4x32xf32>,
    %c7_281 = arith.constant 7 : index
    %c0_282 = arith.constant 0 : index
    %c0_283 = arith.constant 0 : index
    %607 = vector.load %arg4[%c7_281, %c0_282, %c0_283] : memref<8x4x64xf32, #tpu.memory_space<vmem>>, vector<1x4x32xf32>
    %608 = vector.shape_cast %607 : vector<1x4x32xf32> to vector<4x32xf32>
    %609 = vector.shape_cast %576 : vector<4x32xf32> to vector<1x4x32xf32>
    tpu.vector_store %arg4[%c7_281, %c0_282, %c0_283], %609 {strides = array<i32>} : memref<8x4x64xf32, #tpu.memory_space<vmem>>, vector<1x4x32xf32>,
    %c0_284 = arith.constant 0 : index
    %c0_285 = arith.constant 0 : index
    %c32_286 = arith.constant 32 : index
    %610 = vector.load %arg4[%c0_284, %c0_285, %c32_286] : memref<8x4x64xf32, #tpu.memory_space<vmem>>, vector<1x4x32xf32>
    %611 = vector.shape_cast %610 : vector<1x4x32xf32> to vector<4x32xf32>
    %612 = vector.shape_cast %602 : vector<4x32xf32> to vector<1x4x32xf32>
    tpu.vector_store %arg4[%c0_284, %c0_285, %c32_286], %612 {strides = array<i32>} : memref<8x4x64xf32, #tpu.memory_space<vmem>>, vector<1x4x32xf32>,
    return
  }
}

module attributes {stable_mosaic.version = 11 : i64} {
  func.func @_bilstm2_kernel(%arg0: memref<8x4x64xf32, #tpu.memory_space<vmem>>, %arg1: memref<8x4x64xf32, #tpu.memory_space<vmem>>, %arg2: memref<64x256xf32, #tpu.memory_space<vmem>>, %arg3: memref<64x256xf32, #tpu.memory_space<vmem>>, %arg4: memref<64x256xf32, #tpu.memory_space<vmem>>, %arg5: memref<64x256xf32, #tpu.memory_space<vmem>>, %arg6: memref<1x256xf32, #tpu.memory_space<vmem>>, %arg7: memref<8x4x64xf32, #tpu.memory_space<vmem>>, %arg8: memref<8x4x256xf32, #tpu.memory_space<vmem>>, %arg9: memref<4x64xf32, #tpu.memory_space<vmem>>, %arg10: memref<4x64xf32, #tpu.memory_space<vmem>>) attributes {dimension_semantics = [], scalar_prefetch = 0 : i64, scratch_operands = 3 : i64, tpu.core_type = #tpu.core_type<tc>} {
    %c0 = arith.constant 0 : index
    %c0_0 = arith.constant 0 : index
    %c0_1 = arith.constant 0 : index
    %0 = vector.load %arg0[%c0, %c0_0, %c0_1] : memref<8x4x64xf32, #tpu.memory_space<vmem>>, vector<8x4x64xf32>
    %1 = vector.shape_cast %0 : vector<8x4x64xf32> to vector<32x64xf32>
    %c0_2 = arith.constant 0 : index
    %c0_3 = arith.constant 0 : index
    %c0_4 = arith.constant 0 : index
    %2 = vector.load %arg1[%c0_2, %c0_3, %c0_4] : memref<8x4x64xf32, #tpu.memory_space<vmem>>, vector<8x4x64xf32>
    %3 = vector.shape_cast %2 : vector<8x4x64xf32> to vector<32x64xf32>
    %c0_5 = arith.constant 0 : index
    %c0_6 = arith.constant 0 : index
    %4 = vector.load %arg2[%c0_5, %c0_6] : memref<64x256xf32, #tpu.memory_space<vmem>>, vector<64x256xf32>
    %cst = arith.constant dense<0.000000e+00> : vector<32x256xf32>
    %5 = tpu.matmul %1, %4, %cst {dimension_numbers = #tpu.dot_dimension_numbers<[1], [0], [0], [1], [0, 0, 1, 1], [], []>} : vector<32x64xf32>, vector<64x256xf32>, vector<32x256xf32> -> vector<32x256xf32>
    %c0_7 = arith.constant 0 : index
    %c0_8 = arith.constant 0 : index
    %6 = vector.load %arg3[%c0_7, %c0_8] : memref<64x256xf32, #tpu.memory_space<vmem>>, vector<64x256xf32>
    %cst_9 = arith.constant dense<0.000000e+00> : vector<32x256xf32>
    %7 = tpu.matmul %3, %6, %cst_9 {dimension_numbers = #tpu.dot_dimension_numbers<[1], [0], [0], [1], [0, 0, 1, 1], [], []>} : vector<32x64xf32>, vector<64x256xf32>, vector<32x256xf32> -> vector<32x256xf32>
    %8 = arith.addf %5, %7 : vector<32x256xf32>
    %9 = arith.mulf %1, %3 : vector<32x64xf32>
    %c0_10 = arith.constant 0 : index
    %c0_11 = arith.constant 0 : index
    %10 = vector.load %arg4[%c0_10, %c0_11] : memref<64x256xf32, #tpu.memory_space<vmem>>, vector<64x256xf32>
    %cst_12 = arith.constant dense<0.000000e+00> : vector<32x256xf32>
    %11 = tpu.matmul %9, %10, %cst_12 {dimension_numbers = #tpu.dot_dimension_numbers<[1], [0], [0], [1], [0, 0, 1, 1], [], []>} : vector<32x64xf32>, vector<64x256xf32>, vector<32x256xf32> -> vector<32x256xf32>
    %12 = arith.addf %8, %11 : vector<32x256xf32>
    %c0_13 = arith.constant 0 : index
    %c0_14 = arith.constant 0 : index
    %13 = vector.load %arg6[%c0_13, %c0_14] : memref<1x256xf32, #tpu.memory_space<vmem>>, vector<1x256xf32>
    %14 = vector.broadcast %13 : vector<1x256xf32> to vector<32x256xf32>
    %15 = arith.addf %12, %14 : vector<32x256xf32>
    %16 = vector.shape_cast %15 : vector<32x256xf32> to vector<8x4x256xf32>
    %c0_15 = arith.constant 0 : index
    %c0_16 = arith.constant 0 : index
    %c0_17 = arith.constant 0 : index
    %17 = vector.load %arg8[%c0_15, %c0_16, %c0_17] : memref<8x4x256xf32, #tpu.memory_space<vmem>>, vector<8x4x256xf32>
    tpu.vector_store %arg8[%c0_15, %c0_16, %c0_17], %16 {strides = array<i32>} : memref<8x4x256xf32, #tpu.memory_space<vmem>>, vector<8x4x256xf32>,
    %cst_18 = arith.constant 0.000000e+00 : f32
    %18 = vector.broadcast %cst_18 : f32 to vector<4x64xf32>
    %c0_19 = arith.constant 0 : index
    %c0_20 = arith.constant 0 : index
    %19 = vector.load %arg9[%c0_19, %c0_20] : memref<4x64xf32, #tpu.memory_space<vmem>>, vector<4x64xf32>
    tpu.vector_store %arg9[%c0_19, %c0_20], %18 {strides = array<i32>} : memref<4x64xf32, #tpu.memory_space<vmem>>, vector<4x64xf32>,
    %cst_21 = arith.constant 0.000000e+00 : f32
    %20 = vector.broadcast %cst_21 : f32 to vector<4x64xf32>
    %c0_22 = arith.constant 0 : index
    %c0_23 = arith.constant 0 : index
    %21 = vector.load %arg10[%c0_22, %c0_23] : memref<4x64xf32, #tpu.memory_space<vmem>>, vector<4x64xf32>
    tpu.vector_store %arg10[%c0_22, %c0_23], %20 {strides = array<i32>} : memref<4x64xf32, #tpu.memory_space<vmem>>, vector<4x64xf32>,
    %c0_24 = arith.constant 0 : index
    %c0_25 = arith.constant 0 : index
    %22 = vector.load %arg9[%c0_24, %c0_25] : memref<4x64xf32, #tpu.memory_space<vmem>>, vector<4x64xf32>
    %c0_26 = arith.constant 0 : index
    %c0_27 = arith.constant 0 : index
    %23 = vector.load %arg5[%c0_26, %c0_27] : memref<64x256xf32, #tpu.memory_space<vmem>>, vector<64x256xf32>
    %cst_28 = arith.constant dense<0.000000e+00> : vector<4x256xf32>
    %24 = tpu.matmul %22, %23, %cst_28 {dimension_numbers = #tpu.dot_dimension_numbers<[1], [0], [0], [1], [0, 0, 1, 1], [], []>} : vector<4x64xf32>, vector<64x256xf32>, vector<4x256xf32> -> vector<4x256xf32>
    %c0_29 = arith.constant 0 : index
    %c0_30 = arith.constant 0 : index
    %c0_31 = arith.constant 0 : index
    %25 = vector.load %arg8[%c0_29, %c0_30, %c0_31] : memref<8x4x256xf32, #tpu.memory_space<vmem>>, vector<1x4x256xf32>
    %26 = vector.shape_cast %25 : vector<1x4x256xf32> to vector<4x256xf32>
    %27 = vector.extract_strided_slice %26 {offsets = [0, 0], sizes = [4, 128], strides = [1, 1]} : vector<4x256xf32> to vector<4x128xf32>
    %28 = vector.extract_strided_slice %24 {offsets = [0, 0], sizes = [4, 128], strides = [1, 1]} : vector<4x256xf32> to vector<4x128xf32>
    %29 = arith.addf %27, %28 : vector<4x128xf32>
    %c7 = arith.constant 7 : index
    %c0_32 = arith.constant 0 : index
    %c0_33 = arith.constant 0 : index
    %30 = vector.load %arg8[%c7, %c0_32, %c0_33] : memref<8x4x256xf32, #tpu.memory_space<vmem>>, vector<1x4x256xf32>
    %31 = vector.shape_cast %30 : vector<1x4x256xf32> to vector<4x256xf32>
    %32 = vector.extract_strided_slice %31 {offsets = [0, 128], sizes = [4, 128], strides = [1, 1]} : vector<4x256xf32> to vector<4x128xf32>
    %33 = vector.extract_strided_slice %24 {offsets = [0, 128], sizes = [4, 128], strides = [1, 1]} : vector<4x256xf32> to vector<4x128xf32>
    %34 = arith.addf %32, %33 : vector<4x128xf32>
    %c0_34 = arith.constant 0 : index
    %c0_35 = arith.constant 0 : index
    %35 = vector.load %arg10[%c0_34, %c0_35] : memref<4x64xf32, #tpu.memory_space<vmem>>, vector<4x32xf32>
    %36 = vector.extract_strided_slice %29 {offsets = [0, 0], sizes = [4, 32], strides = [1, 1]} : vector<4x128xf32> to vector<4x32xf32>
    %37 = arith.negf %36 : vector<4x32xf32>
    %38 = math.exp %37 : vector<4x32xf32>
    %cst_36 = arith.constant 1.000000e+00 : f32
    %39 = vector.broadcast %cst_36 : f32 to vector<4x32xf32>
    %40 = arith.addf %39, %38 : vector<4x32xf32>
    %41 = arith.divf %39, %40 : vector<4x32xf32>
    %42 = vector.extract_strided_slice %29 {offsets = [0, 32], sizes = [4, 32], strides = [1, 1]} : vector<4x128xf32> to vector<4x32xf32>
    %43 = arith.negf %42 : vector<4x32xf32>
    %44 = math.exp %43 : vector<4x32xf32>
    %cst_37 = arith.constant 1.000000e+00 : f32
    %45 = vector.broadcast %cst_37 : f32 to vector<4x32xf32>
    %46 = arith.addf %45, %44 : vector<4x32xf32>
    %47 = arith.divf %45, %46 : vector<4x32xf32>
    %48 = vector.extract_strided_slice %29 {offsets = [0, 64], sizes = [4, 32], strides = [1, 1]} : vector<4x128xf32> to vector<4x32xf32>
    %49 = math.tanh %48 : vector<4x32xf32>
    %50 = vector.extract_strided_slice %29 {offsets = [0, 96], sizes = [4, 32], strides = [1, 1]} : vector<4x128xf32> to vector<4x32xf32>
    %51 = arith.negf %50 : vector<4x32xf32>
    %52 = math.exp %51 : vector<4x32xf32>
    %cst_38 = arith.constant 1.000000e+00 : f32
    %53 = vector.broadcast %cst_38 : f32 to vector<4x32xf32>
    %54 = arith.addf %53, %52 : vector<4x32xf32>
    %55 = arith.divf %53, %54 : vector<4x32xf32>
    %56 = arith.mulf %47, %35 : vector<4x32xf32>
    %57 = arith.mulf %41, %49 : vector<4x32xf32>
    %58 = arith.addf %56, %57 : vector<4x32xf32>
    %59 = math.tanh %58 : vector<4x32xf32>
    %60 = arith.mulf %55, %59 : vector<4x32xf32>
    %c0_39 = arith.constant 0 : index
    %c32 = arith.constant 32 : index
    %61 = vector.load %arg10[%c0_39, %c32] : memref<4x64xf32, #tpu.memory_space<vmem>>, vector<4x32xf32>
    %62 = vector.extract_strided_slice %34 {offsets = [0, 0], sizes = [4, 32], strides = [1, 1]} : vector<4x128xf32> to vector<4x32xf32>
    %63 = arith.negf %62 : vector<4x32xf32>
    %64 = math.exp %63 : vector<4x32xf32>
    %cst_40 = arith.constant 1.000000e+00 : f32
    %65 = vector.broadcast %cst_40 : f32 to vector<4x32xf32>
    %66 = arith.addf %65, %64 : vector<4x32xf32>
    %67 = arith.divf %65, %66 : vector<4x32xf32>
    %68 = vector.extract_strided_slice %34 {offsets = [0, 32], sizes = [4, 32], strides = [1, 1]} : vector<4x128xf32> to vector<4x32xf32>
    %69 = arith.negf %68 : vector<4x32xf32>
    %70 = math.exp %69 : vector<4x32xf32>
    %cst_41 = arith.constant 1.000000e+00 : f32
    %71 = vector.broadcast %cst_41 : f32 to vector<4x32xf32>
    %72 = arith.addf %71, %70 : vector<4x32xf32>
    %73 = arith.divf %71, %72 : vector<4x32xf32>
    %74 = vector.extract_strided_slice %34 {offsets = [0, 64], sizes = [4, 32], strides = [1, 1]} : vector<4x128xf32> to vector<4x32xf32>
    %75 = math.tanh %74 : vector<4x32xf32>
    %76 = vector.extract_strided_slice %34 {offsets = [0, 96], sizes = [4, 32], strides = [1, 1]} : vector<4x128xf32> to vector<4x32xf32>
    %77 = arith.negf %76 : vector<4x32xf32>
    %78 = math.exp %77 : vector<4x32xf32>
    %cst_42 = arith.constant 1.000000e+00 : f32
    %79 = vector.broadcast %cst_42 : f32 to vector<4x32xf32>
    %80 = arith.addf %79, %78 : vector<4x32xf32>
    %81 = arith.divf %79, %80 : vector<4x32xf32>
    %82 = arith.mulf %73, %61 : vector<4x32xf32>
    %83 = arith.mulf %67, %75 : vector<4x32xf32>
    %84 = arith.addf %82, %83 : vector<4x32xf32>
    %85 = math.tanh %84 : vector<4x32xf32>
    %86 = arith.mulf %81, %85 : vector<4x32xf32>
    %c0_43 = arith.constant 0 : index
    %c0_44 = arith.constant 0 : index
    %87 = vector.load %arg9[%c0_43, %c0_44] : memref<4x64xf32, #tpu.memory_space<vmem>>, vector<4x32xf32>
    tpu.vector_store %arg9[%c0_43, %c0_44], %60 {strides = array<i32>} : memref<4x64xf32, #tpu.memory_space<vmem>>, vector<4x32xf32>,
    %c0_45 = arith.constant 0 : index
    %c32_46 = arith.constant 32 : index
    %88 = vector.load %arg9[%c0_45, %c32_46] : memref<4x64xf32, #tpu.memory_space<vmem>>, vector<4x32xf32>
    tpu.vector_store %arg9[%c0_45, %c32_46], %86 {strides = array<i32>} : memref<4x64xf32, #tpu.memory_space<vmem>>, vector<4x32xf32>,
    %c0_47 = arith.constant 0 : index
    %c0_48 = arith.constant 0 : index
    %89 = vector.load %arg10[%c0_47, %c0_48] : memref<4x64xf32, #tpu.memory_space<vmem>>, vector<4x32xf32>
    tpu.vector_store %arg10[%c0_47, %c0_48], %58 {strides = array<i32>} : memref<4x64xf32, #tpu.memory_space<vmem>>, vector<4x32xf32>,
    %c0_49 = arith.constant 0 : index
    %c32_50 = arith.constant 32 : index
    %90 = vector.load %arg10[%c0_49, %c32_50] : memref<4x64xf32, #tpu.memory_space<vmem>>, vector<4x32xf32>
    tpu.vector_store %arg10[%c0_49, %c32_50], %84 {strides = array<i32>} : memref<4x64xf32, #tpu.memory_space<vmem>>, vector<4x32xf32>,
    %c0_51 = arith.constant 0 : index
    %c0_52 = arith.constant 0 : index
    %c0_53 = arith.constant 0 : index
    %91 = vector.load %arg7[%c0_51, %c0_52, %c0_53] : memref<8x4x64xf32, #tpu.memory_space<vmem>>, vector<1x4x32xf32>
    %92 = vector.shape_cast %91 : vector<1x4x32xf32> to vector<4x32xf32>
    %93 = vector.shape_cast %60 : vector<4x32xf32> to vector<1x4x32xf32>
    tpu.vector_store %arg7[%c0_51, %c0_52, %c0_53], %93 {strides = array<i32>} : memref<8x4x64xf32, #tpu.memory_space<vmem>>, vector<1x4x32xf32>,
    %c7_54 = arith.constant 7 : index
    %c0_55 = arith.constant 0 : index
    %c32_56 = arith.constant 32 : index
    %94 = vector.load %arg7[%c7_54, %c0_55, %c32_56] : memref<8x4x64xf32, #tpu.memory_space<vmem>>, vector<1x4x32xf32>
    %95 = vector.shape_cast %94 : vector<1x4x32xf32> to vector<4x32xf32>
    %96 = vector.shape_cast %86 : vector<4x32xf32> to vector<1x4x32xf32>
    tpu.vector_store %arg7[%c7_54, %c0_55, %c32_56], %96 {strides = array<i32>} : memref<8x4x64xf32, #tpu.memory_space<vmem>>, vector<1x4x32xf32>,
    %c0_57 = arith.constant 0 : index
    %c0_58 = arith.constant 0 : index
    %97 = vector.load %arg9[%c0_57, %c0_58] : memref<4x64xf32, #tpu.memory_space<vmem>>, vector<4x64xf32>
    %c0_59 = arith.constant 0 : index
    %c0_60 = arith.constant 0 : index
    %98 = vector.load %arg5[%c0_59, %c0_60] : memref<64x256xf32, #tpu.memory_space<vmem>>, vector<64x256xf32>
    %cst_61 = arith.constant dense<0.000000e+00> : vector<4x256xf32>
    %99 = tpu.matmul %97, %98, %cst_61 {dimension_numbers = #tpu.dot_dimension_numbers<[1], [0], [0], [1], [0, 0, 1, 1], [], []>} : vector<4x64xf32>, vector<64x256xf32>, vector<4x256xf32> -> vector<4x256xf32>
    %c1 = arith.constant 1 : index
    %c0_62 = arith.constant 0 : index
    %c0_63 = arith.constant 0 : index
    %100 = vector.load %arg8[%c1, %c0_62, %c0_63] : memref<8x4x256xf32, #tpu.memory_space<vmem>>, vector<1x4x256xf32>
    %101 = vector.shape_cast %100 : vector<1x4x256xf32> to vector<4x256xf32>
    %102 = vector.extract_strided_slice %101 {offsets = [0, 0], sizes = [4, 128], strides = [1, 1]} : vector<4x256xf32> to vector<4x128xf32>
    %103 = vector.extract_strided_slice %99 {offsets = [0, 0], sizes = [4, 128], strides = [1, 1]} : vector<4x256xf32> to vector<4x128xf32>
    %104 = arith.addf %102, %103 : vector<4x128xf32>
    %c6 = arith.constant 6 : index
    %c0_64 = arith.constant 0 : index
    %c0_65 = arith.constant 0 : index
    %105 = vector.load %arg8[%c6, %c0_64, %c0_65] : memref<8x4x256xf32, #tpu.memory_space<vmem>>, vector<1x4x256xf32>
    %106 = vector.shape_cast %105 : vector<1x4x256xf32> to vector<4x256xf32>
    %107 = vector.extract_strided_slice %106 {offsets = [0, 128], sizes = [4, 128], strides = [1, 1]} : vector<4x256xf32> to vector<4x128xf32>
    %108 = vector.extract_strided_slice %99 {offsets = [0, 128], sizes = [4, 128], strides = [1, 1]} : vector<4x256xf32> to vector<4x128xf32>
    %109 = arith.addf %107, %108 : vector<4x128xf32>
    %c0_66 = arith.constant 0 : index
    %c0_67 = arith.constant 0 : index
    %110 = vector.load %arg10[%c0_66, %c0_67] : memref<4x64xf32, #tpu.memory_space<vmem>>, vector<4x32xf32>
    %111 = vector.extract_strided_slice %104 {offsets = [0, 0], sizes = [4, 32], strides = [1, 1]} : vector<4x128xf32> to vector<4x32xf32>
    %112 = arith.negf %111 : vector<4x32xf32>
    %113 = math.exp %112 : vector<4x32xf32>
    %cst_68 = arith.constant 1.000000e+00 : f32
    %114 = vector.broadcast %cst_68 : f32 to vector<4x32xf32>
    %115 = arith.addf %114, %113 : vector<4x32xf32>
    %116 = arith.divf %114, %115 : vector<4x32xf32>
    %117 = vector.extract_strided_slice %104 {offsets = [0, 32], sizes = [4, 32], strides = [1, 1]} : vector<4x128xf32> to vector<4x32xf32>
    %118 = arith.negf %117 : vector<4x32xf32>
    %119 = math.exp %118 : vector<4x32xf32>
    %cst_69 = arith.constant 1.000000e+00 : f32
    %120 = vector.broadcast %cst_69 : f32 to vector<4x32xf32>
    %121 = arith.addf %120, %119 : vector<4x32xf32>
    %122 = arith.divf %120, %121 : vector<4x32xf32>
    %123 = vector.extract_strided_slice %104 {offsets = [0, 64], sizes = [4, 32], strides = [1, 1]} : vector<4x128xf32> to vector<4x32xf32>
    %124 = math.tanh %123 : vector<4x32xf32>
    %125 = vector.extract_strided_slice %104 {offsets = [0, 96], sizes = [4, 32], strides = [1, 1]} : vector<4x128xf32> to vector<4x32xf32>
    %126 = arith.negf %125 : vector<4x32xf32>
    %127 = math.exp %126 : vector<4x32xf32>
    %cst_70 = arith.constant 1.000000e+00 : f32
    %128 = vector.broadcast %cst_70 : f32 to vector<4x32xf32>
    %129 = arith.addf %128, %127 : vector<4x32xf32>
    %130 = arith.divf %128, %129 : vector<4x32xf32>
    %131 = arith.mulf %122, %110 : vector<4x32xf32>
    %132 = arith.mulf %116, %124 : vector<4x32xf32>
    %133 = arith.addf %131, %132 : vector<4x32xf32>
    %134 = math.tanh %133 : vector<4x32xf32>
    %135 = arith.mulf %130, %134 : vector<4x32xf32>
    %c0_71 = arith.constant 0 : index
    %c32_72 = arith.constant 32 : index
    %136 = vector.load %arg10[%c0_71, %c32_72] : memref<4x64xf32, #tpu.memory_space<vmem>>, vector<4x32xf32>
    %137 = vector.extract_strided_slice %109 {offsets = [0, 0], sizes = [4, 32], strides = [1, 1]} : vector<4x128xf32> to vector<4x32xf32>
    %138 = arith.negf %137 : vector<4x32xf32>
    %139 = math.exp %138 : vector<4x32xf32>
    %cst_73 = arith.constant 1.000000e+00 : f32
    %140 = vector.broadcast %cst_73 : f32 to vector<4x32xf32>
    %141 = arith.addf %140, %139 : vector<4x32xf32>
    %142 = arith.divf %140, %141 : vector<4x32xf32>
    %143 = vector.extract_strided_slice %109 {offsets = [0, 32], sizes = [4, 32], strides = [1, 1]} : vector<4x128xf32> to vector<4x32xf32>
    %144 = arith.negf %143 : vector<4x32xf32>
    %145 = math.exp %144 : vector<4x32xf32>
    %cst_74 = arith.constant 1.000000e+00 : f32
    %146 = vector.broadcast %cst_74 : f32 to vector<4x32xf32>
    %147 = arith.addf %146, %145 : vector<4x32xf32>
    %148 = arith.divf %146, %147 : vector<4x32xf32>
    %149 = vector.extract_strided_slice %109 {offsets = [0, 64], sizes = [4, 32], strides = [1, 1]} : vector<4x128xf32> to vector<4x32xf32>
    %150 = math.tanh %149 : vector<4x32xf32>
    %151 = vector.extract_strided_slice %109 {offsets = [0, 96], sizes = [4, 32], strides = [1, 1]} : vector<4x128xf32> to vector<4x32xf32>
    %152 = arith.negf %151 : vector<4x32xf32>
    %153 = math.exp %152 : vector<4x32xf32>
    %cst_75 = arith.constant 1.000000e+00 : f32
    %154 = vector.broadcast %cst_75 : f32 to vector<4x32xf32>
    %155 = arith.addf %154, %153 : vector<4x32xf32>
    %156 = arith.divf %154, %155 : vector<4x32xf32>
    %157 = arith.mulf %148, %136 : vector<4x32xf32>
    %158 = arith.mulf %142, %150 : vector<4x32xf32>
    %159 = arith.addf %157, %158 : vector<4x32xf32>
    %160 = math.tanh %159 : vector<4x32xf32>
    %161 = arith.mulf %156, %160 : vector<4x32xf32>
    %c0_76 = arith.constant 0 : index
    %c0_77 = arith.constant 0 : index
    %162 = vector.load %arg9[%c0_76, %c0_77] : memref<4x64xf32, #tpu.memory_space<vmem>>, vector<4x32xf32>
    tpu.vector_store %arg9[%c0_76, %c0_77], %135 {strides = array<i32>} : memref<4x64xf32, #tpu.memory_space<vmem>>, vector<4x32xf32>,
    %c0_78 = arith.constant 0 : index
    %c32_79 = arith.constant 32 : index
    %163 = vector.load %arg9[%c0_78, %c32_79] : memref<4x64xf32, #tpu.memory_space<vmem>>, vector<4x32xf32>
    tpu.vector_store %arg9[%c0_78, %c32_79], %161 {strides = array<i32>} : memref<4x64xf32, #tpu.memory_space<vmem>>, vector<4x32xf32>,
    %c0_80 = arith.constant 0 : index
    %c0_81 = arith.constant 0 : index
    %164 = vector.load %arg10[%c0_80, %c0_81] : memref<4x64xf32, #tpu.memory_space<vmem>>, vector<4x32xf32>
    tpu.vector_store %arg10[%c0_80, %c0_81], %133 {strides = array<i32>} : memref<4x64xf32, #tpu.memory_space<vmem>>, vector<4x32xf32>,
    %c0_82 = arith.constant 0 : index
    %c32_83 = arith.constant 32 : index
    %165 = vector.load %arg10[%c0_82, %c32_83] : memref<4x64xf32, #tpu.memory_space<vmem>>, vector<4x32xf32>
    tpu.vector_store %arg10[%c0_82, %c32_83], %159 {strides = array<i32>} : memref<4x64xf32, #tpu.memory_space<vmem>>, vector<4x32xf32>,
    %c1_84 = arith.constant 1 : index
    %c0_85 = arith.constant 0 : index
    %c0_86 = arith.constant 0 : index
    %166 = vector.load %arg7[%c1_84, %c0_85, %c0_86] : memref<8x4x64xf32, #tpu.memory_space<vmem>>, vector<1x4x32xf32>
    %167 = vector.shape_cast %166 : vector<1x4x32xf32> to vector<4x32xf32>
    %168 = vector.shape_cast %135 : vector<4x32xf32> to vector<1x4x32xf32>
    tpu.vector_store %arg7[%c1_84, %c0_85, %c0_86], %168 {strides = array<i32>} : memref<8x4x64xf32, #tpu.memory_space<vmem>>, vector<1x4x32xf32>,
    %c6_87 = arith.constant 6 : index
    %c0_88 = arith.constant 0 : index
    %c32_89 = arith.constant 32 : index
    %169 = vector.load %arg7[%c6_87, %c0_88, %c32_89] : memref<8x4x64xf32, #tpu.memory_space<vmem>>, vector<1x4x32xf32>
    %170 = vector.shape_cast %169 : vector<1x4x32xf32> to vector<4x32xf32>
    %171 = vector.shape_cast %161 : vector<4x32xf32> to vector<1x4x32xf32>
    tpu.vector_store %arg7[%c6_87, %c0_88, %c32_89], %171 {strides = array<i32>} : memref<8x4x64xf32, #tpu.memory_space<vmem>>, vector<1x4x32xf32>,
    %c0_90 = arith.constant 0 : index
    %c0_91 = arith.constant 0 : index
    %172 = vector.load %arg9[%c0_90, %c0_91] : memref<4x64xf32, #tpu.memory_space<vmem>>, vector<4x64xf32>
    %c0_92 = arith.constant 0 : index
    %c0_93 = arith.constant 0 : index
    %173 = vector.load %arg5[%c0_92, %c0_93] : memref<64x256xf32, #tpu.memory_space<vmem>>, vector<64x256xf32>
    %cst_94 = arith.constant dense<0.000000e+00> : vector<4x256xf32>
    %174 = tpu.matmul %172, %173, %cst_94 {dimension_numbers = #tpu.dot_dimension_numbers<[1], [0], [0], [1], [0, 0, 1, 1], [], []>} : vector<4x64xf32>, vector<64x256xf32>, vector<4x256xf32> -> vector<4x256xf32>
    %c2 = arith.constant 2 : index
    %c0_95 = arith.constant 0 : index
    %c0_96 = arith.constant 0 : index
    %175 = vector.load %arg8[%c2, %c0_95, %c0_96] : memref<8x4x256xf32, #tpu.memory_space<vmem>>, vector<1x4x256xf32>
    %176 = vector.shape_cast %175 : vector<1x4x256xf32> to vector<4x256xf32>
    %177 = vector.extract_strided_slice %176 {offsets = [0, 0], sizes = [4, 128], strides = [1, 1]} : vector<4x256xf32> to vector<4x128xf32>
    %178 = vector.extract_strided_slice %174 {offsets = [0, 0], sizes = [4, 128], strides = [1, 1]} : vector<4x256xf32> to vector<4x128xf32>
    %179 = arith.addf %177, %178 : vector<4x128xf32>
    %c5 = arith.constant 5 : index
    %c0_97 = arith.constant 0 : index
    %c0_98 = arith.constant 0 : index
    %180 = vector.load %arg8[%c5, %c0_97, %c0_98] : memref<8x4x256xf32, #tpu.memory_space<vmem>>, vector<1x4x256xf32>
    %181 = vector.shape_cast %180 : vector<1x4x256xf32> to vector<4x256xf32>
    %182 = vector.extract_strided_slice %181 {offsets = [0, 128], sizes = [4, 128], strides = [1, 1]} : vector<4x256xf32> to vector<4x128xf32>
    %183 = vector.extract_strided_slice %174 {offsets = [0, 128], sizes = [4, 128], strides = [1, 1]} : vector<4x256xf32> to vector<4x128xf32>
    %184 = arith.addf %182, %183 : vector<4x128xf32>
    %c0_99 = arith.constant 0 : index
    %c0_100 = arith.constant 0 : index
    %185 = vector.load %arg10[%c0_99, %c0_100] : memref<4x64xf32, #tpu.memory_space<vmem>>, vector<4x32xf32>
    %186 = vector.extract_strided_slice %179 {offsets = [0, 0], sizes = [4, 32], strides = [1, 1]} : vector<4x128xf32> to vector<4x32xf32>
    %187 = arith.negf %186 : vector<4x32xf32>
    %188 = math.exp %187 : vector<4x32xf32>
    %cst_101 = arith.constant 1.000000e+00 : f32
    %189 = vector.broadcast %cst_101 : f32 to vector<4x32xf32>
    %190 = arith.addf %189, %188 : vector<4x32xf32>
    %191 = arith.divf %189, %190 : vector<4x32xf32>
    %192 = vector.extract_strided_slice %179 {offsets = [0, 32], sizes = [4, 32], strides = [1, 1]} : vector<4x128xf32> to vector<4x32xf32>
    %193 = arith.negf %192 : vector<4x32xf32>
    %194 = math.exp %193 : vector<4x32xf32>
    %cst_102 = arith.constant 1.000000e+00 : f32
    %195 = vector.broadcast %cst_102 : f32 to vector<4x32xf32>
    %196 = arith.addf %195, %194 : vector<4x32xf32>
    %197 = arith.divf %195, %196 : vector<4x32xf32>
    %198 = vector.extract_strided_slice %179 {offsets = [0, 64], sizes = [4, 32], strides = [1, 1]} : vector<4x128xf32> to vector<4x32xf32>
    %199 = math.tanh %198 : vector<4x32xf32>
    %200 = vector.extract_strided_slice %179 {offsets = [0, 96], sizes = [4, 32], strides = [1, 1]} : vector<4x128xf32> to vector<4x32xf32>
    %201 = arith.negf %200 : vector<4x32xf32>
    %202 = math.exp %201 : vector<4x32xf32>
    %cst_103 = arith.constant 1.000000e+00 : f32
    %203 = vector.broadcast %cst_103 : f32 to vector<4x32xf32>
    %204 = arith.addf %203, %202 : vector<4x32xf32>
    %205 = arith.divf %203, %204 : vector<4x32xf32>
    %206 = arith.mulf %197, %185 : vector<4x32xf32>
    %207 = arith.mulf %191, %199 : vector<4x32xf32>
    %208 = arith.addf %206, %207 : vector<4x32xf32>
    %209 = math.tanh %208 : vector<4x32xf32>
    %210 = arith.mulf %205, %209 : vector<4x32xf32>
    %c0_104 = arith.constant 0 : index
    %c32_105 = arith.constant 32 : index
    %211 = vector.load %arg10[%c0_104, %c32_105] : memref<4x64xf32, #tpu.memory_space<vmem>>, vector<4x32xf32>
    %212 = vector.extract_strided_slice %184 {offsets = [0, 0], sizes = [4, 32], strides = [1, 1]} : vector<4x128xf32> to vector<4x32xf32>
    %213 = arith.negf %212 : vector<4x32xf32>
    %214 = math.exp %213 : vector<4x32xf32>
    %cst_106 = arith.constant 1.000000e+00 : f32
    %215 = vector.broadcast %cst_106 : f32 to vector<4x32xf32>
    %216 = arith.addf %215, %214 : vector<4x32xf32>
    %217 = arith.divf %215, %216 : vector<4x32xf32>
    %218 = vector.extract_strided_slice %184 {offsets = [0, 32], sizes = [4, 32], strides = [1, 1]} : vector<4x128xf32> to vector<4x32xf32>
    %219 = arith.negf %218 : vector<4x32xf32>
    %220 = math.exp %219 : vector<4x32xf32>
    %cst_107 = arith.constant 1.000000e+00 : f32
    %221 = vector.broadcast %cst_107 : f32 to vector<4x32xf32>
    %222 = arith.addf %221, %220 : vector<4x32xf32>
    %223 = arith.divf %221, %222 : vector<4x32xf32>
    %224 = vector.extract_strided_slice %184 {offsets = [0, 64], sizes = [4, 32], strides = [1, 1]} : vector<4x128xf32> to vector<4x32xf32>
    %225 = math.tanh %224 : vector<4x32xf32>
    %226 = vector.extract_strided_slice %184 {offsets = [0, 96], sizes = [4, 32], strides = [1, 1]} : vector<4x128xf32> to vector<4x32xf32>
    %227 = arith.negf %226 : vector<4x32xf32>
    %228 = math.exp %227 : vector<4x32xf32>
    %cst_108 = arith.constant 1.000000e+00 : f32
    %229 = vector.broadcast %cst_108 : f32 to vector<4x32xf32>
    %230 = arith.addf %229, %228 : vector<4x32xf32>
    %231 = arith.divf %229, %230 : vector<4x32xf32>
    %232 = arith.mulf %223, %211 : vector<4x32xf32>
    %233 = arith.mulf %217, %225 : vector<4x32xf32>
    %234 = arith.addf %232, %233 : vector<4x32xf32>
    %235 = math.tanh %234 : vector<4x32xf32>
    %236 = arith.mulf %231, %235 : vector<4x32xf32>
    %c0_109 = arith.constant 0 : index
    %c0_110 = arith.constant 0 : index
    %237 = vector.load %arg9[%c0_109, %c0_110] : memref<4x64xf32, #tpu.memory_space<vmem>>, vector<4x32xf32>
    tpu.vector_store %arg9[%c0_109, %c0_110], %210 {strides = array<i32>} : memref<4x64xf32, #tpu.memory_space<vmem>>, vector<4x32xf32>,
    %c0_111 = arith.constant 0 : index
    %c32_112 = arith.constant 32 : index
    %238 = vector.load %arg9[%c0_111, %c32_112] : memref<4x64xf32, #tpu.memory_space<vmem>>, vector<4x32xf32>
    tpu.vector_store %arg9[%c0_111, %c32_112], %236 {strides = array<i32>} : memref<4x64xf32, #tpu.memory_space<vmem>>, vector<4x32xf32>,
    %c0_113 = arith.constant 0 : index
    %c0_114 = arith.constant 0 : index
    %239 = vector.load %arg10[%c0_113, %c0_114] : memref<4x64xf32, #tpu.memory_space<vmem>>, vector<4x32xf32>
    tpu.vector_store %arg10[%c0_113, %c0_114], %208 {strides = array<i32>} : memref<4x64xf32, #tpu.memory_space<vmem>>, vector<4x32xf32>,
    %c0_115 = arith.constant 0 : index
    %c32_116 = arith.constant 32 : index
    %240 = vector.load %arg10[%c0_115, %c32_116] : memref<4x64xf32, #tpu.memory_space<vmem>>, vector<4x32xf32>
    tpu.vector_store %arg10[%c0_115, %c32_116], %234 {strides = array<i32>} : memref<4x64xf32, #tpu.memory_space<vmem>>, vector<4x32xf32>,
    %c2_117 = arith.constant 2 : index
    %c0_118 = arith.constant 0 : index
    %c0_119 = arith.constant 0 : index
    %241 = vector.load %arg7[%c2_117, %c0_118, %c0_119] : memref<8x4x64xf32, #tpu.memory_space<vmem>>, vector<1x4x32xf32>
    %242 = vector.shape_cast %241 : vector<1x4x32xf32> to vector<4x32xf32>
    %243 = vector.shape_cast %210 : vector<4x32xf32> to vector<1x4x32xf32>
    tpu.vector_store %arg7[%c2_117, %c0_118, %c0_119], %243 {strides = array<i32>} : memref<8x4x64xf32, #tpu.memory_space<vmem>>, vector<1x4x32xf32>,
    %c5_120 = arith.constant 5 : index
    %c0_121 = arith.constant 0 : index
    %c32_122 = arith.constant 32 : index
    %244 = vector.load %arg7[%c5_120, %c0_121, %c32_122] : memref<8x4x64xf32, #tpu.memory_space<vmem>>, vector<1x4x32xf32>
    %245 = vector.shape_cast %244 : vector<1x4x32xf32> to vector<4x32xf32>
    %246 = vector.shape_cast %236 : vector<4x32xf32> to vector<1x4x32xf32>
    tpu.vector_store %arg7[%c5_120, %c0_121, %c32_122], %246 {strides = array<i32>} : memref<8x4x64xf32, #tpu.memory_space<vmem>>, vector<1x4x32xf32>,
    %c0_123 = arith.constant 0 : index
    %c0_124 = arith.constant 0 : index
    %247 = vector.load %arg9[%c0_123, %c0_124] : memref<4x64xf32, #tpu.memory_space<vmem>>, vector<4x64xf32>
    %c0_125 = arith.constant 0 : index
    %c0_126 = arith.constant 0 : index
    %248 = vector.load %arg5[%c0_125, %c0_126] : memref<64x256xf32, #tpu.memory_space<vmem>>, vector<64x256xf32>
    %cst_127 = arith.constant dense<0.000000e+00> : vector<4x256xf32>
    %249 = tpu.matmul %247, %248, %cst_127 {dimension_numbers = #tpu.dot_dimension_numbers<[1], [0], [0], [1], [0, 0, 1, 1], [], []>} : vector<4x64xf32>, vector<64x256xf32>, vector<4x256xf32> -> vector<4x256xf32>
    %c3 = arith.constant 3 : index
    %c0_128 = arith.constant 0 : index
    %c0_129 = arith.constant 0 : index
    %250 = vector.load %arg8[%c3, %c0_128, %c0_129] : memref<8x4x256xf32, #tpu.memory_space<vmem>>, vector<1x4x256xf32>
    %251 = vector.shape_cast %250 : vector<1x4x256xf32> to vector<4x256xf32>
    %252 = vector.extract_strided_slice %251 {offsets = [0, 0], sizes = [4, 128], strides = [1, 1]} : vector<4x256xf32> to vector<4x128xf32>
    %253 = vector.extract_strided_slice %249 {offsets = [0, 0], sizes = [4, 128], strides = [1, 1]} : vector<4x256xf32> to vector<4x128xf32>
    %254 = arith.addf %252, %253 : vector<4x128xf32>
    %c4 = arith.constant 4 : index
    %c0_130 = arith.constant 0 : index
    %c0_131 = arith.constant 0 : index
    %255 = vector.load %arg8[%c4, %c0_130, %c0_131] : memref<8x4x256xf32, #tpu.memory_space<vmem>>, vector<1x4x256xf32>
    %256 = vector.shape_cast %255 : vector<1x4x256xf32> to vector<4x256xf32>
    %257 = vector.extract_strided_slice %256 {offsets = [0, 128], sizes = [4, 128], strides = [1, 1]} : vector<4x256xf32> to vector<4x128xf32>
    %258 = vector.extract_strided_slice %249 {offsets = [0, 128], sizes = [4, 128], strides = [1, 1]} : vector<4x256xf32> to vector<4x128xf32>
    %259 = arith.addf %257, %258 : vector<4x128xf32>
    %c0_132 = arith.constant 0 : index
    %c0_133 = arith.constant 0 : index
    %260 = vector.load %arg10[%c0_132, %c0_133] : memref<4x64xf32, #tpu.memory_space<vmem>>, vector<4x32xf32>
    %261 = vector.extract_strided_slice %254 {offsets = [0, 0], sizes = [4, 32], strides = [1, 1]} : vector<4x128xf32> to vector<4x32xf32>
    %262 = arith.negf %261 : vector<4x32xf32>
    %263 = math.exp %262 : vector<4x32xf32>
    %cst_134 = arith.constant 1.000000e+00 : f32
    %264 = vector.broadcast %cst_134 : f32 to vector<4x32xf32>
    %265 = arith.addf %264, %263 : vector<4x32xf32>
    %266 = arith.divf %264, %265 : vector<4x32xf32>
    %267 = vector.extract_strided_slice %254 {offsets = [0, 32], sizes = [4, 32], strides = [1, 1]} : vector<4x128xf32> to vector<4x32xf32>
    %268 = arith.negf %267 : vector<4x32xf32>
    %269 = math.exp %268 : vector<4x32xf32>
    %cst_135 = arith.constant 1.000000e+00 : f32
    %270 = vector.broadcast %cst_135 : f32 to vector<4x32xf32>
    %271 = arith.addf %270, %269 : vector<4x32xf32>
    %272 = arith.divf %270, %271 : vector<4x32xf32>
    %273 = vector.extract_strided_slice %254 {offsets = [0, 64], sizes = [4, 32], strides = [1, 1]} : vector<4x128xf32> to vector<4x32xf32>
    %274 = math.tanh %273 : vector<4x32xf32>
    %275 = vector.extract_strided_slice %254 {offsets = [0, 96], sizes = [4, 32], strides = [1, 1]} : vector<4x128xf32> to vector<4x32xf32>
    %276 = arith.negf %275 : vector<4x32xf32>
    %277 = math.exp %276 : vector<4x32xf32>
    %cst_136 = arith.constant 1.000000e+00 : f32
    %278 = vector.broadcast %cst_136 : f32 to vector<4x32xf32>
    %279 = arith.addf %278, %277 : vector<4x32xf32>
    %280 = arith.divf %278, %279 : vector<4x32xf32>
    %281 = arith.mulf %272, %260 : vector<4x32xf32>
    %282 = arith.mulf %266, %274 : vector<4x32xf32>
    %283 = arith.addf %281, %282 : vector<4x32xf32>
    %284 = math.tanh %283 : vector<4x32xf32>
    %285 = arith.mulf %280, %284 : vector<4x32xf32>
    %c0_137 = arith.constant 0 : index
    %c32_138 = arith.constant 32 : index
    %286 = vector.load %arg10[%c0_137, %c32_138] : memref<4x64xf32, #tpu.memory_space<vmem>>, vector<4x32xf32>
    %287 = vector.extract_strided_slice %259 {offsets = [0, 0], sizes = [4, 32], strides = [1, 1]} : vector<4x128xf32> to vector<4x32xf32>
    %288 = arith.negf %287 : vector<4x32xf32>
    %289 = math.exp %288 : vector<4x32xf32>
    %cst_139 = arith.constant 1.000000e+00 : f32
    %290 = vector.broadcast %cst_139 : f32 to vector<4x32xf32>
    %291 = arith.addf %290, %289 : vector<4x32xf32>
    %292 = arith.divf %290, %291 : vector<4x32xf32>
    %293 = vector.extract_strided_slice %259 {offsets = [0, 32], sizes = [4, 32], strides = [1, 1]} : vector<4x128xf32> to vector<4x32xf32>
    %294 = arith.negf %293 : vector<4x32xf32>
    %295 = math.exp %294 : vector<4x32xf32>
    %cst_140 = arith.constant 1.000000e+00 : f32
    %296 = vector.broadcast %cst_140 : f32 to vector<4x32xf32>
    %297 = arith.addf %296, %295 : vector<4x32xf32>
    %298 = arith.divf %296, %297 : vector<4x32xf32>
    %299 = vector.extract_strided_slice %259 {offsets = [0, 64], sizes = [4, 32], strides = [1, 1]} : vector<4x128xf32> to vector<4x32xf32>
    %300 = math.tanh %299 : vector<4x32xf32>
    %301 = vector.extract_strided_slice %259 {offsets = [0, 96], sizes = [4, 32], strides = [1, 1]} : vector<4x128xf32> to vector<4x32xf32>
    %302 = arith.negf %301 : vector<4x32xf32>
    %303 = math.exp %302 : vector<4x32xf32>
    %cst_141 = arith.constant 1.000000e+00 : f32
    %304 = vector.broadcast %cst_141 : f32 to vector<4x32xf32>
    %305 = arith.addf %304, %303 : vector<4x32xf32>
    %306 = arith.divf %304, %305 : vector<4x32xf32>
    %307 = arith.mulf %298, %286 : vector<4x32xf32>
    %308 = arith.mulf %292, %300 : vector<4x32xf32>
    %309 = arith.addf %307, %308 : vector<4x32xf32>
    %310 = math.tanh %309 : vector<4x32xf32>
    %311 = arith.mulf %306, %310 : vector<4x32xf32>
    %c0_142 = arith.constant 0 : index
    %c0_143 = arith.constant 0 : index
    %312 = vector.load %arg9[%c0_142, %c0_143] : memref<4x64xf32, #tpu.memory_space<vmem>>, vector<4x32xf32>
    tpu.vector_store %arg9[%c0_142, %c0_143], %285 {strides = array<i32>} : memref<4x64xf32, #tpu.memory_space<vmem>>, vector<4x32xf32>,
    %c0_144 = arith.constant 0 : index
    %c32_145 = arith.constant 32 : index
    %313 = vector.load %arg9[%c0_144, %c32_145] : memref<4x64xf32, #tpu.memory_space<vmem>>, vector<4x32xf32>
    tpu.vector_store %arg9[%c0_144, %c32_145], %311 {strides = array<i32>} : memref<4x64xf32, #tpu.memory_space<vmem>>, vector<4x32xf32>,
    %c0_146 = arith.constant 0 : index
    %c0_147 = arith.constant 0 : index
    %314 = vector.load %arg10[%c0_146, %c0_147] : memref<4x64xf32, #tpu.memory_space<vmem>>, vector<4x32xf32>
    tpu.vector_store %arg10[%c0_146, %c0_147], %283 {strides = array<i32>} : memref<4x64xf32, #tpu.memory_space<vmem>>, vector<4x32xf32>,
    %c0_148 = arith.constant 0 : index
    %c32_149 = arith.constant 32 : index
    %315 = vector.load %arg10[%c0_148, %c32_149] : memref<4x64xf32, #tpu.memory_space<vmem>>, vector<4x32xf32>
    tpu.vector_store %arg10[%c0_148, %c32_149], %309 {strides = array<i32>} : memref<4x64xf32, #tpu.memory_space<vmem>>, vector<4x32xf32>,
    %c3_150 = arith.constant 3 : index
    %c0_151 = arith.constant 0 : index
    %c0_152 = arith.constant 0 : index
    %316 = vector.load %arg7[%c3_150, %c0_151, %c0_152] : memref<8x4x64xf32, #tpu.memory_space<vmem>>, vector<1x4x32xf32>
    %317 = vector.shape_cast %316 : vector<1x4x32xf32> to vector<4x32xf32>
    %318 = vector.shape_cast %285 : vector<4x32xf32> to vector<1x4x32xf32>
    tpu.vector_store %arg7[%c3_150, %c0_151, %c0_152], %318 {strides = array<i32>} : memref<8x4x64xf32, #tpu.memory_space<vmem>>, vector<1x4x32xf32>,
    %c4_153 = arith.constant 4 : index
    %c0_154 = arith.constant 0 : index
    %c32_155 = arith.constant 32 : index
    %319 = vector.load %arg7[%c4_153, %c0_154, %c32_155] : memref<8x4x64xf32, #tpu.memory_space<vmem>>, vector<1x4x32xf32>
    %320 = vector.shape_cast %319 : vector<1x4x32xf32> to vector<4x32xf32>
    %321 = vector.shape_cast %311 : vector<4x32xf32> to vector<1x4x32xf32>
    tpu.vector_store %arg7[%c4_153, %c0_154, %c32_155], %321 {strides = array<i32>} : memref<8x4x64xf32, #tpu.memory_space<vmem>>, vector<1x4x32xf32>,
    %c0_156 = arith.constant 0 : index
    %c0_157 = arith.constant 0 : index
    %322 = vector.load %arg9[%c0_156, %c0_157] : memref<4x64xf32, #tpu.memory_space<vmem>>, vector<4x64xf32>
    %c0_158 = arith.constant 0 : index
    %c0_159 = arith.constant 0 : index
    %323 = vector.load %arg5[%c0_158, %c0_159] : memref<64x256xf32, #tpu.memory_space<vmem>>, vector<64x256xf32>
    %cst_160 = arith.constant dense<0.000000e+00> : vector<4x256xf32>
    %324 = tpu.matmul %322, %323, %cst_160 {dimension_numbers = #tpu.dot_dimension_numbers<[1], [0], [0], [1], [0, 0, 1, 1], [], []>} : vector<4x64xf32>, vector<64x256xf32>, vector<4x256xf32> -> vector<4x256xf32>
    %c4_161 = arith.constant 4 : index
    %c0_162 = arith.constant 0 : index
    %c0_163 = arith.constant 0 : index
    %325 = vector.load %arg8[%c4_161, %c0_162, %c0_163] : memref<8x4x256xf32, #tpu.memory_space<vmem>>, vector<1x4x256xf32>
    %326 = vector.shape_cast %325 : vector<1x4x256xf32> to vector<4x256xf32>
    %327 = vector.extract_strided_slice %326 {offsets = [0, 0], sizes = [4, 128], strides = [1, 1]} : vector<4x256xf32> to vector<4x128xf32>
    %328 = vector.extract_strided_slice %324 {offsets = [0, 0], sizes = [4, 128], strides = [1, 1]} : vector<4x256xf32> to vector<4x128xf32>
    %329 = arith.addf %327, %328 : vector<4x128xf32>
    %c3_164 = arith.constant 3 : index
    %c0_165 = arith.constant 0 : index
    %c0_166 = arith.constant 0 : index
    %330 = vector.load %arg8[%c3_164, %c0_165, %c0_166] : memref<8x4x256xf32, #tpu.memory_space<vmem>>, vector<1x4x256xf32>
    %331 = vector.shape_cast %330 : vector<1x4x256xf32> to vector<4x256xf32>
    %332 = vector.extract_strided_slice %331 {offsets = [0, 128], sizes = [4, 128], strides = [1, 1]} : vector<4x256xf32> to vector<4x128xf32>
    %333 = vector.extract_strided_slice %324 {offsets = [0, 128], sizes = [4, 128], strides = [1, 1]} : vector<4x256xf32> to vector<4x128xf32>
    %334 = arith.addf %332, %333 : vector<4x128xf32>
    %c0_167 = arith.constant 0 : index
    %c0_168 = arith.constant 0 : index
    %335 = vector.load %arg10[%c0_167, %c0_168] : memref<4x64xf32, #tpu.memory_space<vmem>>, vector<4x32xf32>
    %336 = vector.extract_strided_slice %329 {offsets = [0, 0], sizes = [4, 32], strides = [1, 1]} : vector<4x128xf32> to vector<4x32xf32>
    %337 = arith.negf %336 : vector<4x32xf32>
    %338 = math.exp %337 : vector<4x32xf32>
    %cst_169 = arith.constant 1.000000e+00 : f32
    %339 = vector.broadcast %cst_169 : f32 to vector<4x32xf32>
    %340 = arith.addf %339, %338 : vector<4x32xf32>
    %341 = arith.divf %339, %340 : vector<4x32xf32>
    %342 = vector.extract_strided_slice %329 {offsets = [0, 32], sizes = [4, 32], strides = [1, 1]} : vector<4x128xf32> to vector<4x32xf32>
    %343 = arith.negf %342 : vector<4x32xf32>
    %344 = math.exp %343 : vector<4x32xf32>
    %cst_170 = arith.constant 1.000000e+00 : f32
    %345 = vector.broadcast %cst_170 : f32 to vector<4x32xf32>
    %346 = arith.addf %345, %344 : vector<4x32xf32>
    %347 = arith.divf %345, %346 : vector<4x32xf32>
    %348 = vector.extract_strided_slice %329 {offsets = [0, 64], sizes = [4, 32], strides = [1, 1]} : vector<4x128xf32> to vector<4x32xf32>
    %349 = math.tanh %348 : vector<4x32xf32>
    %350 = vector.extract_strided_slice %329 {offsets = [0, 96], sizes = [4, 32], strides = [1, 1]} : vector<4x128xf32> to vector<4x32xf32>
    %351 = arith.negf %350 : vector<4x32xf32>
    %352 = math.exp %351 : vector<4x32xf32>
    %cst_171 = arith.constant 1.000000e+00 : f32
    %353 = vector.broadcast %cst_171 : f32 to vector<4x32xf32>
    %354 = arith.addf %353, %352 : vector<4x32xf32>
    %355 = arith.divf %353, %354 : vector<4x32xf32>
    %356 = arith.mulf %347, %335 : vector<4x32xf32>
    %357 = arith.mulf %341, %349 : vector<4x32xf32>
    %358 = arith.addf %356, %357 : vector<4x32xf32>
    %359 = math.tanh %358 : vector<4x32xf32>
    %360 = arith.mulf %355, %359 : vector<4x32xf32>
    %c0_172 = arith.constant 0 : index
    %c32_173 = arith.constant 32 : index
    %361 = vector.load %arg10[%c0_172, %c32_173] : memref<4x64xf32, #tpu.memory_space<vmem>>, vector<4x32xf32>
    %362 = vector.extract_strided_slice %334 {offsets = [0, 0], sizes = [4, 32], strides = [1, 1]} : vector<4x128xf32> to vector<4x32xf32>
    %363 = arith.negf %362 : vector<4x32xf32>
    %364 = math.exp %363 : vector<4x32xf32>
    %cst_174 = arith.constant 1.000000e+00 : f32
    %365 = vector.broadcast %cst_174 : f32 to vector<4x32xf32>
    %366 = arith.addf %365, %364 : vector<4x32xf32>
    %367 = arith.divf %365, %366 : vector<4x32xf32>
    %368 = vector.extract_strided_slice %334 {offsets = [0, 32], sizes = [4, 32], strides = [1, 1]} : vector<4x128xf32> to vector<4x32xf32>
    %369 = arith.negf %368 : vector<4x32xf32>
    %370 = math.exp %369 : vector<4x32xf32>
    %cst_175 = arith.constant 1.000000e+00 : f32
    %371 = vector.broadcast %cst_175 : f32 to vector<4x32xf32>
    %372 = arith.addf %371, %370 : vector<4x32xf32>
    %373 = arith.divf %371, %372 : vector<4x32xf32>
    %374 = vector.extract_strided_slice %334 {offsets = [0, 64], sizes = [4, 32], strides = [1, 1]} : vector<4x128xf32> to vector<4x32xf32>
    %375 = math.tanh %374 : vector<4x32xf32>
    %376 = vector.extract_strided_slice %334 {offsets = [0, 96], sizes = [4, 32], strides = [1, 1]} : vector<4x128xf32> to vector<4x32xf32>
    %377 = arith.negf %376 : vector<4x32xf32>
    %378 = math.exp %377 : vector<4x32xf32>
    %cst_176 = arith.constant 1.000000e+00 : f32
    %379 = vector.broadcast %cst_176 : f32 to vector<4x32xf32>
    %380 = arith.addf %379, %378 : vector<4x32xf32>
    %381 = arith.divf %379, %380 : vector<4x32xf32>
    %382 = arith.mulf %373, %361 : vector<4x32xf32>
    %383 = arith.mulf %367, %375 : vector<4x32xf32>
    %384 = arith.addf %382, %383 : vector<4x32xf32>
    %385 = math.tanh %384 : vector<4x32xf32>
    %386 = arith.mulf %381, %385 : vector<4x32xf32>
    %c0_177 = arith.constant 0 : index
    %c0_178 = arith.constant 0 : index
    %387 = vector.load %arg9[%c0_177, %c0_178] : memref<4x64xf32, #tpu.memory_space<vmem>>, vector<4x32xf32>
    tpu.vector_store %arg9[%c0_177, %c0_178], %360 {strides = array<i32>} : memref<4x64xf32, #tpu.memory_space<vmem>>, vector<4x32xf32>,
    %c0_179 = arith.constant 0 : index
    %c32_180 = arith.constant 32 : index
    %388 = vector.load %arg9[%c0_179, %c32_180] : memref<4x64xf32, #tpu.memory_space<vmem>>, vector<4x32xf32>
    tpu.vector_store %arg9[%c0_179, %c32_180], %386 {strides = array<i32>} : memref<4x64xf32, #tpu.memory_space<vmem>>, vector<4x32xf32>,
    %c0_181 = arith.constant 0 : index
    %c0_182 = arith.constant 0 : index
    %389 = vector.load %arg10[%c0_181, %c0_182] : memref<4x64xf32, #tpu.memory_space<vmem>>, vector<4x32xf32>
    tpu.vector_store %arg10[%c0_181, %c0_182], %358 {strides = array<i32>} : memref<4x64xf32, #tpu.memory_space<vmem>>, vector<4x32xf32>,
    %c0_183 = arith.constant 0 : index
    %c32_184 = arith.constant 32 : index
    %390 = vector.load %arg10[%c0_183, %c32_184] : memref<4x64xf32, #tpu.memory_space<vmem>>, vector<4x32xf32>
    tpu.vector_store %arg10[%c0_183, %c32_184], %384 {strides = array<i32>} : memref<4x64xf32, #tpu.memory_space<vmem>>, vector<4x32xf32>,
    %c4_185 = arith.constant 4 : index
    %c0_186 = arith.constant 0 : index
    %c0_187 = arith.constant 0 : index
    %391 = vector.load %arg7[%c4_185, %c0_186, %c0_187] : memref<8x4x64xf32, #tpu.memory_space<vmem>>, vector<1x4x32xf32>
    %392 = vector.shape_cast %391 : vector<1x4x32xf32> to vector<4x32xf32>
    %393 = vector.shape_cast %360 : vector<4x32xf32> to vector<1x4x32xf32>
    tpu.vector_store %arg7[%c4_185, %c0_186, %c0_187], %393 {strides = array<i32>} : memref<8x4x64xf32, #tpu.memory_space<vmem>>, vector<1x4x32xf32>,
    %c3_188 = arith.constant 3 : index
    %c0_189 = arith.constant 0 : index
    %c32_190 = arith.constant 32 : index
    %394 = vector.load %arg7[%c3_188, %c0_189, %c32_190] : memref<8x4x64xf32, #tpu.memory_space<vmem>>, vector<1x4x32xf32>
    %395 = vector.shape_cast %394 : vector<1x4x32xf32> to vector<4x32xf32>
    %396 = vector.shape_cast %386 : vector<4x32xf32> to vector<1x4x32xf32>
    tpu.vector_store %arg7[%c3_188, %c0_189, %c32_190], %396 {strides = array<i32>} : memref<8x4x64xf32, #tpu.memory_space<vmem>>, vector<1x4x32xf32>,
    %c0_191 = arith.constant 0 : index
    %c0_192 = arith.constant 0 : index
    %397 = vector.load %arg9[%c0_191, %c0_192] : memref<4x64xf32, #tpu.memory_space<vmem>>, vector<4x64xf32>
    %c0_193 = arith.constant 0 : index
    %c0_194 = arith.constant 0 : index
    %398 = vector.load %arg5[%c0_193, %c0_194] : memref<64x256xf32, #tpu.memory_space<vmem>>, vector<64x256xf32>
    %cst_195 = arith.constant dense<0.000000e+00> : vector<4x256xf32>
    %399 = tpu.matmul %397, %398, %cst_195 {dimension_numbers = #tpu.dot_dimension_numbers<[1], [0], [0], [1], [0, 0, 1, 1], [], []>} : vector<4x64xf32>, vector<64x256xf32>, vector<4x256xf32> -> vector<4x256xf32>
    %c5_196 = arith.constant 5 : index
    %c0_197 = arith.constant 0 : index
    %c0_198 = arith.constant 0 : index
    %400 = vector.load %arg8[%c5_196, %c0_197, %c0_198] : memref<8x4x256xf32, #tpu.memory_space<vmem>>, vector<1x4x256xf32>
    %401 = vector.shape_cast %400 : vector<1x4x256xf32> to vector<4x256xf32>
    %402 = vector.extract_strided_slice %401 {offsets = [0, 0], sizes = [4, 128], strides = [1, 1]} : vector<4x256xf32> to vector<4x128xf32>
    %403 = vector.extract_strided_slice %399 {offsets = [0, 0], sizes = [4, 128], strides = [1, 1]} : vector<4x256xf32> to vector<4x128xf32>
    %404 = arith.addf %402, %403 : vector<4x128xf32>
    %c2_199 = arith.constant 2 : index
    %c0_200 = arith.constant 0 : index
    %c0_201 = arith.constant 0 : index
    %405 = vector.load %arg8[%c2_199, %c0_200, %c0_201] : memref<8x4x256xf32, #tpu.memory_space<vmem>>, vector<1x4x256xf32>
    %406 = vector.shape_cast %405 : vector<1x4x256xf32> to vector<4x256xf32>
    %407 = vector.extract_strided_slice %406 {offsets = [0, 128], sizes = [4, 128], strides = [1, 1]} : vector<4x256xf32> to vector<4x128xf32>
    %408 = vector.extract_strided_slice %399 {offsets = [0, 128], sizes = [4, 128], strides = [1, 1]} : vector<4x256xf32> to vector<4x128xf32>
    %409 = arith.addf %407, %408 : vector<4x128xf32>
    %c0_202 = arith.constant 0 : index
    %c0_203 = arith.constant 0 : index
    %410 = vector.load %arg10[%c0_202, %c0_203] : memref<4x64xf32, #tpu.memory_space<vmem>>, vector<4x32xf32>
    %411 = vector.extract_strided_slice %404 {offsets = [0, 0], sizes = [4, 32], strides = [1, 1]} : vector<4x128xf32> to vector<4x32xf32>
    %412 = arith.negf %411 : vector<4x32xf32>
    %413 = math.exp %412 : vector<4x32xf32>
    %cst_204 = arith.constant 1.000000e+00 : f32
    %414 = vector.broadcast %cst_204 : f32 to vector<4x32xf32>
    %415 = arith.addf %414, %413 : vector<4x32xf32>
    %416 = arith.divf %414, %415 : vector<4x32xf32>
    %417 = vector.extract_strided_slice %404 {offsets = [0, 32], sizes = [4, 32], strides = [1, 1]} : vector<4x128xf32> to vector<4x32xf32>
    %418 = arith.negf %417 : vector<4x32xf32>
    %419 = math.exp %418 : vector<4x32xf32>
    %cst_205 = arith.constant 1.000000e+00 : f32
    %420 = vector.broadcast %cst_205 : f32 to vector<4x32xf32>
    %421 = arith.addf %420, %419 : vector<4x32xf32>
    %422 = arith.divf %420, %421 : vector<4x32xf32>
    %423 = vector.extract_strided_slice %404 {offsets = [0, 64], sizes = [4, 32], strides = [1, 1]} : vector<4x128xf32> to vector<4x32xf32>
    %424 = math.tanh %423 : vector<4x32xf32>
    %425 = vector.extract_strided_slice %404 {offsets = [0, 96], sizes = [4, 32], strides = [1, 1]} : vector<4x128xf32> to vector<4x32xf32>
    %426 = arith.negf %425 : vector<4x32xf32>
    %427 = math.exp %426 : vector<4x32xf32>
    %cst_206 = arith.constant 1.000000e+00 : f32
    %428 = vector.broadcast %cst_206 : f32 to vector<4x32xf32>
    %429 = arith.addf %428, %427 : vector<4x32xf32>
    %430 = arith.divf %428, %429 : vector<4x32xf32>
    %431 = arith.mulf %422, %410 : vector<4x32xf32>
    %432 = arith.mulf %416, %424 : vector<4x32xf32>
    %433 = arith.addf %431, %432 : vector<4x32xf32>
    %434 = math.tanh %433 : vector<4x32xf32>
    %435 = arith.mulf %430, %434 : vector<4x32xf32>
    %c0_207 = arith.constant 0 : index
    %c32_208 = arith.constant 32 : index
    %436 = vector.load %arg10[%c0_207, %c32_208] : memref<4x64xf32, #tpu.memory_space<vmem>>, vector<4x32xf32>
    %437 = vector.extract_strided_slice %409 {offsets = [0, 0], sizes = [4, 32], strides = [1, 1]} : vector<4x128xf32> to vector<4x32xf32>
    %438 = arith.negf %437 : vector<4x32xf32>
    %439 = math.exp %438 : vector<4x32xf32>
    %cst_209 = arith.constant 1.000000e+00 : f32
    %440 = vector.broadcast %cst_209 : f32 to vector<4x32xf32>
    %441 = arith.addf %440, %439 : vector<4x32xf32>
    %442 = arith.divf %440, %441 : vector<4x32xf32>
    %443 = vector.extract_strided_slice %409 {offsets = [0, 32], sizes = [4, 32], strides = [1, 1]} : vector<4x128xf32> to vector<4x32xf32>
    %444 = arith.negf %443 : vector<4x32xf32>
    %445 = math.exp %444 : vector<4x32xf32>
    %cst_210 = arith.constant 1.000000e+00 : f32
    %446 = vector.broadcast %cst_210 : f32 to vector<4x32xf32>
    %447 = arith.addf %446, %445 : vector<4x32xf32>
    %448 = arith.divf %446, %447 : vector<4x32xf32>
    %449 = vector.extract_strided_slice %409 {offsets = [0, 64], sizes = [4, 32], strides = [1, 1]} : vector<4x128xf32> to vector<4x32xf32>
    %450 = math.tanh %449 : vector<4x32xf32>
    %451 = vector.extract_strided_slice %409 {offsets = [0, 96], sizes = [4, 32], strides = [1, 1]} : vector<4x128xf32> to vector<4x32xf32>
    %452 = arith.negf %451 : vector<4x32xf32>
    %453 = math.exp %452 : vector<4x32xf32>
    %cst_211 = arith.constant 1.000000e+00 : f32
    %454 = vector.broadcast %cst_211 : f32 to vector<4x32xf32>
    %455 = arith.addf %454, %453 : vector<4x32xf32>
    %456 = arith.divf %454, %455 : vector<4x32xf32>
    %457 = arith.mulf %448, %436 : vector<4x32xf32>
    %458 = arith.mulf %442, %450 : vector<4x32xf32>
    %459 = arith.addf %457, %458 : vector<4x32xf32>
    %460 = math.tanh %459 : vector<4x32xf32>
    %461 = arith.mulf %456, %460 : vector<4x32xf32>
    %c0_212 = arith.constant 0 : index
    %c0_213 = arith.constant 0 : index
    %462 = vector.load %arg9[%c0_212, %c0_213] : memref<4x64xf32, #tpu.memory_space<vmem>>, vector<4x32xf32>
    tpu.vector_store %arg9[%c0_212, %c0_213], %435 {strides = array<i32>} : memref<4x64xf32, #tpu.memory_space<vmem>>, vector<4x32xf32>,
    %c0_214 = arith.constant 0 : index
    %c32_215 = arith.constant 32 : index
    %463 = vector.load %arg9[%c0_214, %c32_215] : memref<4x64xf32, #tpu.memory_space<vmem>>, vector<4x32xf32>
    tpu.vector_store %arg9[%c0_214, %c32_215], %461 {strides = array<i32>} : memref<4x64xf32, #tpu.memory_space<vmem>>, vector<4x32xf32>,
    %c0_216 = arith.constant 0 : index
    %c0_217 = arith.constant 0 : index
    %464 = vector.load %arg10[%c0_216, %c0_217] : memref<4x64xf32, #tpu.memory_space<vmem>>, vector<4x32xf32>
    tpu.vector_store %arg10[%c0_216, %c0_217], %433 {strides = array<i32>} : memref<4x64xf32, #tpu.memory_space<vmem>>, vector<4x32xf32>,
    %c0_218 = arith.constant 0 : index
    %c32_219 = arith.constant 32 : index
    %465 = vector.load %arg10[%c0_218, %c32_219] : memref<4x64xf32, #tpu.memory_space<vmem>>, vector<4x32xf32>
    tpu.vector_store %arg10[%c0_218, %c32_219], %459 {strides = array<i32>} : memref<4x64xf32, #tpu.memory_space<vmem>>, vector<4x32xf32>,
    %c5_220 = arith.constant 5 : index
    %c0_221 = arith.constant 0 : index
    %c0_222 = arith.constant 0 : index
    %466 = vector.load %arg7[%c5_220, %c0_221, %c0_222] : memref<8x4x64xf32, #tpu.memory_space<vmem>>, vector<1x4x32xf32>
    %467 = vector.shape_cast %466 : vector<1x4x32xf32> to vector<4x32xf32>
    %468 = vector.shape_cast %435 : vector<4x32xf32> to vector<1x4x32xf32>
    tpu.vector_store %arg7[%c5_220, %c0_221, %c0_222], %468 {strides = array<i32>} : memref<8x4x64xf32, #tpu.memory_space<vmem>>, vector<1x4x32xf32>,
    %c2_223 = arith.constant 2 : index
    %c0_224 = arith.constant 0 : index
    %c32_225 = arith.constant 32 : index
    %469 = vector.load %arg7[%c2_223, %c0_224, %c32_225] : memref<8x4x64xf32, #tpu.memory_space<vmem>>, vector<1x4x32xf32>
    %470 = vector.shape_cast %469 : vector<1x4x32xf32> to vector<4x32xf32>
    %471 = vector.shape_cast %461 : vector<4x32xf32> to vector<1x4x32xf32>
    tpu.vector_store %arg7[%c2_223, %c0_224, %c32_225], %471 {strides = array<i32>} : memref<8x4x64xf32, #tpu.memory_space<vmem>>, vector<1x4x32xf32>,
    %c0_226 = arith.constant 0 : index
    %c0_227 = arith.constant 0 : index
    %472 = vector.load %arg9[%c0_226, %c0_227] : memref<4x64xf32, #tpu.memory_space<vmem>>, vector<4x64xf32>
    %c0_228 = arith.constant 0 : index
    %c0_229 = arith.constant 0 : index
    %473 = vector.load %arg5[%c0_228, %c0_229] : memref<64x256xf32, #tpu.memory_space<vmem>>, vector<64x256xf32>
    %cst_230 = arith.constant dense<0.000000e+00> : vector<4x256xf32>
    %474 = tpu.matmul %472, %473, %cst_230 {dimension_numbers = #tpu.dot_dimension_numbers<[1], [0], [0], [1], [0, 0, 1, 1], [], []>} : vector<4x64xf32>, vector<64x256xf32>, vector<4x256xf32> -> vector<4x256xf32>
    %c6_231 = arith.constant 6 : index
    %c0_232 = arith.constant 0 : index
    %c0_233 = arith.constant 0 : index
    %475 = vector.load %arg8[%c6_231, %c0_232, %c0_233] : memref<8x4x256xf32, #tpu.memory_space<vmem>>, vector<1x4x256xf32>
    %476 = vector.shape_cast %475 : vector<1x4x256xf32> to vector<4x256xf32>
    %477 = vector.extract_strided_slice %476 {offsets = [0, 0], sizes = [4, 128], strides = [1, 1]} : vector<4x256xf32> to vector<4x128xf32>
    %478 = vector.extract_strided_slice %474 {offsets = [0, 0], sizes = [4, 128], strides = [1, 1]} : vector<4x256xf32> to vector<4x128xf32>
    %479 = arith.addf %477, %478 : vector<4x128xf32>
    %c1_234 = arith.constant 1 : index
    %c0_235 = arith.constant 0 : index
    %c0_236 = arith.constant 0 : index
    %480 = vector.load %arg8[%c1_234, %c0_235, %c0_236] : memref<8x4x256xf32, #tpu.memory_space<vmem>>, vector<1x4x256xf32>
    %481 = vector.shape_cast %480 : vector<1x4x256xf32> to vector<4x256xf32>
    %482 = vector.extract_strided_slice %481 {offsets = [0, 128], sizes = [4, 128], strides = [1, 1]} : vector<4x256xf32> to vector<4x128xf32>
    %483 = vector.extract_strided_slice %474 {offsets = [0, 128], sizes = [4, 128], strides = [1, 1]} : vector<4x256xf32> to vector<4x128xf32>
    %484 = arith.addf %482, %483 : vector<4x128xf32>
    %c0_237 = arith.constant 0 : index
    %c0_238 = arith.constant 0 : index
    %485 = vector.load %arg10[%c0_237, %c0_238] : memref<4x64xf32, #tpu.memory_space<vmem>>, vector<4x32xf32>
    %486 = vector.extract_strided_slice %479 {offsets = [0, 0], sizes = [4, 32], strides = [1, 1]} : vector<4x128xf32> to vector<4x32xf32>
    %487 = arith.negf %486 : vector<4x32xf32>
    %488 = math.exp %487 : vector<4x32xf32>
    %cst_239 = arith.constant 1.000000e+00 : f32
    %489 = vector.broadcast %cst_239 : f32 to vector<4x32xf32>
    %490 = arith.addf %489, %488 : vector<4x32xf32>
    %491 = arith.divf %489, %490 : vector<4x32xf32>
    %492 = vector.extract_strided_slice %479 {offsets = [0, 32], sizes = [4, 32], strides = [1, 1]} : vector<4x128xf32> to vector<4x32xf32>
    %493 = arith.negf %492 : vector<4x32xf32>
    %494 = math.exp %493 : vector<4x32xf32>
    %cst_240 = arith.constant 1.000000e+00 : f32
    %495 = vector.broadcast %cst_240 : f32 to vector<4x32xf32>
    %496 = arith.addf %495, %494 : vector<4x32xf32>
    %497 = arith.divf %495, %496 : vector<4x32xf32>
    %498 = vector.extract_strided_slice %479 {offsets = [0, 64], sizes = [4, 32], strides = [1, 1]} : vector<4x128xf32> to vector<4x32xf32>
    %499 = math.tanh %498 : vector<4x32xf32>
    %500 = vector.extract_strided_slice %479 {offsets = [0, 96], sizes = [4, 32], strides = [1, 1]} : vector<4x128xf32> to vector<4x32xf32>
    %501 = arith.negf %500 : vector<4x32xf32>
    %502 = math.exp %501 : vector<4x32xf32>
    %cst_241 = arith.constant 1.000000e+00 : f32
    %503 = vector.broadcast %cst_241 : f32 to vector<4x32xf32>
    %504 = arith.addf %503, %502 : vector<4x32xf32>
    %505 = arith.divf %503, %504 : vector<4x32xf32>
    %506 = arith.mulf %497, %485 : vector<4x32xf32>
    %507 = arith.mulf %491, %499 : vector<4x32xf32>
    %508 = arith.addf %506, %507 : vector<4x32xf32>
    %509 = math.tanh %508 : vector<4x32xf32>
    %510 = arith.mulf %505, %509 : vector<4x32xf32>
    %c0_242 = arith.constant 0 : index
    %c32_243 = arith.constant 32 : index
    %511 = vector.load %arg10[%c0_242, %c32_243] : memref<4x64xf32, #tpu.memory_space<vmem>>, vector<4x32xf32>
    %512 = vector.extract_strided_slice %484 {offsets = [0, 0], sizes = [4, 32], strides = [1, 1]} : vector<4x128xf32> to vector<4x32xf32>
    %513 = arith.negf %512 : vector<4x32xf32>
    %514 = math.exp %513 : vector<4x32xf32>
    %cst_244 = arith.constant 1.000000e+00 : f32
    %515 = vector.broadcast %cst_244 : f32 to vector<4x32xf32>
    %516 = arith.addf %515, %514 : vector<4x32xf32>
    %517 = arith.divf %515, %516 : vector<4x32xf32>
    %518 = vector.extract_strided_slice %484 {offsets = [0, 32], sizes = [4, 32], strides = [1, 1]} : vector<4x128xf32> to vector<4x32xf32>
    %519 = arith.negf %518 : vector<4x32xf32>
    %520 = math.exp %519 : vector<4x32xf32>
    %cst_245 = arith.constant 1.000000e+00 : f32
    %521 = vector.broadcast %cst_245 : f32 to vector<4x32xf32>
    %522 = arith.addf %521, %520 : vector<4x32xf32>
    %523 = arith.divf %521, %522 : vector<4x32xf32>
    %524 = vector.extract_strided_slice %484 {offsets = [0, 64], sizes = [4, 32], strides = [1, 1]} : vector<4x128xf32> to vector<4x32xf32>
    %525 = math.tanh %524 : vector<4x32xf32>
    %526 = vector.extract_strided_slice %484 {offsets = [0, 96], sizes = [4, 32], strides = [1, 1]} : vector<4x128xf32> to vector<4x32xf32>
    %527 = arith.negf %526 : vector<4x32xf32>
    %528 = math.exp %527 : vector<4x32xf32>
    %cst_246 = arith.constant 1.000000e+00 : f32
    %529 = vector.broadcast %cst_246 : f32 to vector<4x32xf32>
    %530 = arith.addf %529, %528 : vector<4x32xf32>
    %531 = arith.divf %529, %530 : vector<4x32xf32>
    %532 = arith.mulf %523, %511 : vector<4x32xf32>
    %533 = arith.mulf %517, %525 : vector<4x32xf32>
    %534 = arith.addf %532, %533 : vector<4x32xf32>
    %535 = math.tanh %534 : vector<4x32xf32>
    %536 = arith.mulf %531, %535 : vector<4x32xf32>
    %c0_247 = arith.constant 0 : index
    %c0_248 = arith.constant 0 : index
    %537 = vector.load %arg9[%c0_247, %c0_248] : memref<4x64xf32, #tpu.memory_space<vmem>>, vector<4x32xf32>
    tpu.vector_store %arg9[%c0_247, %c0_248], %510 {strides = array<i32>} : memref<4x64xf32, #tpu.memory_space<vmem>>, vector<4x32xf32>,
    %c0_249 = arith.constant 0 : index
    %c32_250 = arith.constant 32 : index
    %538 = vector.load %arg9[%c0_249, %c32_250] : memref<4x64xf32, #tpu.memory_space<vmem>>, vector<4x32xf32>
    tpu.vector_store %arg9[%c0_249, %c32_250], %536 {strides = array<i32>} : memref<4x64xf32, #tpu.memory_space<vmem>>, vector<4x32xf32>,
    %c0_251 = arith.constant 0 : index
    %c0_252 = arith.constant 0 : index
    %539 = vector.load %arg10[%c0_251, %c0_252] : memref<4x64xf32, #tpu.memory_space<vmem>>, vector<4x32xf32>
    tpu.vector_store %arg10[%c0_251, %c0_252], %508 {strides = array<i32>} : memref<4x64xf32, #tpu.memory_space<vmem>>, vector<4x32xf32>,
    %c0_253 = arith.constant 0 : index
    %c32_254 = arith.constant 32 : index
    %540 = vector.load %arg10[%c0_253, %c32_254] : memref<4x64xf32, #tpu.memory_space<vmem>>, vector<4x32xf32>
    tpu.vector_store %arg10[%c0_253, %c32_254], %534 {strides = array<i32>} : memref<4x64xf32, #tpu.memory_space<vmem>>, vector<4x32xf32>,
    %c6_255 = arith.constant 6 : index
    %c0_256 = arith.constant 0 : index
    %c0_257 = arith.constant 0 : index
    %541 = vector.load %arg7[%c6_255, %c0_256, %c0_257] : memref<8x4x64xf32, #tpu.memory_space<vmem>>, vector<1x4x32xf32>
    %542 = vector.shape_cast %541 : vector<1x4x32xf32> to vector<4x32xf32>
    %543 = vector.shape_cast %510 : vector<4x32xf32> to vector<1x4x32xf32>
    tpu.vector_store %arg7[%c6_255, %c0_256, %c0_257], %543 {strides = array<i32>} : memref<8x4x64xf32, #tpu.memory_space<vmem>>, vector<1x4x32xf32>,
    %c1_258 = arith.constant 1 : index
    %c0_259 = arith.constant 0 : index
    %c32_260 = arith.constant 32 : index
    %544 = vector.load %arg7[%c1_258, %c0_259, %c32_260] : memref<8x4x64xf32, #tpu.memory_space<vmem>>, vector<1x4x32xf32>
    %545 = vector.shape_cast %544 : vector<1x4x32xf32> to vector<4x32xf32>
    %546 = vector.shape_cast %536 : vector<4x32xf32> to vector<1x4x32xf32>
    tpu.vector_store %arg7[%c1_258, %c0_259, %c32_260], %546 {strides = array<i32>} : memref<8x4x64xf32, #tpu.memory_space<vmem>>, vector<1x4x32xf32>,
    %c0_261 = arith.constant 0 : index
    %c0_262 = arith.constant 0 : index
    %547 = vector.load %arg9[%c0_261, %c0_262] : memref<4x64xf32, #tpu.memory_space<vmem>>, vector<4x64xf32>
    %c0_263 = arith.constant 0 : index
    %c0_264 = arith.constant 0 : index
    %548 = vector.load %arg5[%c0_263, %c0_264] : memref<64x256xf32, #tpu.memory_space<vmem>>, vector<64x256xf32>
    %cst_265 = arith.constant dense<0.000000e+00> : vector<4x256xf32>
    %549 = tpu.matmul %547, %548, %cst_265 {dimension_numbers = #tpu.dot_dimension_numbers<[1], [0], [0], [1], [0, 0, 1, 1], [], []>} : vector<4x64xf32>, vector<64x256xf32>, vector<4x256xf32> -> vector<4x256xf32>
    %c7_266 = arith.constant 7 : index
    %c0_267 = arith.constant 0 : index
    %c0_268 = arith.constant 0 : index
    %550 = vector.load %arg8[%c7_266, %c0_267, %c0_268] : memref<8x4x256xf32, #tpu.memory_space<vmem>>, vector<1x4x256xf32>
    %551 = vector.shape_cast %550 : vector<1x4x256xf32> to vector<4x256xf32>
    %552 = vector.extract_strided_slice %551 {offsets = [0, 0], sizes = [4, 128], strides = [1, 1]} : vector<4x256xf32> to vector<4x128xf32>
    %553 = vector.extract_strided_slice %549 {offsets = [0, 0], sizes = [4, 128], strides = [1, 1]} : vector<4x256xf32> to vector<4x128xf32>
    %554 = arith.addf %552, %553 : vector<4x128xf32>
    %c0_269 = arith.constant 0 : index
    %c0_270 = arith.constant 0 : index
    %c0_271 = arith.constant 0 : index
    %555 = vector.load %arg8[%c0_269, %c0_270, %c0_271] : memref<8x4x256xf32, #tpu.memory_space<vmem>>, vector<1x4x256xf32>
    %556 = vector.shape_cast %555 : vector<1x4x256xf32> to vector<4x256xf32>
    %557 = vector.extract_strided_slice %556 {offsets = [0, 128], sizes = [4, 128], strides = [1, 1]} : vector<4x256xf32> to vector<4x128xf32>
    %558 = vector.extract_strided_slice %549 {offsets = [0, 128], sizes = [4, 128], strides = [1, 1]} : vector<4x256xf32> to vector<4x128xf32>
    %559 = arith.addf %557, %558 : vector<4x128xf32>
    %c0_272 = arith.constant 0 : index
    %c0_273 = arith.constant 0 : index
    %560 = vector.load %arg10[%c0_272, %c0_273] : memref<4x64xf32, #tpu.memory_space<vmem>>, vector<4x32xf32>
    %561 = vector.extract_strided_slice %554 {offsets = [0, 0], sizes = [4, 32], strides = [1, 1]} : vector<4x128xf32> to vector<4x32xf32>
    %562 = arith.negf %561 : vector<4x32xf32>
    %563 = math.exp %562 : vector<4x32xf32>
    %cst_274 = arith.constant 1.000000e+00 : f32
    %564 = vector.broadcast %cst_274 : f32 to vector<4x32xf32>
    %565 = arith.addf %564, %563 : vector<4x32xf32>
    %566 = arith.divf %564, %565 : vector<4x32xf32>
    %567 = vector.extract_strided_slice %554 {offsets = [0, 32], sizes = [4, 32], strides = [1, 1]} : vector<4x128xf32> to vector<4x32xf32>
    %568 = arith.negf %567 : vector<4x32xf32>
    %569 = math.exp %568 : vector<4x32xf32>
    %cst_275 = arith.constant 1.000000e+00 : f32
    %570 = vector.broadcast %cst_275 : f32 to vector<4x32xf32>
    %571 = arith.addf %570, %569 : vector<4x32xf32>
    %572 = arith.divf %570, %571 : vector<4x32xf32>
    %573 = vector.extract_strided_slice %554 {offsets = [0, 64], sizes = [4, 32], strides = [1, 1]} : vector<4x128xf32> to vector<4x32xf32>
    %574 = math.tanh %573 : vector<4x32xf32>
    %575 = vector.extract_strided_slice %554 {offsets = [0, 96], sizes = [4, 32], strides = [1, 1]} : vector<4x128xf32> to vector<4x32xf32>
    %576 = arith.negf %575 : vector<4x32xf32>
    %577 = math.exp %576 : vector<4x32xf32>
    %cst_276 = arith.constant 1.000000e+00 : f32
    %578 = vector.broadcast %cst_276 : f32 to vector<4x32xf32>
    %579 = arith.addf %578, %577 : vector<4x32xf32>
    %580 = arith.divf %578, %579 : vector<4x32xf32>
    %581 = arith.mulf %572, %560 : vector<4x32xf32>
    %582 = arith.mulf %566, %574 : vector<4x32xf32>
    %583 = arith.addf %581, %582 : vector<4x32xf32>
    %584 = math.tanh %583 : vector<4x32xf32>
    %585 = arith.mulf %580, %584 : vector<4x32xf32>
    %c0_277 = arith.constant 0 : index
    %c32_278 = arith.constant 32 : index
    %586 = vector.load %arg10[%c0_277, %c32_278] : memref<4x64xf32, #tpu.memory_space<vmem>>, vector<4x32xf32>
    %587 = vector.extract_strided_slice %559 {offsets = [0, 0], sizes = [4, 32], strides = [1, 1]} : vector<4x128xf32> to vector<4x32xf32>
    %588 = arith.negf %587 : vector<4x32xf32>
    %589 = math.exp %588 : vector<4x32xf32>
    %cst_279 = arith.constant 1.000000e+00 : f32
    %590 = vector.broadcast %cst_279 : f32 to vector<4x32xf32>
    %591 = arith.addf %590, %589 : vector<4x32xf32>
    %592 = arith.divf %590, %591 : vector<4x32xf32>
    %593 = vector.extract_strided_slice %559 {offsets = [0, 32], sizes = [4, 32], strides = [1, 1]} : vector<4x128xf32> to vector<4x32xf32>
    %594 = arith.negf %593 : vector<4x32xf32>
    %595 = math.exp %594 : vector<4x32xf32>
    %cst_280 = arith.constant 1.000000e+00 : f32
    %596 = vector.broadcast %cst_280 : f32 to vector<4x32xf32>
    %597 = arith.addf %596, %595 : vector<4x32xf32>
    %598 = arith.divf %596, %597 : vector<4x32xf32>
    %599 = vector.extract_strided_slice %559 {offsets = [0, 64], sizes = [4, 32], strides = [1, 1]} : vector<4x128xf32> to vector<4x32xf32>
    %600 = math.tanh %599 : vector<4x32xf32>
    %601 = vector.extract_strided_slice %559 {offsets = [0, 96], sizes = [4, 32], strides = [1, 1]} : vector<4x128xf32> to vector<4x32xf32>
    %602 = arith.negf %601 : vector<4x32xf32>
    %603 = math.exp %602 : vector<4x32xf32>
    %cst_281 = arith.constant 1.000000e+00 : f32
    %604 = vector.broadcast %cst_281 : f32 to vector<4x32xf32>
    %605 = arith.addf %604, %603 : vector<4x32xf32>
    %606 = arith.divf %604, %605 : vector<4x32xf32>
    %607 = arith.mulf %598, %586 : vector<4x32xf32>
    %608 = arith.mulf %592, %600 : vector<4x32xf32>
    %609 = arith.addf %607, %608 : vector<4x32xf32>
    %610 = math.tanh %609 : vector<4x32xf32>
    %611 = arith.mulf %606, %610 : vector<4x32xf32>
    %c0_282 = arith.constant 0 : index
    %c0_283 = arith.constant 0 : index
    %612 = vector.load %arg9[%c0_282, %c0_283] : memref<4x64xf32, #tpu.memory_space<vmem>>, vector<4x32xf32>
    tpu.vector_store %arg9[%c0_282, %c0_283], %585 {strides = array<i32>} : memref<4x64xf32, #tpu.memory_space<vmem>>, vector<4x32xf32>,
    %c0_284 = arith.constant 0 : index
    %c32_285 = arith.constant 32 : index
    %613 = vector.load %arg9[%c0_284, %c32_285] : memref<4x64xf32, #tpu.memory_space<vmem>>, vector<4x32xf32>
    tpu.vector_store %arg9[%c0_284, %c32_285], %611 {strides = array<i32>} : memref<4x64xf32, #tpu.memory_space<vmem>>, vector<4x32xf32>,
    %c0_286 = arith.constant 0 : index
    %c0_287 = arith.constant 0 : index
    %614 = vector.load %arg10[%c0_286, %c0_287] : memref<4x64xf32, #tpu.memory_space<vmem>>, vector<4x32xf32>
    tpu.vector_store %arg10[%c0_286, %c0_287], %583 {strides = array<i32>} : memref<4x64xf32, #tpu.memory_space<vmem>>, vector<4x32xf32>,
    %c0_288 = arith.constant 0 : index
    %c32_289 = arith.constant 32 : index
    %615 = vector.load %arg10[%c0_288, %c32_289] : memref<4x64xf32, #tpu.memory_space<vmem>>, vector<4x32xf32>
    tpu.vector_store %arg10[%c0_288, %c32_289], %609 {strides = array<i32>} : memref<4x64xf32, #tpu.memory_space<vmem>>, vector<4x32xf32>,
    %c7_290 = arith.constant 7 : index
    %c0_291 = arith.constant 0 : index
    %c0_292 = arith.constant 0 : index
    %616 = vector.load %arg7[%c7_290, %c0_291, %c0_292] : memref<8x4x64xf32, #tpu.memory_space<vmem>>, vector<1x4x32xf32>
    %617 = vector.shape_cast %616 : vector<1x4x32xf32> to vector<4x32xf32>
    %618 = vector.shape_cast %585 : vector<4x32xf32> to vector<1x4x32xf32>
    tpu.vector_store %arg7[%c7_290, %c0_291, %c0_292], %618 {strides = array<i32>} : memref<8x4x64xf32, #tpu.memory_space<vmem>>, vector<1x4x32xf32>,
    %c0_293 = arith.constant 0 : index
    %c0_294 = arith.constant 0 : index
    %c32_295 = arith.constant 32 : index
    %619 = vector.load %arg7[%c0_293, %c0_294, %c32_295] : memref<8x4x64xf32, #tpu.memory_space<vmem>>, vector<1x4x32xf32>
    %620 = vector.shape_cast %619 : vector<1x4x32xf32> to vector<4x32xf32>
    %621 = vector.shape_cast %611 : vector<4x32xf32> to vector<1x4x32xf32>
    tpu.vector_store %arg7[%c0_293, %c0_294, %c32_295], %621 {strides = array<i32>} : memref<8x4x64xf32, #tpu.memory_space<vmem>>, vector<1x4x32xf32>,
    return
  }
}

module attributes {stable_mosaic.version = 11 : i64} {
  func.func @_pool_fc_kernel(%arg0: memref<8x4x64xf32, #tpu.memory_space<vmem>>, %arg1: memref<64x2xf32, #tpu.memory_space<vmem>>, %arg2: memref<64x2xf32, #tpu.memory_space<vmem>>, %arg3: memref<64x2xf32, #tpu.memory_space<vmem>>, %arg4: memref<64x2xf32, #tpu.memory_space<vmem>>, %arg5: memref<1x2xf32, #tpu.memory_space<vmem>>, %arg6: memref<2x3xf32, #tpu.memory_space<vmem>>, %arg7: memref<1x3xf32, #tpu.memory_space<vmem>>, %arg8: memref<2x3xf32, #tpu.memory_space<vmem>>) attributes {dimension_semantics = [], scalar_prefetch = 0 : i64, scratch_operands = 0 : i64, tpu.core_type = #tpu.core_type<tc>} {
    %c0 = arith.constant 0 : index
    %c0_0 = arith.constant 0 : index
    %c0_1 = arith.constant 0 : index
    %0 = vector.load %arg0[%c0, %c0_0, %c0_1] : memref<8x4x64xf32, #tpu.memory_space<vmem>>, vector<8x4x64xf32>
    %cst = arith.constant dense<0.000000e+00> : vector<4x64xf32>
    %1 = vector.multi_reduction <add>, %0, %cst [0] : vector<8x4x64xf32> to vector<4x64xf32>
    %cst_2 = arith.constant 1.250000e-01 : f32
    %2 = vector.broadcast %cst_2 : f32 to vector<4x64xf32>
    %3 = arith.mulf %1, %2 : vector<4x64xf32>
    %cst_3 = arith.constant dense<0xFF800000> : vector<4x64xf32>
    %4 = vector.multi_reduction <maximumf>, %0, %cst_3 [0] : vector<8x4x64xf32> to vector<4x64xf32>
    %5 = vector.extract_strided_slice %3 {offsets = [0, 0], sizes = [2, 64], strides = [1, 1]} : vector<4x64xf32> to vector<2x64xf32>
    %6 = vector.extract_strided_slice %3 {offsets = [2, 0], sizes = [2, 64], strides = [1, 1]} : vector<4x64xf32> to vector<2x64xf32>
    %7 = vector.extract_strided_slice %4 {offsets = [0, 0], sizes = [2, 64], strides = [1, 1]} : vector<4x64xf32> to vector<2x64xf32>
    %8 = vector.extract_strided_slice %4 {offsets = [2, 0], sizes = [2, 64], strides = [1, 1]} : vector<4x64xf32> to vector<2x64xf32>
    %c0_4 = arith.constant 0 : index
    %c0_5 = arith.constant 0 : index
    %9 = vector.load %arg1[%c0_4, %c0_5] : memref<64x2xf32, #tpu.memory_space<vmem>>, vector<64x2xf32>
    %cst_6 = arith.constant dense<0.000000e+00> : vector<2x2xf32>
    %10 = tpu.matmul %5, %9, %cst_6 {dimension_numbers = #tpu.dot_dimension_numbers<[1], [0], [0], [1], [0, 0, 1, 1], [], []>} : vector<2x64xf32>, vector<64x2xf32>, vector<2x2xf32> -> vector<2x2xf32>
    %c0_7 = arith.constant 0 : index
    %c0_8 = arith.constant 0 : index
    %11 = vector.load %arg2[%c0_7, %c0_8] : memref<64x2xf32, #tpu.memory_space<vmem>>, vector<64x2xf32>
    %cst_9 = arith.constant dense<0.000000e+00> : vector<2x2xf32>
    %12 = tpu.matmul %7, %11, %cst_9 {dimension_numbers = #tpu.dot_dimension_numbers<[1], [0], [0], [1], [0, 0, 1, 1], [], []>} : vector<2x64xf32>, vector<64x2xf32>, vector<2x2xf32> -> vector<2x2xf32>
    %13 = arith.addf %10, %12 : vector<2x2xf32>
    %c0_10 = arith.constant 0 : index
    %c0_11 = arith.constant 0 : index
    %14 = vector.load %arg3[%c0_10, %c0_11] : memref<64x2xf32, #tpu.memory_space<vmem>>, vector<64x2xf32>
    %cst_12 = arith.constant dense<0.000000e+00> : vector<2x2xf32>
    %15 = tpu.matmul %6, %14, %cst_12 {dimension_numbers = #tpu.dot_dimension_numbers<[1], [0], [0], [1], [0, 0, 1, 1], [], []>} : vector<2x64xf32>, vector<64x2xf32>, vector<2x2xf32> -> vector<2x2xf32>
    %16 = arith.addf %13, %15 : vector<2x2xf32>
    %c0_13 = arith.constant 0 : index
    %c0_14 = arith.constant 0 : index
    %17 = vector.load %arg4[%c0_13, %c0_14] : memref<64x2xf32, #tpu.memory_space<vmem>>, vector<64x2xf32>
    %cst_15 = arith.constant dense<0.000000e+00> : vector<2x2xf32>
    %18 = tpu.matmul %8, %17, %cst_15 {dimension_numbers = #tpu.dot_dimension_numbers<[1], [0], [0], [1], [0, 0, 1, 1], [], []>} : vector<2x64xf32>, vector<64x2xf32>, vector<2x2xf32> -> vector<2x2xf32>
    %19 = arith.addf %16, %18 : vector<2x2xf32>
    %c0_16 = arith.constant 0 : index
    %c0_17 = arith.constant 0 : index
    %20 = vector.load %arg5[%c0_16, %c0_17] : memref<1x2xf32, #tpu.memory_space<vmem>>, vector<1x2xf32>
    %21 = vector.broadcast %20 : vector<1x2xf32> to vector<2x2xf32>
    %22 = arith.addf %19, %21 : vector<2x2xf32>
    %c0_18 = arith.constant 0 : index
    %c0_19 = arith.constant 0 : index
    %23 = vector.load %arg6[%c0_18, %c0_19] : memref<2x3xf32, #tpu.memory_space<vmem>>, vector<2x3xf32>
    %cst_20 = arith.constant dense<0.000000e+00> : vector<2x3xf32>
    %24 = tpu.matmul %22, %23, %cst_20 {dimension_numbers = #tpu.dot_dimension_numbers<[1], [0], [0], [1], [0, 0, 1, 1], [], []>} : vector<2x2xf32>, vector<2x3xf32>, vector<2x3xf32> -> vector<2x3xf32>
    %c0_21 = arith.constant 0 : index
    %c0_22 = arith.constant 0 : index
    %25 = vector.load %arg7[%c0_21, %c0_22] : memref<1x3xf32, #tpu.memory_space<vmem>>, vector<1x3xf32>
    %26 = vector.broadcast %25 : vector<1x3xf32> to vector<2x3xf32>
    %27 = arith.addf %24, %26 : vector<2x3xf32>
    %cst_23 = arith.constant dense<0xFF800000> : vector<2xf32>
    %28 = vector.multi_reduction <maximumf>, %27, %cst_23 [1] : vector<2x3xf32> to vector<2xf32>
    %29 = vector.shape_cast %28 : vector<2xf32> to vector<2x1xf32>
    %30 = vector.broadcast %29 : vector<2x1xf32> to vector<2x3xf32>
    %31 = arith.subf %27, %30 : vector<2x3xf32>
    %32 = math.exp %31 : vector<2x3xf32>
    %cst_24 = arith.constant dense<0.000000e+00> : vector<2xf32>
    %33 = vector.multi_reduction <add>, %32, %cst_24 [1] : vector<2x3xf32> to vector<2xf32>
    %34 = vector.shape_cast %33 : vector<2xf32> to vector<2x1xf32>
    %35 = tpu.reciprocal %34 : vector<2x1xf32> -> vector<2x1xf32>
    %36 = vector.broadcast %35 : vector<2x1xf32> to vector<2x3xf32>
    %37 = arith.mulf %32, %36 : vector<2x3xf32>
    %c0_25 = arith.constant 0 : index
    %c0_26 = arith.constant 0 : index
    %38 = vector.load %arg8[%c0_25, %c0_26] : memref<2x3xf32, #tpu.memory_space<vmem>>, vector<2x3xf32>
    tpu.vector_store %arg8[%c0_25, %c0_26], %37 {strides = array<i32>} : memref<2x3xf32, #tpu.memory_space<vmem>>, vector<2x3xf32>,
    return
  }
}

</mosaic_0001>

<llo_original>
// kernel: _lambda_.5
$region0: #{_lambda_.5}
  #allocation0 [shape = 'u32[]', space=smem, size = 0x4, offset = 0x4, fixed_abs, tag = 'smem constant byte address 0x4 - core index']
  #allocation1 [shape = 'u32[144,128]{1,0:T(1,128)}', space=vmem, size = 0x12000, scoped, tag = 'internal scratch']
  %s0 = inlined_call_operand.vmem [shape: f32[4,8,64], index: 0, kind: input, shape index: {}, may-alias: {0,1}]
  %s1 = inlined_call_operand.vmem [shape: f32[4,8,64], index: 1, kind: input, shape index: {}, may-alias: {0,1}]
  %s2 = inlined_call_operand.vmem [shape: f32[2,8,1], index: 2, kind: input, shape index: {}]
  %s3 = inlined_call_operand.vmem [shape: f32[2,8,1], index: 3, kind: input, shape index: {}]
  %s4 = inlined_call_operand.vmem [shape: f32[2,8,64], index: 4, kind: output, shape index: {0}]
  %s5 = inlined_call_operand.vmem [shape: f32[2,8,64], index: 5, kind: output, shape index: {1}]
  %6 = xla_tuple %s4, %s5
  %s7 = sld [smem:[#allocation0]]
  $region57: #{_lambda_.5} parent=0
    _
  %s9 = ssub.s32 1, %s7
  %s10 = scalar_select 0, %s9, %s7
  loop: start=0, step=1, limit=4
  $region2: #{_lambda_.5} parent=0 // loop_pre_header
    _
  $region3: #{_lambda_.5} parent=0 // loop_header
    %s12 = sphi 0, %s16
    %p13 = scmp.ge.s32.totalorder %s12, 4
    %s22 = sphi 0, %s24
    %s25 = sphi 0, %s22
    %s26 = sphi 0, %s25
    %s42 = sphi 0, %s26
    %s50 = sphi 0, %s52
    %s53 = sphi 0, %s50
    %s54 = sphi 0, %s53
    %s70 = sphi 0, %s54
    %s76 = sphi 0, %s78
    %s79 = sphi 0, %s76
    %s80 = sphi 0, %s79
    %s96 = sphi 0, %s80
    %s102 = sphi 0, %s104
    %s105 = sphi 0, %s102
    %s106 = sphi 0, %s105
    %s122 = sphi 0, %s106
    %s128 = sphi 0, %s130
    %s131 = sphi 0, %s128
    %s132 = sphi 0, %s131
    %s148 = sphi 0, %s132
    %s154 = sphi 0, %s156
    %s157 = sphi 0, %s154
    %s158 = sphi 0, %s157
    %s174 = sphi 0, %s158
  $region4: #{_lambda_.5} parent=0 // loop_header_branch
    %15 = sbr.rel (%p13) target = $region8
  $region5: #{_lambda_.5} parent=0 // loop_body
    %s17 = ssub.s32 %s12, 1
    %s18 = ssub.s32 %s12, 2
    %s19 = sadd.s32 %s12, 1
    %s20 = ssub.s32 %s12, %s19
    %p21 = scmp.eq.s32.totalorder %s20, 0
    %s23 = sadd.s32 %s22, 1
    %s24 = scalar_select %p21, %s22, %s23
    %p27 = pneg %p21
    %p28 = scmp.eq.s32.totalorder %s12, 1
    %p29 = por %p27, %p28
    %p30 = scmp.ne.s32.totalorder %s22, %s25
    %p31 = scmp.eq.s32.totalorder %s12, 0
    %p32 = por %p30, %p31
    %p33 = scmp.ne.s32.totalorder %s22, %s25
    %p34 = scmp.eq.s32.totalorder %s17, 1
    %p35 = por %p33, %p34
    %p36 = scmp.ne.s32.totalorder %s25, %s26
    %p37 = scmp.eq.s32.totalorder %s17, 0
    %p38 = por %p36, %p37
    %p39 = scmp.ne.s32.totalorder %s25, %s26
    %p40 = scmp.eq.s32.totalorder %s18, 1
    %p41 = por %p39, %p40
    %p43 = scmp.ne.s32.totalorder %s26, %s42
    %p44 = scmp.eq.s32.totalorder %s18, 0
    %p45 = por %p43, %p44
    %s46 = sadd.s32 %s12, 2
    %s47 = sadd.s32 %s19, 2
    %s48 = ssub.s32 %s46, %s47
    %p49 = scmp.eq.s32.totalorder %s48, 0
    %s51 = sadd.s32 %s50, 1
    %s52 = scalar_select %p49, %s50, %s51
    %p55 = pneg %p49
    %p56 = scmp.eq.s32.totalorder %s12, 1
    %p57 = por %p55, %p56
    %p58 = scmp.ne.s32.totalorder %s50, %s53
    %p59 = scmp.eq.s32.totalorder %s12, 0
    %p60 = por %p58, %p59
    %p61 = scmp.ne.s32.totalorder %s50, %s53
    %p62 = scmp.eq.s32.totalorder %s17, 1
    %p63 = por %p61, %p62
    %p64 = scmp.ne.s32.totalorder %s53, %s54
    %p65 = scmp.eq.s32.totalorder %s17, 0
    %p66 = por %p64, %p65
    %p67 = scmp.ne.s32.totalorder %s53, %s54
    %p68 = scmp.eq.s32.totalorder %s18, 1
    %p69 = por %p67, %p68
    %p71 = scmp.ne.s32.totalorder %s54, %s70
    %p72 = scmp.eq.s32.totalorder %s18, 0
    %p73 = por %p71, %p72
    %s74 = ssub.s32 %s12, %s19
    %p75 = scmp.eq.s32.totalorder %s74, 0
    %s77 = sadd.s32 %s76, 1
    %s78 = scalar_select %p75, %s76, %s77
    %p81 = pneg %p75
    %p82 = scmp.eq.s32.totalorder %s12, 1
    %p83 = por %p81, %p82
    %p84 = scmp.ne.s32.totalorder %s76, %s79
    %p85 = scmp.eq.s32.totalorder %s12, 0
    %p86 = por %p84, %p85
    %p87 = scmp.ne.s32.totalorder %s76, %s79
    %p88 = scmp.eq.s32.totalorder %s17, 1
    %p89 = por %p87, %p88
    %p90 = scmp.ne.s32.totalorder %s79, %s80
    %p91 = scmp.eq.s32.totalorder %s17, 0
    %p92 = por %p90, %p91
    %p93 = scmp.ne.s32.totalorder %s79, %s80
    %p94 = scmp.eq.s32.totalorder %s18, 1
    %p95 = por %p93, %p94
    %p97 = scmp.ne.s32.totalorder %s80, %s96
    %p98 = scmp.eq.s32.totalorder %s18, 0
    %p99 = por %p97, %p98
    %s100 = ssub.s32 %s12, %s19
    %p101 = scmp.eq.s32.totalorder %s100, 0
    %s103 = sadd.s32 %s102, 1
    %s104 = scalar_select %p101, %s102, %s103
    %p107 = pneg %p101
    %p108 = scmp.eq.s32.totalorder %s12, 1
    %p109 = por %p107, %p108
    %p110 = scmp.ne.s32.totalorder %s102, %s105
    %p111 = scmp.eq.s32.totalorder %s12, 0
    %p112 = por %p110, %p111
    %p113 = scmp.ne.s32.totalorder %s102, %s105
    %p114 = scmp.eq.s32.totalorder %s17, 1
    %p115 = por %p113, %p114
    %p116 = scmp.ne.s32.totalorder %s105, %s106
    %p117 = scmp.eq.s32.totalorder %s17, 0
    %p118 = por %p116, %p117
    %p119 = scmp.ne.s32.totalorder %s105, %s106
    %p120 = scmp.eq.s32.totalorder %s18, 1
    %p121 = por %p119, %p120
    %p123 = scmp.ne.s32.totalorder %s106, %s122
    %p124 = scmp.eq.s32.totalorder %s18, 0
    %p125 = por %p123, %p124
    %s126 = ssub.s32 %s12, %s19
    %p127 = scmp.eq.s32.totalorder %s126, 0
    %s129 = sadd.s32 %s128, 1
    %s130 = scalar_select %p127, %s128, %s129
    %p133 = pneg %p127
    %p134 = scmp.eq.s32.totalorder %s12, 1
    %p135 = por %p133, %p134
    %p136 = scmp.ne.s32.totalorder %s128, %s131
    %p137 = scmp.eq.s32.totalorder %s12, 0
    %p138 = por %p136, %p137
    %p139 = scmp.ne.s32.totalorder %s128, %s131
    %p140 = scmp.eq.s32.totalorder %s17, 1
    %p141 = por %p139, %p140
    %p142 = scmp.ne.s32.totalorder %s131, %s132
    %p143 = scmp.eq.s32.totalorder %s17, 0
    %p144 = por %p142, %p143
    %p145 = scmp.ne.s32.totalorder %s131, %s132
    %p146 = scmp.eq.s32.totalorder %s18, 1
    %p147 = por %p145, %p146
    %p149 = scmp.ne.s32.totalorder %s132, %s148
    %p150 = scmp.eq.s32.totalorder %s18, 0
    %p151 = por %p149, %p150
    %s152 = ssub.s32 %s12, %s19
    %p153 = scmp.eq.s32.totalorder %s152, 0
    %s155 = sadd.s32 %s154, 1
    %s156 = scalar_select %p153, %s154, %s155
    %p159 = pneg %p153
    %p160 = scmp.eq.s32.totalorder %s12, 1
    %p161 = por %p159, %p160
    %p162 = scmp.ne.s32.totalorder %s154, %s157
    %p163 = scmp.eq.s32.totalorder %s12, 0
    %p164 = por %p162, %p163
    %p165 = scmp.ne.s32.totalorder %s154, %s157
    %p166 = scmp.eq.s32.totalorder %s17, 1
    %p167 = por %p165, %p166
    %p168 = scmp.ne.s32.totalorder %s157, %s158
    %p169 = scmp.eq.s32.totalorder %s17, 0
    %p170 = por %p168, %p169
    %p171 = scmp.ne.s32.totalorder %s157, %s158
    %p172 = scmp.eq.s32.totalorder %s18, 1
    %p173 = por %p171, %p172
    %p175 = scmp.ne.s32.totalorder %s158, %s174
    %p176 = scmp.eq.s32.totalorder %s18, 0
    %p177 = por %p175, %p176
    %p178 = scmp.le.s32.totalorder 1, %s12
    %p179 = scmp.lt.s32.totalorder %s12, 3
    %p180 = pnand %p178, %p179
    %p181 = pneg %p180
    // Predicated region
    $region9: #{_lambda_.5} parent=5 // pred_check
      _
    $region10: #{_lambda_.5} parent=5 // pred_check_branch
      %183 = sbr.rel (%p180) target = $region12
    $region11: #{_lambda_.5} parent=5 // pred_region
      %s184 = ssub.s32 %s12, 1
    $region12: #{_lambda_.5} parent=5 // pred_fallthru
      _
    %p185 = scmp.lt.s32.totalorder %s12, 2
    // Predicated region
    $region13: #{_lambda_.5} parent=5 // pred_check
      %p186 = pneg %p185
    $region14: #{_lambda_.5} parent=5 // pred_check_branch
      %188 = sbr.rel (%p186) target = $region16
    $region15: #{_lambda_.5} parent=5 // pred_region
      // Predicated region
      $region17: #{_lambda_.5} parent=15 // pred_check
        %p189 = pneg %p32
      $region18: #{_lambda_.5} parent=15 // pred_check_branch
        %191 = sbr.rel (%p189) target = $region20
      $region19: #{_lambda_.5} parent=15 // pred_region
        %p192 = scmp.lt.s32.totalorder %s12, 3
        %s193 = scalar_select %p192, %s12, 3
        %s194 = smul.addr %s193, 8
        %s195 = scalar_lea.vmem %s0, %s194
      $region20: #{_lambda_.5} parent=15 // pred_fallthru
        _
      // Predicated region
      $region21: #{_lambda_.5} parent=15 // pred_check
        %p196 = pneg %p60
      $region22: #{_lambda_.5} parent=15 // pred_check_branch
        %198 = sbr.rel (%p196) target = $region24
      $region23: #{_lambda_.5} parent=15 // pred_region
        %s199 = sadd.s32 %s12, 2
        %p200 = scmp.lt.s32.totalorder %s199, 3
        %s201 = scalar_select %p200, %s199, 3
        %s202 = smul.addr %s201, 8
        %s203 = scalar_lea.vmem %s1, %s202
        %s204 = sadd.s32 %s12, 2
      $region24: #{_lambda_.5} parent=15 // pred_fallthru
        _
      // Predicated region
      $region25: #{_lambda_.5} parent=15 // pred_check
        %p205 = pneg %p86
      $region26: #{_lambda_.5} parent=15 // pred_check_branch
        %207 = sbr.rel (%p205) target = $region28
      $region27: #{_lambda_.5} parent=15 // pred_region
        %p208 = scmp.lt.s32.totalorder %s12, 1
        %s209 = scalar_select %p208, %s12, 1
        %s210 = smul.addr %s209, 8
        %s211 = scalar_lea.vmem %s2, %s210
      $region28: #{_lambda_.5} parent=15 // pred_fallthru
        _
      // Predicated region
      $region29: #{_lambda_.5} parent=15 // pred_check
        %p212 = pneg %p112
      $region30: #{_lambda_.5} parent=15 // pred_check_branch
        %214 = sbr.rel (%p212) target = $region32
      $region31: #{_lambda_.5} parent=15 // pred_region
        %p215 = scmp.lt.s32.totalorder %s12, 1
        %s216 = scalar_select %p215, %s12, 1
        %s217 = smul.addr %s216, 8
        %s218 = scalar_lea.vmem %s3, %s217
      $region32: #{_lambda_.5} parent=15 // pred_fallthru
        _
    $region16: #{_lambda_.5} parent=5 // pred_fallthru
      _
    %p219 = scmp.le.s32.totalorder 1, %s12
    %p220 = scmp.lt.s32.totalorder %s12, 3
    %p221 = pnand %p219, %p220
    %p222 = pneg %p221
    // Predicated region
    $region33: #{_lambda_.5} parent=5 // pred_check
      _
    $region34: #{_lambda_.5} parent=5 // pred_check_branch
      %224 = sbr.rel (%p221) target = $region36
    $region35: #{_lambda_.5} parent=5 // pred_region
      %s225 = ssub.s32 %s12, 1
      %p226 = scmp.lt.s32.totalorder %s17, 3
      %s227 = scalar_select %p226, %s17, 3
      %s228 = smul.addr %s227, 8
      %s229 = scalar_lea.vmem %s0, %s228
      %p230 = pneg %p38
      %p231 = pneg %p35
      %s232 = sadd.s32 %s17, 2
      %p233 = scmp.lt.s32.totalorder %s232, 3
      %s234 = scalar_select %p233, %s232, 3
      %s235 = smul.addr %s234, 8
      %s236 = scalar_lea.vmem %s1, %s235
      %p237 = pneg %p66
      %p238 = pneg %p63
      %p239 = scmp.lt.s32.totalorder %s17, 1
      %s240 = scalar_select %p239, %s17, 1
      %s241 = smul.addr %s240, 8
      %s242 = scalar_lea.vmem %s2, %s241
      %p243 = pneg %p92
      %p244 = pneg %p89
      %p245 = scmp.lt.s32.totalorder %s17, 1
      %s246 = scalar_select %p245, %s17, 1
      %s247 = smul.addr %s246, 8
      %s248 = scalar_lea.vmem %s3, %s247
      %p249 = pneg %p118
      %p250 = pneg %p115
      %p251 = pneg %p144
      %p252 = pneg %p141
      %p253 = scmp.lt.s32.totalorder %s17, 1
      %s254 = scalar_select %p253, %s17, 1
      %s255 = smul.addr %s254, 8
      %s256 = scalar_lea.vmem %s4, %s255
      %p257 = pneg %p170
      %p258 = pneg %p167
      %p259 = scmp.lt.s32.totalorder %s17, 1
      %s260 = scalar_select %p259, %s17, 1
      %s261 = smul.addr %s260, 8
      %s262 = scalar_lea.vmem %s5, %s261
      %p263 = scmp.lt.s32.totalorder %s17, 3
      %s264 = scalar_select %p263, %s17, 3
      %s265 = smul.addr %s264, 8
      %s266 = scalar_lea.vmem %s0, %s265
      %s267 = sadd.s32 %s17, 2
      %p268 = scmp.lt.s32.totalorder %s267, 3
      %s269 = scalar_select %p268, %s267, 3
      %s270 = smul.addr %s269, 8
      %s271 = scalar_lea.vmem %s1, %s270
      %s272 = sadd.s32 %s17, 2
      %p273 = scmp.lt.s32.totalorder %s17, 1
      %s274 = scalar_select %p273, %s17, 1
      %s275 = smul.addr %s274, 8
      %s276 = scalar_lea.vmem %s2, %s275
      %p277 = scmp.lt.s32.totalorder %s17, 1
      %s278 = scalar_select %p277, %s17, 1
      %s279 = smul.addr %s278, 8
      %s280 = scalar_lea.vmem %s3, %s279
      %p281 = scmp.lt.s32.totalorder %s17, 1
      %s282 = scalar_select %p281, %s17, 1
      %s283 = smul.addr %s282, 8
      %s284 = scalar_lea.vmem %s4, %s283
      %p285 = scmp.lt.s32.totalorder %s17, 1
      %s286 = scalar_select %p285, %s17, 1
      %s287 = smul.addr %s286, 8
      %s288 = scalar_lea.vmem %s5, %s287
      %v289 = vld [vmem:[%s266] sm:$0xff]
      %v290 = vld [vmem:[%s271] sm:$0xff]
      %v291 = vld [vmem:[%s276] sm:$0xff]
      %v292 = vld [vmem:[%s280] sm:$0xff]
      %vm293 = vcmask 523264
      %v295 = vsel %vm293, %v289, 0
      %v298 = vsel %vm293, %v290, 0
      %300 = vmatprep.subr.mxu0 0.0
      %301 = vmatpush1.xpose.msra.mxu0 0.0
      %302 = vmatprep.subr.mxu0 0.0
      %303 = vmatpush1.xpose.msra.mxu0 0.0
      %304 = vmatprep.subr.mxu0 0.0
      %305 = vmatpush1.xpose.msra.mxu0 0.0
      %306 = vmatprep.subr.mxu0 0.0
      %307 = vmatpush1.xpose.msra.mxu0 0.0
      %308 = vmatprep.subr.mxu0 0.0
      %309 = vmatpush1.xpose.msra.mxu0 0.0
      %310 = vmatprep.subr.mxu0 0.0
      %311 = vmatpush1.xpose.msra.mxu0 0.0
      %312 = vmatprep.subr.mxu0 0.0
      %313 = vmatpush1.xpose.msra.mxu0 0.0
      %314 = vmatprep.subr.mxu0 0.0
      %315 = vmatpush1.xpose.msra.mxu0 0.0
      %316 = vmatprep.subr.mxu0 0.0
      %317 = vmatpush1.xpose.msra.mxu0 0.0
      %318 = vmatprep.subr.mxu0 0.0
      %319 = vmatpush1.xpose.msra.mxu0 0.0
      %320 = vmatprep.subr.mxu0 0.0
      %321 = vmatpush1.xpose.msra.mxu0 0.0
      %322 = vmatprep.subr.mxu0 0.0
      %323 = vmatpush1.xpose.msra.mxu0 0.0
      %324 = vmatprep.subr.mxu0 0.0
      %325 = vmatpush1.xpose.msra.mxu0 0.0
      %326 = vmatprep.subr.mxu0 0.0
      %327 = vmatpush1.xpose.msra.mxu0 0.0
      %328 = vmatprep.subr.mxu0 0.0
      %329 = vmatpush1.xpose.msra.mxu0 0.0
      %330 = vmatprep.subr.mxu0 0.0
      %331 = vmatpush1.xpose.msra.mxu0 %v298
      %332 = vmatprep.subr.mxu0 0.0
      %333 = vmatpush2.xpose.msra.mxu0 0.0
      %334 = vmatprep.subr.mxu0 0.0
      %335 = vmatpush2.xpose.msra.mxu0 0.0
      %336 = vmatprep.subr.mxu0 0.0
      %337 = vmatpush2.xpose.msra.mxu0 0.0
      %338 = vmatprep.subr.mxu0 0.0
      %339 = vmatpush2.xpose.msra.mxu0 0.0
      %340 = vmatprep.subr.mxu0 0.0
      %341 = vmatpush2.xpose.msra.mxu0 0.0
      %342 = vmatprep.subr.mxu0 0.0
      %343 = vmatpush2.xpose.msra.mxu0 0.0
      %344 = vmatprep.subr.mxu0 0.0
      %345 = vmatpush2.xpose.msra.mxu0 0.0
      %346 = vmatprep.subr.mxu0 0.0
      %347 = vmatpush2.xpose.msra.mxu0 0.0
      %348 = vmatprep.subr.mxu0 0.0
      %349 = vmatpush2.xpose.msra.mxu0 0.0
      %350 = vmatprep.subr.mxu0 0.0
      %351 = vmatpush2.xpose.msra.mxu0 0.0
      %352 = vmatprep.subr.mxu0 0.0
      %353 = vmatpush2.xpose.msra.mxu0 0.0
      %354 = vmatprep.subr.mxu0 0.0
      %355 = vmatpush2.xpose.msra.mxu0 0.0
      %356 = vmatprep.subr.mxu0 0.0
      %357 = vmatpush2.xpose.msra.mxu0 0.0
      %358 = vmatprep.subr.mxu0 0.0
      %359 = vmatpush2.xpose.msra.mxu0 0.0
      %360 = vmatprep.subr.mxu0 0.0
      %361 = vmatpush2.xpose.msra.mxu0 0.0
      %362 = vmatprep.subr.mxu0 0.0
      %363 = vmatpush2.xpose.msra.mxu0 0.0
      %364 = vmatprep.mubr.f32.mxu0 0.0
      %365 = vmatmul.mubr.f32.gmra.mxu0 %v295
      %v366 = vpop.f32.mrf.mxu0
      %v367 = vadd.f32 0.0, %v366
      %v368 = vpop.f32.mrf.mxu0
      %369 = vdwg.mxu0
      %370 = vxpose.xlu0.b32.start [1/16] %v367, 128
      %371 = vxpose.xlu0.b32.cont [2/16] 0.0, 128
      %372 = vxpose.xlu0.b32.cont [3/16] 0.0, 128
      %373 = vxpose.xlu0.b32.cont [4/16] 0.0, 128
      %374 = vxpose.xlu0.b32.cont [5/16] 0.0, 128
      %375 = vxpose.xlu0.b32.cont [6/16] 0.0, 128
      %376 = vxpose.xlu0.b32.cont [7/16] 0.0, 128
      %377 = vxpose.xlu0.b32.cont [8/16] 0.0, 128
      %378 = vxpose.xlu0.b32.cont [9/16] 0.0, 128
      %379 = vxpose.xlu0.b32.cont [10/16] 0.0, 128
      %380 = vxpose.xlu0.b32.cont [11/16] 0.0, 128
      %381 = vxpose.xlu0.b32.cont [12/16] 0.0, 128
      %382 = vxpose.xlu0.b32.cont [13/16] 0.0, 128
      %383 = vxpose.xlu0.b32.cont [14/16] 0.0, 128
      %384 = vxpose.xlu0.b32.cont [15/16] 0.0, 128
      %385 = vxpose.xlu0.b32.end [16/16] 0.0, 128
      %v386 = vpop.trf.xlu0
      %v387 = vpop.trf.xlu0
      %v388 = vpop.trf.xlu0
      %v389 = vpop.trf.xlu0
      %v390 = vpop.trf.xlu0
      %v391 = vpop.trf.xlu0
      %v392 = vpop.trf.xlu0
      %v393 = vpop.trf.xlu0
      %v394 = vpop.trf.xlu0
      %v395 = vpop.trf.xlu0
      %v396 = vpop.trf.xlu0
      %v397 = vpop.trf.xlu0
      %v398 = vpop.trf.xlu0
      %v399 = vpop.trf.xlu0
      %v400 = vpop.trf.xlu0
      %v401 = vpop.trf.xlu0
      %vm402 = vcmp.eq.f32.partialorder %v292, 1.0
      %v403 = vsel %vm402, 1, 0
      %404 = vset.pattern.permute.xlu0 0
      %405 = vperm.xlu0 %404, %v403
      %v406 = vpop.permute.xlu0 %405
      %vm407 = vcmp.eq.s32.totalorder %v406, 1
      %v408 = vsel %vm407, -1e+09, %v367
      %vm409 = vcmp.eq.f32.partialorder %v291, 1.0
      %v410 = vsel %vm409, 1, 0
      %411 = vset.pattern.permute.xlu0 0
      %412 = vperm.xlu0 %411, %v410
      %v413 = vpop.permute.xlu0 %412
      %vm414 = vcmp.eq.s32.totalorder %v413, 1
      %v415 = vsel %vm414, -1e+09, %v386
      %vm416 = vcmask 64512
      %v417 = vsel %vm416, %v408, -inf
      %418 = vmax.xlane.f32.xlu0 %v417
      %v419 = vpop.xlane.xlu0 %418
      %v420 = vsub.f32 %v408, %v419
      %v421 = vmul.f32 %v420, 1.442695
      %v422 = vpow.pop %v421
      %v423 = vsel %vm416, %v422, 0.0
      %424 = vadd.xlane.f32.xlu0 %v423
      %v425 = vpop.xlane.xlu0 %424
      %v426 = vrcp.pop %v425
      %v427 = vmul.f32 %v422, %v426
      %v429 = vsel %vm416, %v427, 0
      %431 = vmatprep.subr.mxu0 0.0
      %432 = vmatpush1.msra.mxu0 0.0
      %433 = vmatprep.subr.mxu0 0.0
      %434 = vmatpush1.msra.mxu0 0.0
      %435 = vmatprep.subr.mxu0 0.0
      %436 = vmatpush1.msra.mxu0 0.0
      %437 = vmatprep.subr.mxu0 0.0
      %438 = vmatpush1.msra.mxu0 0.0
      %439 = vmatprep.subr.mxu0 0.0
      %440 = vmatpush1.msra.mxu0 0.0
      %441 = vmatprep.subr.mxu0 0.0
      %442 = vmatpush1.msra.mxu0 0.0
      %443 = vmatprep.subr.mxu0 0.0
      %444 = vmatpush1.msra.mxu0 0.0
      %445 = vmatprep.subr.mxu0 0.0
      %446 = vmatpush1.msra.mxu0 0.0
      %447 = vmatprep.subr.mxu0 0.0
      %448 = vmatpush1.msra.mxu0 0.0
      %449 = vmatprep.subr.mxu0 0.0
      %450 = vmatpush1.msra.mxu0 0.0
      %451 = vmatprep.subr.mxu0 0.0
      %452 = vmatpush1.msra.mxu0 0.0
      %453 = vmatprep.subr.mxu0 0.0
      %454 = vmatpush1.msra.mxu0 0.0
      %455 = vmatprep.subr.mxu0 0.0
      %456 = vmatpush1.msra.mxu0 0.0
      %457 = vmatprep.subr.mxu0 0.0
      %458 = vmatpush1.msra.mxu0 0.0
      %459 = vmatprep.subr.mxu0 0.0
      %460 = vmatpush1.msra.mxu0 0.0
      %461 = vmatprep.subr.mxu0 0.0
      %462 = vmatpush1.msra.mxu0 %v290
      %463 = vmatprep.subr.mxu0 0.0
      %464 = vmatpush2.msra.mxu0 0.0
      %465 = vmatprep.subr.mxu0 0.0
      %466 = vmatpush2.msra.mxu0 0.0
      %467 = vmatprep.subr.mxu0 0.0
      %468 = vmatpush2.msra.mxu0 0.0
      %469 = vmatprep.subr.mxu0 0.0
      %470 = vmatpush2.msra.mxu0 0.0
      %471 = vmatprep.subr.mxu0 0.0
      %472 = vmatpush2.msra.mxu0 0.0
      %473 = vmatprep.subr.mxu0 0.0
      %474 = vmatpush2.msra.mxu0 0.0
      %475 = vmatprep.subr.mxu0 0.0
      %476 = vmatpush2.msra.mxu0 0.0
      %477 = vmatprep.subr.mxu0 0.0
      %478 = vmatpush2.msra.mxu0 0.0
      %479 = vmatprep.subr.mxu0 0.0
      %480 = vmatpush2.msra.mxu0 0.0
      %481 = vmatprep.subr.mxu0 0.0
      %482 = vmatpush2.msra.mxu0 0.0
      %483 = vmatprep.subr.mxu0 0.0
      %484 = vmatpush2.msra.mxu0 0.0
      %485 = vmatprep.subr.mxu0 0.0
      %486 = vmatpush2.msra.mxu0 0.0
      %487 = vmatprep.subr.mxu0 0.0
      %488 = vmatpush2.msra.mxu0 0.0
      %489 = vmatprep.subr.mxu0 0.0
      %490 = vmatpush2.msra.mxu0 0.0
      %491 = vmatprep.subr.mxu0 0.0
      %492 = vmatpush2.msra.mxu0 0.0
      %493 = vmatprep.subr.mxu0 0.0
      %494 = vmatpush2.msra.mxu0 0.0
      %495 = vmatprep.mubr.f32.mxu0 0.0
      %496 = vmatmul.mubr.f32.gmra.mxu0 %v429
      %v497 = vpop.f32.mrf.mxu0
      %v498 = vadd.f32 0.0, %v497
      %v499 = vpop.f32.mrf.mxu0
      %500 = vdwg.mxu0
      %501 = vst.msk [vmem:[%s284] sm:$0xff] %vm293, %v498
      %v502 = vsel %vm416, %v415, -inf
      %503 = vmax.xlane.f32.xlu0 %v502
      %v504 = vpop.xlane.xlu0 %503
      %v505 = vsub.f32 %v415, %v504
      %v506 = vmul.f32 %v505, 1.442695
      %v507 = vpow.pop %v506
      %v508 = vsel %vm416, %v507, 0.0
      %509 = vadd.xlane.f32.xlu0 %v508
      %v510 = vpop.xlane.xlu0 %509
      %v511 = vrcp.pop %v510
      %v512 = vmul.f32 %v507, %v511
      %v514 = vsel %vm416, %v512, 0
      %516 = vmatprep.subr.mxu0 0.0
      %517 = vmatpush1.msra.mxu0 0.0
      %518 = vmatprep.subr.mxu0 0.0
      %519 = vmatpush1.msra.mxu0 0.0
      %520 = vmatprep.subr.mxu0 0.0
      %521 = vmatpush1.msra.mxu0 0.0
      %522 = vmatprep.subr.mxu0 0.0
      %523 = vmatpush1.msra.mxu0 0.0
      %524 = vmatprep.subr.mxu0 0.0
      %525 = vmatpush1.msra.mxu0 0.0
      %526 = vmatprep.subr.mxu0 0.0
      %527 = vmatpush1.msra.mxu0 0.0
      %528 = vmatprep.subr.mxu0 0.0
      %529 = vmatpush1.msra.mxu0 0.0
      %530 = vmatprep.subr.mxu0 0.0
      %531 = vmatpush1.msra.mxu0 0.0
      %532 = vmatprep.subr.mxu0 0.0
      %533 = vmatpush1.msra.mxu0 0.0
      %534 = vmatprep.subr.mxu0 0.0
      %535 = vmatpush1.msra.mxu0 0.0
      %536 = vmatprep.subr.mxu0 0.0
      %537 = vmatpush1.msra.mxu0 0.0
      %538 = vmatprep.subr.mxu0 0.0
      %539 = vmatpush1.msra.mxu0 0.0
      %540 = vmatprep.subr.mxu0 0.0
      %541 = vmatpush1.msra.mxu0 0.0
      %542 = vmatprep.subr.mxu0 0.0
      %543 = vmatpush1.msra.mxu0 0.0
      %544 = vmatprep.subr.mxu0 0.0
      %545 = vmatpush1.msra.mxu0 0.0
      %546 = vmatprep.subr.mxu0 0.0
      %547 = vmatpush1.msra.mxu0 %v289
      %548 = vmatprep.subr.mxu0 0.0
      %549 = vmatpush2.msra.mxu0 0.0
      %550 = vmatprep.subr.mxu0 0.0
      %551 = vmatpush2.msra.mxu0 0.0
      %552 = vmatprep.subr.mxu0 0.0
      %553 = vmatpush2.msra.mxu0 0.0
      %554 = vmatprep.subr.mxu0 0.0
      %555 = vmatpush2.msra.mxu0 0.0
      %556 = vmatprep.subr.mxu0 0.0
      %557 = vmatpush2.msra.mxu0 0.0
      %558 = vmatprep.subr.mxu0 0.0
      %559 = vmatpush2.msra.mxu0 0.0
      %560 = vmatprep.subr.mxu0 0.0
      %561 = vmatpush2.msra.mxu0 0.0
      %562 = vmatprep.subr.mxu0 0.0
      %563 = vmatpush2.msra.mxu0 0.0
      %564 = vmatprep.subr.mxu0 0.0
      %565 = vmatpush2.msra.mxu0 0.0
      %566 = vmatprep.subr.mxu0 0.0
      %567 = vmatpush2.msra.mxu0 0.0
      %568 = vmatprep.subr.mxu0 0.0
      %569 = vmatpush2.msra.mxu0 0.0
      %570 = vmatprep.subr.mxu0 0.0
      %571 = vmatpush2.msra.mxu0 0.0
      %572 = vmatprep.subr.mxu0 0.0
      %573 = vmatpush2.msra.mxu0 0.0
      %574 = vmatprep.subr.mxu0 0.0
      %575 = vmatpush2.msra.mxu0 0.0
      %576 = vmatprep.subr.mxu0 0.0
      %577 = vmatpush2.msra.mxu0 0.0
      %578 = vmatprep.subr.mxu0 0.0
      %579 = vmatpush2.msra.mxu0 0.0
      %580 = vmatprep.mubr.f32.mxu0 0.0
      %581 = vmatmul.mubr.f32.gmra.mxu0 %v514
      %v582 = vpop.f32.mrf.mxu0
      %v583 = vadd.f32 0.0, %v582
      %v584 = vpop.f32.mrf.mxu0
      %585 = vdwg.mxu0
      %586 = vst.msk [vmem:[%s288] sm:$0xff] %vm293, %v583
      %p587 = scmp.lt.s32.totalorder %s17, 1
      %s588 = scalar_select %p587, %s17, 1
      %s589 = smul.addr %s588, 8
      %s590 = scalar_lea.vmem %s4, %s589
      %p591 = scmp.lt.s32.totalorder %s17, 1
      %s592 = scalar_select %p591, %s17, 1
      %s593 = smul.addr %s592, 8
      %s594 = scalar_lea.vmem %s5, %s593
      // Predicated region
      $region37: #{_lambda_.5} parent=35 // pred_check
        %p595 = pneg %p141
      $region38: #{_lambda_.5} parent=35 // pred_check_branch
        %597 = sbr.rel (%p595) target = $region40
      $region39: #{_lambda_.5} parent=35 // pred_region
        _
      $region40: #{_lambda_.5} parent=35 // pred_fallthru
        _
      // Predicated region
      $region41: #{_lambda_.5} parent=35 // pred_check
        %p598 = pneg %p167
      $region42: #{_lambda_.5} parent=35 // pred_check_branch
        %600 = sbr.rel (%p598) target = $region44
      $region43: #{_lambda_.5} parent=35 // pred_region
        _
      $region44: #{_lambda_.5} parent=35 // pred_fallthru
        _
    $region36: #{_lambda_.5} parent=5 // pred_fallthru
      _
    %p601 = scmp.le.s32.totalorder 2, %s12
    // Predicated region
    $region45: #{_lambda_.5} parent=5 // pred_check
      %p602 = pneg %p601
    $region46: #{_lambda_.5} parent=5 // pred_check_branch
      %604 = sbr.rel (%p602) target = $region48
    $region47: #{_lambda_.5} parent=5 // pred_region
      %s605 = ssub.s32 %s12, 2
      // Predicated region
      $region49: #{_lambda_.5} parent=47 // pred_check
        %p606 = pneg %p147
      $region50: #{_lambda_.5} parent=47 // pred_check_branch
        %608 = sbr.rel (%p606) target = $region52
      $region51: #{_lambda_.5} parent=47 // pred_region
        %p609 = scmp.lt.s32.totalorder %s18, 1
        %s610 = scalar_select %p609, %s18, 1
        %s611 = smul.addr %s610, 8
        %s612 = scalar_lea.vmem %s4, %s611
      $region52: #{_lambda_.5} parent=47 // pred_fallthru
        _
      // Predicated region
      $region53: #{_lambda_.5} parent=47 // pred_check
        %p613 = pneg %p173
      $region54: #{_lambda_.5} parent=47 // pred_check_branch
        %615 = sbr.rel (%p613) target = $region56
      $region55: #{_lambda_.5} parent=47 // pred_region
        %p616 = scmp.lt.s32.totalorder %s18, 1
        %s617 = scalar_select %p616, %s18, 1
        %s618 = smul.addr %s617, 8
        %s619 = scalar_lea.vmem %s5, %s618
      $region56: #{_lambda_.5} parent=47 // pred_fallthru
        _
    $region48: #{_lambda_.5} parent=5 // pred_fallthru
      _
  $region6: #{_lambda_.5} parent=0 // loop_footer
    %s16 = sadd.s32 1, %s12
  $region7: #{_lambda_.5} parent=0 // loop_footer_branch
    %11 = sbr.rel target = $region3
  $region8: #{_lambda_.5} parent=0 // loop_exit
    _

// kernel: _lambda_.7
$region0: #{_lambda_.7}
  #allocation0 [shape = 'u32[]', space=smem, size = 0x4, offset = 0x4, fixed_abs, tag = 'smem constant byte address 0x4 - core index']
  #allocation1 [shape = 'u32[144,128]{1,0:T(1,128)}', space=vmem, size = 0x12000, scoped, tag = 'internal scratch']
  %s0 = inlined_call_operand.vmem [shape: f32[8,4,64], index: 0, kind: input, shape index: {}]
  %s1 = inlined_call_operand.vmem [shape: f32[64,2], index: 1, kind: input, shape index: {}]
  %s2 = inlined_call_operand.vmem [shape: f32[64,2], index: 2, kind: input, shape index: {}]
  %s3 = inlined_call_operand.vmem [shape: f32[64,2], index: 3, kind: input, shape index: {}]
  %s4 = inlined_call_operand.vmem [shape: f32[64,2], index: 4, kind: input, shape index: {}]
  %s5 = inlined_call_operand.vmem [shape: f32[1,2], index: 5, kind: input, shape index: {}]
  %s6 = inlined_call_operand.vmem [shape: f32[2,3], index: 6, kind: input, shape index: {}]
  %s7 = inlined_call_operand.vmem [shape: f32[1,3], index: 7, kind: input, shape index: {}]
  %s8 = inlined_call_operand.hbm [shape: f32[2,3], index: 8, kind: output, shape index: {}]
  %s9 = sld [smem:[#allocation0]]
  $region42: #{_lambda_.7} parent=0
    _
  %s11 = ssub.s32 1, %s9
  %s12 = scalar_select 0, %s11, %s9
  $region1: #{_lambda_.7} parent=0
    #allocation2 [shape = 'u8[1024]{0}', space=vmem, size = 0x400, scoped, tag = 'output window, operand 0, single buffered']
    #allocation3 [shape = 's32[1]{0}', space=sflag, size = 0x4, scoped, tag = 'scoped memory for _lambda_.7']
    %13 = vsyncpa [#allocation3], 0
    // Predicated region
    $region2: #{_lambda_.7} parent=1 // pred_check
      _
    $region3: #{_lambda_.7} parent=1 // pred_check_branch
      %15 = sbr.rel (0) target = $region5
    $region4: #{_lambda_.7} parent=1 // pred_region
      _
    $region5: #{_lambda_.7} parent=1 // pred_fallthru
      _
    // Predicated region
    $region6: #{_lambda_.7} parent=1 // pred_check
      _
    $region7: #{_lambda_.7} parent=1 // pred_check_branch
      %17 = sbr.rel (0) target = $region9
    $region8: #{_lambda_.7} parent=1 // pred_region
      _
    $region9: #{_lambda_.7} parent=1 // pred_fallthru
      _
    // Predicated region
    $region10: #{_lambda_.7} parent=1 // pred_check
      _
    $region11: #{_lambda_.7} parent=1 // pred_check_branch
      %19 = sbr.rel (0) target = $region13
    $region12: #{_lambda_.7} parent=1 // pred_region
      _
    $region13: #{_lambda_.7} parent=1 // pred_fallthru
      _
    // Predicated region
    $region14: #{_lambda_.7} parent=1 // pred_check
      _
    $region15: #{_lambda_.7} parent=1 // pred_check_branch
      %21 = sbr.rel (0) target = $region17
    $region16: #{_lambda_.7} parent=1 // pred_region
      _
    $region17: #{_lambda_.7} parent=1 // pred_fallthru
      _
    // Predicated region
    $region18: #{_lambda_.7} parent=1 // pred_check
      _
    $region19: #{_lambda_.7} parent=1 // pred_check_branch
      %23 = sbr.rel (0) target = $region21
    $region20: #{_lambda_.7} parent=1 // pred_region
      _
    $region21: #{_lambda_.7} parent=1 // pred_fallthru
      _
    // Predicated region
    $region22: #{_lambda_.7} parent=1 // pred_check
      _
    $region23: #{_lambda_.7} parent=1 // pred_check_branch
      %25 = sbr.rel (0) target = $region25
    $region24: #{_lambda_.7} parent=1 // pred_region
      _
    $region25: #{_lambda_.7} parent=1 // pred_fallthru
      _
    // Predicated region
    $region26: #{_lambda_.7} parent=1 // pred_check
      _
    $region27: #{_lambda_.7} parent=1 // pred_check_branch
      %27 = sbr.rel (0) target = $region29
    $region28: #{_lambda_.7} parent=1 // pred_region
      _
    $region29: #{_lambda_.7} parent=1 // pred_fallthru
      _
    // Predicated region
    $region30: #{_lambda_.7} parent=1 // pred_check
      _
    $region31: #{_lambda_.7} parent=1 // pred_check_branch
      %29 = sbr.rel (0) target = $region33
    $region32: #{_lambda_.7} parent=1 // pred_region
      _
    $region33: #{_lambda_.7} parent=1 // pred_fallthru
      _
    %v30 = vld [vmem:[%s0] sm:$0xf]
    %v31 = vld [vmem:[%s0 + $0x4] sm:$0xf]
    %v32 = vld [vmem:[%s0 + $0x8] sm:$0xf]
    %v33 = vld [vmem:[%s0 + $0xc] sm:$0xf]
    %v34 = vld [vmem:[%s0 + $0x10] sm:$0xf]
    %v35 = vld [vmem:[%s0 + $0x14] sm:$0xf]
    %v36 = vld [vmem:[%s0 + $0x18] sm:$0xf]
    %v37 = vld [vmem:[%s0 + $0x1c] sm:$0xf]
    %vm38 = vcmask 519168
    %v39 = vsel %vm38, %v30, 0.0
    %v40 = vsel %vm38, %v31, 0.0
    %v41 = vadd.f32 %v39, %v40
    %v42 = vsel %vm38, %v32, 0.0
    %v43 = vadd.f32 %v41, %v42
    %v44 = vsel %vm38, %v33, 0.0
    %v45 = vadd.f32 %v43, %v44
    %v46 = vsel %vm38, %v34, 0.0
    %v47 = vadd.f32 %v45, %v46
    %v48 = vsel %vm38, %v35, 0.0
    %v49 = vadd.f32 %v47, %v48
    %v50 = vsel %vm38, %v36, 0.0
    %v51 = vadd.f32 %v49, %v50
    %v52 = vsel %vm38, %v37, 0.0
    %v53 = vadd.f32 %v51, %v52
    %v54 = vmul.f32 %v53, 0.125
    %v55 = vsel %vm38, %v30, -inf
    %v56 = vsel %vm38, %v31, -inf
    %v57 = vsel %vm38, %v32, -inf
    %v58 = vsel %vm38, %v33, -inf
    %v59 = vsel %vm38, %v34, -inf
    %v60 = vmax.f32 %v55, %v59
    %v61 = vsel %vm38, %v35, -inf
    %v62 = vmax.f32 %v56, %v61
    %v63 = vsel %vm38, %v36, -inf
    %v64 = vmax.f32 %v57, %v63
    %v65 = vsel %vm38, %v37, -inf
    %v66 = vmax.f32 %v58, %v65
    %v67 = vmax.f32 %v60, %v62
    %v68 = vmax.f32 %v64, %v66
    %v69 = vmax.f32 %v67, %v68
    %v70 = vld [vmem:[%s1] sm:$0xff]
    %v71 = vld [vmem:[%s1 + $0x8] sm:$0xff]
    %v72 = vld [vmem:[%s1 + $0x10] sm:$0xff]
    %v73 = vld [vmem:[%s1 + $0x18] sm:$0xff]
    %v74 = vld [vmem:[%s1 + $0x20] sm:$0xff]
    %v75 = vld [vmem:[%s1 + $0x28] sm:$0xff]
    %v76 = vld [vmem:[%s1 + $0x30] sm:$0xff]
    %v77 = vld [vmem:[%s1 + $0x38] sm:$0xff]
    %v78 = vld [vmem:[%s2] sm:$0xff]
    %v79 = vld [vmem:[%s2 + $0x8] sm:$0xff]
    %v80 = vld [vmem:[%s2 + $0x10] sm:$0xff]
    %v81 = vld [vmem:[%s2 + $0x18] sm:$0xff]
    %v82 = vld [vmem:[%s2 + $0x20] sm:$0xff]
    %v83 = vld [vmem:[%s2 + $0x28] sm:$0xff]
    %v84 = vld [vmem:[%s2 + $0x30] sm:$0xff]
    %v85 = vld [vmem:[%s2 + $0x38] sm:$0xff]
    %vm86 = vcmask 523264
    %v88 = vsel %vm86, %v69, 0
    %90 = vmatprep.subr.mxu0 0.0
    %91 = vmatpush1.msra.mxu0 0.0
    %92 = vmatprep.subr.mxu0 0.0
    %93 = vmatpush1.msra.mxu0 0.0
    %94 = vmatprep.subr.mxu0 0.0
    %95 = vmatpush1.msra.mxu0 0.0
    %96 = vmatprep.subr.mxu0 0.0
    %97 = vmatpush1.msra.mxu0 0.0
    %98 = vmatprep.subr.mxu0 0.0
    %99 = vmatpush1.msra.mxu0 0.0
    %100 = vmatprep.subr.mxu0 0.0
    %101 = vmatpush1.msra.mxu0 0.0
    %102 = vmatprep.subr.mxu0 0.0
    %103 = vmatpush1.msra.mxu0 0.0
    %104 = vmatprep.subr.mxu0 0.0
    %105 = vmatpush1.msra.mxu0 0.0
    %106 = vmatprep.subr.mxu0 0.0
    %107 = vmatpush1.msra.mxu0 %v85
    %108 = vmatprep.subr.mxu0 0.0
    %109 = vmatpush1.msra.mxu0 %v84
    %110 = vmatprep.subr.mxu0 0.0
    %111 = vmatpush1.msra.mxu0 %v83
    %112 = vmatprep.subr.mxu0 0.0
    %113 = vmatpush1.msra.mxu0 %v82
    %114 = vmatprep.subr.mxu0 0.0
    %115 = vmatpush1.msra.mxu0 %v81
    %116 = vmatprep.subr.mxu0 0.0
    %117 = vmatpush1.msra.mxu0 %v80
    %118 = vmatprep.subr.mxu0 0.0
    %119 = vmatpush1.msra.mxu0 %v79
    %120 = vmatprep.subr.mxu0 0.0
    %121 = vmatpush1.msra.mxu0 %v78
    %122 = vmatprep.subr.mxu0 0.0
    %123 = vmatpush2.msra.mxu0 0.0
    %124 = vmatprep.subr.mxu0 0.0
    %125 = vmatpush2.msra.mxu0 0.0
    %126 = vmatprep.subr.mxu0 0.0
    %127 = vmatpush2.msra.mxu0 0.0
    %128 = vmatprep.subr.mxu0 0.0
    %129 = vmatpush2.msra.mxu0 0.0
    %130 = vmatprep.subr.mxu0 0.0
    %131 = vmatpush2.msra.mxu0 0.0
    %132 = vmatprep.subr.mxu0 0.0
    %133 = vmatpush2.msra.mxu0 0.0
    %134 = vmatprep.subr.mxu0 0.0
    %135 = vmatpush2.msra.mxu0 0.0
    %136 = vmatprep.subr.mxu0 0.0
    %137 = vmatpush2.msra.mxu0 0.0
    %138 = vmatprep.subr.mxu0 0.0
    %139 = vmatpush2.msra.mxu0 0.0
    %140 = vmatprep.subr.mxu0 0.0
    %141 = vmatpush2.msra.mxu0 0.0
    %142 = vmatprep.subr.mxu0 0.0
    %143 = vmatpush2.msra.mxu0 0.0
    %144 = vmatprep.subr.mxu0 0.0
    %145 = vmatpush2.msra.mxu0 0.0
    %146 = vmatprep.subr.mxu0 0.0
    %147 = vmatpush2.msra.mxu0 0.0
    %148 = vmatprep.subr.mxu0 0.0
    %149 = vmatpush2.msra.mxu0 0.0
    %150 = vmatprep.subr.mxu0 0.0
    %151 = vmatpush2.msra.mxu0 0.0
    %152 = vmatprep.subr.mxu0 0.0
    %153 = vmatpush2.msra.mxu0 0.0
    %154 = vmatprep.mubr.f32.mxu0 0.0
    %155 = vmatmul.mubr.f32.gmra.mxu0 %v88
    %v156 = vpop.f32.mrf.mxu0
    %v157 = vadd.f32 0.0, %v156
    %v158 = vpop.f32.mrf.mxu0
    %159 = vdwg.mxu0
    %v161 = vsel %vm86, %v54, 0
    %163 = vmatprep.subr.mxu0 0.0
    %164 = vmatpush1.msra.mxu0 0.0
    %165 = vmatprep.subr.mxu0 0.0
    %166 = vmatpush1.msra.mxu0 0.0
    %167 = vmatprep.subr.mxu0 0.0
    %168 = vmatpush1.msra.mxu0 0.0
    %169 = vmatprep.subr.mxu0 0.0
    %170 = vmatpush1.msra.mxu0 0.0
    %171 = vmatprep.subr.mxu0 0.0
    %172 = vmatpush1.msra.mxu0 0.0
    %173 = vmatprep.subr.mxu0 0.0
    %174 = vmatpush1.msra.mxu0 0.0
    %175 = vmatprep.subr.mxu0 0.0
    %176 = vmatpush1.msra.mxu0 0.0
    %177 = vmatprep.subr.mxu0 0.0
    %178 = vmatpush1.msra.mxu0 0.0
    %179 = vmatprep.subr.mxu0 0.0
    %180 = vmatpush1.msra.mxu0 %v77
    %181 = vmatprep.subr.mxu0 0.0
    %182 = vmatpush1.msra.mxu0 %v76
    %183 = vmatprep.subr.mxu0 0.0
    %184 = vmatpush1.msra.mxu0 %v75
    %185 = vmatprep.subr.mxu0 0.0
    %186 = vmatpush1.msra.mxu0 %v74
    %187 = vmatprep.subr.mxu0 0.0
    %188 = vmatpush1.msra.mxu0 %v73
    %189 = vmatprep.subr.mxu0 0.0
    %190 = vmatpush1.msra.mxu0 %v72
    %191 = vmatprep.subr.mxu0 0.0
    %192 = vmatpush1.msra.mxu0 %v71
    %193 = vmatprep.subr.mxu0 0.0
    %194 = vmatpush1.msra.mxu0 %v70
    %195 = vmatprep.subr.mxu0 0.0
    %196 = vmatpush2.msra.mxu0 0.0
    %197 = vmatprep.subr.mxu0 0.0
    %198 = vmatpush2.msra.mxu0 0.0
    %199 = vmatprep.subr.mxu0 0.0
    %200 = vmatpush2.msra.mxu0 0.0
    %201 = vmatprep.subr.mxu0 0.0
    %202 = vmatpush2.msra.mxu0 0.0
    %203 = vmatprep.subr.mxu0 0.0
    %204 = vmatpush2.msra.mxu0 0.0
    %205 = vmatprep.subr.mxu0 0.0
    %206 = vmatpush2.msra.mxu0 0.0
    %207 = vmatprep.subr.mxu0 0.0
    %208 = vmatpush2.msra.mxu0 0.0
    %209 = vmatprep.subr.mxu0 0.0
    %210 = vmatpush2.msra.mxu0 0.0
    %211 = vmatprep.subr.mxu0 0.0
    %212 = vmatpush2.msra.mxu0 0.0
    %213 = vmatprep.subr.mxu0 0.0
    %214 = vmatpush2.msra.mxu0 0.0
    %215 = vmatprep.subr.mxu0 0.0
    %216 = vmatpush2.msra.mxu0 0.0
    %217 = vmatprep.subr.mxu0 0.0
    %218 = vmatpush2.msra.mxu0 0.0
    %219 = vmatprep.subr.mxu0 0.0
    %220 = vmatpush2.msra.mxu0 0.0
    %221 = vmatprep.subr.mxu0 0.0
    %222 = vmatpush2.msra.mxu0 0.0
    %223 = vmatprep.subr.mxu0 0.0
    %224 = vmatpush2.msra.mxu0 0.0
    %225 = vmatprep.subr.mxu0 0.0
    %226 = vmatpush2.msra.mxu0 0.0
    %227 = vmatprep.mubr.f32.mxu0 0.0
    %228 = vmatmul.mubr.f32.gmra.mxu0 %v161
    %v229 = vpop.f32.mrf.mxu0
    %v230 = vadd.f32 %v157, %v229
    %v231 = vpop.f32.mrf.mxu0
    %232 = vdwg.mxu0
    %v233 = vld [vmem:[%s3] sm:$0xff]
    %v234 = vld [vmem:[%s3 + $0x8] sm:$0xff]
    %v235 = vld [vmem:[%s3 + $0x10] sm:$0xff]
    %v236 = vld [vmem:[%s3 + $0x18] sm:$0xff]
    %v237 = vld [vmem:[%s3 + $0x20] sm:$0xff]
    %v238 = vld [vmem:[%s3 + $0x28] sm:$0xff]
    %v239 = vld [vmem:[%s3 + $0x30] sm:$0xff]
    %v240 = vld [vmem:[%s3 + $0x38] sm:$0xff]
    %v241 = vrot.slane %v54, 2
    %v242 = vsel %vm86, %v241, 0
    %244 = vmatprep.subr.mxu0 0.0
    %245 = vmatpush1.msra.mxu0 0.0
    %246 = vmatprep.subr.mxu0 0.0
    %247 = vmatpush1.msra.mxu0 0.0
    %248 = vmatprep.subr.mxu0 0.0
    %249 = vmatpush1.msra.mxu0 0.0
    %250 = vmatprep.subr.mxu0 0.0
    %251 = vmatpush1.msra.mxu0 0.0
    %252 = vmatprep.subr.mxu0 0.0
    %253 = vmatpush1.msra.mxu0 0.0
    %254 = vmatprep.subr.mxu0 0.0
    %255 = vmatpush1.msra.mxu0 0.0
    %256 = vmatprep.subr.mxu0 0.0
    %257 = vmatpush1.msra.mxu0 0.0
    %258 = vmatprep.subr.mxu0 0.0
    %259 = vmatpush1.msra.mxu0 0.0
    %260 = vmatprep.subr.mxu0 0.0
    %261 = vmatpush1.msra.mxu0 %v240
    %262 = vmatprep.subr.mxu0 0.0
    %263 = vmatpush1.msra.mxu0 %v239
    %264 = vmatprep.subr.mxu0 0.0
    %265 = vmatpush1.msra.mxu0 %v238
    %266 = vmatprep.subr.mxu0 0.0
    %267 = vmatpush1.msra.mxu0 %v237
    %268 = vmatprep.subr.mxu0 0.0
    %269 = vmatpush1.msra.mxu0 %v236
    %270 = vmatprep.subr.mxu0 0.0
    %271 = vmatpush1.msra.mxu0 %v235
    %272 = vmatprep.subr.mxu0 0.0
    %273 = vmatpush1.msra.mxu0 %v234
    %274 = vmatprep.subr.mxu0 0.0
    %275 = vmatpush1.msra.mxu0 %v233
    %276 = vmatprep.subr.mxu0 0.0
    %277 = vmatpush2.msra.mxu0 0.0
    %278 = vmatprep.subr.mxu0 0.0
    %279 = vmatpush2.msra.mxu0 0.0
    %280 = vmatprep.subr.mxu0 0.0
    %281 = vmatpush2.msra.mxu0 0.0
    %282 = vmatprep.subr.mxu0 0.0
    %283 = vmatpush2.msra.mxu0 0.0
    %284 = vmatprep.subr.mxu0 0.0
    %285 = vmatpush2.msra.mxu0 0.0
    %286 = vmatprep.subr.mxu0 0.0
    %287 = vmatpush2.msra.mxu0 0.0
    %288 = vmatprep.subr.mxu0 0.0
    %289 = vmatpush2.msra.mxu0 0.0
    %290 = vmatprep.subr.mxu0 0.0
    %291 = vmatpush2.msra.mxu0 0.0
    %292 = vmatprep.subr.mxu0 0.0
    %293 = vmatpush2.msra.mxu0 0.0
    %294 = vmatprep.subr.mxu0 0.0
    %295 = vmatpush2.msra.mxu0 0.0
    %296 = vmatprep.subr.mxu0 0.0
    %297 = vmatpush2.msra.mxu0 0.0
    %298 = vmatprep.subr.mxu0 0.0
    %299 = vmatpush2.msra.mxu0 0.0
    %300 = vmatprep.subr.mxu0 0.0
    %301 = vmatpush2.msra.mxu0 0.0
    %302 = vmatprep.subr.mxu0 0.0
    %303 = vmatpush2.msra.mxu0 0.0
    %304 = vmatprep.subr.mxu0 0.0
    %305 = vmatpush2.msra.mxu0 0.0
    %306 = vmatprep.subr.mxu0 0.0
    %307 = vmatpush2.msra.mxu0 0.0
    %308 = vmatprep.mubr.f32.mxu0 0.0
    %309 = vmatmul.mubr.f32.gmra.mxu0 %v242
    %v310 = vpop.f32.mrf.mxu0
    %v311 = vadd.f32 0.0, %v310
    %v312 = vpop.f32.mrf.mxu0
    %313 = vdwg.mxu0
    %v314 = vadd.f32 %v230, %v311
    %v315 = vld [vmem:[%s4] sm:$0xff]
    %v316 = vld [vmem:[%s4 + $0x8] sm:$0xff]
    %v317 = vld [vmem:[%s4 + $0x10] sm:$0xff]
    %v318 = vld [vmem:[%s4 + $0x18] sm:$0xff]
    %v319 = vld [vmem:[%s4 + $0x20] sm:$0xff]
    %v320 = vld [vmem:[%s4 + $0x28] sm:$0xff]
    %v321 = vld [vmem:[%s4 + $0x30] sm:$0xff]
    %v322 = vld [vmem:[%s4 + $0x38] sm:$0xff]
    %v323 = vrot.slane %v69, 2
    %v324 = vsel %vm86, %v323, 0
    %326 = vmatprep.subr.mxu0 0.0
    %327 = vmatpush1.msra.mxu0 0.0
    %328 = vmatprep.subr.mxu0 0.0
    %329 = vmatpush1.msra.mxu0 0.0
    %330 = vmatprep.subr.mxu0 0.0
    %331 = vmatpush1.msra.mxu0 0.0
    %332 = vmatprep.subr.mxu0 0.0
    %333 = vmatpush1.msra.mxu0 0.0
    %334 = vmatprep.subr.mxu0 0.0
    %335 = vmatpush1.msra.mxu0 0.0
    %336 = vmatprep.subr.mxu0 0.0
    %337 = vmatpush1.msra.mxu0 0.0
    %338 = vmatprep.subr.mxu0 0.0
    %339 = vmatpush1.msra.mxu0 0.0
    %340 = vmatprep.subr.mxu0 0.0
    %341 = vmatpush1.msra.mxu0 0.0
    %342 = vmatprep.subr.mxu0 0.0
    %343 = vmatpush1.msra.mxu0 %v322
    %344 = vmatprep.subr.mxu0 0.0
    %345 = vmatpush1.msra.mxu0 %v321
    %346 = vmatprep.subr.mxu0 0.0
    %347 = vmatpush1.msra.mxu0 %v320
    %348 = vmatprep.subr.mxu0 0.0
    %349 = vmatpush1.msra.mxu0 %v319
    %350 = vmatprep.subr.mxu0 0.0
    %351 = vmatpush1.msra.mxu0 %v318
    %352 = vmatprep.subr.mxu0 0.0
    %353 = vmatpush1.msra.mxu0 %v317
    %354 = vmatprep.subr.mxu0 0.0
    %355 = vmatpush1.msra.mxu0 %v316
    %356 = vmatprep.subr.mxu0 0.0
    %357 = vmatpush1.msra.mxu0 %v315
    %358 = vmatprep.subr.mxu0 0.0
    %359 = vmatpush2.msra.mxu0 0.0
    %360 = vmatprep.subr.mxu0 0.0
    %361 = vmatpush2.msra.mxu0 0.0
    %362 = vmatprep.subr.mxu0 0.0
    %363 = vmatpush2.msra.mxu0 0.0
    %364 = vmatprep.subr.mxu0 0.0
    %365 = vmatpush2.msra.mxu0 0.0
    %366 = vmatprep.subr.mxu0 0.0
    %367 = vmatpush2.msra.mxu0 0.0
    %368 = vmatprep.subr.mxu0 0.0
    %369 = vmatpush2.msra.mxu0 0.0
    %370 = vmatprep.subr.mxu0 0.0
    %371 = vmatpush2.msra.mxu0 0.0
    %372 = vmatprep.subr.mxu0 0.0
    %373 = vmatpush2.msra.mxu0 0.0
    %374 = vmatprep.subr.mxu0 0.0
    %375 = vmatpush2.msra.mxu0 0.0
    %376 = vmatprep.subr.mxu0 0.0
    %377 = vmatpush2.msra.mxu0 0.0
    %378 = vmatprep.subr.mxu0 0.0
    %379 = vmatpush2.msra.mxu0 0.0
    %380 = vmatprep.subr.mxu0 0.0
    %381 = vmatpush2.msra.mxu0 0.0
    %382 = vmatprep.subr.mxu0 0.0
    %383 = vmatpush2.msra.mxu0 0.0
    %384 = vmatprep.subr.mxu0 0.0
    %385 = vmatpush2.msra.mxu0 0.0
    %386 = vmatprep.subr.mxu0 0.0
    %387 = vmatpush2.msra.mxu0 0.0
    %388 = vmatprep.subr.mxu0 0.0
    %389 = vmatpush2.msra.mxu0 0.0
    %390 = vmatprep.mubr.f32.mxu0 0.0
    %391 = vmatmul.mubr.f32.gmra.mxu0 %v324
    %v392 = vpop.f32.mrf.mxu0
    %v393 = vadd.f32 0.0, %v392
    %v394 = vpop.f32.mrf.mxu0
    %395 = vdwg.mxu0
    %v396 = vadd.f32 %v314, %v393
    %v397 = vld [vmem:[%s5] sm:$0x1]
    %v399 = vlaneseq
    %v400 = vshrl.u32 %v399, 7
    %v401 = vsub.s32 0, %v400
    %v402 = vrot.slane %v397, %v401
    %v404 = vadd.f32 %v396, %v402
    %v405 = vld [vmem:[%s6] sm:$0x3]
    %v406 = vld [vmem:[%s7] sm:$0x1]
    %v408 = vlaneseq
    %v409 = vshrl.u32 %v408, 7
    %v410 = vsub.s32 0, %v409
    %v411 = vrot.slane %v406, %v410
    %vm413 = vcmask 15360
    %v415 = vsel %vm413, %v404, 0
    %vm417 = vcmask 1041408
    %v419 = vsel %vm417, %v405, 0
    %421 = vmatprep.subr.mxu0 0.0
    %422 = vmatpush1.msra.mxu0 0.0
    %423 = vmatprep.subr.mxu0 0.0
    %424 = vmatpush1.msra.mxu0 0.0
    %425 = vmatprep.subr.mxu0 0.0
    %426 = vmatpush1.msra.mxu0 0.0
    %427 = vmatprep.subr.mxu0 0.0
    %428 = vmatpush1.msra.mxu0 0.0
    %429 = vmatprep.subr.mxu0 0.0
    %430 = vmatpush1.msra.mxu0 0.0
    %431 = vmatprep.subr.mxu0 0.0
    %432 = vmatpush1.msra.mxu0 0.0
    %433 = vmatprep.subr.mxu0 0.0
    %434 = vmatpush1.msra.mxu0 0.0
    %435 = vmatprep.subr.mxu0 0.0
    %436 = vmatpush1.msra.mxu0 0.0
    %437 = vmatprep.subr.mxu0 0.0
    %438 = vmatpush1.msra.mxu0 0.0
    %439 = vmatprep.subr.mxu0 0.0
    %440 = vmatpush1.msra.mxu0 0.0
    %441 = vmatprep.subr.mxu0 0.0
    %442 = vmatpush1.msra.mxu0 0.0
    %443 = vmatprep.subr.mxu0 0.0
    %444 = vmatpush1.msra.mxu0 0.0
    %445 = vmatprep.subr.mxu0 0.0
    %446 = vmatpush1.msra.mxu0 0.0
    %447 = vmatprep.subr.mxu0 0.0
    %448 = vmatpush1.msra.mxu0 0.0
    %449 = vmatprep.subr.mxu0 0.0
    %450 = vmatpush1.msra.mxu0 0.0
    %451 = vmatprep.subr.mxu0 0.0
    %452 = vmatpush1.msra.mxu0 %v419
    %453 = vmatprep.subr.mxu0 0.0
    %454 = vmatpush2.msra.mxu0 0.0
    %455 = vmatprep.subr.mxu0 0.0
    %456 = vmatpush2.msra.mxu0 0.0
    %457 = vmatprep.subr.mxu0 0.0
    %458 = vmatpush2.msra.mxu0 0.0
    %459 = vmatprep.subr.mxu0 0.0
    %460 = vmatpush2.msra.mxu0 0.0
    %461 = vmatprep.subr.mxu0 0.0
    %462 = vmatpush2.msra.mxu0 0.0
    %463 = vmatprep.subr.mxu0 0.0
    %464 = vmatpush2.msra.mxu0 0.0
    %465 = vmatprep.subr.mxu0 0.0
    %466 = vmatpush2.msra.mxu0 0.0
    %467 = vmatprep.subr.mxu0 0.0
    %468 = vmatpush2.msra.mxu0 0.0
    %469 = vmatprep.subr.mxu0 0.0
    %470 = vmatpush2.msra.mxu0 0.0
    %471 = vmatprep.subr.mxu0 0.0
    %472 = vmatpush2.msra.mxu0 0.0
    %473 = vmatprep.subr.mxu0 0.0
    %474 = vmatpush2.msra.mxu0 0.0
    %475 = vmatprep.subr.mxu0 0.0
    %476 = vmatpush2.msra.mxu0 0.0
    %477 = vmatprep.subr.mxu0 0.0
    %478 = vmatpush2.msra.mxu0 0.0
    %479 = vmatprep.subr.mxu0 0.0
    %480 = vmatpush2.msra.mxu0 0.0
    %481 = vmatprep.subr.mxu0 0.0
    %482 = vmatpush2.msra.mxu0 0.0
    %483 = vmatprep.subr.mxu0 0.0
    %484 = vmatpush2.msra.mxu0 0.0
    %485 = vmatprep.mubr.f32.mxu0 0.0
    %486 = vmatmul.mubr.f32.gmra.mxu0 %v415
    %v487 = vpop.f32.mrf.mxu0
    %v488 = vadd.f32 %v411, %v487
    %v489 = vpop.f32.mrf.mxu0
    %490 = vdwg.mxu0
    %vm491 = vcmask 17408
    %v492 = vsel %vm491, %v488, -inf
    %493 = vmax.xlane.f32.xlu0 %v492
    %v494 = vpop.xlane.xlu0 %493
    %v495 = vsub.f32 %v488, %v494
    %v496 = vmul.f32 %v495, 1.442695
    %v497 = vpow.pop %v496
    %v498 = vsel %vm491, %v497, 0.0
    %499 = vadd.xlane.f32.xlu0 %v498
    %v500 = vpop.xlane.xlu0 %499
    %v501 = vrcp.pop %v500
    %v502 = vmul.f32 %v497, %v501
    %503 = vst.msk [vmem:[#allocation2] sm:$0x3] %vm491, %v502
    // Predicated region
    $region34: #{_lambda_.7} parent=1 // pred_check
      _
    $region35: #{_lambda_.7} parent=1 // pred_check_branch
      %505 = sbr.rel (0) target = $region37
    $region36: #{_lambda_.7} parent=1 // pred_region
      %s507 = ssub.s32 32, 32
      %508 = vsyncadd [#allocation3], %s507
      %s510 = sshll.u32 [#allocation2], 4
      %s511 = int_to_ptr.vmem [resolvable:$true] %s510
      %513 = dma.vmem_to_hbm [thread:$0]  %s511, 32, %s8, [#allocation3]
    $region37: #{_lambda_.7} parent=1 // pred_fallthru
      _
    // Predicated region
    $region38: #{_lambda_.7} parent=1 // pred_check
      _
    $region39: #{_lambda_.7} parent=1 // pred_check_branch
      %515 = sbr.rel (0) target = $region41
    $region40: #{_lambda_.7} parent=1 // pred_region
      %516 = dma.done [#allocation3], 32
    $region41: #{_lambda_.7} parent=1 // pred_fallthru
      _
    %517 = vsyncpa [#allocation3], 1

// kernel: _lambda_.4
$region0: #{_lambda_.4}
  #allocation0 [shape = 'u32[]', space=smem, size = 0x4, offset = 0x4, fixed_abs, tag = 'smem constant byte address 0x4 - core index']
  #allocation1 [shape = 'u32[144,128]{1,0:T(1,128)}', space=vmem, size = 0x12000, scoped, tag = 'internal scratch']
  #allocation2 [shape = 'f32[8,4,256]{2,1,0:T(4,128)}', space=vmem, size = 0x8000, scoped, tag = 'scratch operand']
  #allocation3 [shape = 'f32[4,64]{1,0:T(4,128)}', space=vmem, size = 0x800, scoped, tag = 'scratch operand']
  #allocation4 [shape = 'f32[4,64]{1,0:T(4,128)}', space=vmem, size = 0x800, scoped, tag = 'scratch operand']
  %s0 = inlined_call_operand.vmem [shape: f32[8,4,32], index: 0, kind: input, shape index: {}]
  %s1 = inlined_call_operand.vmem [shape: f32[32,256], index: 1, kind: input, shape index: {}]
  %s2 = inlined_call_operand.vmem [shape: f32[64,256], index: 2, kind: input, shape index: {}]
  %s3 = inlined_call_operand.vmem [shape: f32[1,256], index: 3, kind: input, shape index: {}]
  %s4 = inlined_call_operand.vmem [shape: f32[8,4,64], index: 4, kind: output, shape index: {}]
  %s5 = sld [smem:[#allocation0]]
  $region26: #{_lambda_.4} parent=0
    _
  %s7 = ssub.s32 1, %s5
  %s8 = scalar_select 0, %s7, %s5
  // Predicated region
  $region2: #{_lambda_.4} parent=0 // pred_check
    _
  $region3: #{_lambda_.4} parent=0 // pred_check_branch
    %10 = sbr.rel (0) target = $region5
  $region4: #{_lambda_.4} parent=0 // pred_region
    _
  $region5: #{_lambda_.4} parent=0 // pred_fallthru
    _
  // Predicated region
  $region6: #{_lambda_.4} parent=0 // pred_check
    _
  $region7: #{_lambda_.4} parent=0 // pred_check_branch
    %12 = sbr.rel (0) target = $region9
  $region8: #{_lambda_.4} parent=0 // pred_region
    _
  $region9: #{_lambda_.4} parent=0 // pred_fallthru
    _
  // Predicated region
  $region10: #{_lambda_.4} parent=0 // pred_check
    _
  $region11: #{_lambda_.4} parent=0 // pred_check_branch
    %14 = sbr.rel (0) target = $region13
  $region12: #{_lambda_.4} parent=0 // pred_region
    _
  $region13: #{_lambda_.4} parent=0 // pred_fallthru
    _
  // Predicated region
  $region14: #{_lambda_.4} parent=0 // pred_check
    _
  $region15: #{_lambda_.4} parent=0 // pred_check_branch
    %16 = sbr.rel (0) target = $region17
  $region16: #{_lambda_.4} parent=0 // pred_region
    _
  $region17: #{_lambda_.4} parent=0 // pred_fallthru
    _
  %v17 = vld [vmem:[%s0] sm:$0xf]
  %v18 = vld [vmem:[%s0 + $0x4] sm:$0xf]
  %v19 = vld [vmem:[%s0 + $0x8] sm:$0xf]
  %v20 = vld [vmem:[%s0 + $0xc] sm:$0xf]
  %v21 = vld [vmem:[%s0 + $0x10] sm:$0xf]
  %v22 = vld [vmem:[%s0 + $0x14] sm:$0xf]
  %v23 = vld [vmem:[%s0 + $0x18] sm:$0xf]
  %v24 = vld [vmem:[%s0 + $0x1c] sm:$0xf]
  %v25 = vld [vmem:[%s1] sm:$0xff]
  %v26 = vld [vmem:[%s1 + $0x8] sm:$0xff]
  %v27 = vld [vmem:[%s1 + $0x10] sm:$0xff]
  %v28 = vld [vmem:[%s1 + $0x18] sm:$0xff]
  %v29 = vld [vmem:[%s1 + $0x20] sm:$0xff]
  %v30 = vld [vmem:[%s1 + $0x28] sm:$0xff]
  %v31 = vld [vmem:[%s1 + $0x30] sm:$0xff]
  %v32 = vld [vmem:[%s1 + $0x38] sm:$0xff]
  %v33 = vld [vmem:[%s3] sm:$0x3]
  %v35 = vlaneseq
  %v36 = vshrl.u32 %v35, 7
  %v37 = vsub.s32 0, %v36
  %v38 = vrot.slane %v33, %v37
  %v39 = vlaneseq
  %v40 = vshrl.u32 %v39, 7
  %v41 = vsub.s32 1, %v40
  %v42 = vrot.slane %v33, %v41
  %v53 = vcombine.low %v17, %v18
  %v54 = vcombine.low %v19, %v20
  %v55 = vcombine.low %v21, %v22
  %v56 = vcombine.low %v23, %v24
  %vm57 = vcmask 261120
  %v58 = vsel %vm57, %v53, 0
  %v60 = vsel %vm57, %v54, 0
  %v62 = vsel %vm57, %v55, 0
  %v64 = vsel %vm57, %v56, 0
  %66 = vmatprep.subr.mxu0 0.0
  %67 = vmatpush1.msra.mxu0 0.0
  %68 = vmatprep.subr.mxu0 0.0
  %69 = vmatpush1.msra.mxu0 0.0
  %70 = vmatprep.subr.mxu0 0.0
  %71 = vmatpush1.msra.mxu0 0.0
  %72 = vmatprep.subr.mxu0 0.0
  %73 = vmatpush1.msra.mxu0 0.0
  %74 = vmatprep.subr.mxu0 0.0
  %75 = vmatpush1.msra.mxu0 0.0
  %76 = vmatprep.subr.mxu0 0.0
  %77 = vmatpush1.msra.mxu0 0.0
  %78 = vmatprep.subr.mxu0 0.0
  %79 = vmatpush1.msra.mxu0 0.0
  %80 = vmatprep.subr.mxu0 0.0
  %81 = vmatpush1.msra.mxu0 0.0
  %82 = vmatprep.subr.mxu0 0.0
  %83 = vmatpush1.msra.mxu0 0.0
  %84 = vmatprep.subr.mxu0 0.0
  %85 = vmatpush1.msra.mxu0 0.0
  %86 = vmatprep.subr.mxu0 0.0
  %87 = vmatpush1.msra.mxu0 0.0
  %88 = vmatprep.subr.mxu0 0.0
  %89 = vmatpush1.msra.mxu0 0.0
  %90 = vmatprep.subr.mxu0 %v32
  %91 = vmatpush1.msra.mxu0 %v31
  %92 = vmatprep.subr.mxu0 %v30
  %93 = vmatpush1.msra.mxu0 %v29
  %94 = vmatprep.subr.mxu0 %v28
  %95 = vmatpush1.msra.mxu0 %v27
  %96 = vmatprep.subr.mxu0 %v26
  %97 = vmatpush1.msra.mxu0 %v25
  %98 = vmatprep.subr.mxu0 0.0
  %99 = vmatpush2.msra.mxu0 0.0
  %100 = vmatprep.subr.mxu0 0.0
  %101 = vmatpush2.msra.mxu0 0.0
  %102 = vmatprep.subr.mxu0 0.0
  %103 = vmatpush2.msra.mxu0 0.0
  %104 = vmatprep.subr.mxu0 0.0
  %105 = vmatpush2.msra.mxu0 0.0
  %106 = vmatprep.subr.mxu0 0.0
  %107 = vmatpush2.msra.mxu0 0.0
  %108 = vmatprep.subr.mxu0 0.0
  %109 = vmatpush2.msra.mxu0 0.0
  %110 = vmatprep.subr.mxu0 0.0
  %111 = vmatpush2.msra.mxu0 0.0
  %112 = vmatprep.subr.mxu0 0.0
  %113 = vmatpush2.msra.mxu0 0.0
  %114 = vmatprep.subr.mxu0 0.0
  %115 = vmatpush2.msra.mxu0 0.0
  %116 = vmatprep.subr.mxu0 0.0
  %117 = vmatpush2.msra.mxu0 0.0
  %118 = vmatprep.subr.mxu0 0.0
  %119 = vmatpush2.msra.mxu0 0.0
  %120 = vmatprep.subr.mxu0 0.0
  %121 = vmatpush2.msra.mxu0 0.0
  %122 = vmatprep.subr.mxu0 0.0
  %123 = vmatpush2.msra.mxu0 0.0
  %124 = vmatprep.subr.mxu0 0.0
  %125 = vmatpush2.msra.mxu0 0.0
  %126 = vmatprep.subr.mxu0 0.0
  %127 = vmatpush2.msra.mxu0 0.0
  %128 = vmatprep.subr.mxu0 0.0
  %129 = vmatpush2.msra.mxu0 0.0
  %130 = vmatprep.mubr.f32.mxu0 0.0
  %131 = vmatmul.mubr.f32.gmra.mxu0 %v58
  %v132 = vpop.f32.mrf.mxu0
  %v133 = vadd.f32 %v38, %v132
  %v134 = vpop.f32.mrf.mxu0
  %v135 = vadd.f32 %v42, %v134
  %136 = vmatprep.mubr.f32.mxu0 0.0
  %137 = vmatmul.mubr.f32.gmra.mxu0 %v60
  %v138 = vpop.f32.mrf.mxu0
  %v139 = vadd.f32 %v38, %v138
  %v140 = vpop.f32.mrf.mxu0
  %v141 = vadd.f32 %v42, %v140
  %142 = vmatprep.mubr.f32.mxu0 0.0
  %143 = vmatmul.mubr.f32.gmra.mxu0 %v62
  %v144 = vpop.f32.mrf.mxu0
  %v145 = vadd.f32 %v38, %v144
  %v146 = vpop.f32.mrf.mxu0
  %v147 = vadd.f32 %v42, %v146
  %148 = vmatprep.mubr.f32.mxu0 0.0
  %149 = vmatmul.mubr.f32.gmra.mxu0 %v64
  %v150 = vpop.f32.mrf.mxu0
  %v151 = vadd.f32 %v38, %v150
  %v152 = vpop.f32.mrf.mxu0
  %v153 = vadd.f32 %v42, %v152
  %154 = vdwg.mxu0
  %v163 = vcombine.low %v133, %v135
  %v164 = vcombine.high %v133, %v135
  %v165 = vcombine.low %v139, %v141
  %v166 = vcombine.high %v139, %v141
  %v167 = vcombine.low %v145, %v147
  %v168 = vcombine.high %v145, %v147
  %v169 = vcombine.low %v151, %v153
  %v170 = vcombine.high %v151, %v153
  %179 = vst [vmem:[#allocation2] sm:$0xff] %v163
  %180 = vst [vmem:[#allocation2 + $0x8] sm:$0xff] %v164
  %181 = vst [vmem:[#allocation2 + $0x10] sm:$0xff] %v165
  %182 = vst [vmem:[#allocation2 + $0x18] sm:$0xff] %v166
  %183 = vst [vmem:[#allocation2 + $0x20] sm:$0xff] %v167
  %184 = vst [vmem:[#allocation2 + $0x28] sm:$0xff] %v168
  %185 = vst [vmem:[#allocation2 + $0x30] sm:$0xff] %v169
  %186 = vst [vmem:[#allocation2 + $0x38] sm:$0xff] %v170
  %vm187 = vcmask 519168
  %188 = vst.msk [vmem:[#allocation3] sm:$0xf] %vm187, 0.0
  %189 = vst.msk [vmem:[#allocation4] sm:$0xf] %vm187, 0.0
  %v190 = vld [vmem:[#allocation3] sm:$0xf]
  %v191 = vld [vmem:[%s2] sm:$0xff]
  %v192 = vld [vmem:[%s2 + $0x8] sm:$0xff]
  %v193 = vld [vmem:[%s2 + $0x10] sm:$0xff]
  %v194 = vld [vmem:[%s2 + $0x18] sm:$0xff]
  %v195 = vld [vmem:[%s2 + $0x20] sm:$0xff]
  %v196 = vld [vmem:[%s2 + $0x28] sm:$0xff]
  %v197 = vld [vmem:[%s2 + $0x30] sm:$0xff]
  %v198 = vld [vmem:[%s2 + $0x38] sm:$0xff]
  %v199 = vld [vmem:[%s2 + $0x40] sm:$0xff]
  %v200 = vld [vmem:[%s2 + $0x48] sm:$0xff]
  %v201 = vld [vmem:[%s2 + $0x50] sm:$0xff]
  %v202 = vld [vmem:[%s2 + $0x58] sm:$0xff]
  %v203 = vld [vmem:[%s2 + $0x60] sm:$0xff]
  %v204 = vld [vmem:[%s2 + $0x68] sm:$0xff]
  %v205 = vld [vmem:[%s2 + $0x70] sm:$0xff]
  %v206 = vld [vmem:[%s2 + $0x78] sm:$0xff]
  %vm207 = vcmask 523264
  %v209 = vsel %vm207, %v190, 0
  %211 = vmatprep.subr.mxu0 0.0
  %212 = vmatpush1.msra.mxu0 0.0
  %213 = vmatprep.subr.mxu0 0.0
  %214 = vmatpush1.msra.mxu0 0.0
  %215 = vmatprep.subr.mxu0 0.0
  %216 = vmatpush1.msra.mxu0 0.0
  %217 = vmatprep.subr.mxu0 0.0
  %218 = vmatpush1.msra.mxu0 0.0
  %219 = vmatprep.subr.mxu0 0.0
  %220 = vmatpush1.msra.mxu0 0.0
  %221 = vmatprep.subr.mxu0 0.0
  %222 = vmatpush1.msra.mxu0 0.0
  %223 = vmatprep.subr.mxu0 0.0
  %224 = vmatpush1.msra.mxu0 0.0
  %225 = vmatprep.subr.mxu0 0.0
  %226 = vmatpush1.msra.mxu0 0.0
  %227 = vmatprep.subr.mxu0 %v206
  %228 = vmatpush1.msra.mxu0 %v205
  %229 = vmatprep.subr.mxu0 %v204
  %230 = vmatpush1.msra.mxu0 %v203
  %231 = vmatprep.subr.mxu0 %v202
  %232 = vmatpush1.msra.mxu0 %v201
  %233 = vmatprep.subr.mxu0 %v200
  %234 = vmatpush1.msra.mxu0 %v199
  %235 = vmatprep.subr.mxu0 %v198
  %236 = vmatpush1.msra.mxu0 %v197
  %237 = vmatprep.subr.mxu0 %v196
  %238 = vmatpush1.msra.mxu0 %v195
  %239 = vmatprep.subr.mxu0 %v194
  %240 = vmatpush1.msra.mxu0 %v193
  %241 = vmatprep.subr.mxu0 %v192
  %242 = vmatpush1.msra.mxu0 %v191
  %243 = vmatprep.subr.mxu0 0.0
  %244 = vmatpush2.msra.mxu0 0.0
  %245 = vmatprep.subr.mxu0 0.0
  %246 = vmatpush2.msra.mxu0 0.0
  %247 = vmatprep.subr.mxu0 0.0
  %248 = vmatpush2.msra.mxu0 0.0
  %249 = vmatprep.subr.mxu0 0.0
  %250 = vmatpush2.msra.mxu0 0.0
  %251 = vmatprep.subr.mxu0 0.0
  %252 = vmatpush2.msra.mxu0 0.0
  %253 = vmatprep.subr.mxu0 0.0
  %254 = vmatpush2.msra.mxu0 0.0
  %255 = vmatprep.subr.mxu0 0.0
  %256 = vmatpush2.msra.mxu0 0.0
  %257 = vmatprep.subr.mxu0 0.0
  %258 = vmatpush2.msra.mxu0 0.0
  %259 = vmatprep.subr.mxu0 0.0
  %260 = vmatpush2.msra.mxu0 0.0
  %261 = vmatprep.subr.mxu0 0.0
  %262 = vmatpush2.msra.mxu0 0.0
  %263 = vmatprep.subr.mxu0 0.0
  %264 = vmatpush2.msra.mxu0 0.0
  %265 = vmatprep.subr.mxu0 0.0
  %266 = vmatpush2.msra.mxu0 0.0
  %267 = vmatprep.subr.mxu0 0.0
  %268 = vmatpush2.msra.mxu0 0.0
  %269 = vmatprep.subr.mxu0 0.0
  %270 = vmatpush2.msra.mxu0 0.0
  %271 = vmatprep.subr.mxu0 0.0
  %272 = vmatpush2.msra.mxu0 0.0
  %273 = vmatprep.subr.mxu0 0.0
  %274 = vmatpush2.msra.mxu0 0.0
  %275 = vmatprep.mubr.f32.mxu0 0.0
  %276 = vmatmul.mubr.f32.gmra.mxu0 %v209
  %v277 = vpop.f32.mrf.mxu0
  %v278 = vadd.f32 0.0, %v277
  %v279 = vpop.f32.mrf.mxu0
  %v280 = vadd.f32 0.0, %v279
  %281 = vdwg.mxu0
  %v282 = vld [vmem:[#allocation2] sm:$0xff]
  %v283 = vadd.f32 %v282, %v278
  %s284 = scalar_lea.vmem [#allocation2], 56
  %v285 = vld [vmem:[%s284] sm:$0xff]
  %v287 = vrot.slane %v285, 4
  %v289 = vadd.f32 %v287, %v280
  %v290 = vld [vmem:[#allocation4] sm:$0xf]
  %v291 = vxor.u32 %v283, 2147483648
  %v292 = vmul.f32 %v291, 1.442695
  %v293 = vpow.pop %v292
  %v294 = vadd.f32 %v293, 1.0
  %v295 = vrcp.pop %v294
  %v296 = vmul.f32 1.0, %v295
  %v297 = vtanh.pop %v283
  %299 = vrot.lane.b32.xlu0 %v290, 32
  %v300 = vpop.permute.xlu0 %299
  %v302 = vmul.f32 %v296, %v300
  %304 = vrot.lane.b32.xlu0 %v297, 64
  %v305 = vpop.permute.xlu0 %304
  %v307 = vmul.f32 %v296, %v305
  %309 = vrot.lane.b32.xlu0 %v307, 32
  %v310 = vpop.permute.xlu0 %309
  %v312 = vadd.f32 %v302, %v310
  %v313 = vtanh.pop %v312
  %315 = vrot.lane.b32.xlu0 %v313, 64
  %v316 = vpop.permute.xlu0 %315
  %v318 = vmul.f32 %v296, %v316
  %v319 = vxor.u32 %v289, 2147483648
  %v320 = vmul.f32 %v319, 1.442695
  %v321 = vpow.pop %v320
  %v322 = vadd.f32 %v321, 1.0
  %v323 = vrcp.pop %v322
  %v324 = vmul.f32 1.0, %v323
  %v325 = vtanh.pop %v289
  %v326 = vmul.f32 %v324, %v290
  %328 = vrot.lane.b32.xlu0 %v325, 64
  %v329 = vpop.permute.xlu0 %328
  %v331 = vmul.f32 %v324, %v329
  %333 = vrot.lane.b32.xlu0 %v331, 32
  %v334 = vpop.permute.xlu0 %333
  %v336 = vadd.f32 %v326, %v334
  %v337 = vtanh.pop %v336
  %339 = vrot.lane.b32.xlu0 %v337, 64
  %v340 = vpop.permute.xlu0 %339
  %v342 = vmul.f32 %v324, %v340
  %344 = vrot.lane.b32.xlu0 %v318, 32
  %v345 = vpop.permute.xlu0 %344
  %vm347 = vcmask 257024
  %348 = vst.msk [vmem:[#allocation3] sm:$0xf] %vm347, %v345
  %350 = vrot.lane.b32.xlu0 %v342, 64
  %v351 = vpop.permute.xlu0 %350
  %vm353 = vcmask 519424
  %354 = vst.msk [vmem:[#allocation3] sm:$0xf] %vm353, %v351
  %356 = vrot.lane.b32.xlu0 %v312, 96
  %v357 = vpop.permute.xlu0 %356
  %359 = vst.msk [vmem:[#allocation4] sm:$0xf] %vm347, %v357
  %360 = vst.msk [vmem:[#allocation4] sm:$0xf] %vm353, %v336
  %361 = vst.msk [vmem:[%s4] sm:$0xf] %vm347, %v345
  %s362 = scalar_lea.vmem %s4, 28
  %363 = vst.msk [vmem:[%s362] sm:$0xf] %vm353, %v351
  %v364 = vld [vmem:[#allocation3] sm:$0xf]
  %v365 = vld [vmem:[%s2] sm:$0xff]
  %v366 = vld [vmem:[%s2 + $0x8] sm:$0xff]
  %v367 = vld [vmem:[%s2 + $0x10] sm:$0xff]
  %v368 = vld [vmem:[%s2 + $0x18] sm:$0xff]
  %v369 = vld [vmem:[%s2 + $0x20] sm:$0xff]
  %v370 = vld [vmem:[%s2 + $0x28] sm:$0xff]
  %v371 = vld [vmem:[%s2 + $0x30] sm:$0xff]
  %v372 = vld [vmem:[%s2 + $0x38] sm:$0xff]
  %v373 = vld [vmem:[%s2 + $0x40] sm:$0xff]
  %v374 = vld [vmem:[%s2 + $0x48] sm:$0xff]
  %v375 = vld [vmem:[%s2 + $0x50] sm:$0xff]
  %v376 = vld [vmem:[%s2 + $0x58] sm:$0xff]
  %v377 = vld [vmem:[%s2 + $0x60] sm:$0xff]
  %v378 = vld [vmem:[%s2 + $0x68] sm:$0xff]
  %v379 = vld [vmem:[%s2 + $0x70] sm:$0xff]
  %v380 = vld [vmem:[%s2 + $0x78] sm:$0xff]
  %v382 = vsel %vm207, %v364, 0
  %384 = vmatprep.subr.mxu0 0.0
  %385 = vmatpush1.msra.mxu0 0.0
  %386 = vmatprep.subr.mxu0 0.0
  %387 = vmatpush1.msra.mxu0 0.0
  %388 = vmatprep.subr.mxu0 0.0
  %389 = vmatpush1.msra.mxu0 0.0
  %390 = vmatprep.subr.mxu0 0.0
  %391 = vmatpush1.msra.mxu0 0.0
  %392 = vmatprep.subr.mxu0 0.0
  %393 = vmatpush1.msra.mxu0 0.0
  %394 = vmatprep.subr.mxu0 0.0
  %395 = vmatpush1.msra.mxu0 0.0
  %396 = vmatprep.subr.mxu0 0.0
  %397 = vmatpush1.msra.mxu0 0.0
  %398 = vmatprep.subr.mxu0 0.0
  %399 = vmatpush1.msra.mxu0 0.0
  %400 = vmatprep.subr.mxu0 %v380
  %401 = vmatpush1.msra.mxu0 %v379
  %402 = vmatprep.subr.mxu0 %v378
  %403 = vmatpush1.msra.mxu0 %v377
  %404 = vmatprep.subr.mxu0 %v376
  %405 = vmatpush1.msra.mxu0 %v375
  %406 = vmatprep.subr.mxu0 %v374
  %407 = vmatpush1.msra.mxu0 %v373
  %408 = vmatprep.subr.mxu0 %v372
  %409 = vmatpush1.msra.mxu0 %v371
  %410 = vmatprep.subr.mxu0 %v370
  %411 = vmatpush1.msra.mxu0 %v369
  %412 = vmatprep.subr.mxu0 %v368
  %413 = vmatpush1.msra.mxu0 %v367
  %414 = vmatprep.subr.mxu0 %v366
  %415 = vmatpush1.msra.mxu0 %v365
  %416 = vmatprep.subr.mxu0 0.0
  %417 = vmatpush2.msra.mxu0 0.0
  %418 = vmatprep.subr.mxu0 0.0
  %419 = vmatpush2.msra.mxu0 0.0
  %420 = vmatprep.subr.mxu0 0.0
  %421 = vmatpush2.msra.mxu0 0.0
  %422 = vmatprep.subr.mxu0 0.0
  %423 = vmatpush2.msra.mxu0 0.0
  %424 = vmatprep.subr.mxu0 0.0
  %425 = vmatpush2.msra.mxu0 0.0
  %426 = vmatprep.subr.mxu0 0.0
  %427 = vmatpush2.msra.mxu0 0.0
  %428 = vmatprep.subr.mxu0 0.0
  %429 = vmatpush2.msra.mxu0 0.0
  %430 = vmatprep.subr.mxu0 0.0
  %431 = vmatpush2.msra.mxu0 0.0
  %432 = vmatprep.subr.mxu0 0.0
  %433 = vmatpush2.msra.mxu0 0.0
  %434 = vmatprep.subr.mxu0 0.0
  %435 = vmatpush2.msra.mxu0 0.0
  %436 = vmatprep.subr.mxu0 0.0
  %437 = vmatpush2.msra.mxu0 0.0
  %438 = vmatprep.subr.mxu0 0.0
  %439 = vmatpush2.msra.mxu0 0.0
  %440 = vmatprep.subr.mxu0 0.0
  %441 = vmatpush2.msra.mxu0 0.0
  %442 = vmatprep.subr.mxu0 0.0
  %443 = vmatpush2.msra.mxu0 0.0
  %444 = vmatprep.subr.mxu0 0.0
  %445 = vmatpush2.msra.mxu0 0.0
  %446 = vmatprep.subr.mxu0 0.0
  %447 = vmatpush2.msra.mxu0 0.0
  %448 = vmatprep.mubr.f32.mxu0 0.0
  %449 = vmatmul.mubr.f32.gmra.mxu0 %v382
  %v450 = vpop.f32.mrf.mxu0
  %v451 = vadd.f32 0.0, %v450
  %v452 = vpop.f32.mrf.mxu0
  %v453 = vadd.f32 0.0, %v452
  %454 = vdwg.mxu0
  %s455 = scalar_lea.vmem [#allocation2], 8
  %v456 = vld [vmem:[%s455] sm:$0xff]
  %v457 = vadd.f32 %v456, %v451
  %s458 = scalar_lea.vmem [#allocation2], 48
  %v459 = vld [vmem:[%s458] sm:$0xff]
  %v461 = vrot.slane %v459, 4
  %v463 = vadd.f32 %v461, %v453
  %v464 = vld [vmem:[#allocation4] sm:$0xf]
  %v465 = vxor.u32 %v457, 2147483648
  %v466 = vmul.f32 %v465, 1.442695
  %v467 = vpow.pop %v466
  %v468 = vadd.f32 %v467, 1.0
  %v469 = vrcp.pop %v468
  %v470 = vmul.f32 1.0, %v469
  %v471 = vtanh.pop %v457
  %473 = vrot.lane.b32.xlu0 %v464, 32
  %v474 = vpop.permute.xlu0 %473
  %v476 = vmul.f32 %v470, %v474
  %478 = vrot.lane.b32.xlu0 %v471, 64
  %v479 = vpop.permute.xlu0 %478
  %v481 = vmul.f32 %v470, %v479
  %483 = vrot.lane.b32.xlu0 %v481, 32
  %v484 = vpop.permute.xlu0 %483
  %v486 = vadd.f32 %v476, %v484
  %v487 = vtanh.pop %v486
  %489 = vrot.lane.b32.xlu0 %v487, 64
  %v490 = vpop.permute.xlu0 %489
  %v492 = vmul.f32 %v470, %v490
  %v493 = vxor.u32 %v463, 2147483648
  %v494 = vmul.f32 %v493, 1.442695
  %v495 = vpow.pop %v494
  %v496 = vadd.f32 %v495, 1.0
  %v497 = vrcp.pop %v496
  %v498 = vmul.f32 1.0, %v497
  %v499 = vtanh.pop %v463
  %v500 = vmul.f32 %v498, %v464
  %502 = vrot.lane.b32.xlu0 %v499, 64
  %v503 = vpop.permute.xlu0 %502
  %v505 = vmul.f32 %v498, %v503
  %507 = vrot.lane.b32.xlu0 %v505, 32
  %v508 = vpop.permute.xlu0 %507
  %v510 = vadd.f32 %v500, %v508
  %v511 = vtanh.pop %v510
  %513 = vrot.lane.b32.xlu0 %v511, 64
  %v514 = vpop.permute.xlu0 %513
  %v516 = vmul.f32 %v498, %v514
  %518 = vrot.lane.b32.xlu0 %v492, 32
  %v519 = vpop.permute.xlu0 %518
  %521 = vst.msk [vmem:[#allocation3] sm:$0xf] %vm347, %v519
  %523 = vrot.lane.b32.xlu0 %v516, 64
  %v524 = vpop.permute.xlu0 %523
  %526 = vst.msk [vmem:[#allocation3] sm:$0xf] %vm353, %v524
  %528 = vrot.lane.b32.xlu0 %v486, 96
  %v529 = vpop.permute.xlu0 %528
  %531 = vst.msk [vmem:[#allocation4] sm:$0xf] %vm347, %v529
  %532 = vst.msk [vmem:[#allocation4] sm:$0xf] %vm353, %v510
  %s533 = scalar_lea.vmem %s4, 4
  %534 = vst.msk [vmem:[%s533] sm:$0xf] %vm347, %v519
  %s535 = scalar_lea.vmem %s4, 24
  %536 = vst.msk [vmem:[%s535] sm:$0xf] %vm353, %v524
  %v537 = vld [vmem:[#allocation3] sm:$0xf]
  %v538 = vld [vmem:[%s2] sm:$0xff]
  %v539 = vld [vmem:[%s2 + $0x8] sm:$0xff]
  %v540 = vld [vmem:[%s2 + $0x10] sm:$0xff]
  %v541 = vld [vmem:[%s2 + $0x18] sm:$0xff]
  %v542 = vld [vmem:[%s2 + $0x20] sm:$0xff]
  %v543 = vld [vmem:[%s2 + $0x28] sm:$0xff]
  %v544 = vld [vmem:[%s2 + $0x30] sm:$0xff]
  %v545 = vld [vmem:[%s2 + $0x38] sm:$0xff]
  %v546 = vld [vmem:[%s2 + $0x40] sm:$0xff]
  %v547 = vld [vmem:[%s2 + $0x48] sm:$0xff]
  %v548 = vld [vmem:[%s2 + $0x50] sm:$0xff]
  %v549 = vld [vmem:[%s2 + $0x58] sm:$0xff]
  %v550 = vld [vmem:[%s2 + $0x60] sm:$0xff]
  %v551 = vld [vmem:[%s2 + $0x68] sm:$0xff]
  %v552 = vld [vmem:[%s2 + $0x70] sm:$0xff]
  %v553 = vld [vmem:[%s2 + $0x78] sm:$0xff]
  %v555 = vsel %vm207, %v537, 0
  %557 = vmatprep.subr.mxu0 0.0
  %558 = vmatpush1.msra.mxu0 0.0
  %559 = vmatprep.subr.mxu0 0.0
  %560 = vmatpush1.msra.mxu0 0.0
  %561 = vmatprep.subr.mxu0 0.0
  %562 = vmatpush1.msra.mxu0 0.0
  %563 = vmatprep.subr.mxu0 0.0
  %564 = vmatpush1.msra.mxu0 0.0
  %565 = vmatprep.subr.mxu0 0.0
  %566 = vmatpush1.msra.mxu0 0.0
  %567 = vmatprep.subr.mxu0 0.0
  %568 = vmatpush1.msra.mxu0 0.0
  %569 = vmatprep.subr.mxu0 0.0
  %570 = vmatpush1.msra.mxu0 0.0
  %571 = vmatprep.subr.mxu0 0.0
  %572 = vmatpush1.msra.mxu0 0.0
  %573 = vmatprep.subr.mxu0 %v553
  %574 = vmatpush1.msra.mxu0 %v552
  %575 = vmatprep.subr.mxu0 %v551
  %576 = vmatpush1.msra.mxu0 %v550
  %577 = vmatprep.subr.mxu0 %v549
  %578 = vmatpush1.msra.mxu0 %v548
  %579 = vmatprep.subr.mxu0 %v547
  %580 = vmatpush1.msra.mxu0 %v546
  %581 = vmatprep.subr.mxu0 %v545
  %582 = vmatpush1.msra.mxu0 %v544
  %583 = vmatprep.subr.mxu0 %v543
  %584 = vmatpush1.msra.mxu0 %v542
  %585 = vmatprep.subr.mxu0 %v541
  %586 = vmatpush1.msra.mxu0 %v540
  %587 = vmatprep.subr.mxu0 %v539
  %588 = vmatpush1.msra.mxu0 %v538
  %589 = vmatprep.subr.mxu0 0.0
  %590 = vmatpush2.msra.mxu0 0.0
  %591 = vmatprep.subr.mxu0 0.0
  %592 = vmatpush2.msra.mxu0 0.0
  %593 = vmatprep.subr.mxu0 0.0
  %594 = vmatpush2.msra.mxu0 0.0
  %595 = vmatprep.subr.mxu0 0.0
  %596 = vmatpush2.msra.mxu0 0.0
  %597 = vmatprep.subr.mxu0 0.0
  %598 = vmatpush2.msra.mxu0 0.0
  %599 = vmatprep.subr.mxu0 0.0
  %600 = vmatpush2.msra.mxu0 0.0
  %601 = vmatprep.subr.mxu0 0.0
  %602 = vmatpush2.msra.mxu0 0.0
  %603 = vmatprep.subr.mxu0 0.0
  %604 = vmatpush2.msra.mxu0 0.0
  %605 = vmatprep.subr.mxu0 0.0
  %606 = vmatpush2.msra.mxu0 0.0
  %607 = vmatprep.subr.mxu0 0.0
  %608 = vmatpush2.msra.mxu0 0.0
  %609 = vmatprep.subr.mxu0 0.0
  %610 = vmatpush2.msra.mxu0 0.0
  %611 = vmatprep.subr.mxu0 0.0
  %612 = vmatpush2.msra.mxu0 0.0
  %613 = vmatprep.subr.mxu0 0.0
  %614 = vmatpush2.msra.mxu0 0.0
  %615 = vmatprep.subr.mxu0 0.0
  %616 = vmatpush2.msra.mxu0 0.0
  %617 = vmatprep.subr.mxu0 0.0
  %618 = vmatpush2.msra.mxu0 0.0
  %619 = vmatprep.subr.mxu0 0.0
  %620 = vmatpush2.msra.mxu0 0.0
  %621 = vmatprep.mubr.f32.mxu0 0.0
  %622 = vmatmul.mubr.f32.gmra.mxu0 %v555
  %v623 = vpop.f32.mrf.mxu0
  %v624 = vadd.f32 0.0, %v623
  %v625 = vpop.f32.mrf.mxu0
  %v626 = vadd.f32 0.0, %v625
  %627 = vdwg.mxu0
  %s628 = scalar_lea.vmem [#allocation2], 16
  %v629 = vld [vmem:[%s628] sm:$0xff]
  %v630 = vadd.f32 %v629, %v624
  %s631 = scalar_lea.vmem [#allocation2], 40
  %v632 = vld [vmem:[%s631] sm:$0xff]
  %v634 = vrot.slane %v632, 4
  %v636 = vadd.f32 %v634, %v626
  %v637 = vld [vmem:[#allocation4] sm:$0xf]
  %v638 = vxor.u32 %v630, 2147483648
  %v639 = vmul.f32 %v638, 1.442695
  %v640 = vpow.pop %v639
  %v641 = vadd.f32 %v640, 1.0
  %v642 = vrcp.pop %v641
  %v643 = vmul.f32 1.0, %v642
  %v644 = vtanh.pop %v630
  %646 = vrot.lane.b32.xlu0 %v637, 32
  %v647 = vpop.permute.xlu0 %646
  %v649 = vmul.f32 %v643, %v647
  %651 = vrot.lane.b32.xlu0 %v644, 64
  %v652 = vpop.permute.xlu0 %651
  %v654 = vmul.f32 %v643, %v652
  %656 = vrot.lane.b32.xlu0 %v654, 32
  %v657 = vpop.permute.xlu0 %656
  %v659 = vadd.f32 %v649, %v657
  %v660 = vtanh.pop %v659
  %662 = vrot.lane.b32.xlu0 %v660, 64
  %v663 = vpop.permute.xlu0 %662
  %v665 = vmul.f32 %v643, %v663
  %v666 = vxor.u32 %v636, 2147483648
  %v667 = vmul.f32 %v666, 1.442695
  %v668 = vpow.pop %v667
  %v669 = vadd.f32 %v668, 1.0
  %v670 = vrcp.pop %v669
  %v671 = vmul.f32 1.0, %v670
  %v672 = vtanh.pop %v636
  %v673 = vmul.f32 %v671, %v637
  %675 = vrot.lane.b32.xlu0 %v672, 64
  %v676 = vpop.permute.xlu0 %675
  %v678 = vmul.f32 %v671, %v676
  %680 = vrot.lane.b32.xlu0 %v678, 32
  %v681 = vpop.permute.xlu0 %680
  %v683 = vadd.f32 %v673, %v681
  %v684 = vtanh.pop %v683
  %686 = vrot.lane.b32.xlu0 %v684, 64
  %v687 = vpop.permute.xlu0 %686
  %v689 = vmul.f32 %v671, %v687
  %691 = vrot.lane.b32.xlu0 %v665, 32
  %v692 = vpop.permute.xlu0 %691
  %694 = vst.msk [vmem:[#allocation3] sm:$0xf] %vm347, %v692
  %696 = vrot.lane.b32.xlu0 %v689, 64
  %v697 = vpop.permute.xlu0 %696
  %699 = vst.msk [vmem:[#allocation3] sm:$0xf] %vm353, %v697
  %701 = vrot.lane.b32.xlu0 %v659, 96
  %v702 = vpop.permute.xlu0 %701
  %704 = vst.msk [vmem:[#allocation4] sm:$0xf] %vm347, %v702
  %705 = vst.msk [vmem:[#allocation4] sm:$0xf] %vm353, %v683
  %s706 = scalar_lea.vmem %s4, 8
  %707 = vst.msk [vmem:[%s706] sm:$0xf] %vm347, %v692
  %s708 = scalar_lea.vmem %s4, 20
  %709 = vst.msk [vmem:[%s708] sm:$0xf] %vm353, %v697
  %v710 = vld [vmem:[#allocation3] sm:$0xf]
  %v711 = vld [vmem:[%s2] sm:$0xff]
  %v712 = vld [vmem:[%s2 + $0x8] sm:$0xff]
  %v713 = vld [vmem:[%s2 + $0x10] sm:$0xff]
  %v714 = vld [vmem:[%s2 + $0x18] sm:$0xff]
  %v715 = vld [vmem:[%s2 + $0x20] sm:$0xff]
  %v716 = vld [vmem:[%s2 + $0x28] sm:$0xff]
  %v717 = vld [vmem:[%s2 + $0x30] sm:$0xff]
  %v718 = vld [vmem:[%s2 + $0x38] sm:$0xff]
  %v719 = vld [vmem:[%s2 + $0x40] sm:$0xff]
  %v720 = vld [vmem:[%s2 + $0x48] sm:$0xff]
  %v721 = vld [vmem:[%s2 + $0x50] sm:$0xff]
  %v722 = vld [vmem:[%s2 + $0x58] sm:$0xff]
  %v723 = vld [vmem:[%s2 + $0x60] sm:$0xff]
  %v724 = vld [vmem:[%s2 + $0x68] sm:$0xff]
  %v725 = vld [vmem:[%s2 + $0x70] sm:$0xff]
  %v726 = vld [vmem:[%s2 + $0x78] sm:$0xff]
  %v728 = vsel %vm207, %v710, 0
  %730 = vmatprep.subr.mxu0 0.0
  %731 = vmatpush1.msra.mxu0 0.0
  %732 = vmatprep.subr.mxu0 0.0
  %733 = vmatpush1.msra.mxu0 0.0
  %734 = vmatprep.subr.mxu0 0.0
  %735 = vmatpush1.msra.mxu0 0.0
  %736 = vmatprep.subr.mxu0 0.0
  %737 = vmatpush1.msra.mxu0 0.0
  %738 = vmatprep.subr.mxu0 0.0
  %739 = vmatpush1.msra.mxu0 0.0
  %740 = vmatprep.subr.mxu0 0.0
  %741 = vmatpush1.msra.mxu0 0.0
  %742 = vmatprep.subr.mxu0 0.0
  %743 = vmatpush1.msra.mxu0 0.0
  %744 = vmatprep.subr.mxu0 0.0
  %745 = vmatpush1.msra.mxu0 0.0
  %746 = vmatprep.subr.mxu0 %v726
  %747 = vmatpush1.msra.mxu0 %v725
  %748 = vmatprep.subr.mxu0 %v724
  %749 = vmatpush1.msra.mxu0 %v723
  %750 = vmatprep.subr.mxu0 %v722
  %751 = vmatpush1.msra.mxu0 %v721
  %752 = vmatprep.subr.mxu0 %v720
  %753 = vmatpush1.msra.mxu0 %v719
  %754 = vmatprep.subr.mxu0 %v718
  %755 = vmatpush1.msra.mxu0 %v717
  %756 = vmatprep.subr.mxu0 %v716
  %757 = vmatpush1.msra.mxu0 %v715
  %758 = vmatprep.subr.mxu0 %v714
  %759 = vmatpush1.msra.mxu0 %v713
  %760 = vmatprep.subr.mxu0 %v712
  %761 = vmatpush1.msra.mxu0 %v711
  %762 = vmatprep.subr.mxu0 0.0
  %763 = vmatpush2.msra.mxu0 0.0
  %764 = vmatprep.subr.mxu0 0.0
  %765 = vmatpush2.msra.mxu0 0.0
  %766 = vmatprep.subr.mxu0 0.0
  %767 = vmatpush2.msra.mxu0 0.0
  %768 = vmatprep.subr.mxu0 0.0
  %769 = vmatpush2.msra.mxu0 0.0
  %770 = vmatprep.subr.mxu0 0.0
  %771 = vmatpush2.msra.mxu0 0.0
  %772 = vmatprep.subr.mxu0 0.0
  %773 = vmatpush2.msra.mxu0 0.0
  %774 = vmatprep.subr.mxu0 0.0
  %775 = vmatpush2.msra.mxu0 0.0
  %776 = vmatprep.subr.mxu0 0.0
  %777 = vmatpush2.msra.mxu0 0.0
  %778 = vmatprep.subr.mxu0 0.0
  %779 = vmatpush2.msra.mxu0 0.0
  %780 = vmatprep.subr.mxu0 0.0
  %781 = vmatpush2.msra.mxu0 0.0
  %782 = vmatprep.subr.mxu0 0.0
  %783 = vmatpush2.msra.mxu0 0.0
  %784 = vmatprep.subr.mxu0 0.0
  %785 = vmatpush2.msra.mxu0 0.0
  %786 = vmatprep.subr.mxu0 0.0
  %787 = vmatpush2.msra.mxu0 0.0
  %788 = vmatprep.subr.mxu0 0.0
  %789 = vmatpush2.msra.mxu0 0.0
  %790 = vmatprep.subr.mxu0 0.0
  %791 = vmatpush2.msra.mxu0 0.0
  %792 = vmatprep.subr.mxu0 0.0
  %793 = vmatpush2.msra.mxu0 0.0
  %794 = vmatprep.mubr.f32.mxu0 0.0
  %795 = vmatmul.mubr.f32.gmra.mxu0 %v728
  %v796 = vpop.f32.mrf.mxu0
  %v797 = vadd.f32 0.0, %v796
  %v798 = vpop.f32.mrf.mxu0
  %v799 = vadd.f32 0.0, %v798
  %800 = vdwg.mxu0
  %s801 = scalar_lea.vmem [#allocation2], 24
  %v802 = vld [vmem:[%s801] sm:$0xff]
  %v803 = vadd.f32 %v802, %v797
  %s804 = scalar_lea.vmem [#allocation2], 32
  %v805 = vld [vmem:[%s804] sm:$0xff]
  %v807 = vrot.slane %v805, 4
  %v809 = vadd.f32 %v807, %v799
  %v810 = vld [vmem:[#allocation4] sm:$0xf]
  %v811 = vxor.u32 %v803, 2147483648
  %v812 = vmul.f32 %v811, 1.442695
  %v813 = vpow.pop %v812
  %v814 = vadd.f32 %v813, 1.0
  %v815 = vrcp.pop %v814
  %v816 = vmul.f32 1.0, %v815
  %v817 = vtanh.pop %v803
  %819 = vrot.lane.b32.xlu0 %v810, 32
  %v820 = vpop.permute.xlu0 %819
  %v822 = vmul.f32 %v816, %v820
  %824 = vrot.lane.b32.xlu0 %v817, 64
  %v825 = vpop.permute.xlu0 %824
  %v827 = vmul.f32 %v816, %v825
  %829 = vrot.lane.b32.xlu0 %v827, 32
  %v830 = vpop.permute.xlu0 %829
  %v832 = vadd.f32 %v822, %v830
  %v833 = vtanh.pop %v832
  %835 = vrot.lane.b32.xlu0 %v833, 64
  %v836 = vpop.permute.xlu0 %835
  %v838 = vmul.f32 %v816, %v836
  %v839 = vxor.u32 %v809, 2147483648
  %v840 = vmul.f32 %v839, 1.442695
  %v841 = vpow.pop %v840
  %v842 = vadd.f32 %v841, 1.0
  %v843 = vrcp.pop %v842
  %v844 = vmul.f32 1.0, %v843
  %v845 = vtanh.pop %v809
  %v846 = vmul.f32 %v844, %v810
  %848 = vrot.lane.b32.xlu0 %v845, 64
  %v849 = vpop.permute.xlu0 %848
  %v851 = vmul.f32 %v844, %v849
  %853 = vrot.lane.b32.xlu0 %v851, 32
  %v854 = vpop.permute.xlu0 %853
  %v856 = vadd.f32 %v846, %v854
  %v857 = vtanh.pop %v856
  %859 = vrot.lane.b32.xlu0 %v857, 64
  %v860 = vpop.permute.xlu0 %859
  %v862 = vmul.f32 %v844, %v860
  %864 = vrot.lane.b32.xlu0 %v838, 32
  %v865 = vpop.permute.xlu0 %864
  %867 = vst.msk [vmem:[#allocation3] sm:$0xf] %vm347, %v865
  %869 = vrot.lane.b32.xlu0 %v862, 64
  %v870 = vpop.permute.xlu0 %869
  %872 = vst.msk [vmem:[#allocation3] sm:$0xf] %vm353, %v870
  %874 = vrot.lane.b32.xlu0 %v832, 96
  %v875 = vpop.permute.xlu0 %874
  %877 = vst.msk [vmem:[#allocation4] sm:$0xf] %vm347, %v875
  %878 = vst.msk [vmem:[#allocation4] sm:$0xf] %vm353, %v856
  %s879 = scalar_lea.vmem %s4, 12
  %880 = vst.msk [vmem:[%s879] sm:$0xf] %vm347, %v865
  %s881 = scalar_lea.vmem %s4, 16
  %882 = vst.msk [vmem:[%s881] sm:$0xf] %vm353, %v870
  %v883 = vld [vmem:[#allocation3] sm:$0xf]
  %v884 = vld [vmem:[%s2] sm:$0xff]
  %v885 = vld [vmem:[%s2 + $0x8] sm:$0xff]
  %v886 = vld [vmem:[%s2 + $0x10] sm:$0xff]
  %v887 = vld [vmem:[%s2 + $0x18] sm:$0xff]
  %v888 = vld [vmem:[%s2 + $0x20] sm:$0xff]
  %v889 = vld [vmem:[%s2 + $0x28] sm:$0xff]
  %v890 = vld [vmem:[%s2 + $0x30] sm:$0xff]
  %v891 = vld [vmem:[%s2 + $0x38] sm:$0xff]
  %v892 = vld [vmem:[%s2 + $0x40] sm:$0xff]
  %v893 = vld [vmem:[%s2 + $0x48] sm:$0xff]
  %v894 = vld [vmem:[%s2 + $0x50] sm:$0xff]
  %v895 = vld [vmem:[%s2 + $0x58] sm:$0xff]
  %v896 = vld [vmem:[%s2 + $0x60] sm:$0xff]
  %v897 = vld [vmem:[%s2 + $0x68] sm:$0xff]
  %v898 = vld [vmem:[%s2 + $0x70] sm:$0xff]
  %v899 = vld [vmem:[%s2 + $0x78] sm:$0xff]
  %v901 = vsel %vm207, %v883, 0
  %903 = vmatprep.subr.mxu0 0.0
  %904 = vmatpush1.msra.mxu0 0.0
  %905 = vmatprep.subr.mxu0 0.0
  %906 = vmatpush1.msra.mxu0 0.0
  %907 = vmatprep.subr.mxu0 0.0
  %908 = vmatpush1.msra.mxu0 0.0
  %909 = vmatprep.subr.mxu0 0.0
  %910 = vmatpush1.msra.mxu0 0.0
  %911 = vmatprep.subr.mxu0 0.0
  %912 = vmatpush1.msra.mxu0 0.0
  %913 = vmatprep.subr.mxu0 0.0
  %914 = vmatpush1.msra.mxu0 0.0
  %915 = vmatprep.subr.mxu0 0.0
  %916 = vmatpush1.msra.mxu0 0.0
  %917 = vmatprep.subr.mxu0 0.0
  %918 = vmatpush1.msra.mxu0 0.0
  %919 = vmatprep.subr.mxu0 %v899
  %920 = vmatpush1.msra.mxu0 %v898
  %921 = vmatprep.subr.mxu0 %v897
  %922 = vmatpush1.msra.mxu0 %v896
  %923 = vmatprep.subr.mxu0 %v895
  %924 = vmatpush1.msra.mxu0 %v894
  %925 = vmatprep.subr.mxu0 %v893
  %926 = vmatpush1.msra.mxu0 %v892
  %927 = vmatprep.subr.mxu0 %v891
  %928 = vmatpush1.msra.mxu0 %v890
  %929 = vmatprep.subr.mxu0 %v889
  %930 = vmatpush1.msra.mxu0 %v888
  %931 = vmatprep.subr.mxu0 %v887
  %932 = vmatpush1.msra.mxu0 %v886
  %933 = vmatprep.subr.mxu0 %v885
  %934 = vmatpush1.msra.mxu0 %v884
  %935 = vmatprep.subr.mxu0 0.0
  %936 = vmatpush2.msra.mxu0 0.0
  %937 = vmatprep.subr.mxu0 0.0
  %938 = vmatpush2.msra.mxu0 0.0
  %939 = vmatprep.subr.mxu0 0.0
  %940 = vmatpush2.msra.mxu0 0.0
  %941 = vmatprep.subr.mxu0 0.0
  %942 = vmatpush2.msra.mxu0 0.0
  %943 = vmatprep.subr.mxu0 0.0
  %944 = vmatpush2.msra.mxu0 0.0
  %945 = vmatprep.subr.mxu0 0.0
  %946 = vmatpush2.msra.mxu0 0.0
  %947 = vmatprep.subr.mxu0 0.0
  %948 = vmatpush2.msra.mxu0 0.0
  %949 = vmatprep.subr.mxu0 0.0
  %950 = vmatpush2.msra.mxu0 0.0
  %951 = vmatprep.subr.mxu0 0.0
  %952 = vmatpush2.msra.mxu0 0.0
  %953 = vmatprep.subr.mxu0 0.0
  %954 = vmatpush2.msra.mxu0 0.0
  %955 = vmatprep.subr.mxu0 0.0
  %956 = vmatpush2.msra.mxu0 0.0
  %957 = vmatprep.subr.mxu0 0.0
  %958 = vmatpush2.msra.mxu0 0.0
  %959 = vmatprep.subr.mxu0 0.0
  %960 = vmatpush2.msra.mxu0 0.0
  %961 = vmatprep.subr.mxu0 0.0
  %962 = vmatpush2.msra.mxu0 0.0
  %963 = vmatprep.subr.mxu0 0.0
  %964 = vmatpush2.msra.mxu0 0.0
  %965 = vmatprep.subr.mxu0 0.0
  %966 = vmatpush2.msra.mxu0 0.0
  %967 = vmatprep.mubr.f32.mxu0 0.0
  %968 = vmatmul.mubr.f32.gmra.mxu0 %v901
  %v969 = vpop.f32.mrf.mxu0
  %v970 = vadd.f32 0.0, %v969
  %v971 = vpop.f32.mrf.mxu0
  %v972 = vadd.f32 0.0, %v971
  %973 = vdwg.mxu0
  %v974 = vld [vmem:[%s804] sm:$0xff]
  %v975 = vadd.f32 %v974, %v970
  %v976 = vld [vmem:[%s801] sm:$0xff]
  %v978 = vrot.slane %v976, 4
  %v980 = vadd.f32 %v978, %v972
  %v981 = vld [vmem:[#allocation4] sm:$0xf]
  %v982 = vxor.u32 %v975, 2147483648
  %v983 = vmul.f32 %v982, 1.442695
  %v984 = vpow.pop %v983
  %v985 = vadd.f32 %v984, 1.0
  %v986 = vrcp.pop %v985
  %v987 = vmul.f32 1.0, %v986
  %v988 = vtanh.pop %v975
  %990 = vrot.lane.b32.xlu0 %v981, 32
  %v991 = vpop.permute.xlu0 %990
  %v993 = vmul.f32 %v987, %v991
  %995 = vrot.lane.b32.xlu0 %v988, 64
  %v996 = vpop.permute.xlu0 %995
  %v998 = vmul.f32 %v987, %v996
  %1000 = vrot.lane.b32.xlu0 %v998, 32
  %v1001 = vpop.permute.xlu0 %1000
  %v1003 = vadd.f32 %v993, %v1001
  %v1004 = vtanh.pop %v1003
  %1006 = vrot.lane.b32.xlu0 %v1004, 64
  %v1007 = vpop.permute.xlu0 %1006
  %v1009 = vmul.f32 %v987, %v1007
  %v1010 = vxor.u32 %v980, 2147483648
  %v1011 = vmul.f32 %v1010, 1.442695
  %v1012 = vpow.pop %v1011
  %v1013 = vadd.f32 %v1012, 1.0
  %v1014 = vrcp.pop %v1013
  %v1015 = vmul.f32 1.0, %v1014
  %v1016 = vtanh.pop %v980
  %v1017 = vmul.f32 %v1015, %v981
  %1019 = vrot.lane.b32.xlu0 %v1016, 64
  %v1020 = vpop.permute.xlu0 %1019
  %v1022 = vmul.f32 %v1015, %v1020
  %1024 = vrot.lane.b32.xlu0 %v1022, 32
  %v1025 = vpop.permute.xlu0 %1024
  %v1027 = vadd.f32 %v1017, %v1025
  %v1028 = vtanh.pop %v1027
  %1030 = vrot.lane.b32.xlu0 %v1028, 64
  %v1031 = vpop.permute.xlu0 %1030
  %v1033 = vmul.f32 %v1015, %v1031
  %1035 = vrot.lane.b32.xlu0 %v1009, 32
  %v1036 = vpop.permute.xlu0 %1035
  %1038 = vst.msk [vmem:[#allocation3] sm:$0xf] %vm347, %v1036
  %1040 = vrot.lane.b32.xlu0 %v1033, 64
  %v1041 = vpop.permute.xlu0 %1040
  %1043 = vst.msk [vmem:[#allocation3] sm:$0xf] %vm353, %v1041
  %1045 = vrot.lane.b32.xlu0 %v1003, 96
  %v1046 = vpop.permute.xlu0 %1045
  %1048 = vst.msk [vmem:[#allocation4] sm:$0xf] %vm347, %v1046
  %1049 = vst.msk [vmem:[#allocation4] sm:$0xf] %vm353, %v1027
  %1050 = vst.msk [vmem:[%s881] sm:$0xf] %vm347, %v1036
  %1051 = vst.msk [vmem:[%s879] sm:$0xf] %vm353, %v1041
  %v1052 = vld [vmem:[#allocation3] sm:$0xf]
  %v1053 = vld [vmem:[%s2] sm:$0xff]
  %v1054 = vld [vmem:[%s2 + $0x8] sm:$0xff]
  %v1055 = vld [vmem:[%s2 + $0x10] sm:$0xff]
  %v1056 = vld [vmem:[%s2 + $0x18] sm:$0xff]
  %v1057 = vld [vmem:[%s2 + $0x20] sm:$0xff]
  %v1058 = vld [vmem:[%s2 + $0x28] sm:$0xff]
  %v1059 = vld [vmem:[%s2 + $0x30] sm:$0xff]
  %v1060 = vld [vmem:[%s2 + $0x38] sm:$0xff]
  %v1061 = vld [vmem:[%s2 + $0x40] sm:$0xff]
  %v1062 = vld [vmem:[%s2 + $0x48] sm:$0xff]
  %v1063 = vld [vmem:[%s2 + $0x50] sm:$0xff]
  %v1064 = vld [vmem:[%s2 + $0x58] sm:$0xff]
  %v1065 = vld [vmem:[%s2 + $0x60] sm:$0xff]
  %v1066 = vld [vmem:[%s2 + $0x68] sm:$0xff]
  %v1067 = vld [vmem:[%s2 + $0x70] sm:$0xff]
  %v1068 = vld [vmem:[%s2 + $0x78] sm:$0xff]
  %v1070 = vsel %vm207, %v1052, 0
  %1072 = vmatprep.subr.mxu0 0.0
  %1073 = vmatpush1.msra.mxu0 0.0
  %1074 = vmatprep.subr.mxu0 0.0
  %1075 = vmatpush1.msra.mxu0 0.0
  %1076 = vmatprep.subr.mxu0 0.0
  %1077 = vmatpush1.msra.mxu0 0.0
  %1078 = vmatprep.subr.mxu0 0.0
  %1079 = vmatpush1.msra.mxu0 0.0
  %1080 = vmatprep.subr.mxu0 0.0
  %1081 = vmatpush1.msra.mxu0 0.0
  %1082 = vmatprep.subr.mxu0 0.0
  %1083 = vmatpush1.msra.mxu0 0.0
  %1084 = vmatprep.subr.mxu0 0.0
  %1085 = vmatpush1.msra.mxu0 0.0
  %1086 = vmatprep.subr.mxu0 0.0
  %1087 = vmatpush1.msra.mxu0 0.0
  %1088 = vmatprep.subr.mxu0 %v1068
  %1089 = vmatpush1.msra.mxu0 %v1067
  %1090 = vmatprep.subr.mxu0 %v1066
  %1091 = vmatpush1.msra.mxu0 %v1065
  %1092 = vmatprep.subr.mxu0 %v1064
  %1093 = vmatpush1.msra.mxu0 %v1063
  %1094 = vmatprep.subr.mxu0 %v1062
  %1095 = vmatpush1.msra.mxu0 %v1061
  %1096 = vmatprep.subr.mxu0 %v1060
  %1097 = vmatpush1.msra.mxu0 %v1059
  %1098 = vmatprep.subr.mxu0 %v1058
  %1099 = vmatpush1.msra.mxu0 %v1057
  %1100 = vmatprep.subr.mxu0 %v1056
  %1101 = vmatpush1.msra.mxu0 %v1055
  %1102 = vmatprep.subr.mxu0 %v1054
  %1103 = vmatpush1.msra.mxu0 %v1053
  %1104 = vmatprep.subr.mxu0 0.0
  %1105 = vmatpush2.msra.mxu0 0.0
  %1106 = vmatprep.subr.mxu0 0.0
  %1107 = vmatpush2.msra.mxu0 0.0
  %1108 = vmatprep.subr.mxu0 0.0
  %1109 = vmatpush2.msra.mxu0 0.0
  %1110 = vmatprep.subr.mxu0 0.0
  %1111 = vmatpush2.msra.mxu0 0.0
  %1112 = vmatprep.subr.mxu0 0.0
  %1113 = vmatpush2.msra.mxu0 0.0
  %1114 = vmatprep.subr.mxu0 0.0
  %1115 = vmatpush2.msra.mxu0 0.0
  %1116 = vmatprep.subr.mxu0 0.0
  %1117 = vmatpush2.msra.mxu0 0.0
  %1118 = vmatprep.subr.mxu0 0.0
  %1119 = vmatpush2.msra.mxu0 0.0
  %1120 = vmatprep.subr.mxu0 0.0
  %1121 = vmatpush2.msra.mxu0 0.0
  %1122 = vmatprep.subr.mxu0 0.0
  %1123 = vmatpush2.msra.mxu0 0.0
  %1124 = vmatprep.subr.mxu0 0.0
  %1125 = vmatpush2.msra.mxu0 0.0
  %1126 = vmatprep.subr.mxu0 0.0
  %1127 = vmatpush2.msra.mxu0 0.0
  %1128 = vmatprep.subr.mxu0 0.0
  %1129 = vmatpush2.msra.mxu0 0.0
  %1130 = vmatprep.subr.mxu0 0.0
  %1131 = vmatpush2.msra.mxu0 0.0
  %1132 = vmatprep.subr.mxu0 0.0
  %1133 = vmatpush2.msra.mxu0 0.0
  %1134 = vmatprep.subr.mxu0 0.0
  %1135 = vmatpush2.msra.mxu0 0.0
  %1136 = vmatprep.mubr.f32.mxu0 0.0
  %1137 = vmatmul.mubr.f32.gmra.mxu0 %v1070
  %v1138 = vpop.f32.mrf.mxu0
  %v1139 = vadd.f32 0.0, %v1138
  %v1140 = vpop.f32.mrf.mxu0
  %v1141 = vadd.f32 0.0, %v1140
  %1142 = vdwg.mxu0
  %v1143 = vld [vmem:[%s631] sm:$0xff]
  %v1144 = vadd.f32 %v1143, %v1139
  %v1145 = vld [vmem:[%s628] sm:$0xff]
  %v1147 = vrot.slane %v1145, 4
  %v1149 = vadd.f32 %v1147, %v1141
  %v1150 = vld [vmem:[#allocation4] sm:$0xf]
  %v1151 = vxor.u32 %v1144, 2147483648
  %v1152 = vmul.f32 %v1151, 1.442695
  %v1153 = vpow.pop %v1152
  %v1154 = vadd.f32 %v1153, 1.0
  %v1155 = vrcp.pop %v1154
  %v1156 = vmul.f32 1.0, %v1155
  %v1157 = vtanh.pop %v1144
  %1159 = vrot.lane.b32.xlu0 %v1150, 32
  %v1160 = vpop.permute.xlu0 %1159
  %v1162 = vmul.f32 %v1156, %v1160
  %1164 = vrot.lane.b32.xlu0 %v1157, 64
  %v1165 = vpop.permute.xlu0 %1164
  %v1167 = vmul.f32 %v1156, %v1165
  %1169 = vrot.lane.b32.xlu0 %v1167, 32
  %v1170 = vpop.permute.xlu0 %1169
  %v1172 = vadd.f32 %v1162, %v1170
  %v1173 = vtanh.pop %v1172
  %1175 = vrot.lane.b32.xlu0 %v1173, 64
  %v1176 = vpop.permute.xlu0 %1175
  %v1178 = vmul.f32 %v1156, %v1176
  %v1179 = vxor.u32 %v1149, 2147483648
  %v1180 = vmul.f32 %v1179, 1.442695
  %v1181 = vpow.pop %v1180
  %v1182 = vadd.f32 %v1181, 1.0
  %v1183 = vrcp.pop %v1182
  %v1184 = vmul.f32 1.0, %v1183
  %v1185 = vtanh.pop %v1149
  %v1186 = vmul.f32 %v1184, %v1150
  %1188 = vrot.lane.b32.xlu0 %v1185, 64
  %v1189 = vpop.permute.xlu0 %1188
  %v1191 = vmul.f32 %v1184, %v1189
  %1193 = vrot.lane.b32.xlu0 %v1191, 32
  %v1194 = vpop.permute.xlu0 %1193
  %v1196 = vadd.f32 %v1186, %v1194
  %v1197 = vtanh.pop %v1196
  %1199 = vrot.lane.b32.xlu0 %v1197, 64
  %v1200 = vpop.permute.xlu0 %1199
  %v1202 = vmul.f32 %v1184, %v1200
  %1204 = vrot.lane.b32.xlu0 %v1178, 32
  %v1205 = vpop.permute.xlu0 %1204
  %1207 = vst.msk [vmem:[#allocation3] sm:$0xf] %vm347, %v1205
  %1209 = vrot.lane.b32.xlu0 %v1202, 64
  %v1210 = vpop.permute.xlu0 %1209
  %1212 = vst.msk [vmem:[#allocation3] sm:$0xf] %vm353, %v1210
  %1214 = vrot.lane.b32.xlu0 %v1172, 96
  %v1215 = vpop.permute.xlu0 %1214
  %1217 = vst.msk [vmem:[#allocation4] sm:$0xf] %vm347, %v1215
  %1218 = vst.msk [vmem:[#allocation4] sm:$0xf] %vm353, %v1196
  %1219 = vst.msk [vmem:[%s708] sm:$0xf] %vm347, %v1205
  %1220 = vst.msk [vmem:[%s706] sm:$0xf] %vm353, %v1210
  %v1221 = vld [vmem:[#allocation3] sm:$0xf]
  %v1222 = vld [vmem:[%s2] sm:$0xff]
  %v1223 = vld [vmem:[%s2 + $0x8] sm:$0xff]
  %v1224 = vld [vmem:[%s2 + $0x10] sm:$0xff]
  %v1225 = vld [vmem:[%s2 + $0x18] sm:$0xff]
  %v1226 = vld [vmem:[%s2 + $0x20] sm:$0xff]
  %v1227 = vld [vmem:[%s2 + $0x28] sm:$0xff]
  %v1228 = vld [vmem:[%s2 + $0x30] sm:$0xff]
  %v1229 = vld [vmem:[%s2 + $0x38] sm:$0xff]
  %v1230 = vld [vmem:[%s2 + $0x40] sm:$0xff]
  %v1231 = vld [vmem:[%s2 + $0x48] sm:$0xff]
  %v1232 = vld [vmem:[%s2 + $0x50] sm:$0xff]
  %v1233 = vld [vmem:[%s2 + $0x58] sm:$0xff]
  %v1234 = vld [vmem:[%s2 + $0x60] sm:$0xff]
  %v1235 = vld [vmem:[%s2 + $0x68] sm:$0xff]
  %v1236 = vld [vmem:[%s2 + $0x70] sm:$0xff]
  %v1237 = vld [vmem:[%s2 + $0x78] sm:$0xff]
  %v1239 = vsel %vm207, %v1221, 0
  %1241 = vmatprep.subr.mxu0 0.0
  %1242 = vmatpush1.msra.mxu0 0.0
  %1243 = vmatprep.subr.mxu0 0.0
  %1244 = vmatpush1.msra.mxu0 0.0
  %1245 = vmatprep.subr.mxu0 0.0
  %1246 = vmatpush1.msra.mxu0 0.0
  %1247 = vmatprep.subr.mxu0 0.0
  %1248 = vmatpush1.msra.mxu0 0.0
  %1249 = vmatprep.subr.mxu0 0.0
  %1250 = vmatpush1.msra.mxu0 0.0
  %1251 = vmatprep.subr.mxu0 0.0
  %1252 = vmatpush1.msra.mxu0 0.0
  %1253 = vmatprep.subr.mxu0 0.0
  %1254 = vmatpush1.msra.mxu0 0.0
  %1255 = vmatprep.subr.mxu0 0.0
  %1256 = vmatpush1.msra.mxu0 0.0
  %1257 = vmatprep.subr.mxu0 %v1237
  %1258 = vmatpush1.msra.mxu0 %v1236
  %1259 = vmatprep.subr.mxu0 %v1235
  %1260 = vmatpush1.msra.mxu0 %v1234
  %1261 = vmatprep.subr.mxu0 %v1233
  %1262 = vmatpush1.msra.mxu0 %v1232
  %1263 = vmatprep.subr.mxu0 %v1231
  %1264 = vmatpush1.msra.mxu0 %v1230
  %1265 = vmatprep.subr.mxu0 %v1229
  %1266 = vmatpush1.msra.mxu0 %v1228
  %1267 = vmatprep.subr.mxu0 %v1227
  %1268 = vmatpush1.msra.mxu0 %v1226
  %1269 = vmatprep.subr.mxu0 %v1225
  %1270 = vmatpush1.msra.mxu0 %v1224
  %1271 = vmatprep.subr.mxu0 %v1223
  %1272 = vmatpush1.msra.mxu0 %v1222
  %1273 = vmatprep.subr.mxu0 0.0
  %1274 = vmatpush2.msra.mxu0 0.0
  %1275 = vmatprep.subr.mxu0 0.0
  %1276 = vmatpush2.msra.mxu0 0.0
  %1277 = vmatprep.subr.mxu0 0.0
  %1278 = vmatpush2.msra.mxu0 0.0
  %1279 = vmatprep.subr.mxu0 0.0
  %1280 = vmatpush2.msra.mxu0 0.0
  %1281 = vmatprep.subr.mxu0 0.0
  %1282 = vmatpush2.msra.mxu0 0.0
  %1283 = vmatprep.subr.mxu0 0.0
  %1284 = vmatpush2.msra.mxu0 0.0
  %1285 = vmatprep.subr.mxu0 0.0
  %1286 = vmatpush2.msra.mxu0 0.0
  %1287 = vmatprep.subr.mxu0 0.0
  %1288 = vmatpush2.msra.mxu0 0.0
  %1289 = vmatprep.subr.mxu0 0.0
  %1290 = vmatpush2.msra.mxu0 0.0
  %1291 = vmatprep.subr.mxu0 0.0
  %1292 = vmatpush2.msra.mxu0 0.0
  %1293 = vmatprep.subr.mxu0 0.0
  %1294 = vmatpush2.msra.mxu0 0.0
  %1295 = vmatprep.subr.mxu0 0.0
  %1296 = vmatpush2.msra.mxu0 0.0
  %1297 = vmatprep.subr.mxu0 0.0
  %1298 = vmatpush2.msra.mxu0 0.0
  %1299 = vmatprep.subr.mxu0 0.0
  %1300 = vmatpush2.msra.mxu0 0.0
  %1301 = vmatprep.subr.mxu0 0.0
  %1302 = vmatpush2.msra.mxu0 0.0
  %1303 = vmatprep.subr.mxu0 0.0
  %1304 = vmatpush2.msra.mxu0 0.0
  %1305 = vmatprep.mubr.f32.mxu0 0.0
  %1306 = vmatmul.mubr.f32.gmra.mxu0 %v1239
  %v1307 = vpop.f32.mrf.mxu0
  %v1308 = vadd.f32 0.0, %v1307
  %v1309 = vpop.f32.mrf.mxu0
  %v1310 = vadd.f32 0.0, %v1309
  %1311 = vdwg.mxu0
  %v1312 = vld [vmem:[%s458] sm:$0xff]
  %v1313 = vadd.f32 %v1312, %v1308
  %v1314 = vld [vmem:[%s455] sm:$0xff]
  %v1316 = vrot.slane %v1314, 4
  %v1318 = vadd.f32 %v1316, %v1310
  %v1319 = vld [vmem:[#allocation4] sm:$0xf]
  %v1320 = vxor.u32 %v1313, 2147483648
  %v1321 = vmul.f32 %v1320, 1.442695
  %v1322 = vpow.pop %v1321
  %v1323 = vadd.f32 %v1322, 1.0
  %v1324 = vrcp.pop %v1323
  %v1325 = vmul.f32 1.0, %v1324
  %v1326 = vtanh.pop %v1313
  %1328 = vrot.lane.b32.xlu0 %v1319, 32
  %v1329 = vpop.permute.xlu0 %1328
  %v1331 = vmul.f32 %v1325, %v1329
  %1333 = vrot.lane.b32.xlu0 %v1326, 64
  %v1334 = vpop.permute.xlu0 %1333
  %v1336 = vmul.f32 %v1325, %v1334
  %1338 = vrot.lane.b32.xlu0 %v1336, 32
  %v1339 = vpop.permute.xlu0 %1338
  %v1341 = vadd.f32 %v1331, %v1339
  %v1342 = vtanh.pop %v1341
  %1344 = vrot.lane.b32.xlu0 %v1342, 64
  %v1345 = vpop.permute.xlu0 %1344
  %v1347 = vmul.f32 %v1325, %v1345
  %v1348 = vxor.u32 %v1318, 2147483648
  %v1349 = vmul.f32 %v1348, 1.442695
  %v1350 = vpow.pop %v1349
  %v1351 = vadd.f32 %v1350, 1.0
  %v1352 = vrcp.pop %v1351
  %v1353 = vmul.f32 1.0, %v1352
  %v1354 = vtanh.pop %v1318
  %v1355 = vmul.f32 %v1353, %v1319
  %1357 = vrot.lane.b32.xlu0 %v1354, 64
  %v1358 = vpop.permute.xlu0 %1357
  %v1360 = vmul.f32 %v1353, %v1358
  %1362 = vrot.lane.b32.xlu0 %v1360, 32
  %v1363 = vpop.permute.xlu0 %1362
  %v1365 = vadd.f32 %v1355, %v1363
  %v1366 = vtanh.pop %v1365
  %1368 = vrot.lane.b32.xlu0 %v1366, 64
  %v1369 = vpop.permute.xlu0 %1368
  %v1371 = vmul.f32 %v1353, %v1369
  %1373 = vrot.lane.b32.xlu0 %v1347, 32
  %v1374 = vpop.permute.xlu0 %1373
  %1376 = vst.msk [vmem:[#allocation3] sm:$0xf] %vm347, %v1374
  %1378 = vrot.lane.b32.xlu0 %v1371, 64
  %v1379 = vpop.permute.xlu0 %1378
  %1381 = vst.msk [vmem:[#allocation3] sm:$0xf] %vm353, %v1379
  %1383 = vrot.lane.b32.xlu0 %v1341, 96
  %v1384 = vpop.permute.xlu0 %1383
  %1386 = vst.msk [vmem:[#allocation4] sm:$0xf] %vm347, %v1384
  %1387 = vst.msk [vmem:[#allocation4] sm:$0xf] %vm353, %v1365
  %1388 = vst.msk [vmem:[%s535] sm:$0xf] %vm347, %v1374
  %1389 = vst.msk [vmem:[%s533] sm:$0xf] %vm353, %v1379
  %v1390 = vld [vmem:[#allocation3] sm:$0xf]
  %v1391 = vld [vmem:[%s2] sm:$0xff]
  %v1392 = vld [vmem:[%s2 + $0x8] sm:$0xff]
  %v1393 = vld [vmem:[%s2 + $0x10] sm:$0xff]
  %v1394 = vld [vmem:[%s2 + $0x18] sm:$0xff]
  %v1395 = vld [vmem:[%s2 + $0x20] sm:$0xff]
  %v1396 = vld [vmem:[%s2 + $0x28] sm:$0xff]
  %v1397 = vld [vmem:[%s2 + $0x30] sm:$0xff]
  %v1398 = vld [vmem:[%s2 + $0x38] sm:$0xff]
  %v1399 = vld [vmem:[%s2 + $0x40] sm:$0xff]
  %v1400 = vld [vmem:[%s2 + $0x48] sm:$0xff]
  %v1401 = vld [vmem:[%s2 + $0x50] sm:$0xff]
  %v1402 = vld [vmem:[%s2 + $0x58] sm:$0xff]
  %v1403 = vld [vmem:[%s2 + $0x60] sm:$0xff]
  %v1404 = vld [vmem:[%s2 + $0x68] sm:$0xff]
  %v1405 = vld [vmem:[%s2 + $0x70] sm:$0xff]
  %v1406 = vld [vmem:[%s2 + $0x78] sm:$0xff]
  %v1408 = vsel %vm207, %v1390, 0
  %1410 = vmatprep.subr.mxu0 0.0
  %1411 = vmatpush1.msra.mxu0 0.0
  %1412 = vmatprep.subr.mxu0 0.0
  %1413 = vmatpush1.msra.mxu0 0.0
  %1414 = vmatprep.subr.mxu0 0.0
  %1415 = vmatpush1.msra.mxu0 0.0
  %1416 = vmatprep.subr.mxu0 0.0
  %1417 = vmatpush1.msra.mxu0 0.0
  %1418 = vmatprep.subr.mxu0 0.0
  %1419 = vmatpush1.msra.mxu0 0.0
  %1420 = vmatprep.subr.mxu0 0.0
  %1421 = vmatpush1.msra.mxu0 0.0
  %1422 = vmatprep.subr.mxu0 0.0
  %1423 = vmatpush1.msra.mxu0 0.0
  %1424 = vmatprep.subr.mxu0 0.0
  %1425 = vmatpush1.msra.mxu0 0.0
  %1426 = vmatprep.subr.mxu0 %v1406
  %1427 = vmatpush1.msra.mxu0 %v1405
  %1428 = vmatprep.subr.mxu0 %v1404
  %1429 = vmatpush1.msra.mxu0 %v1403
  %1430 = vmatprep.subr.mxu0 %v1402
  %1431 = vmatpush1.msra.mxu0 %v1401
  %1432 = vmatprep.subr.mxu0 %v1400
  %1433 = vmatpush1.msra.mxu0 %v1399
  %1434 = vmatprep.subr.mxu0 %v1398
  %1435 = vmatpush1.msra.mxu0 %v1397
  %1436 = vmatprep.subr.mxu0 %v1396
  %1437 = vmatpush1.msra.mxu0 %v1395
  %1438 = vmatprep.subr.mxu0 %v1394
  %1439 = vmatpush1.msra.mxu0 %v1393
  %1440 = vmatprep.subr.mxu0 %v1392
  %1441 = vmatpush1.msra.mxu0 %v1391
  %1442 = vmatprep.subr.mxu0 0.0
  %1443 = vmatpush2.msra.mxu0 0.0
  %1444 = vmatprep.subr.mxu0 0.0
  %1445 = vmatpush2.msra.mxu0 0.0
  %1446 = vmatprep.subr.mxu0 0.0
  %1447 = vmatpush2.msra.mxu0 0.0
  %1448 = vmatprep.subr.mxu0 0.0
  %1449 = vmatpush2.msra.mxu0 0.0
  %1450 = vmatprep.subr.mxu0 0.0
  %1451 = vmatpush2.msra.mxu0 0.0
  %1452 = vmatprep.subr.mxu0 0.0
  %1453 = vmatpush2.msra.mxu0 0.0
  %1454 = vmatprep.subr.mxu0 0.0
  %1455 = vmatpush2.msra.mxu0 0.0
  %1456 = vmatprep.subr.mxu0 0.0
  %1457 = vmatpush2.msra.mxu0 0.0
  %1458 = vmatprep.subr.mxu0 0.0
  %1459 = vmatpush2.msra.mxu0 0.0
  %1460 = vmatprep.subr.mxu0 0.0
  %1461 = vmatpush2.msra.mxu0 0.0
  %1462 = vmatprep.subr.mxu0 0.0
  %1463 = vmatpush2.msra.mxu0 0.0
  %1464 = vmatprep.subr.mxu0 0.0
  %1465 = vmatpush2.msra.mxu0 0.0
  %1466 = vmatprep.subr.mxu0 0.0
  %1467 = vmatpush2.msra.mxu0 0.0
  %1468 = vmatprep.subr.mxu0 0.0
  %1469 = vmatpush2.msra.mxu0 0.0
  %1470 = vmatprep.subr.mxu0 0.0
  %1471 = vmatpush2.msra.mxu0 0.0
  %1472 = vmatprep.subr.mxu0 0.0
  %1473 = vmatpush2.msra.mxu0 0.0
  %1474 = vmatprep.mubr.f32.mxu0 0.0
  %1475 = vmatmul.mubr.f32.gmra.mxu0 %v1408
  %v1476 = vpop.f32.mrf.mxu0
  %v1477 = vadd.f32 0.0, %v1476
  %v1478 = vpop.f32.mrf.mxu0
  %v1479 = vadd.f32 0.0, %v1478
  %1480 = vdwg.mxu0
  %v1481 = vld [vmem:[%s284] sm:$0xff]
  %v1482 = vadd.f32 %v1481, %v1477
  %v1483 = vld [vmem:[#allocation2] sm:$0xff]
  %v1485 = vrot.slane %v1483, 4
  %v1487 = vadd.f32 %v1485, %v1479
  %v1488 = vld [vmem:[#allocation4] sm:$0xf]
  %v1489 = vxor.u32 %v1482, 2147483648
  %v1490 = vmul.f32 %v1489, 1.442695
  %v1491 = vpow.pop %v1490
  %v1492 = vadd.f32 %v1491, 1.0
  %v1493 = vrcp.pop %v1492
  %v1494 = vmul.f32 1.0, %v1493
  %v1495 = vtanh.pop %v1482
  %1497 = vrot.lane.b32.xlu0 %v1488, 32
  %v1498 = vpop.permute.xlu0 %1497
  %v1500 = vmul.f32 %v1494, %v1498
  %1502 = vrot.lane.b32.xlu0 %v1495, 64
  %v1503 = vpop.permute.xlu0 %1502
  %v1505 = vmul.f32 %v1494, %v1503
  %1507 = vrot.lane.b32.xlu0 %v1505, 32
  %v1508 = vpop.permute.xlu0 %1507
  %v1510 = vadd.f32 %v1500, %v1508
  %v1511 = vtanh.pop %v1510
  %1513 = vrot.lane.b32.xlu0 %v1511, 64
  %v1514 = vpop.permute.xlu0 %1513
  %v1516 = vmul.f32 %v1494, %v1514
  %v1517 = vxor.u32 %v1487, 2147483648
  %v1518 = vmul.f32 %v1517, 1.442695
  %v1519 = vpow.pop %v1518
  %v1520 = vadd.f32 %v1519, 1.0
  %v1521 = vrcp.pop %v1520
  %v1522 = vmul.f32 1.0, %v1521
  %v1523 = vtanh.pop %v1487
  %v1524 = vmul.f32 %v1522, %v1488
  %1526 = vrot.lane.b32.xlu0 %v1523, 64
  %v1527 = vpop.permute.xlu0 %1526
  %v1529 = vmul.f32 %v1522, %v1527
  %1531 = vrot.lane.b32.xlu0 %v1529, 32
  %v1532 = vpop.permute.xlu0 %1531
  %v1534 = vadd.f32 %v1524, %v1532
  %v1535 = vtanh.pop %v1534
  %1537 = vrot.lane.b32.xlu0 %v1535, 64
  %v1538 = vpop.permute.xlu0 %1537
  %v1540 = vmul.f32 %v1522, %v1538
  %1542 = vrot.lane.b32.xlu0 %v1516, 32
  %v1543 = vpop.permute.xlu0 %1542
  %1545 = vst.msk [vmem:[#allocation3] sm:$0xf] %vm347, %v1543
  %1547 = vrot.lane.b32.xlu0 %v1540, 64
  %v1548 = vpop.permute.xlu0 %1547
  %1550 = vst.msk [vmem:[#allocation3] sm:$0xf] %vm353, %v1548
  %1552 = vrot.lane.b32.xlu0 %v1510, 96
  %v1553 = vpop.permute.xlu0 %1552
  %1555 = vst.msk [vmem:[#allocation4] sm:$0xf] %vm347, %v1553
  %1556 = vst.msk [vmem:[#allocation4] sm:$0xf] %vm353, %v1534
  %1557 = vst.msk [vmem:[%s362] sm:$0xf] %vm347, %v1543
  %1558 = vst.msk [vmem:[%s4] sm:$0xf] %vm353, %v1548
  // Predicated region
  $region18: #{_lambda_.4} parent=0 // pred_check
    _
  $region19: #{_lambda_.4} parent=0 // pred_check_branch
    %1560 = sbr.rel (0) target = $region21
  $region20: #{_lambda_.4} parent=0 // pred_region
    _
  $region21: #{_lambda_.4} parent=0 // pred_fallthru
    _
  // Predicated region
  $region22: #{_lambda_.4} parent=0 // pred_check
    _
  $region23: #{_lambda_.4} parent=0 // pred_check_branch
    %1562 = sbr.rel (0) target = $region25
  $region24: #{_lambda_.4} parent=0 // pred_region
    _
  $region25: #{_lambda_.4} parent=0 // pred_fallthru
    _

// kernel: _lambda_.6
$region0: #{_lambda_.6}
  #allocation0 [shape = 'u32[]', space=smem, size = 0x4, offset = 0x4, fixed_abs, tag = 'smem constant byte address 0x4 - core index']
  #allocation1 [shape = 'u32[144,128]{1,0:T(1,128)}', space=vmem, size = 0x12000, scoped, tag = 'internal scratch']
  #allocation2 [shape = 'f32[8,4,256]{2,1,0:T(4,128)}', space=vmem, size = 0x8000, scoped, tag = 'scratch operand']
  #allocation3 [shape = 'f32[4,64]{1,0:T(4,128)}', space=vmem, size = 0x800, scoped, tag = 'scratch operand']
  #allocation4 [shape = 'f32[4,64]{1,0:T(4,128)}', space=vmem, size = 0x800, scoped, tag = 'scratch operand']
  %s0 = inlined_call_operand.vmem [shape: f32[8,4,64], index: 0, kind: input, shape index: {}]
  %s1 = inlined_call_operand.vmem [shape: f32[8,4,64], index: 1, kind: input, shape index: {}]
  %s2 = inlined_call_operand.vmem [shape: f32[64,256], index: 2, kind: input, shape index: {}]
  %s3 = inlined_call_operand.vmem [shape: f32[64,256], index: 3, kind: input, shape index: {}]
  %s4 = inlined_call_operand.vmem [shape: f32[64,256], index: 4, kind: input, shape index: {}]
  %s5 = inlined_call_operand.vmem [shape: f32[64,256], index: 5, kind: input, shape index: {}]
  %s6 = inlined_call_operand.vmem [shape: f32[1,256], index: 6, kind: input, shape index: {}]
  %s7 = inlined_call_operand.vmem [shape: f32[8,4,64], index: 7, kind: output, shape index: {}]
  %s8 = sld [smem:[#allocation0]]
  $region38: #{_lambda_.6} parent=0
    _
  %s10 = ssub.s32 1, %s8
  %s11 = scalar_select 0, %s10, %s8
  // Predicated region
  $region2: #{_lambda_.6} parent=0 // pred_check
    _
  $region3: #{_lambda_.6} parent=0 // pred_check_branch
    %13 = sbr.rel (0) target = $region5
  $region4: #{_lambda_.6} parent=0 // pred_region
    _
  $region5: #{_lambda_.6} parent=0 // pred_fallthru
    _
  // Predicated region
  $region6: #{_lambda_.6} parent=0 // pred_check
    _
  $region7: #{_lambda_.6} parent=0 // pred_check_branch
    %15 = sbr.rel (0) target = $region9
  $region8: #{_lambda_.6} parent=0 // pred_region
    _
  $region9: #{_lambda_.6} parent=0 // pred_fallthru
    _
  // Predicated region
  $region10: #{_lambda_.6} parent=0 // pred_check
    _
  $region11: #{_lambda_.6} parent=0 // pred_check_branch
    %17 = sbr.rel (0) target = $region13
  $region12: #{_lambda_.6} parent=0 // pred_region
    _
  $region13: #{_lambda_.6} parent=0 // pred_fallthru
    _
  // Predicated region
  $region14: #{_lambda_.6} parent=0 // pred_check
    _
  $region15: #{_lambda_.6} parent=0 // pred_check_branch
    %19 = sbr.rel (0) target = $region17
  $region16: #{_lambda_.6} parent=0 // pred_region
    _
  $region17: #{_lambda_.6} parent=0 // pred_fallthru
    _
  // Predicated region
  $region18: #{_lambda_.6} parent=0 // pred_check
    _
  $region19: #{_lambda_.6} parent=0 // pred_check_branch
    %21 = sbr.rel (0) target = $region21
  $region20: #{_lambda_.6} parent=0 // pred_region
    _
  $region21: #{_lambda_.6} parent=0 // pred_fallthru
    _
  // Predicated region
  $region22: #{_lambda_.6} parent=0 // pred_check
    _
  $region23: #{_lambda_.6} parent=0 // pred_check_branch
    %23 = sbr.rel (0) target = $region25
  $region24: #{_lambda_.6} parent=0 // pred_region
    _
  $region25: #{_lambda_.6} parent=0 // pred_fallthru
    _
  // Predicated region
  $region26: #{_lambda_.6} parent=0 // pred_check
    _
  $region27: #{_lambda_.6} parent=0 // pred_check_branch
    %25 = sbr.rel (0) target = $region29
  $region28: #{_lambda_.6} parent=0 // pred_region
    _
  $region29: #{_lambda_.6} parent=0 // pred_fallthru
    _
  %v26 = vld [vmem:[%s0] sm:$0xf]
  %v27 = vld [vmem:[%s0 + $0x4] sm:$0xf]
  %v28 = vld [vmem:[%s0 + $0x8] sm:$0xf]
  %v29 = vld [vmem:[%s0 + $0xc] sm:$0xf]
  %v30 = vld [vmem:[%s0 + $0x10] sm:$0xf]
  %v31 = vld [vmem:[%s0 + $0x14] sm:$0xf]
  %v32 = vld [vmem:[%s0 + $0x18] sm:$0xf]
  %v33 = vld [vmem:[%s0 + $0x1c] sm:$0xf]
  %v34 = vld [vmem:[%s1] sm:$0xf]
  %v35 = vld [vmem:[%s1 + $0x4] sm:$0xf]
  %v36 = vld [vmem:[%s1 + $0x8] sm:$0xf]
  %v37 = vld [vmem:[%s1 + $0xc] sm:$0xf]
  %v38 = vld [vmem:[%s1 + $0x10] sm:$0xf]
  %v39 = vld [vmem:[%s1 + $0x14] sm:$0xf]
  %v40 = vld [vmem:[%s1 + $0x18] sm:$0xf]
  %v41 = vld [vmem:[%s1 + $0x1c] sm:$0xf]
  %v42 = vld [vmem:[%s2] sm:$0xff]
  %v43 = vld [vmem:[%s2 + $0x8] sm:$0xff]
  %v44 = vld [vmem:[%s2 + $0x10] sm:$0xff]
  %v45 = vld [vmem:[%s2 + $0x18] sm:$0xff]
  %v46 = vld [vmem:[%s2 + $0x20] sm:$0xff]
  %v47 = vld [vmem:[%s2 + $0x28] sm:$0xff]
  %v48 = vld [vmem:[%s2 + $0x30] sm:$0xff]
  %v49 = vld [vmem:[%s2 + $0x38] sm:$0xff]
  %v50 = vld [vmem:[%s2 + $0x40] sm:$0xff]
  %v51 = vld [vmem:[%s2 + $0x48] sm:$0xff]
  %v52 = vld [vmem:[%s2 + $0x50] sm:$0xff]
  %v53 = vld [vmem:[%s2 + $0x58] sm:$0xff]
  %v54 = vld [vmem:[%s2 + $0x60] sm:$0xff]
  %v55 = vld [vmem:[%s2 + $0x68] sm:$0xff]
  %v56 = vld [vmem:[%s2 + $0x70] sm:$0xff]
  %v57 = vld [vmem:[%s2 + $0x78] sm:$0xff]
  %v58 = vld [vmem:[%s3] sm:$0xff]
  %v59 = vld [vmem:[%s3 + $0x8] sm:$0xff]
  %v60 = vld [vmem:[%s3 + $0x10] sm:$0xff]
  %v61 = vld [vmem:[%s3 + $0x18] sm:$0xff]
  %v62 = vld [vmem:[%s3 + $0x20] sm:$0xff]
  %v63 = vld [vmem:[%s3 + $0x28] sm:$0xff]
  %v64 = vld [vmem:[%s3 + $0x30] sm:$0xff]
  %v65 = vld [vmem:[%s3 + $0x38] sm:$0xff]
  %v66 = vld [vmem:[%s3 + $0x40] sm:$0xff]
  %v67 = vld [vmem:[%s3 + $0x48] sm:$0xff]
  %v68 = vld [vmem:[%s3 + $0x50] sm:$0xff]
  %v69 = vld [vmem:[%s3 + $0x58] sm:$0xff]
  %v70 = vld [vmem:[%s3 + $0x60] sm:$0xff]
  %v71 = vld [vmem:[%s3 + $0x68] sm:$0xff]
  %v72 = vld [vmem:[%s3 + $0x70] sm:$0xff]
  %v73 = vld [vmem:[%s3 + $0x78] sm:$0xff]
  %v82 = vcombine.low %v34, %v35
  %v83 = vcombine.low %v36, %v37
  %v84 = vcombine.low %v38, %v39
  %v85 = vcombine.low %v40, %v41
  %vm86 = vcmask 523264
  %v87 = vsel %vm86, %v82, 0
  %v89 = vsel %vm86, %v83, 0
  %v91 = vsel %vm86, %v84, 0
  %v93 = vsel %vm86, %v85, 0
  %95 = vmatprep.subr.mxu0 0.0
  %96 = vmatpush1.msra.mxu0 0.0
  %97 = vmatprep.subr.mxu0 0.0
  %98 = vmatpush1.msra.mxu0 0.0
  %99 = vmatprep.subr.mxu0 0.0
  %100 = vmatpush1.msra.mxu0 0.0
  %101 = vmatprep.subr.mxu0 0.0
  %102 = vmatpush1.msra.mxu0 0.0
  %103 = vmatprep.subr.mxu0 0.0
  %104 = vmatpush1.msra.mxu0 0.0
  %105 = vmatprep.subr.mxu0 0.0
  %106 = vmatpush1.msra.mxu0 0.0
  %107 = vmatprep.subr.mxu0 0.0
  %108 = vmatpush1.msra.mxu0 0.0
  %109 = vmatprep.subr.mxu0 0.0
  %110 = vmatpush1.msra.mxu0 0.0
  %111 = vmatprep.subr.mxu0 %v73
  %112 = vmatpush1.msra.mxu0 %v72
  %113 = vmatprep.subr.mxu0 %v71
  %114 = vmatpush1.msra.mxu0 %v70
  %115 = vmatprep.subr.mxu0 %v69
  %116 = vmatpush1.msra.mxu0 %v68
  %117 = vmatprep.subr.mxu0 %v67
  %118 = vmatpush1.msra.mxu0 %v66
  %119 = vmatprep.subr.mxu0 %v65
  %120 = vmatpush1.msra.mxu0 %v64
  %121 = vmatprep.subr.mxu0 %v63
  %122 = vmatpush1.msra.mxu0 %v62
  %123 = vmatprep.subr.mxu0 %v61
  %124 = vmatpush1.msra.mxu0 %v60
  %125 = vmatprep.subr.mxu0 %v59
  %126 = vmatpush1.msra.mxu0 %v58
  %127 = vmatprep.subr.mxu0 0.0
  %128 = vmatpush2.msra.mxu0 0.0
  %129 = vmatprep.subr.mxu0 0.0
  %130 = vmatpush2.msra.mxu0 0.0
  %131 = vmatprep.subr.mxu0 0.0
  %132 = vmatpush2.msra.mxu0 0.0
  %133 = vmatprep.subr.mxu0 0.0
  %134 = vmatpush2.msra.mxu0 0.0
  %135 = vmatprep.subr.mxu0 0.0
  %136 = vmatpush2.msra.mxu0 0.0
  %137 = vmatprep.subr.mxu0 0.0
  %138 = vmatpush2.msra.mxu0 0.0
  %139 = vmatprep.subr.mxu0 0.0
  %140 = vmatpush2.msra.mxu0 0.0
  %141 = vmatprep.subr.mxu0 0.0
  %142 = vmatpush2.msra.mxu0 0.0
  %143 = vmatprep.subr.mxu0 0.0
  %144 = vmatpush2.msra.mxu0 0.0
  %145 = vmatprep.subr.mxu0 0.0
  %146 = vmatpush2.msra.mxu0 0.0
  %147 = vmatprep.subr.mxu0 0.0
  %148 = vmatpush2.msra.mxu0 0.0
  %149 = vmatprep.subr.mxu0 0.0
  %150 = vmatpush2.msra.mxu0 0.0
  %151 = vmatprep.subr.mxu0 0.0
  %152 = vmatpush2.msra.mxu0 0.0
  %153 = vmatprep.subr.mxu0 0.0
  %154 = vmatpush2.msra.mxu0 0.0
  %155 = vmatprep.subr.mxu0 0.0
  %156 = vmatpush2.msra.mxu0 0.0
  %157 = vmatprep.subr.mxu0 0.0
  %158 = vmatpush2.msra.mxu0 0.0
  %159 = vmatprep.mubr.f32.mxu0 0.0
  %160 = vmatmul.mubr.f32.gmra.mxu0 %v87
  %v161 = vpop.f32.mrf.mxu0
  %v162 = vadd.f32 0.0, %v161
  %v163 = vpop.f32.mrf.mxu0
  %v164 = vadd.f32 0.0, %v163
  %165 = vmatprep.mubr.f32.mxu0 0.0
  %166 = vmatmul.mubr.f32.gmra.mxu0 %v89
  %v167 = vpop.f32.mrf.mxu0
  %v168 = vadd.f32 0.0, %v167
  %v169 = vpop.f32.mrf.mxu0
  %v170 = vadd.f32 0.0, %v169
  %171 = vmatprep.mubr.f32.mxu0 0.0
  %172 = vmatmul.mubr.f32.gmra.mxu0 %v91
  %v173 = vpop.f32.mrf.mxu0
  %v174 = vadd.f32 0.0, %v173
  %v175 = vpop.f32.mrf.mxu0
  %v176 = vadd.f32 0.0, %v175
  %177 = vmatprep.mubr.f32.mxu0 0.0
  %178 = vmatmul.mubr.f32.gmra.mxu0 %v93
  %v179 = vpop.f32.mrf.mxu0
  %v180 = vadd.f32 0.0, %v179
  %v181 = vpop.f32.mrf.mxu0
  %v182 = vadd.f32 0.0, %v181
  %183 = vdwg.mxu0
  %v192 = vcombine.low %v26, %v27
  %v193 = vcombine.low %v28, %v29
  %v194 = vcombine.low %v30, %v31
  %v195 = vcombine.low %v32, %v33
  %v196 = vsel %vm86, %v192, 0
  %v198 = vsel %vm86, %v193, 0
  %v200 = vsel %vm86, %v194, 0
  %v202 = vsel %vm86, %v195, 0
  %204 = vmatprep.subr.mxu0 0.0
  %205 = vmatpush1.msra.mxu0 0.0
  %206 = vmatprep.subr.mxu0 0.0
  %207 = vmatpush1.msra.mxu0 0.0
  %208 = vmatprep.subr.mxu0 0.0
  %209 = vmatpush1.msra.mxu0 0.0
  %210 = vmatprep.subr.mxu0 0.0
  %211 = vmatpush1.msra.mxu0 0.0
  %212 = vmatprep.subr.mxu0 0.0
  %213 = vmatpush1.msra.mxu0 0.0
  %214 = vmatprep.subr.mxu0 0.0
  %215 = vmatpush1.msra.mxu0 0.0
  %216 = vmatprep.subr.mxu0 0.0
  %217 = vmatpush1.msra.mxu0 0.0
  %218 = vmatprep.subr.mxu0 0.0
  %219 = vmatpush1.msra.mxu0 0.0
  %220 = vmatprep.subr.mxu0 %v57
  %221 = vmatpush1.msra.mxu0 %v56
  %222 = vmatprep.subr.mxu0 %v55
  %223 = vmatpush1.msra.mxu0 %v54
  %224 = vmatprep.subr.mxu0 %v53
  %225 = vmatpush1.msra.mxu0 %v52
  %226 = vmatprep.subr.mxu0 %v51
  %227 = vmatpush1.msra.mxu0 %v50
  %228 = vmatprep.subr.mxu0 %v49
  %229 = vmatpush1.msra.mxu0 %v48
  %230 = vmatprep.subr.mxu0 %v47
  %231 = vmatpush1.msra.mxu0 %v46
  %232 = vmatprep.subr.mxu0 %v45
  %233 = vmatpush1.msra.mxu0 %v44
  %234 = vmatprep.subr.mxu0 %v43
  %235 = vmatpush1.msra.mxu0 %v42
  %236 = vmatprep.subr.mxu0 0.0
  %237 = vmatpush2.msra.mxu0 0.0
  %238 = vmatprep.subr.mxu0 0.0
  %239 = vmatpush2.msra.mxu0 0.0
  %240 = vmatprep.subr.mxu0 0.0
  %241 = vmatpush2.msra.mxu0 0.0
  %242 = vmatprep.subr.mxu0 0.0
  %243 = vmatpush2.msra.mxu0 0.0
  %244 = vmatprep.subr.mxu0 0.0
  %245 = vmatpush2.msra.mxu0 0.0
  %246 = vmatprep.subr.mxu0 0.0
  %247 = vmatpush2.msra.mxu0 0.0
  %248 = vmatprep.subr.mxu0 0.0
  %249 = vmatpush2.msra.mxu0 0.0
  %250 = vmatprep.subr.mxu0 0.0
  %251 = vmatpush2.msra.mxu0 0.0
  %252 = vmatprep.subr.mxu0 0.0
  %253 = vmatpush2.msra.mxu0 0.0
  %254 = vmatprep.subr.mxu0 0.0
  %255 = vmatpush2.msra.mxu0 0.0
  %256 = vmatprep.subr.mxu0 0.0
  %257 = vmatpush2.msra.mxu0 0.0
  %258 = vmatprep.subr.mxu0 0.0
  %259 = vmatpush2.msra.mxu0 0.0
  %260 = vmatprep.subr.mxu0 0.0
  %261 = vmatpush2.msra.mxu0 0.0
  %262 = vmatprep.subr.mxu0 0.0
  %263 = vmatpush2.msra.mxu0 0.0
  %264 = vmatprep.subr.mxu0 0.0
  %265 = vmatpush2.msra.mxu0 0.0
  %266 = vmatprep.subr.mxu0 0.0
  %267 = vmatpush2.msra.mxu0 0.0
  %268 = vmatprep.mubr.f32.mxu0 0.0
  %269 = vmatmul.mubr.f32.gmra.mxu0 %v196
  %v270 = vpop.f32.mrf.mxu0
  %v271 = vadd.f32 %v162, %v270
  %v272 = vpop.f32.mrf.mxu0
  %v273 = vadd.f32 %v164, %v272
  %274 = vmatprep.mubr.f32.mxu0 0.0
  %275 = vmatmul.mubr.f32.gmra.mxu0 %v198
  %v276 = vpop.f32.mrf.mxu0
  %v277 = vadd.f32 %v168, %v276
  %v278 = vpop.f32.mrf.mxu0
  %v279 = vadd.f32 %v170, %v278
  %280 = vmatprep.mubr.f32.mxu0 0.0
  %281 = vmatmul.mubr.f32.gmra.mxu0 %v200
  %v282 = vpop.f32.mrf.mxu0
  %v283 = vadd.f32 %v174, %v282
  %v284 = vpop.f32.mrf.mxu0
  %v285 = vadd.f32 %v176, %v284
  %286 = vmatprep.mubr.f32.mxu0 0.0
  %287 = vmatmul.mubr.f32.gmra.mxu0 %v202
  %v288 = vpop.f32.mrf.mxu0
  %v289 = vadd.f32 %v180, %v288
  %v290 = vpop.f32.mrf.mxu0
  %v291 = vadd.f32 %v182, %v290
  %292 = vdwg.mxu0
  %v293 = vmul.f32 %v26, %v34
  %v294 = vmul.f32 %v27, %v35
  %v295 = vmul.f32 %v28, %v36
  %v296 = vmul.f32 %v29, %v37
  %v297 = vmul.f32 %v30, %v38
  %v298 = vmul.f32 %v31, %v39
  %v299 = vmul.f32 %v32, %v40
  %v300 = vmul.f32 %v33, %v41
  %v301 = vld [vmem:[%s4] sm:$0xff]
  %v302 = vld [vmem:[%s4 + $0x8] sm:$0xff]
  %v303 = vld [vmem:[%s4 + $0x10] sm:$0xff]
  %v304 = vld [vmem:[%s4 + $0x18] sm:$0xff]
  %v305 = vld [vmem:[%s4 + $0x20] sm:$0xff]
  %v306 = vld [vmem:[%s4 + $0x28] sm:$0xff]
  %v307 = vld [vmem:[%s4 + $0x30] sm:$0xff]
  %v308 = vld [vmem:[%s4 + $0x38] sm:$0xff]
  %v309 = vld [vmem:[%s4 + $0x40] sm:$0xff]
  %v310 = vld [vmem:[%s4 + $0x48] sm:$0xff]
  %v311 = vld [vmem:[%s4 + $0x50] sm:$0xff]
  %v312 = vld [vmem:[%s4 + $0x58] sm:$0xff]
  %v313 = vld [vmem:[%s4 + $0x60] sm:$0xff]
  %v314 = vld [vmem:[%s4 + $0x68] sm:$0xff]
  %v315 = vld [vmem:[%s4 + $0x70] sm:$0xff]
  %v316 = vld [vmem:[%s4 + $0x78] sm:$0xff]
  %v325 = vcombine.low %v293, %v294
  %v326 = vcombine.low %v295, %v296
  %v327 = vcombine.low %v297, %v298
  %v328 = vcombine.low %v299, %v300
  %v329 = vsel %vm86, %v325, 0
  %v331 = vsel %vm86, %v326, 0
  %v333 = vsel %vm86, %v327, 0
  %v335 = vsel %vm86, %v328, 0
  %337 = vmatprep.subr.mxu0 0.0
  %338 = vmatpush1.msra.mxu0 0.0
  %339 = vmatprep.subr.mxu0 0.0
  %340 = vmatpush1.msra.mxu0 0.0
  %341 = vmatprep.subr.mxu0 0.0
  %342 = vmatpush1.msra.mxu0 0.0
  %343 = vmatprep.subr.mxu0 0.0
  %344 = vmatpush1.msra.mxu0 0.0
  %345 = vmatprep.subr.mxu0 0.0
  %346 = vmatpush1.msra.mxu0 0.0
  %347 = vmatprep.subr.mxu0 0.0
  %348 = vmatpush1.msra.mxu0 0.0
  %349 = vmatprep.subr.mxu0 0.0
  %350 = vmatpush1.msra.mxu0 0.0
  %351 = vmatprep.subr.mxu0 0.0
  %352 = vmatpush1.msra.mxu0 0.0
  %353 = vmatprep.subr.mxu0 %v316
  %354 = vmatpush1.msra.mxu0 %v315
  %355 = vmatprep.subr.mxu0 %v314
  %356 = vmatpush1.msra.mxu0 %v313
  %357 = vmatprep.subr.mxu0 %v312
  %358 = vmatpush1.msra.mxu0 %v311
  %359 = vmatprep.subr.mxu0 %v310
  %360 = vmatpush1.msra.mxu0 %v309
  %361 = vmatprep.subr.mxu0 %v308
  %362 = vmatpush1.msra.mxu0 %v307
  %363 = vmatprep.subr.mxu0 %v306
  %364 = vmatpush1.msra.mxu0 %v305
  %365 = vmatprep.subr.mxu0 %v304
  %366 = vmatpush1.msra.mxu0 %v303
  %367 = vmatprep.subr.mxu0 %v302
  %368 = vmatpush1.msra.mxu0 %v301
  %369 = vmatprep.subr.mxu0 0.0
  %370 = vmatpush2.msra.mxu0 0.0
  %371 = vmatprep.subr.mxu0 0.0
  %372 = vmatpush2.msra.mxu0 0.0
  %373 = vmatprep.subr.mxu0 0.0
  %374 = vmatpush2.msra.mxu0 0.0
  %375 = vmatprep.subr.mxu0 0.0
  %376 = vmatpush2.msra.mxu0 0.0
  %377 = vmatprep.subr.mxu0 0.0
  %378 = vmatpush2.msra.mxu0 0.0
  %379 = vmatprep.subr.mxu0 0.0
  %380 = vmatpush2.msra.mxu0 0.0
  %381 = vmatprep.subr.mxu0 0.0
  %382 = vmatpush2.msra.mxu0 0.0
  %383 = vmatprep.subr.mxu0 0.0
  %384 = vmatpush2.msra.mxu0 0.0
  %385 = vmatprep.subr.mxu0 0.0
  %386 = vmatpush2.msra.mxu0 0.0
  %387 = vmatprep.subr.mxu0 0.0
  %388 = vmatpush2.msra.mxu0 0.0
  %389 = vmatprep.subr.mxu0 0.0
  %390 = vmatpush2.msra.mxu0 0.0
  %391 = vmatprep.subr.mxu0 0.0
  %392 = vmatpush2.msra.mxu0 0.0
  %393 = vmatprep.subr.mxu0 0.0
  %394 = vmatpush2.msra.mxu0 0.0
  %395 = vmatprep.subr.mxu0 0.0
  %396 = vmatpush2.msra.mxu0 0.0
  %397 = vmatprep.subr.mxu0 0.0
  %398 = vmatpush2.msra.mxu0 0.0
  %399 = vmatprep.subr.mxu0 0.0
  %400 = vmatpush2.msra.mxu0 0.0
  %401 = vmatprep.mubr.f32.mxu0 0.0
  %402 = vmatmul.mubr.f32.gmra.mxu0 %v329
  %v403 = vpop.f32.mrf.mxu0
  %v404 = vadd.f32 0.0, %v403
  %v405 = vpop.f32.mrf.mxu0
  %v406 = vadd.f32 0.0, %v405
  %407 = vmatprep.mubr.f32.mxu0 0.0
  %408 = vmatmul.mubr.f32.gmra.mxu0 %v331
  %v409 = vpop.f32.mrf.mxu0
  %v410 = vadd.f32 0.0, %v409
  %v411 = vpop.f32.mrf.mxu0
  %v412 = vadd.f32 0.0, %v411
  %413 = vmatprep.mubr.f32.mxu0 0.0
  %414 = vmatmul.mubr.f32.gmra.mxu0 %v333
  %v415 = vpop.f32.mrf.mxu0
  %v416 = vadd.f32 0.0, %v415
  %v417 = vpop.f32.mrf.mxu0
  %v418 = vadd.f32 0.0, %v417
  %419 = vmatprep.mubr.f32.mxu0 0.0
  %420 = vmatmul.mubr.f32.gmra.mxu0 %v335
  %v421 = vpop.f32.mrf.mxu0
  %v422 = vadd.f32 0.0, %v421
  %v423 = vpop.f32.mrf.mxu0
  %v424 = vadd.f32 0.0, %v423
  %425 = vdwg.mxu0
  %v426 = vadd.f32 %v271, %v404
  %v427 = vadd.f32 %v273, %v406
  %v428 = vadd.f32 %v277, %v410
  %v429 = vadd.f32 %v279, %v412
  %v430 = vadd.f32 %v283, %v416
  %v431 = vadd.f32 %v285, %v418
  %v432 = vadd.f32 %v289, %v422
  %v433 = vadd.f32 %v291, %v424
  %v434 = vld [vmem:[%s6] sm:$0x3]
  %v436 = vlaneseq
  %v437 = vshrl.u32 %v436, 7
  %v438 = vsub.s32 0, %v437
  %v439 = vrot.slane %v434, %v438
  %v440 = vlaneseq
  %v441 = vshrl.u32 %v440, 7
  %v442 = vsub.s32 1, %v441
  %v443 = vrot.slane %v434, %v442
  %v446 = vadd.f32 %v426, %v439
  %v447 = vadd.f32 %v427, %v443
  %v448 = vadd.f32 %v428, %v439
  %v449 = vadd.f32 %v429, %v443
  %v450 = vadd.f32 %v430, %v439
  %v451 = vadd.f32 %v431, %v443
  %v452 = vadd.f32 %v432, %v439
  %v453 = vadd.f32 %v433, %v443
  %v462 = vcombine.low %v446, %v447
  %v463 = vcombine.high %v446, %v447
  %v464 = vcombine.low %v448, %v449
  %v465 = vcombine.high %v448, %v449
  %v466 = vcombine.low %v450, %v451
  %v467 = vcombine.high %v450, %v451
  %v468 = vcombine.low %v452, %v453
  %v469 = vcombine.high %v452, %v453
  %478 = vst [vmem:[#allocation2] sm:$0xff] %v462
  %479 = vst [vmem:[#allocation2 + $0x8] sm:$0xff] %v463
  %480 = vst [vmem:[#allocation2 + $0x10] sm:$0xff] %v464
  %481 = vst [vmem:[#allocation2 + $0x18] sm:$0xff] %v465
  %482 = vst [vmem:[#allocation2 + $0x20] sm:$0xff] %v466
  %483 = vst [vmem:[#allocation2 + $0x28] sm:$0xff] %v467
  %484 = vst [vmem:[#allocation2 + $0x30] sm:$0xff] %v468
  %485 = vst [vmem:[#allocation2 + $0x38] sm:$0xff] %v469
  %vm486 = vcmask 519168
  %487 = vst.msk [vmem:[#allocation3] sm:$0xf] %vm486, 0.0
  %488 = vst.msk [vmem:[#allocation4] sm:$0xf] %vm486, 0.0
  %v489 = vld [vmem:[#allocation3] sm:$0xf]
  %v490 = vld [vmem:[%s5] sm:$0xff]
  %v491 = vld [vmem:[%s5 + $0x8] sm:$0xff]
  %v492 = vld [vmem:[%s5 + $0x10] sm:$0xff]
  %v493 = vld [vmem:[%s5 + $0x18] sm:$0xff]
  %v494 = vld [vmem:[%s5 + $0x20] sm:$0xff]
  %v495 = vld [vmem:[%s5 + $0x28] sm:$0xff]
  %v496 = vld [vmem:[%s5 + $0x30] sm:$0xff]
  %v497 = vld [vmem:[%s5 + $0x38] sm:$0xff]
  %v498 = vld [vmem:[%s5 + $0x40] sm:$0xff]
  %v499 = vld [vmem:[%s5 + $0x48] sm:$0xff]
  %v500 = vld [vmem:[%s5 + $0x50] sm:$0xff]
  %v501 = vld [vmem:[%s5 + $0x58] sm:$0xff]
  %v502 = vld [vmem:[%s5 + $0x60] sm:$0xff]
  %v503 = vld [vmem:[%s5 + $0x68] sm:$0xff]
  %v504 = vld [vmem:[%s5 + $0x70] sm:$0xff]
  %v505 = vld [vmem:[%s5 + $0x78] sm:$0xff]
  %v507 = vsel %vm86, %v489, 0
  %509 = vmatprep.subr.mxu0 0.0
  %510 = vmatpush1.msra.mxu0 0.0
  %511 = vmatprep.subr.mxu0 0.0
  %512 = vmatpush1.msra.mxu0 0.0
  %513 = vmatprep.subr.mxu0 0.0
  %514 = vmatpush1.msra.mxu0 0.0
  %515 = vmatprep.subr.mxu0 0.0
  %516 = vmatpush1.msra.mxu0 0.0
  %517 = vmatprep.subr.mxu0 0.0
  %518 = vmatpush1.msra.mxu0 0.0
  %519 = vmatprep.subr.mxu0 0.0
  %520 = vmatpush1.msra.mxu0 0.0
  %521 = vmatprep.subr.mxu0 0.0
  %522 = vmatpush1.msra.mxu0 0.0
  %523 = vmatprep.subr.mxu0 0.0
  %524 = vmatpush1.msra.mxu0 0.0
  %525 = vmatprep.subr.mxu0 %v505
  %526 = vmatpush1.msra.mxu0 %v504
  %527 = vmatprep.subr.mxu0 %v503
  %528 = vmatpush1.msra.mxu0 %v502
  %529 = vmatprep.subr.mxu0 %v501
  %530 = vmatpush1.msra.mxu0 %v500
  %531 = vmatprep.subr.mxu0 %v499
  %532 = vmatpush1.msra.mxu0 %v498
  %533 = vmatprep.subr.mxu0 %v497
  %534 = vmatpush1.msra.mxu0 %v496
  %535 = vmatprep.subr.mxu0 %v495
  %536 = vmatpush1.msra.mxu0 %v494
  %537 = vmatprep.subr.mxu0 %v493
  %538 = vmatpush1.msra.mxu0 %v492
  %539 = vmatprep.subr.mxu0 %v491
  %540 = vmatpush1.msra.mxu0 %v490
  %541 = vmatprep.subr.mxu0 0.0
  %542 = vmatpush2.msra.mxu0 0.0
  %543 = vmatprep.subr.mxu0 0.0
  %544 = vmatpush2.msra.mxu0 0.0
  %545 = vmatprep.subr.mxu0 0.0
  %546 = vmatpush2.msra.mxu0 0.0
  %547 = vmatprep.subr.mxu0 0.0
  %548 = vmatpush2.msra.mxu0 0.0
  %549 = vmatprep.subr.mxu0 0.0
  %550 = vmatpush2.msra.mxu0 0.0
  %551 = vmatprep.subr.mxu0 0.0
  %552 = vmatpush2.msra.mxu0 0.0
  %553 = vmatprep.subr.mxu0 0.0
  %554 = vmatpush2.msra.mxu0 0.0
  %555 = vmatprep.subr.mxu0 0.0
  %556 = vmatpush2.msra.mxu0 0.0
  %557 = vmatprep.subr.mxu0 0.0
  %558 = vmatpush2.msra.mxu0 0.0
  %559 = vmatprep.subr.mxu0 0.0
  %560 = vmatpush2.msra.mxu0 0.0
  %561 = vmatprep.subr.mxu0 0.0
  %562 = vmatpush2.msra.mxu0 0.0
  %563 = vmatprep.subr.mxu0 0.0
  %564 = vmatpush2.msra.mxu0 0.0
  %565 = vmatprep.subr.mxu0 0.0
  %566 = vmatpush2.msra.mxu0 0.0
  %567 = vmatprep.subr.mxu0 0.0
  %568 = vmatpush2.msra.mxu0 0.0
  %569 = vmatprep.subr.mxu0 0.0
  %570 = vmatpush2.msra.mxu0 0.0
  %571 = vmatprep.subr.mxu0 0.0
  %572 = vmatpush2.msra.mxu0 0.0
  %573 = vmatprep.mubr.f32.mxu0 0.0
  %574 = vmatmul.mubr.f32.gmra.mxu0 %v507
  %v575 = vpop.f32.mrf.mxu0
  %v576 = vadd.f32 0.0, %v575
  %v577 = vpop.f32.mrf.mxu0
  %v578 = vadd.f32 0.0, %v577
  %579 = vdwg.mxu0
  %v580 = vld [vmem:[#allocation2] sm:$0xff]
  %v581 = vadd.f32 %v580, %v576
  %s582 = scalar_lea.vmem [#allocation2], 56
  %v583 = vld [vmem:[%s582] sm:$0xff]
  %v585 = vrot.slane %v583, 4
  %v587 = vadd.f32 %v585, %v578
  %v588 = vld [vmem:[#allocation4] sm:$0xf]
  %v589 = vxor.u32 %v581, 2147483648
  %v590 = vmul.f32 %v589, 1.442695
  %v591 = vpow.pop %v590
  %v592 = vadd.f32 %v591, 1.0
  %v593 = vrcp.pop %v592
  %v594 = vmul.f32 1.0, %v593
  %v595 = vtanh.pop %v581
  %597 = vrot.lane.b32.xlu0 %v588, 32
  %v598 = vpop.permute.xlu0 %597
  %v600 = vmul.f32 %v594, %v598
  %602 = vrot.lane.b32.xlu0 %v595, 64
  %v603 = vpop.permute.xlu0 %602
  %v605 = vmul.f32 %v594, %v603
  %607 = vrot.lane.b32.xlu0 %v605, 32
  %v608 = vpop.permute.xlu0 %607
  %v610 = vadd.f32 %v600, %v608
  %v611 = vtanh.pop %v610
  %613 = vrot.lane.b32.xlu0 %v611, 64
  %v614 = vpop.permute.xlu0 %613
  %v616 = vmul.f32 %v594, %v614
  %v617 = vxor.u32 %v587, 2147483648
  %v618 = vmul.f32 %v617, 1.442695
  %v619 = vpow.pop %v618
  %v620 = vadd.f32 %v619, 1.0
  %v621 = vrcp.pop %v620
  %v622 = vmul.f32 1.0, %v621
  %v623 = vtanh.pop %v587
  %v624 = vmul.f32 %v622, %v588
  %626 = vrot.lane.b32.xlu0 %v623, 64
  %v627 = vpop.permute.xlu0 %626
  %v629 = vmul.f32 %v622, %v627
  %631 = vrot.lane.b32.xlu0 %v629, 32
  %v632 = vpop.permute.xlu0 %631
  %v634 = vadd.f32 %v624, %v632
  %v635 = vtanh.pop %v634
  %637 = vrot.lane.b32.xlu0 %v635, 64
  %v638 = vpop.permute.xlu0 %637
  %v640 = vmul.f32 %v622, %v638
  %642 = vrot.lane.b32.xlu0 %v616, 32
  %v643 = vpop.permute.xlu0 %642
  %vm645 = vcmask 257024
  %646 = vst.msk [vmem:[#allocation3] sm:$0xf] %vm645, %v643
  %648 = vrot.lane.b32.xlu0 %v640, 64
  %v649 = vpop.permute.xlu0 %648
  %vm651 = vcmask 519424
  %652 = vst.msk [vmem:[#allocation3] sm:$0xf] %vm651, %v649
  %654 = vrot.lane.b32.xlu0 %v610, 96
  %v655 = vpop.permute.xlu0 %654
  %657 = vst.msk [vmem:[#allocation4] sm:$0xf] %vm645, %v655
  %658 = vst.msk [vmem:[#allocation4] sm:$0xf] %vm651, %v634
  %659 = vst.msk [vmem:[%s7] sm:$0xf] %vm645, %v643
  %s660 = scalar_lea.vmem %s7, 28
  %661 = vst.msk [vmem:[%s660] sm:$0xf] %vm651, %v649
  %v662 = vld [vmem:[#allocation3] sm:$0xf]
  %v663 = vld [vmem:[%s5] sm:$0xff]
  %v664 = vld [vmem:[%s5 + $0x8] sm:$0xff]
  %v665 = vld [vmem:[%s5 + $0x10] sm:$0xff]
  %v666 = vld [vmem:[%s5 + $0x18] sm:$0xff]
  %v667 = vld [vmem:[%s5 + $0x20] sm:$0xff]
  %v668 = vld [vmem:[%s5 + $0x28] sm:$0xff]
  %v669 = vld [vmem:[%s5 + $0x30] sm:$0xff]
  %v670 = vld [vmem:[%s5 + $0x38] sm:$0xff]
  %v671 = vld [vmem:[%s5 + $0x40] sm:$0xff]
  %v672 = vld [vmem:[%s5 + $0x48] sm:$0xff]
  %v673 = vld [vmem:[%s5 + $0x50] sm:$0xff]
  %v674 = vld [vmem:[%s5 + $0x58] sm:$0xff]
  %v675 = vld [vmem:[%s5 + $0x60] sm:$0xff]
  %v676 = vld [vmem:[%s5 + $0x68] sm:$0xff]
  %v677 = vld [vmem:[%s5 + $0x70] sm:$0xff]
  %v678 = vld [vmem:[%s5 + $0x78] sm:$0xff]
  %v680 = vsel %vm86, %v662, 0
  %682 = vmatprep.subr.mxu0 0.0
  %683 = vmatpush1.msra.mxu0 0.0
  %684 = vmatprep.subr.mxu0 0.0
  %685 = vmatpush1.msra.mxu0 0.0
  %686 = vmatprep.subr.mxu0 0.0
  %687 = vmatpush1.msra.mxu0 0.0
  %688 = vmatprep.subr.mxu0 0.0
  %689 = vmatpush1.msra.mxu0 0.0
  %690 = vmatprep.subr.mxu0 0.0
  %691 = vmatpush1.msra.mxu0 0.0
  %692 = vmatprep.subr.mxu0 0.0
  %693 = vmatpush1.msra.mxu0 0.0
  %694 = vmatprep.subr.mxu0 0.0
  %695 = vmatpush1.msra.mxu0 0.0
  %696 = vmatprep.subr.mxu0 0.0
  %697 = vmatpush1.msra.mxu0 0.0
  %698 = vmatprep.subr.mxu0 %v678
  %699 = vmatpush1.msra.mxu0 %v677
  %700 = vmatprep.subr.mxu0 %v676
  %701 = vmatpush1.msra.mxu0 %v675
  %702 = vmatprep.subr.mxu0 %v674
  %703 = vmatpush1.msra.mxu0 %v673
  %704 = vmatprep.subr.mxu0 %v672
  %705 = vmatpush1.msra.mxu0 %v671
  %706 = vmatprep.subr.mxu0 %v670
  %707 = vmatpush1.msra.mxu0 %v669
  %708 = vmatprep.subr.mxu0 %v668
  %709 = vmatpush1.msra.mxu0 %v667
  %710 = vmatprep.subr.mxu0 %v666
  %711 = vmatpush1.msra.mxu0 %v665
  %712 = vmatprep.subr.mxu0 %v664
  %713 = vmatpush1.msra.mxu0 %v663
  %714 = vmatprep.subr.mxu0 0.0
  %715 = vmatpush2.msra.mxu0 0.0
  %716 = vmatprep.subr.mxu0 0.0
  %717 = vmatpush2.msra.mxu0 0.0
  %718 = vmatprep.subr.mxu0 0.0
  %719 = vmatpush2.msra.mxu0 0.0
  %720 = vmatprep.subr.mxu0 0.0
  %721 = vmatpush2.msra.mxu0 0.0
  %722 = vmatprep.subr.mxu0 0.0
  %723 = vmatpush2.msra.mxu0 0.0
  %724 = vmatprep.subr.mxu0 0.0
  %725 = vmatpush2.msra.mxu0 0.0
  %726 = vmatprep.subr.mxu0 0.0
  %727 = vmatpush2.msra.mxu0 0.0
  %728 = vmatprep.subr.mxu0 0.0
  %729 = vmatpush2.msra.mxu0 0.0
  %730 = vmatprep.subr.mxu0 0.0
  %731 = vmatpush2.msra.mxu0 0.0
  %732 = vmatprep.subr.mxu0 0.0
  %733 = vmatpush2.msra.mxu0 0.0
  %734 = vmatprep.subr.mxu0 0.0
  %735 = vmatpush2.msra.mxu0 0.0
  %736 = vmatprep.subr.mxu0 0.0
  %737 = vmatpush2.msra.mxu0 0.0
  %738 = vmatprep.subr.mxu0 0.0
  %739 = vmatpush2.msra.mxu0 0.0
  %740 = vmatprep.subr.mxu0 0.0
  %741 = vmatpush2.msra.mxu0 0.0
  %742 = vmatprep.subr.mxu0 0.0
  %743 = vmatpush2.msra.mxu0 0.0
  %744 = vmatprep.subr.mxu0 0.0
  %745 = vmatpush2.msra.mxu0 0.0
  %746 = vmatprep.mubr.f32.mxu0 0.0
  %747 = vmatmul.mubr.f32.gmra.mxu0 %v680
  %v748 = vpop.f32.mrf.mxu0
  %v749 = vadd.f32 0.0, %v748
  %v750 = vpop.f32.mrf.mxu0
  %v751 = vadd.f32 0.0, %v750
  %752 = vdwg.mxu0
  %s753 = scalar_lea.vmem [#allocation2], 8
  %v754 = vld [vmem:[%s753] sm:$0xff]
  %v755 = vadd.f32 %v754, %v749
  %s756 = scalar_lea.vmem [#allocation2], 48
  %v757 = vld [vmem:[%s756] sm:$0xff]
  %v759 = vrot.slane %v757, 4
  %v761 = vadd.f32 %v759, %v751
  %v762 = vld [vmem:[#allocation4] sm:$0xf]
  %v763 = vxor.u32 %v755, 2147483648
  %v764 = vmul.f32 %v763, 1.442695
  %v765 = vpow.pop %v764
  %v766 = vadd.f32 %v765, 1.0
  %v767 = vrcp.pop %v766
  %v768 = vmul.f32 1.0, %v767
  %v769 = vtanh.pop %v755
  %771 = vrot.lane.b32.xlu0 %v762, 32
  %v772 = vpop.permute.xlu0 %771
  %v774 = vmul.f32 %v768, %v772
  %776 = vrot.lane.b32.xlu0 %v769, 64
  %v777 = vpop.permute.xlu0 %776
  %v779 = vmul.f32 %v768, %v777
  %781 = vrot.lane.b32.xlu0 %v779, 32
  %v782 = vpop.permute.xlu0 %781
  %v784 = vadd.f32 %v774, %v782
  %v785 = vtanh.pop %v784
  %787 = vrot.lane.b32.xlu0 %v785, 64
  %v788 = vpop.permute.xlu0 %787
  %v790 = vmul.f32 %v768, %v788
  %v791 = vxor.u32 %v761, 2147483648
  %v792 = vmul.f32 %v791, 1.442695
  %v793 = vpow.pop %v792
  %v794 = vadd.f32 %v793, 1.0
  %v795 = vrcp.pop %v794
  %v796 = vmul.f32 1.0, %v795
  %v797 = vtanh.pop %v761
  %v798 = vmul.f32 %v796, %v762
  %800 = vrot.lane.b32.xlu0 %v797, 64
  %v801 = vpop.permute.xlu0 %800
  %v803 = vmul.f32 %v796, %v801
  %805 = vrot.lane.b32.xlu0 %v803, 32
  %v806 = vpop.permute.xlu0 %805
  %v808 = vadd.f32 %v798, %v806
  %v809 = vtanh.pop %v808
  %811 = vrot.lane.b32.xlu0 %v809, 64
  %v812 = vpop.permute.xlu0 %811
  %v814 = vmul.f32 %v796, %v812
  %816 = vrot.lane.b32.xlu0 %v790, 32
  %v817 = vpop.permute.xlu0 %816
  %819 = vst.msk [vmem:[#allocation3] sm:$0xf] %vm645, %v817
  %821 = vrot.lane.b32.xlu0 %v814, 64
  %v822 = vpop.permute.xlu0 %821
  %824 = vst.msk [vmem:[#allocation3] sm:$0xf] %vm651, %v822
  %826 = vrot.lane.b32.xlu0 %v784, 96
  %v827 = vpop.permute.xlu0 %826
  %829 = vst.msk [vmem:[#allocation4] sm:$0xf] %vm645, %v827
  %830 = vst.msk [vmem:[#allocation4] sm:$0xf] %vm651, %v808
  %s831 = scalar_lea.vmem %s7, 4
  %832 = vst.msk [vmem:[%s831] sm:$0xf] %vm645, %v817
  %s833 = scalar_lea.vmem %s7, 24
  %834 = vst.msk [vmem:[%s833] sm:$0xf] %vm651, %v822
  %v835 = vld [vmem:[#allocation3] sm:$0xf]
  %v836 = vld [vmem:[%s5] sm:$0xff]
  %v837 = vld [vmem:[%s5 + $0x8] sm:$0xff]
  %v838 = vld [vmem:[%s5 + $0x10] sm:$0xff]
  %v839 = vld [vmem:[%s5 + $0x18] sm:$0xff]
  %v840 = vld [vmem:[%s5 + $0x20] sm:$0xff]
  %v841 = vld [vmem:[%s5 + $0x28] sm:$0xff]
  %v842 = vld [vmem:[%s5 + $0x30] sm:$0xff]
  %v843 = vld [vmem:[%s5 + $0x38] sm:$0xff]
  %v844 = vld [vmem:[%s5 + $0x40] sm:$0xff]
  %v845 = vld [vmem:[%s5 + $0x48] sm:$0xff]
  %v846 = vld [vmem:[%s5 + $0x50] sm:$0xff]
  %v847 = vld [vmem:[%s5 + $0x58] sm:$0xff]
  %v848 = vld [vmem:[%s5 + $0x60] sm:$0xff]
  %v849 = vld [vmem:[%s5 + $0x68] sm:$0xff]
  %v850 = vld [vmem:[%s5 + $0x70] sm:$0xff]
  %v851 = vld [vmem:[%s5 + $0x78] sm:$0xff]
  %v853 = vsel %vm86, %v835, 0
  %855 = vmatprep.subr.mxu0 0.0
  %856 = vmatpush1.msra.mxu0 0.0
  %857 = vmatprep.subr.mxu0 0.0
  %858 = vmatpush1.msra.mxu0 0.0
  %859 = vmatprep.subr.mxu0 0.0
  %860 = vmatpush1.msra.mxu0 0.0
  %861 = vmatprep.subr.mxu0 0.0
  %862 = vmatpush1.msra.mxu0 0.0
  %863 = vmatprep.subr.mxu0 0.0
  %864 = vmatpush1.msra.mxu0 0.0
  %865 = vmatprep.subr.mxu0 0.0
  %866 = vmatpush1.msra.mxu0 0.0
  %867 = vmatprep.subr.mxu0 0.0
  %868 = vmatpush1.msra.mxu0 0.0
  %869 = vmatprep.subr.mxu0 0.0
  %870 = vmatpush1.msra.mxu0 0.0
  %871 = vmatprep.subr.mxu0 %v851
  %872 = vmatpush1.msra.mxu0 %v850
  %873 = vmatprep.subr.mxu0 %v849
  %874 = vmatpush1.msra.mxu0 %v848
  %875 = vmatprep.subr.mxu0 %v847
  %876 = vmatpush1.msra.mxu0 %v846
  %877 = vmatprep.subr.mxu0 %v845
  %878 = vmatpush1.msra.mxu0 %v844
  %879 = vmatprep.subr.mxu0 %v843
  %880 = vmatpush1.msra.mxu0 %v842
  %881 = vmatprep.subr.mxu0 %v841
  %882 = vmatpush1.msra.mxu0 %v840
  %883 = vmatprep.subr.mxu0 %v839
  %884 = vmatpush1.msra.mxu0 %v838
  %885 = vmatprep.subr.mxu0 %v837
  %886 = vmatpush1.msra.mxu0 %v836
  %887 = vmatprep.subr.mxu0 0.0
  %888 = vmatpush2.msra.mxu0 0.0
  %889 = vmatprep.subr.mxu0 0.0
  %890 = vmatpush2.msra.mxu0 0.0
  %891 = vmatprep.subr.mxu0 0.0
  %892 = vmatpush2.msra.mxu0 0.0
  %893 = vmatprep.subr.mxu0 0.0
  %894 = vmatpush2.msra.mxu0 0.0
  %895 = vmatprep.subr.mxu0 0.0
  %896 = vmatpush2.msra.mxu0 0.0
  %897 = vmatprep.subr.mxu0 0.0
  %898 = vmatpush2.msra.mxu0 0.0
  %899 = vmatprep.subr.mxu0 0.0
  %900 = vmatpush2.msra.mxu0 0.0
  %901 = vmatprep.subr.mxu0 0.0
  %902 = vmatpush2.msra.mxu0 0.0
  %903 = vmatprep.subr.mxu0 0.0
  %904 = vmatpush2.msra.mxu0 0.0
  %905 = vmatprep.subr.mxu0 0.0
  %906 = vmatpush2.msra.mxu0 0.0
  %907 = vmatprep.subr.mxu0 0.0
  %908 = vmatpush2.msra.mxu0 0.0
  %909 = vmatprep.subr.mxu0 0.0
  %910 = vmatpush2.msra.mxu0 0.0
  %911 = vmatprep.subr.mxu0 0.0
  %912 = vmatpush2.msra.mxu0 0.0
  %913 = vmatprep.subr.mxu0 0.0
  %914 = vmatpush2.msra.mxu0 0.0
  %915 = vmatprep.subr.mxu0 0.0
  %916 = vmatpush2.msra.mxu0 0.0
  %917 = vmatprep.subr.mxu0 0.0
  %918 = vmatpush2.msra.mxu0 0.0
  %919 = vmatprep.mubr.f32.mxu0 0.0
  %920 = vmatmul.mubr.f32.gmra.mxu0 %v853
  %v921 = vpop.f32.mrf.mxu0
  %v922 = vadd.f32 0.0, %v921
  %v923 = vpop.f32.mrf.mxu0
  %v924 = vadd.f32 0.0, %v923
  %925 = vdwg.mxu0
  %s926 = scalar_lea.vmem [#allocation2], 16
  %v927 = vld [vmem:[%s926] sm:$0xff]
  %v928 = vadd.f32 %v927, %v922
  %s929 = scalar_lea.vmem [#allocation2], 40
  %v930 = vld [vmem:[%s929] sm:$0xff]
  %v932 = vrot.slane %v930, 4
  %v934 = vadd.f32 %v932, %v924
  %v935 = vld [vmem:[#allocation4] sm:$0xf]
  %v936 = vxor.u32 %v928, 2147483648
  %v937 = vmul.f32 %v936, 1.442695
  %v938 = vpow.pop %v937
  %v939 = vadd.f32 %v938, 1.0
  %v940 = vrcp.pop %v939
  %v941 = vmul.f32 1.0, %v940
  %v942 = vtanh.pop %v928
  %944 = vrot.lane.b32.xlu0 %v935, 32
  %v945 = vpop.permute.xlu0 %944
  %v947 = vmul.f32 %v941, %v945
  %949 = vrot.lane.b32.xlu0 %v942, 64
  %v950 = vpop.permute.xlu0 %949
  %v952 = vmul.f32 %v941, %v950
  %954 = vrot.lane.b32.xlu0 %v952, 32
  %v955 = vpop.permute.xlu0 %954
  %v957 = vadd.f32 %v947, %v955
  %v958 = vtanh.pop %v957
  %960 = vrot.lane.b32.xlu0 %v958, 64
  %v961 = vpop.permute.xlu0 %960
  %v963 = vmul.f32 %v941, %v961
  %v964 = vxor.u32 %v934, 2147483648
  %v965 = vmul.f32 %v964, 1.442695
  %v966 = vpow.pop %v965
  %v967 = vadd.f32 %v966, 1.0
  %v968 = vrcp.pop %v967
  %v969 = vmul.f32 1.0, %v968
  %v970 = vtanh.pop %v934
  %v971 = vmul.f32 %v969, %v935
  %973 = vrot.lane.b32.xlu0 %v970, 64
  %v974 = vpop.permute.xlu0 %973
  %v976 = vmul.f32 %v969, %v974
  %978 = vrot.lane.b32.xlu0 %v976, 32
  %v979 = vpop.permute.xlu0 %978
  %v981 = vadd.f32 %v971, %v979
  %v982 = vtanh.pop %v981
  %984 = vrot.lane.b32.xlu0 %v982, 64
  %v985 = vpop.permute.xlu0 %984
  %v987 = vmul.f32 %v969, %v985
  %989 = vrot.lane.b32.xlu0 %v963, 32
  %v990 = vpop.permute.xlu0 %989
  %992 = vst.msk [vmem:[#allocation3] sm:$0xf] %vm645, %v990
  %994 = vrot.lane.b32.xlu0 %v987, 64
  %v995 = vpop.permute.xlu0 %994
  %997 = vst.msk [vmem:[#allocation3] sm:$0xf] %vm651, %v995
  %999 = vrot.lane.b32.xlu0 %v957, 96
  %v1000 = vpop.permute.xlu0 %999
  %1002 = vst.msk [vmem:[#allocation4] sm:$0xf] %vm645, %v1000
  %1003 = vst.msk [vmem:[#allocation4] sm:$0xf] %vm651, %v981
  %s1004 = scalar_lea.vmem %s7, 8
  %1005 = vst.msk [vmem:[%s1004] sm:$0xf] %vm645, %v990
  %s1006 = scalar_lea.vmem %s7, 20
  %1007 = vst.msk [vmem:[%s1006] sm:$0xf] %vm651, %v995
  %v1008 = vld [vmem:[#allocation3] sm:$0xf]
  %v1009 = vld [vmem:[%s5] sm:$0xff]
  %v1010 = vld [vmem:[%s5 + $0x8] sm:$0xff]
  %v1011 = vld [vmem:[%s5 + $0x10] sm:$0xff]
  %v1012 = vld [vmem:[%s5 + $0x18] sm:$0xff]
  %v1013 = vld [vmem:[%s5 + $0x20] sm:$0xff]
  %v1014 = vld [vmem:[%s5 + $0x28] sm:$0xff]
  %v1015 = vld [vmem:[%s5 + $0x30] sm:$0xff]
  %v1016 = vld [vmem:[%s5 + $0x38] sm:$0xff]
  %v1017 = vld [vmem:[%s5 + $0x40] sm:$0xff]
  %v1018 = vld [vmem:[%s5 + $0x48] sm:$0xff]
  %v1019 = vld [vmem:[%s5 + $0x50] sm:$0xff]
  %v1020 = vld [vmem:[%s5 + $0x58] sm:$0xff]
  %v1021 = vld [vmem:[%s5 + $0x60] sm:$0xff]
  %v1022 = vld [vmem:[%s5 + $0x68] sm:$0xff]
  %v1023 = vld [vmem:[%s5 + $0x70] sm:$0xff]
  %v1024 = vld [vmem:[%s5 + $0x78] sm:$0xff]
  %v1026 = vsel %vm86, %v1008, 0
  %1028 = vmatprep.subr.mxu0 0.0
  %1029 = vmatpush1.msra.mxu0 0.0
  %1030 = vmatprep.subr.mxu0 0.0
  %1031 = vmatpush1.msra.mxu0 0.0
  %1032 = vmatprep.subr.mxu0 0.0
  %1033 = vmatpush1.msra.mxu0 0.0
  %1034 = vmatprep.subr.mxu0 0.0
  %1035 = vmatpush1.msra.mxu0 0.0
  %1036 = vmatprep.subr.mxu0 0.0
  %1037 = vmatpush1.msra.mxu0 0.0
  %1038 = vmatprep.subr.mxu0 0.0
  %1039 = vmatpush1.msra.mxu0 0.0
  %1040 = vmatprep.subr.mxu0 0.0
  %1041 = vmatpush1.msra.mxu0 0.0
  %1042 = vmatprep.subr.mxu0 0.0
  %1043 = vmatpush1.msra.mxu0 0.0
  %1044 = vmatprep.subr.mxu0 %v1024
  %1045 = vmatpush1.msra.mxu0 %v1023
  %1046 = vmatprep.subr.mxu0 %v1022
  %1047 = vmatpush1.msra.mxu0 %v1021
  %1048 = vmatprep.subr.mxu0 %v1020
  %1049 = vmatpush1.msra.mxu0 %v1019
  %1050 = vmatprep.subr.mxu0 %v1018
  %1051 = vmatpush1.msra.mxu0 %v1017
  %1052 = vmatprep.subr.mxu0 %v1016
  %1053 = vmatpush1.msra.mxu0 %v1015
  %1054 = vmatprep.subr.mxu0 %v1014
  %1055 = vmatpush1.msra.mxu0 %v1013
  %1056 = vmatprep.subr.mxu0 %v1012
  %1057 = vmatpush1.msra.mxu0 %v1011
  %1058 = vmatprep.subr.mxu0 %v1010
  %1059 = vmatpush1.msra.mxu0 %v1009
  %1060 = vmatprep.subr.mxu0 0.0
  %1061 = vmatpush2.msra.mxu0 0.0
  %1062 = vmatprep.subr.mxu0 0.0
  %1063 = vmatpush2.msra.mxu0 0.0
  %1064 = vmatprep.subr.mxu0 0.0
  %1065 = vmatpush2.msra.mxu0 0.0
  %1066 = vmatprep.subr.mxu0 0.0
  %1067 = vmatpush2.msra.mxu0 0.0
  %1068 = vmatprep.subr.mxu0 0.0
  %1069 = vmatpush2.msra.mxu0 0.0
  %1070 = vmatprep.subr.mxu0 0.0
  %1071 = vmatpush2.msra.mxu0 0.0
  %1072 = vmatprep.subr.mxu0 0.0
  %1073 = vmatpush2.msra.mxu0 0.0
  %1074 = vmatprep.subr.mxu0 0.0
  %1075 = vmatpush2.msra.mxu0 0.0
  %1076 = vmatprep.subr.mxu0 0.0
  %1077 = vmatpush2.msra.mxu0 0.0
  %1078 = vmatprep.subr.mxu0 0.0
  %1079 = vmatpush2.msra.mxu0 0.0
  %1080 = vmatprep.subr.mxu0 0.0
  %1081 = vmatpush2.msra.mxu0 0.0
  %1082 = vmatprep.subr.mxu0 0.0
  %1083 = vmatpush2.msra.mxu0 0.0
  %1084 = vmatprep.subr.mxu0 0.0
  %1085 = vmatpush2.msra.mxu0 0.0
  %1086 = vmatprep.subr.mxu0 0.0
  %1087 = vmatpush2.msra.mxu0 0.0
  %1088 = vmatprep.subr.mxu0 0.0
  %1089 = vmatpush2.msra.mxu0 0.0
  %1090 = vmatprep.subr.mxu0 0.0
  %1091 = vmatpush2.msra.mxu0 0.0
  %1092 = vmatprep.mubr.f32.mxu0 0.0
  %1093 = vmatmul.mubr.f32.gmra.mxu0 %v1026
  %v1094 = vpop.f32.mrf.mxu0
  %v1095 = vadd.f32 0.0, %v1094
  %v1096 = vpop.f32.mrf.mxu0
  %v1097 = vadd.f32 0.0, %v1096
  %1098 = vdwg.mxu0
  %s1099 = scalar_lea.vmem [#allocation2], 24
  %v1100 = vld [vmem:[%s1099] sm:$0xff]
  %v1101 = vadd.f32 %v1100, %v1095
  %s1102 = scalar_lea.vmem [#allocation2], 32
  %v1103 = vld [vmem:[%s1102] sm:$0xff]
  %v1105 = vrot.slane %v1103, 4
  %v1107 = vadd.f32 %v1105, %v1097
  %v1108 = vld [vmem:[#allocation4] sm:$0xf]
  %v1109 = vxor.u32 %v1101, 2147483648
  %v1110 = vmul.f32 %v1109, 1.442695
  %v1111 = vpow.pop %v1110
  %v1112 = vadd.f32 %v1111, 1.0
  %v1113 = vrcp.pop %v1112
  %v1114 = vmul.f32 1.0, %v1113
  %v1115 = vtanh.pop %v1101
  %1117 = vrot.lane.b32.xlu0 %v1108, 32
  %v1118 = vpop.permute.xlu0 %1117
  %v1120 = vmul.f32 %v1114, %v1118
  %1122 = vrot.lane.b32.xlu0 %v1115, 64
  %v1123 = vpop.permute.xlu0 %1122
  %v1125 = vmul.f32 %v1114, %v1123
  %1127 = vrot.lane.b32.xlu0 %v1125, 32
  %v1128 = vpop.permute.xlu0 %1127
  %v1130 = vadd.f32 %v1120, %v1128
  %v1131 = vtanh.pop %v1130
  %1133 = vrot.lane.b32.xlu0 %v1131, 64
  %v1134 = vpop.permute.xlu0 %1133
  %v1136 = vmul.f32 %v1114, %v1134
  %v1137 = vxor.u32 %v1107, 2147483648
  %v1138 = vmul.f32 %v1137, 1.442695
  %v1139 = vpow.pop %v1138
  %v1140 = vadd.f32 %v1139, 1.0
  %v1141 = vrcp.pop %v1140
  %v1142 = vmul.f32 1.0, %v1141
  %v1143 = vtanh.pop %v1107
  %v1144 = vmul.f32 %v1142, %v1108
  %1146 = vrot.lane.b32.xlu0 %v1143, 64
  %v1147 = vpop.permute.xlu0 %1146
  %v1149 = vmul.f32 %v1142, %v1147
  %1151 = vrot.lane.b32.xlu0 %v1149, 32
  %v1152 = vpop.permute.xlu0 %1151
  %v1154 = vadd.f32 %v1144, %v1152
  %v1155 = vtanh.pop %v1154
  %1157 = vrot.lane.b32.xlu0 %v1155, 64
  %v1158 = vpop.permute.xlu0 %1157
  %v1160 = vmul.f32 %v1142, %v1158
  %1162 = vrot.lane.b32.xlu0 %v1136, 32
  %v1163 = vpop.permute.xlu0 %1162
  %1165 = vst.msk [vmem:[#allocation3] sm:$0xf] %vm645, %v1163
  %1167 = vrot.lane.b32.xlu0 %v1160, 64
  %v1168 = vpop.permute.xlu0 %1167
  %1170 = vst.msk [vmem:[#allocation3] sm:$0xf] %vm651, %v1168
  %1172 = vrot.lane.b32.xlu0 %v1130, 96
  %v1173 = vpop.permute.xlu0 %1172
  %1175 = vst.msk [vmem:[#allocation4] sm:$0xf] %vm645, %v1173
  %1176 = vst.msk [vmem:[#allocation4] sm:$0xf] %vm651, %v1154
  %s1177 = scalar_lea.vmem %s7, 12
  %1178 = vst.msk [vmem:[%s1177] sm:$0xf] %vm645, %v1163
  %s1179 = scalar_lea.vmem %s7, 16
  %1180 = vst.msk [vmem:[%s1179] sm:$0xf] %vm651, %v1168
  %v1181 = vld [vmem:[#allocation3] sm:$0xf]
  %v1182 = vld [vmem:[%s5] sm:$0xff]
  %v1183 = vld [vmem:[%s5 + $0x8] sm:$0xff]
  %v1184 = vld [vmem:[%s5 + $0x10] sm:$0xff]
  %v1185 = vld [vmem:[%s5 + $0x18] sm:$0xff]
  %v1186 = vld [vmem:[%s5 + $0x20] sm:$0xff]
  %v1187 = vld [vmem:[%s5 + $0x28] sm:$0xff]
  %v1188 = vld [vmem:[%s5 + $0x30] sm:$0xff]
  %v1189 = vld [vmem:[%s5 + $0x38] sm:$0xff]
  %v1190 = vld [vmem:[%s5 + $0x40] sm:$0xff]
  %v1191 = vld [vmem:[%s5 + $0x48] sm:$0xff]
  %v1192 = vld [vmem:[%s5 + $0x50] sm:$0xff]
  %v1193 = vld [vmem:[%s5 + $0x58] sm:$0xff]
  %v1194 = vld [vmem:[%s5 + $0x60] sm:$0xff]
  %v1195 = vld [vmem:[%s5 + $0x68] sm:$0xff]
  %v1196 = vld [vmem:[%s5 + $0x70] sm:$0xff]
  %v1197 = vld [vmem:[%s5 + $0x78] sm:$0xff]
  %v1199 = vsel %vm86, %v1181, 0
  %1201 = vmatprep.subr.mxu0 0.0
  %1202 = vmatpush1.msra.mxu0 0.0
  %1203 = vmatprep.subr.mxu0 0.0
  %1204 = vmatpush1.msra.mxu0 0.0
  %1205 = vmatprep.subr.mxu0 0.0
  %1206 = vmatpush1.msra.mxu0 0.0
  %1207 = vmatprep.subr.mxu0 0.0
  %1208 = vmatpush1.msra.mxu0 0.0
  %1209 = vmatprep.subr.mxu0 0.0
  %1210 = vmatpush1.msra.mxu0 0.0
  %1211 = vmatprep.subr.mxu0 0.0
  %1212 = vmatpush1.msra.mxu0 0.0
  %1213 = vmatprep.subr.mxu0 0.0
  %1214 = vmatpush1.msra.mxu0 0.0
  %1215 = vmatprep.subr.mxu0 0.0
  %1216 = vmatpush1.msra.mxu0 0.0
  %1217 = vmatprep.subr.mxu0 %v1197
  %1218 = vmatpush1.msra.mxu0 %v1196
  %1219 = vmatprep.subr.mxu0 %v1195
  %1220 = vmatpush1.msra.mxu0 %v1194
  %1221 = vmatprep.subr.mxu0 %v1193
  %1222 = vmatpush1.msra.mxu0 %v1192
  %1223 = vmatprep.subr.mxu0 %v1191
  %1224 = vmatpush1.msra.mxu0 %v1190
  %1225 = vmatprep.subr.mxu0 %v1189
  %1226 = vmatpush1.msra.mxu0 %v1188
  %1227 = vmatprep.subr.mxu0 %v1187
  %1228 = vmatpush1.msra.mxu0 %v1186
  %1229 = vmatprep.subr.mxu0 %v1185
  %1230 = vmatpush1.msra.mxu0 %v1184
  %1231 = vmatprep.subr.mxu0 %v1183
  %1232 = vmatpush1.msra.mxu0 %v1182
  %1233 = vmatprep.subr.mxu0 0.0
  %1234 = vmatpush2.msra.mxu0 0.0
  %1235 = vmatprep.subr.mxu0 0.0
  %1236 = vmatpush2.msra.mxu0 0.0
  %1237 = vmatprep.subr.mxu0 0.0
  %1238 = vmatpush2.msra.mxu0 0.0
  %1239 = vmatprep.subr.mxu0 0.0
  %1240 = vmatpush2.msra.mxu0 0.0
  %1241 = vmatprep.subr.mxu0 0.0
  %1242 = vmatpush2.msra.mxu0 0.0
  %1243 = vmatprep.subr.mxu0 0.0
  %1244 = vmatpush2.msra.mxu0 0.0
  %1245 = vmatprep.subr.mxu0 0.0
  %1246 = vmatpush2.msra.mxu0 0.0
  %1247 = vmatprep.subr.mxu0 0.0
  %1248 = vmatpush2.msra.mxu0 0.0
  %1249 = vmatprep.subr.mxu0 0.0
  %1250 = vmatpush2.msra.mxu0 0.0
  %1251 = vmatprep.subr.mxu0 0.0
  %1252 = vmatpush2.msra.mxu0 0.0
  %1253 = vmatprep.subr.mxu0 0.0
  %1254 = vmatpush2.msra.mxu0 0.0
  %1255 = vmatprep.subr.mxu0 0.0
  %1256 = vmatpush2.msra.mxu0 0.0
  %1257 = vmatprep.subr.mxu0 0.0
  %1258 = vmatpush2.msra.mxu0 0.0
  %1259 = vmatprep.subr.mxu0 0.0
  %1260 = vmatpush2.msra.mxu0 0.0
  %1261 = vmatprep.subr.mxu0 0.0
  %1262 = vmatpush2.msra.mxu0 0.0
  %1263 = vmatprep.subr.mxu0 0.0
  %1264 = vmatpush2.msra.mxu0 0.0
  %1265 = vmatprep.mubr.f32.mxu0 0.0
  %1266 = vmatmul.mubr.f32.gmra.mxu0 %v1199
  %v1267 = vpop.f32.mrf.mxu0
  %v1268 = vadd.f32 0.0, %v1267
  %v1269 = vpop.f32.mrf.mxu0
  %v1270 = vadd.f32 0.0, %v1269
  %1271 = vdwg.mxu0
  %v1272 = vld [vmem:[%s1102] sm:$0xff]
  %v1273 = vadd.f32 %v1272, %v1268
  %v1274 = vld [vmem:[%s1099] sm:$0xff]
  %v1276 = vrot.slane %v1274, 4
  %v1278 = vadd.f32 %v1276, %v1270
  %v1279 = vld [vmem:[#allocation4] sm:$0xf]
  %v1280 = vxor.u32 %v1273, 2147483648
  %v1281 = vmul.f32 %v1280, 1.442695
  %v1282 = vpow.pop %v1281
  %v1283 = vadd.f32 %v1282, 1.0
  %v1284 = vrcp.pop %v1283
  %v1285 = vmul.f32 1.0, %v1284
  %v1286 = vtanh.pop %v1273
  %1288 = vrot.lane.b32.xlu0 %v1279, 32
  %v1289 = vpop.permute.xlu0 %1288
  %v1291 = vmul.f32 %v1285, %v1289
  %1293 = vrot.lane.b32.xlu0 %v1286, 64
  %v1294 = vpop.permute.xlu0 %1293
  %v1296 = vmul.f32 %v1285, %v1294
  %1298 = vrot.lane.b32.xlu0 %v1296, 32
  %v1299 = vpop.permute.xlu0 %1298
  %v1301 = vadd.f32 %v1291, %v1299
  %v1302 = vtanh.pop %v1301
  %1304 = vrot.lane.b32.xlu0 %v1302, 64
  %v1305 = vpop.permute.xlu0 %1304
  %v1307 = vmul.f32 %v1285, %v1305
  %v1308 = vxor.u32 %v1278, 2147483648
  %v1309 = vmul.f32 %v1308, 1.442695
  %v1310 = vpow.pop %v1309
  %v1311 = vadd.f32 %v1310, 1.0
  %v1312 = vrcp.pop %v1311
  %v1313 = vmul.f32 1.0, %v1312
  %v1314 = vtanh.pop %v1278
  %v1315 = vmul.f32 %v1313, %v1279
  %1317 = vrot.lane.b32.xlu0 %v1314, 64
  %v1318 = vpop.permute.xlu0 %1317
  %v1320 = vmul.f32 %v1313, %v1318
  %1322 = vrot.lane.b32.xlu0 %v1320, 32
  %v1323 = vpop.permute.xlu0 %1322
  %v1325 = vadd.f32 %v1315, %v1323
  %v1326 = vtanh.pop %v1325
  %1328 = vrot.lane.b32.xlu0 %v1326, 64
  %v1329 = vpop.permute.xlu0 %1328
  %v1331 = vmul.f32 %v1313, %v1329
  %1333 = vrot.lane.b32.xlu0 %v1307, 32
  %v1334 = vpop.permute.xlu0 %1333
  %1336 = vst.msk [vmem:[#allocation3] sm:$0xf] %vm645, %v1334
  %1338 = vrot.lane.b32.xlu0 %v1331, 64
  %v1339 = vpop.permute.xlu0 %1338
  %1341 = vst.msk [vmem:[#allocation3] sm:$0xf] %vm651, %v1339
  %1343 = vrot.lane.b32.xlu0 %v1301, 96
  %v1344 = vpop.permute.xlu0 %1343
  %1346 = vst.msk [vmem:[#allocation4] sm:$0xf] %vm645, %v1344
  %1347 = vst.msk [vmem:[#allocation4] sm:$0xf] %vm651, %v1325
  %1348 = vst.msk [vmem:[%s1179] sm:$0xf] %vm645, %v1334
  %1349 = vst.msk [vmem:[%s1177] sm:$0xf] %vm651, %v1339
  %v1350 = vld [vmem:[#allocation3] sm:$0xf]
  %v1351 = vld [vmem:[%s5] sm:$0xff]
  %v1352 = vld [vmem:[%s5 + $0x8] sm:$0xff]
  %v1353 = vld [vmem:[%s5 + $0x10] sm:$0xff]
  %v1354 = vld [vmem:[%s5 + $0x18] sm:$0xff]
  %v1355 = vld [vmem:[%s5 + $0x20] sm:$0xff]
  %v1356 = vld [vmem:[%s5 + $0x28] sm:$0xff]
  %v1357 = vld [vmem:[%s5 + $0x30] sm:$0xff]
  %v1358 = vld [vmem:[%s5 + $0x38] sm:$0xff]
  %v1359 = vld [vmem:[%s5 + $0x40] sm:$0xff]
  %v1360 = vld [vmem:[%s5 + $0x48] sm:$0xff]
  %v1361 = vld [vmem:[%s5 + $0x50] sm:$0xff]
  %v1362 = vld [vmem:[%s5 + $0x58] sm:$0xff]
  %v1363 = vld [vmem:[%s5 + $0x60] sm:$0xff]
  %v1364 = vld [vmem:[%s5 + $0x68] sm:$0xff]
  %v1365 = vld [vmem:[%s5 + $0x70] sm:$0xff]
  %v1366 = vld [vmem:[%s5 + $0x78] sm:$0xff]
  %v1368 = vsel %vm86, %v1350, 0
  %1370 = vmatprep.subr.mxu0 0.0
  %1371 = vmatpush1.msra.mxu0 0.0
  %1372 = vmatprep.subr.mxu0 0.0
  %1373 = vmatpush1.msra.mxu0 0.0
  %1374 = vmatprep.subr.mxu0 0.0
  %1375 = vmatpush1.msra.mxu0 0.0
  %1376 = vmatprep.subr.mxu0 0.0
  %1377 = vmatpush1.msra.mxu0 0.0
  %1378 = vmatprep.subr.mxu0 0.0
  %1379 = vmatpush1.msra.mxu0 0.0
  %1380 = vmatprep.subr.mxu0 0.0
  %1381 = vmatpush1.msra.mxu0 0.0
  %1382 = vmatprep.subr.mxu0 0.0
  %1383 = vmatpush1.msra.mxu0 0.0
  %1384 = vmatprep.subr.mxu0 0.0
  %1385 = vmatpush1.msra.mxu0 0.0
  %1386 = vmatprep.subr.mxu0 %v1366
  %1387 = vmatpush1.msra.mxu0 %v1365
  %1388 = vmatprep.subr.mxu0 %v1364
  %1389 = vmatpush1.msra.mxu0 %v1363
  %1390 = vmatprep.subr.mxu0 %v1362
  %1391 = vmatpush1.msra.mxu0 %v1361
  %1392 = vmatprep.subr.mxu0 %v1360
  %1393 = vmatpush1.msra.mxu0 %v1359
  %1394 = vmatprep.subr.mxu0 %v1358
  %1395 = vmatpush1.msra.mxu0 %v1357
  %1396 = vmatprep.subr.mxu0 %v1356
  %1397 = vmatpush1.msra.mxu0 %v1355
  %1398 = vmatprep.subr.mxu0 %v1354
  %1399 = vmatpush1.msra.mxu0 %v1353
  %1400 = vmatprep.subr.mxu0 %v1352
  %1401 = vmatpush1.msra.mxu0 %v1351
  %1402 = vmatprep.subr.mxu0 0.0
  %1403 = vmatpush2.msra.mxu0 0.0
  %1404 = vmatprep.subr.mxu0 0.0
  %1405 = vmatpush2.msra.mxu0 0.0
  %1406 = vmatprep.subr.mxu0 0.0
  %1407 = vmatpush2.msra.mxu0 0.0
  %1408 = vmatprep.subr.mxu0 0.0
  %1409 = vmatpush2.msra.mxu0 0.0
  %1410 = vmatprep.subr.mxu0 0.0
  %1411 = vmatpush2.msra.mxu0 0.0
  %1412 = vmatprep.subr.mxu0 0.0
  %1413 = vmatpush2.msra.mxu0 0.0
  %1414 = vmatprep.subr.mxu0 0.0
  %1415 = vmatpush2.msra.mxu0 0.0
  %1416 = vmatprep.subr.mxu0 0.0
  %1417 = vmatpush2.msra.mxu0 0.0
  %1418 = vmatprep.subr.mxu0 0.0
  %1419 = vmatpush2.msra.mxu0 0.0
  %1420 = vmatprep.subr.mxu0 0.0
  %1421 = vmatpush2.msra.mxu0 0.0
  %1422 = vmatprep.subr.mxu0 0.0
  %1423 = vmatpush2.msra.mxu0 0.0
  %1424 = vmatprep.subr.mxu0 0.0
  %1425 = vmatpush2.msra.mxu0 0.0
  %1426 = vmatprep.subr.mxu0 0.0
  %1427 = vmatpush2.msra.mxu0 0.0
  %1428 = vmatprep.subr.mxu0 0.0
  %1429 = vmatpush2.msra.mxu0 0.0
  %1430 = vmatprep.subr.mxu0 0.0
  %1431 = vmatpush2.msra.mxu0 0.0
  %1432 = vmatprep.subr.mxu0 0.0
  %1433 = vmatpush2.msra.mxu0 0.0
  %1434 = vmatprep.mubr.f32.mxu0 0.0
  %1435 = vmatmul.mubr.f32.gmra.mxu0 %v1368
  %v1436 = vpop.f32.mrf.mxu0
  %v1437 = vadd.f32 0.0, %v1436
  %v1438 = vpop.f32.mrf.mxu0
  %v1439 = vadd.f32 0.0, %v1438
  %1440 = vdwg.mxu0
  %v1441 = vld [vmem:[%s929] sm:$0xff]
  %v1442 = vadd.f32 %v1441, %v1437
  %v1443 = vld [vmem:[%s926] sm:$0xff]
  %v1445 = vrot.slane %v1443, 4
  %v1447 = vadd.f32 %v1445, %v1439
  %v1448 = vld [vmem:[#allocation4] sm:$0xf]
  %v1449 = vxor.u32 %v1442, 2147483648
  %v1450 = vmul.f32 %v1449, 1.442695
  %v1451 = vpow.pop %v1450
  %v1452 = vadd.f32 %v1451, 1.0
  %v1453 = vrcp.pop %v1452
  %v1454 = vmul.f32 1.0, %v1453
  %v1455 = vtanh.pop %v1442
  %1457 = vrot.lane.b32.xlu0 %v1448, 32
  %v1458 = vpop.permute.xlu0 %1457
  %v1460 = vmul.f32 %v1454, %v1458
  %1462 = vrot.lane.b32.xlu0 %v1455, 64
  %v1463 = vpop.permute.xlu0 %1462
  %v1465 = vmul.f32 %v1454, %v1463
  %1467 = vrot.lane.b32.xlu0 %v1465, 32
  %v1468 = vpop.permute.xlu0 %1467
  %v1470 = vadd.f32 %v1460, %v1468
  %v1471 = vtanh.pop %v1470
  %1473 = vrot.lane.b32.xlu0 %v1471, 64
  %v1474 = vpop.permute.xlu0 %1473
  %v1476 = vmul.f32 %v1454, %v1474
  %v1477 = vxor.u32 %v1447, 2147483648
  %v1478 = vmul.f32 %v1477, 1.442695
  %v1479 = vpow.pop %v1478
  %v1480 = vadd.f32 %v1479, 1.0
  %v1481 = vrcp.pop %v1480
  %v1482 = vmul.f32 1.0, %v1481
  %v1483 = vtanh.pop %v1447
  %v1484 = vmul.f32 %v1482, %v1448
  %1486 = vrot.lane.b32.xlu0 %v1483, 64
  %v1487 = vpop.permute.xlu0 %1486
  %v1489 = vmul.f32 %v1482, %v1487
  %1491 = vrot.lane.b32.xlu0 %v1489, 32
  %v1492 = vpop.permute.xlu0 %1491
  %v1494 = vadd.f32 %v1484, %v1492
  %v1495 = vtanh.pop %v1494
  %1497 = vrot.lane.b32.xlu0 %v1495, 64
  %v1498 = vpop.permute.xlu0 %1497
  %v1500 = vmul.f32 %v1482, %v1498
  %1502 = vrot.lane.b32.xlu0 %v1476, 32
  %v1503 = vpop.permute.xlu0 %1502
  %1505 = vst.msk [vmem:[#allocation3] sm:$0xf] %vm645, %v1503
  %1507 = vrot.lane.b32.xlu0 %v1500, 64
  %v1508 = vpop.permute.xlu0 %1507
  %1510 = vst.msk [vmem:[#allocation3] sm:$0xf] %vm651, %v1508
  %1512 = vrot.lane.b32.xlu0 %v1470, 96
  %v1513 = vpop.permute.xlu0 %1512
  %1515 = vst.msk [vmem:[#allocation4] sm:$0xf] %vm645, %v1513
  %1516 = vst.msk [vmem:[#allocation4] sm:$0xf] %vm651, %v1494
  %1517 = vst.msk [vmem:[%s1006] sm:$0xf] %vm645, %v1503
  %1518 = vst.msk [vmem:[%s1004] sm:$0xf] %vm651, %v1508
  %v1519 = vld [vmem:[#allocation3] sm:$0xf]
  %v1520 = vld [vmem:[%s5] sm:$0xff]
  %v1521 = vld [vmem:[%s5 + $0x8] sm:$0xff]
  %v1522 = vld [vmem:[%s5 + $0x10] sm:$0xff]
  %v1523 = vld [vmem:[%s5 + $0x18] sm:$0xff]
  %v1524 = vld [vmem:[%s5 + $0x20] sm:$0xff]
  %v1525 = vld [vmem:[%s5 + $0x28] sm:$0xff]
  %v1526 = vld [vmem:[%s5 + $0x30] sm:$0xff]
  %v1527 = vld [vmem:[%s5 + $0x38] sm:$0xff]
  %v1528 = vld [vmem:[%s5 + $0x40] sm:$0xff]
  %v1529 = vld [vmem:[%s5 + $0x48] sm:$0xff]
  %v1530 = vld [vmem:[%s5 + $0x50] sm:$0xff]
  %v1531 = vld [vmem:[%s5 + $0x58] sm:$0xff]
  %v1532 = vld [vmem:[%s5 + $0x60] sm:$0xff]
  %v1533 = vld [vmem:[%s5 + $0x68] sm:$0xff]
  %v1534 = vld [vmem:[%s5 + $0x70] sm:$0xff]
  %v1535 = vld [vmem:[%s5 + $0x78] sm:$0xff]
  %v1537 = vsel %vm86, %v1519, 0
  %1539 = vmatprep.subr.mxu0 0.0
  %1540 = vmatpush1.msra.mxu0 0.0
  %1541 = vmatprep.subr.mxu0 0.0
  %1542 = vmatpush1.msra.mxu0 0.0
  %1543 = vmatprep.subr.mxu0 0.0
  %1544 = vmatpush1.msra.mxu0 0.0
  %1545 = vmatprep.subr.mxu0 0.0
  %1546 = vmatpush1.msra.mxu0 0.0
  %1547 = vmatprep.subr.mxu0 0.0
  %1548 = vmatpush1.msra.mxu0 0.0
  %1549 = vmatprep.subr.mxu0 0.0
  %1550 = vmatpush1.msra.mxu0 0.0
  %1551 = vmatprep.subr.mxu0 0.0
  %1552 = vmatpush1.msra.mxu0 0.0
  %1553 = vmatprep.subr.mxu0 0.0
  %1554 = vmatpush1.msra.mxu0 0.0
  %1555 = vmatprep.subr.mxu0 %v1535
  %1556 = vmatpush1.msra.mxu0 %v1534
  %1557 = vmatprep.subr.mxu0 %v1533
  %1558 = vmatpush1.msra.mxu0 %v1532
  %1559 = vmatprep.subr.mxu0 %v1531
  %1560 = vmatpush1.msra.mxu0 %v1530
  %1561 = vmatprep.subr.mxu0 %v1529
  %1562 = vmatpush1.msra.mxu0 %v1528
  %1563 = vmatprep.subr.mxu0 %v1527
  %1564 = vmatpush1.msra.mxu0 %v1526
  %1565 = vmatprep.subr.mxu0 %v1525
  %1566 = vmatpush1.msra.mxu0 %v1524
  %1567 = vmatprep.subr.mxu0 %v1523
  %1568 = vmatpush1.msra.mxu0 %v1522
  %1569 = vmatprep.subr.mxu0 %v1521
  %1570 = vmatpush1.msra.mxu0 %v1520
  %1571 = vmatprep.subr.mxu0 0.0
  %1572 = vmatpush2.msra.mxu0 0.0
  %1573 = vmatprep.subr.mxu0 0.0
  %1574 = vmatpush2.msra.mxu0 0.0
  %1575 = vmatprep.subr.mxu0 0.0
  %1576 = vmatpush2.msra.mxu0 0.0
  %1577 = vmatprep.subr.mxu0 0.0
  %1578 = vmatpush2.msra.mxu0 0.0
  %1579 = vmatprep.subr.mxu0 0.0
  %1580 = vmatpush2.msra.mxu0 0.0
  %1581 = vmatprep.subr.mxu0 0.0
  %1582 = vmatpush2.msra.mxu0 0.0
  %1583 = vmatprep.subr.mxu0 0.0
  %1584 = vmatpush2.msra.mxu0 0.0
  %1585 = vmatprep.subr.mxu0 0.0
  %1586 = vmatpush2.msra.mxu0 0.0
  %1587 = vmatprep.subr.mxu0 0.0
  %1588 = vmatpush2.msra.mxu0 0.0
  %1589 = vmatprep.subr.mxu0 0.0
  %1590 = vmatpush2.msra.mxu0 0.0
  %1591 = vmatprep.subr.mxu0 0.0
  %1592 = vmatpush2.msra.mxu0 0.0
  %1593 = vmatprep.subr.mxu0 0.0
  %1594 = vmatpush2.msra.mxu0 0.0
  %1595 = vmatprep.subr.mxu0 0.0
  %1596 = vmatpush2.msra.mxu0 0.0
  %1597 = vmatprep.subr.mxu0 0.0
  %1598 = vmatpush2.msra.mxu0 0.0
  %1599 = vmatprep.subr.mxu0 0.0
  %1600 = vmatpush2.msra.mxu0 0.0
  %1601 = vmatprep.subr.mxu0 0.0
  %1602 = vmatpush2.msra.mxu0 0.0
  %1603 = vmatprep.mubr.f32.mxu0 0.0
  %1604 = vmatmul.mubr.f32.gmra.mxu0 %v1537
  %v1605 = vpop.f32.mrf.mxu0
  %v1606 = vadd.f32 0.0, %v1605
  %v1607 = vpop.f32.mrf.mxu0
  %v1608 = vadd.f32 0.0, %v1607
  %1609 = vdwg.mxu0
  %v1610 = vld [vmem:[%s756] sm:$0xff]
  %v1611 = vadd.f32 %v1610, %v1606
  %v1612 = vld [vmem:[%s753] sm:$0xff]
  %v1614 = vrot.slane %v1612, 4
  %v1616 = vadd.f32 %v1614, %v1608
  %v1617 = vld [vmem:[#allocation4] sm:$0xf]
  %v1618 = vxor.u32 %v1611, 2147483648
  %v1619 = vmul.f32 %v1618, 1.442695
  %v1620 = vpow.pop %v1619
  %v1621 = vadd.f32 %v1620, 1.0
  %v1622 = vrcp.pop %v1621
  %v1623 = vmul.f32 1.0, %v1622
  %v1624 = vtanh.pop %v1611
  %1626 = vrot.lane.b32.xlu0 %v1617, 32
  %v1627 = vpop.permute.xlu0 %1626
  %v1629 = vmul.f32 %v1623, %v1627
  %1631 = vrot.lane.b32.xlu0 %v1624, 64
  %v1632 = vpop.permute.xlu0 %1631
  %v1634 = vmul.f32 %v1623, %v1632
  %1636 = vrot.lane.b32.xlu0 %v1634, 32
  %v1637 = vpop.permute.xlu0 %1636
  %v1639 = vadd.f32 %v1629, %v1637
  %v1640 = vtanh.pop %v1639
  %1642 = vrot.lane.b32.xlu0 %v1640, 64
  %v1643 = vpop.permute.xlu0 %1642
  %v1645 = vmul.f32 %v1623, %v1643
  %v1646 = vxor.u32 %v1616, 2147483648
  %v1647 = vmul.f32 %v1646, 1.442695
  %v1648 = vpow.pop %v1647
  %v1649 = vadd.f32 %v1648, 1.0
  %v1650 = vrcp.pop %v1649
  %v1651 = vmul.f32 1.0, %v1650
  %v1652 = vtanh.pop %v1616
  %v1653 = vmul.f32 %v1651, %v1617
  %1655 = vrot.lane.b32.xlu0 %v1652, 64
  %v1656 = vpop.permute.xlu0 %1655
  %v1658 = vmul.f32 %v1651, %v1656
  %1660 = vrot.lane.b32.xlu0 %v1658, 32
  %v1661 = vpop.permute.xlu0 %1660
  %v1663 = vadd.f32 %v1653, %v1661
  %v1664 = vtanh.pop %v1663
  %1666 = vrot.lane.b32.xlu0 %v1664, 64
  %v1667 = vpop.permute.xlu0 %1666
  %v1669 = vmul.f32 %v1651, %v1667
  %1671 = vrot.lane.b32.xlu0 %v1645, 32
  %v1672 = vpop.permute.xlu0 %1671
  %1674 = vst.msk [vmem:[#allocation3] sm:$0xf] %vm645, %v1672
  %1676 = vrot.lane.b32.xlu0 %v1669, 64
  %v1677 = vpop.permute.xlu0 %1676
  %1679 = vst.msk [vmem:[#allocation3] sm:$0xf] %vm651, %v1677
  %1681 = vrot.lane.b32.xlu0 %v1639, 96
  %v1682 = vpop.permute.xlu0 %1681
  %1684 = vst.msk [vmem:[#allocation4] sm:$0xf] %vm645, %v1682
  %1685 = vst.msk [vmem:[#allocation4] sm:$0xf] %vm651, %v1663
  %1686 = vst.msk [vmem:[%s833] sm:$0xf] %vm645, %v1672
  %1687 = vst.msk [vmem:[%s831] sm:$0xf] %vm651, %v1677
  %v1688 = vld [vmem:[#allocation3] sm:$0xf]
  %v1689 = vld [vmem:[%s5] sm:$0xff]
  %v1690 = vld [vmem:[%s5 + $0x8] sm:$0xff]
  %v1691 = vld [vmem:[%s5 + $0x10] sm:$0xff]
  %v1692 = vld [vmem:[%s5 + $0x18] sm:$0xff]
  %v1693 = vld [vmem:[%s5 + $0x20] sm:$0xff]
  %v1694 = vld [vmem:[%s5 + $0x28] sm:$0xff]
  %v1695 = vld [vmem:[%s5 + $0x30] sm:$0xff]
  %v1696 = vld [vmem:[%s5 + $0x38] sm:$0xff]
  %v1697 = vld [vmem:[%s5 + $0x40] sm:$0xff]
  %v1698 = vld [vmem:[%s5 + $0x48] sm:$0xff]
  %v1699 = vld [vmem:[%s5 + $0x50] sm:$0xff]
  %v1700 = vld [vmem:[%s5 + $0x58] sm:$0xff]
  %v1701 = vld [vmem:[%s5 + $0x60] sm:$0xff]
  %v1702 = vld [vmem:[%s5 + $0x68] sm:$0xff]
  %v1703 = vld [vmem:[%s5 + $0x70] sm:$0xff]
  %v1704 = vld [vmem:[%s5 + $0x78] sm:$0xff]
  %v1706 = vsel %vm86, %v1688, 0
  %1708 = vmatprep.subr.mxu0 0.0
  %1709 = vmatpush1.msra.mxu0 0.0
  %1710 = vmatprep.subr.mxu0 0.0
  %1711 = vmatpush1.msra.mxu0 0.0
  %1712 = vmatprep.subr.mxu0 0.0
  %1713 = vmatpush1.msra.mxu0 0.0
  %1714 = vmatprep.subr.mxu0 0.0
  %1715 = vmatpush1.msra.mxu0 0.0
  %1716 = vmatprep.subr.mxu0 0.0
  %1717 = vmatpush1.msra.mxu0 0.0
  %1718 = vmatprep.subr.mxu0 0.0
  %1719 = vmatpush1.msra.mxu0 0.0
  %1720 = vmatprep.subr.mxu0 0.0
  %1721 = vmatpush1.msra.mxu0 0.0
  %1722 = vmatprep.subr.mxu0 0.0
  %1723 = vmatpush1.msra.mxu0 0.0
  %1724 = vmatprep.subr.mxu0 %v1704
  %1725 = vmatpush1.msra.mxu0 %v1703
  %1726 = vmatprep.subr.mxu0 %v1702
  %1727 = vmatpush1.msra.mxu0 %v1701
  %1728 = vmatprep.subr.mxu0 %v1700
  %1729 = vmatpush1.msra.mxu0 %v1699
  %1730 = vmatprep.subr.mxu0 %v1698
  %1731 = vmatpush1.msra.mxu0 %v1697
  %1732 = vmatprep.subr.mxu0 %v1696
  %1733 = vmatpush1.msra.mxu0 %v1695
  %1734 = vmatprep.subr.mxu0 %v1694
  %1735 = vmatpush1.msra.mxu0 %v1693
  %1736 = vmatprep.subr.mxu0 %v1692
  %1737 = vmatpush1.msra.mxu0 %v1691
  %1738 = vmatprep.subr.mxu0 %v1690
  %1739 = vmatpush1.msra.mxu0 %v1689
  %1740 = vmatprep.subr.mxu0 0.0
  %1741 = vmatpush2.msra.mxu0 0.0
  %1742 = vmatprep.subr.mxu0 0.0
  %1743 = vmatpush2.msra.mxu0 0.0
  %1744 = vmatprep.subr.mxu0 0.0
  %1745 = vmatpush2.msra.mxu0 0.0
  %1746 = vmatprep.subr.mxu0 0.0
  %1747 = vmatpush2.msra.mxu0 0.0
  %1748 = vmatprep.subr.mxu0 0.0
  %1749 = vmatpush2.msra.mxu0 0.0
  %1750 = vmatprep.subr.mxu0 0.0
  %1751 = vmatpush2.msra.mxu0 0.0
  %1752 = vmatprep.subr.mxu0 0.0
  %1753 = vmatpush2.msra.mxu0 0.0
  %1754 = vmatprep.subr.mxu0 0.0
  %1755 = vmatpush2.msra.mxu0 0.0
  %1756 = vmatprep.subr.mxu0 0.0
  %1757 = vmatpush2.msra.mxu0 0.0
  %1758 = vmatprep.subr.mxu0 0.0
  %1759 = vmatpush2.msra.mxu0 0.0
  %1760 = vmatprep.subr.mxu0 0.0
  %1761 = vmatpush2.msra.mxu0 0.0
  %1762 = vmatprep.subr.mxu0 0.0
  %1763 = vmatpush2.msra.mxu0 0.0
  %1764 = vmatprep.subr.mxu0 0.0
  %1765 = vmatpush2.msra.mxu0 0.0
  %1766 = vmatprep.subr.mxu0 0.0
  %1767 = vmatpush2.msra.mxu0 0.0
  %1768 = vmatprep.subr.mxu0 0.0
  %1769 = vmatpush2.msra.mxu0 0.0
  %1770 = vmatprep.subr.mxu0 0.0
  %1771 = vmatpush2.msra.mxu0 0.0
  %1772 = vmatprep.mubr.f32.mxu0 0.0
  %1773 = vmatmul.mubr.f32.gmra.mxu0 %v1706
  %v1774 = vpop.f32.mrf.mxu0
  %v1775 = vadd.f32 0.0, %v1774
  %v1776 = vpop.f32.mrf.mxu0
  %v1777 = vadd.f32 0.0, %v1776
  %1778 = vdwg.mxu0
  %v1779 = vld [vmem:[%s582] sm:$0xff]
  %v1780 = vadd.f32 %v1779, %v1775
  %v1781 = vld [vmem:[#allocation2] sm:$0xff]
  %v1783 = vrot.slane %v1781, 4
  %v1785 = vadd.f32 %v1783, %v1777
  %v1786 = vld [vmem:[#allocation4] sm:$0xf]
  %v1787 = vxor.u32 %v1780, 2147483648
  %v1788 = vmul.f32 %v1787, 1.442695
  %v1789 = vpow.pop %v1788
  %v1790 = vadd.f32 %v1789, 1.0
  %v1791 = vrcp.pop %v1790
  %v1792 = vmul.f32 1.0, %v1791
  %v1793 = vtanh.pop %v1780
  %1795 = vrot.lane.b32.xlu0 %v1786, 32
  %v1796 = vpop.permute.xlu0 %1795
  %v1798 = vmul.f32 %v1792, %v1796
  %1800 = vrot.lane.b32.xlu0 %v1793, 64
  %v1801 = vpop.permute.xlu0 %1800
  %v1803 = vmul.f32 %v1792, %v1801
  %1805 = vrot.lane.b32.xlu0 %v1803, 32
  %v1806 = vpop.permute.xlu0 %1805
  %v1808 = vadd.f32 %v1798, %v1806
  %v1809 = vtanh.pop %v1808
  %1811 = vrot.lane.b32.xlu0 %v1809, 64
  %v1812 = vpop.permute.xlu0 %1811
  %v1814 = vmul.f32 %v1792, %v1812
  %v1815 = vxor.u32 %v1785, 2147483648
  %v1816 = vmul.f32 %v1815, 1.442695
  %v1817 = vpow.pop %v1816
  %v1818 = vadd.f32 %v1817, 1.0
  %v1819 = vrcp.pop %v1818
  %v1820 = vmul.f32 1.0, %v1819
  %v1821 = vtanh.pop %v1785
  %v1822 = vmul.f32 %v1820, %v1786
  %1824 = vrot.lane.b32.xlu0 %v1821, 64
  %v1825 = vpop.permute.xlu0 %1824
  %v1827 = vmul.f32 %v1820, %v1825
  %1829 = vrot.lane.b32.xlu0 %v1827, 32
  %v1830 = vpop.permute.xlu0 %1829
  %v1832 = vadd.f32 %v1822, %v1830
  %v1833 = vtanh.pop %v1832
  %1835 = vrot.lane.b32.xlu0 %v1833, 64
  %v1836 = vpop.permute.xlu0 %1835
  %v1838 = vmul.f32 %v1820, %v1836
  %1840 = vrot.lane.b32.xlu0 %v1814, 32
  %v1841 = vpop.permute.xlu0 %1840
  %1843 = vst.msk [vmem:[#allocation3] sm:$0xf] %vm645, %v1841
  %1845 = vrot.lane.b32.xlu0 %v1838, 64
  %v1846 = vpop.permute.xlu0 %1845
  %1848 = vst.msk [vmem:[#allocation3] sm:$0xf] %vm651, %v1846
  %1850 = vrot.lane.b32.xlu0 %v1808, 96
  %v1851 = vpop.permute.xlu0 %1850
  %1853 = vst.msk [vmem:[#allocation4] sm:$0xf] %vm645, %v1851
  %1854 = vst.msk [vmem:[#allocation4] sm:$0xf] %vm651, %v1832
  %1855 = vst.msk [vmem:[%s660] sm:$0xf] %vm645, %v1841
  %1856 = vst.msk [vmem:[%s7] sm:$0xf] %vm651, %v1846
  // Predicated region
  $region30: #{_lambda_.6} parent=0 // pred_check
    _
  $region31: #{_lambda_.6} parent=0 // pred_check_branch
    %1858 = sbr.rel (0) target = $region33
  $region32: #{_lambda_.6} parent=0 // pred_region
    _
  $region33: #{_lambda_.6} parent=0 // pred_fallthru
    _
  // Predicated region
  $region34: #{_lambda_.6} parent=0 // pred_check
    _
  $region35: #{_lambda_.6} parent=0 // pred_check_branch
    %1860 = sbr.rel (0) target = $region37
  $region36: #{_lambda_.6} parent=0 // pred_region
    _
  $region37: #{_lambda_.6} parent=0 // pred_fallthru
    _

</llo_original>
